<compile_context>
chip_gen: v7x
topology: tpu7x:2x2x1
jax: 0.10.0
libtpu: 0.0.40
codegen_flags: <defaults>
</compile_context>

<pallas_src>
import math
import functools

import jax
import jax.numpy as jnp
from jax.experimental import pallas as pl
from jax.experimental.pallas import tpu as pltpu


# ----------------------------- VMEM budgeting ---------------------------------

def _vmem_limit_bytes():
    cap = 64 * 1024 * 1024  # conservative fallback (v7x per-core VMEM)
    try:
        cap = int(pltpu.get_tpu_info().vmem_capacity_bytes)
    except Exception:
        pass
    return max(16 * 1024 * 1024, min(int(cap * 0.7), 100 * 1024 * 1024))


_VMEM_LIMIT = _vmem_limit_bytes()


def _divisor_candidates(n, cands):
    """Descending list of tile sizes that evenly divide n (full extent incl.)."""
    return sorted({t for t in cands if t <= n and n % t == 0} | {n}, reverse=True)


def _choose_tiles(m, m_cands, n, n_cands, est_bytes, budget):
    """Largest (tm, tn) (shrinking tn first) whose VMEM estimate fits budget."""
    m_opts = _divisor_candidates(m, m_cands)
    n_opts = _divisor_candidates(n, n_cands)
    for tm in m_opts:
        for tn in n_opts:
            if est_bytes(tm, tn) <= budget:
                return tm, tn
    return m_opts[-1], n_opts[-1]


# ------------------------------- math helpers ---------------------------------

def _erf(x):
    # Abramowitz & Stegun 7.1.26 rational approximation, |error| < 1.5e-7.
    a1, a2, a3, a4, a5 = 0.254829592, -0.284496736, 1.421413741, -1.453152027, 1.061405429
    p = 0.3275911
    sgn = jnp.where(x >= 0.0, 1.0, -1.0)
    ax = jnp.abs(x)
    t = 1.0 / (1.0 + p * ax)
    poly = ((((a5 * t + a4) * t + a3) * t + a2) * t + a1) * t
    return sgn * (1.0 - poly * jnp.exp(-ax * ax))


def _gelu_exact(x):
    return 0.5 * x * (1.0 + _erf(x * (1.0 / math.sqrt(2.0))))


def _layernorm(x, gamma, beta, eps=1e-5):
    mu = jnp.mean(x, axis=-1, keepdims=True)
    var = jnp.mean((x - mu) ** 2, axis=-1, keepdims=True)
    return (x - mu) * jax.lax.rsqrt(var + eps) * gamma + beta


# ---------------------- kernel 1: LN1 + QKV projection ------------------------

def _ln_qkv_kernel(x_ref, g_ref, b_ref, w_ref, bias_ref, o_ref, xn_sc):
    @pl.when(pl.program_id(1) == 0)
    def _():
        # LN1 computed once per row tile, cached in VMEM (review item 1).
        xn_sc[...] = _layernorm(x_ref[...], g_ref[...], b_ref[...]).astype(jnp.bfloat16)

    acc = jnp.dot(xn_sc[...], w_ref[...], preferred_element_type=jnp.float32)
    o_ref[...] = (acc + bias_ref[...]).astype(o_ref.dtype)


def ln_qkv_proj(x, gamma, beta, w, bias):
    M, E = x.shape
    N = w.shape[1]

    def est(tm, tn):
        return (2 * tm * E * 4 + 2 * E * tn * 2 + 2 * tm * tn * 2
                + tm * E * 2 + 8 * (tn + E) * 4)

    tm, tn = _choose_tiles(M, (512, 256, 128, 64, 32, 16, 8),
                           N, (512, 256, 128), est, _VMEM_LIMIT)
    return pl.pallas_call(
        _ln_qkv_kernel,
        out_shape=jax.ShapeDtypeStruct((M, N), jnp.bfloat16),
        grid=(M // tm, N // tn),
        in_specs=[
            pl.BlockSpec((tm, E), lambda i, j: (i, 0)),
            pl.BlockSpec((1, E), lambda i, j: (0, 0)),
            pl.BlockSpec((1, E), lambda i, j: (0, 0)),
            pl.BlockSpec((E, tn), lambda i, j: (0, j)),
            pl.BlockSpec((1, tn), lambda i, j: (0, j)),
        ],
        out_specs=pl.BlockSpec((tm, tn), lambda i, j: (i, j)),
        scratch_shapes=[pltpu.VMEM((tm, E), jnp.bfloat16)],
        compiler_params=pltpu.CompilerParams(
            dimension_semantics=("parallel", "arbitrary"),
            vmem_limit_bytes=_VMEM_LIMIT),
    )(x, gamma, beta, w, bias)


# ------------------- kernel 2: flash-style causal attention -------------------

def _flash_kernel(q_ref, k_ref, v_ref, o_ref, q_sc, m_sc, l_sc, acc_sc, *,
                  scale, tq, tk, num_heads, head_dim):
    qi = pl.program_id(1)
    ki = pl.program_id(2)
    H, hd = num_heads, head_dim

    @pl.when(ki == 0)
    def _():
        # Fold the 1/sqrt(hd) scale into q once per q tile (review item 6).
        q_sc[...] = (q_ref[...].astype(jnp.float32) * scale).astype(jnp.bfloat16)
        m_sc[...] = jnp.full(m_sc.shape, -1e30, jnp.float32)
        l_sc[...] = jnp.zeros(l_sc.shape, jnp.float32)
        acc_sc[...] = jnp.zeros(acc_sc.shape, jnp.float32)

    # Skip kv tiles that lie entirely in the future (causal).
    @pl.when(ki * tk <= qi * tq + (tq - 1))
    def _():
        q = q_sc[...]                      # (tq, E) bf16, pre-scaled
        k = k_ref[...]                     # (tk, E) bf16
        v = v_ref[...]                     # (tk, E) bf16
        row = qi * tq + jax.lax.broadcasted_iota(jnp.int32, (tq, tk), 0)
        col = ki * tk + jax.lax.broadcasted_iota(jnp.int32, (tq, tk), 1)
        causal = col <= row
        for h in range(H):
            sl = slice(h * hd, (h + 1) * hd)
            s = jax.lax.dot_general(q[:, sl], k[:, sl],
                                    (((1,), (1,)), ((), ())),
                                    preferred_element_type=jnp.float32)
            s = jnp.where(causal, s, -1e30)
            m_prev = m_sc[h]
            m_new = jnp.maximum(m_prev, jnp.max(s, axis=-1, keepdims=True))
            alpha = jnp.exp(m_prev - m_new)
            p = jnp.exp(s - m_new)
            l_sc[h] = alpha * l_sc[h] + jnp.sum(p, axis=-1, keepdims=True)
            acc_sc[h] = alpha * acc_sc[h] + jnp.dot(
                p.astype(v.dtype), v[:, sl], preferred_element_type=jnp.float32)
            m_sc[h] = m_new

    @pl.when(ki == pl.num_programs(2) - 1)
    def _():
        pieces = []
        for h in range(H):
            inv = pl.reciprocal(l_sc[h], approx=True)
            pieces.append((acc_sc[h] * inv).astype(o_ref.dtype))
        # Single lane-dense (tq, E) store of the combined-head context.
        o_ref[...] = jnp.concatenate(pieces, axis=-1)


def _flash_vmem_est(t, E, H):
    return (3 * 2 * t * E * 2 + 2 * t * E * 2       # q/k/v + out blocks (x2 buf)
            + t * E * 2 + t * E * 4 + 2 * H * t * 4  # scratches
            + 4 * t * t * 4)                         # s/p headroom


def flash_attention(qkv, num_heads):
    """qkv: (B, T, 3E) bf16 fused projection.  Returns (B, T, E) bf16 context."""
    B, T, threeE = qkv.shape
    E = threeE // 3
    H = num_heads
    hd = E // H
    scale = 1.0 / math.sqrt(hd)

    cands = _divisor_candidates(T, (256, 128))
    tq = cands[-1]
    for c in cands:
        if _flash_vmem_est(c, E, H) <= _VMEM_LIMIT:
            tq = c
            break
    tk = tq

    if E % 128 == 0:
        # q/k/v sliced straight from the fused tensor via BlockSpec block
        # indices: no XLA-side slice / transpose HBM passes (review item 4).
        operands = (qkv, qkv, qkv)
        col = (0, 1, 2)
    else:
        # TODO(synk): lane-unaligned E -- fall back to XLA-side q/k/v slices.
        operands = (qkv[..., :E], qkv[..., E:2 * E], qkv[..., 2 * E:])
        col = (0, 0, 0)

    # Clamp the k/v block index to the diagonal so causally-dead tiles are
    # never DMA'd (review item 2).
    q_spec = pl.BlockSpec((None, tq, E), lambda b, qi, ki, c=col[0]: (b, qi, c))
    k_spec = pl.BlockSpec((None, tk, E),
                          lambda b, qi, ki, c=col[1]: (b, jnp.minimum(ki, qi), c))
    v_spec = pl.BlockSpec((None, tk, E),
                          lambda b, qi, ki, c=col[2]: (b, jnp.minimum(ki, qi), c))

    return pl.pallas_call(
        functools.partial(_flash_kernel, scale=scale, tq=tq, tk=tk,
                          num_heads=H, head_dim=hd),
        out_shape=jax.ShapeDtypeStruct((B, T, E), jnp.bfloat16),
        grid=(B, T // tq, T // tk),
        in_specs=[q_spec, k_spec, v_spec],
        out_specs=pl.BlockSpec((None, tq, E), lambda b, qi, ki: (b, qi, 0)),
        scratch_shapes=[
            pltpu.VMEM((tq, E), jnp.bfloat16),      # pre-scaled q tile
            pltpu.VMEM((H, tq, 1), jnp.float32),    # running max
            pltpu.VMEM((H, tq, 1), jnp.float32),    # running denom
            pltpu.VMEM((H, tq, hd), jnp.float32),   # output accumulator
        ],
        compiler_params=pltpu.CompilerParams(
            dimension_semantics=("parallel", "parallel", "arbitrary"),
            vmem_limit_bytes=_VMEM_LIMIT),
    )(*operands)


# ------ kernel 3: attention out-proj + residual + LN2 + FFN + residual --------

def _attn_ffn_kernel(ctx_ref, x_ref, wo_ref, bo_ref, g_ref, b_ref,
                     w1_ref, b1_ref, w2_ref, b2_ref, o_ref,
                     resid_sc, xn_sc, acc_sc):
    pi = pl.program_id(1)

    @pl.when(pi == 0)
    def _():
        # Fused attention out-projection + residual (review item 7): the
        # post-attention residual never round-trips HBM.
        attn = jnp.dot(ctx_ref[...], wo_ref[...],
                       preferred_element_type=jnp.float32) + bo_ref[...]
        resid = x_ref[...] + attn                     # dropout1: identity (eval)
        resid_sc[...] = resid
        xn_sc[...] = _layernorm(resid, g_ref[...], b_ref[...]).astype(jnp.bfloat16)
        acc_sc[...] = jnp.zeros(acc_sc.shape, jnp.float32)

    h = jnp.dot(xn_sc[...], w1_ref[...],
                preferred_element_type=jnp.float32) + b1_ref[...]
    h = _gelu_exact(h)                                # exact (erf) GELU, f32
    acc_sc[...] += jnp.dot(h.astype(jnp.bfloat16), w2_ref[...],
                           preferred_element_type=jnp.float32)

    @pl.when(pi == pl.num_programs(1) - 1)
    def _():
        o_ref[...] = resid_sc[...] + acc_sc[...] + b2_ref[...]   # dropout2: identity


def attn_out_ffn(ctx, x, wo, bo, ln2w, ln2b, w1, b1, w2, b2):
    M, E = x.shape
    P = w1.shape[1]

    # TODO(synk): for very large E on low-VMEM parts (v7x), the resident (E,E)
    # wo block should additionally be tiled over an extra grid axis.
    def est(tm, tp):
        return (2 * tm * E * 2 + 2 * tm * E * 4 + E * E * 2
                + 2 * E * tp * 2 + 2 * tp * E * 2
                + 2 * tm * E * 4 + tm * E * 10 + tm * tp * 4
                + 8 * (E + tp) * 4)

    tm, tp = _choose_tiles(M, (256, 128, 64, 32, 16, 8),
                           P, (512, 256, 128), est, _VMEM_LIMIT)

    flops = 2 * M * E * E + 4 * M * E * P
    bytes_acc = M * E * 10 + E * E * 2 + (M // tm) * 2 * E * P * 2

    return pl.pallas_call(
        _attn_ffn_kernel,
        out_shape=jax.ShapeDtypeStruct((M, E), jnp.float32),
        grid=(M // tm, P // tp),
        in_specs=[
            pl.BlockSpec((tm, E), lambda i, p: (i, 0)),   # attention context
            pl.BlockSpec((tm, E), lambda i, p: (i, 0)),   # block-input residual
            pl.BlockSpec((E, E), lambda i, p: (0, 0)),    # wo
            pl.BlockSpec((1, E), lambda i, p: (0, 0)),    # bo
            pl.BlockSpec((1, E), lambda i, p: (0, 0)),    # ln2 gamma
            pl.BlockSpec((1, E), lambda i, p: (0, 0)),    # ln2 beta
            pl.BlockSpec((E, tp), lambda i, p: (0, p)),   # w1 (streamed over P)
            pl.BlockSpec((1, tp), lambda i, p: (0, p)),   # b1
            pl.BlockSpec((tp, E), lambda i, p: (p, 0)),   # w2 (streamed over P)
            pl.BlockSpec((1, E), lambda i, p: (0, 0)),    # b2
        ],
        out_specs=pl.BlockSpec((tm, E), lambda i, p: (i, 0)),
        scratch_shapes=[
            pltpu.VMEM((tm, E), jnp.float32),     # x + attn residual
            pltpu.VMEM((tm, E), jnp.bfloat16),    # LN2(resid), bf16 for MXU
            pltpu.VMEM((tm, E), jnp.float32),     # FFN accumulator
        ],
        compiler_params=pltpu.CompilerParams(
            dimension_semantics=("parallel", "arbitrary"),
            vmem_limit_bytes=_VMEM_LIMIT),
        cost_estimate=pl.CostEstimate(flops=int(flops), transcendentals=int(M * P),
                                      bytes_accessed=int(bytes_acc)),
    )(ctx, x, wo, bo, ln2w, ln2b, w1, b1, w2, b2)


# ---------------------- kernel 4: vocabulary projection -----------------------

def _vocab_proj_kernel(x_ref, w_ref, o_ref):
    # f32 -> bf16 cast of activations done in-kernel (no extra XLA pass).
    o_ref[...] = jnp.dot(x_ref[...].astype(jnp.bfloat16), w_ref[...],
                         preferred_element_type=jnp.float32)


def vocab_projection(x, w_out_padded, vocab_size):
    B, T, E = x.shape
    M = B * T
    Vp = w_out_padded.shape[1]            # pre-padded to a multiple of 128 at init

    def est(tm, tv):
        return 2 * tm * E * 4 + 2 * E * tv * 2 + 2 * tm * tv * 4

    tm, tv = _choose_tiles(M, (512, 256, 128, 64, 32, 16, 8),
                           Vp, (512, 256, 128), est, _VMEM_LIMIT)
    logits = pl.pallas_call(
        _vocab_proj_kernel,
        out_shape=jax.ShapeDtypeStruct((M, Vp), jnp.float32),
        grid=(M // tm, Vp // tv),
        in_specs=[
            pl.BlockSpec((tm, E), lambda i, j: (i, 0)),
            pl.BlockSpec((E, tv), lambda i, j: (0, j)),
        ],
        out_specs=pl.BlockSpec((tm, tv), lambda i, j: (i, j)),
        compiler_params=pltpu.CompilerParams(
            dimension_semantics=("parallel", "parallel"),
            vmem_limit_bytes=_VMEM_LIMIT),
        cost_estimate=pl.CostEstimate(
            flops=int(2 * M * E * Vp), transcendentals=0,
            bytes_accessed=int(M * E * 4 + E * Vp * 2 + M * Vp * 4)),
    )(x.reshape(M, E), w_out_padded)
    logits = logits.reshape(B, T, Vp)
    if Vp != vocab_size:
        logits = logits[..., :vocab_size]
    return logits


# -------------------- transformer block (glue over the kernels) ---------------

def transformer_block(x, block_params, num_heads):
    B, T, E = x.shape
    (ln1w, ln1b, wqkv, bqkv, wo, bo, ln2w, ln2b, w1, b1, w2, b2) = block_params
    x2 = x.reshape(B * T, E)                                   # residual, f32
    qkv = ln_qkv_proj(x2, ln1w, ln1b, wqkv, bqkv)              # (B*T, 3E) bf16
    ctx = flash_attention(qkv.reshape(B, T, 3 * E), num_heads)  # (B, T, E) bf16
    out = attn_out_ffn(ctx.reshape(B * T, E), x2, wo, bo,
                       ln2w, ln2b, w1, b1, w2, b2)             # (B*T, E) f32
    return out.reshape(B, T, E)


# -------------------- params / embedding glue (plain JAX) ---------------------

def positional_encoding(context_size, d_model):
    position = jnp.arange(context_size, dtype=jnp.float32)[:, None]
    div_term = jnp.exp(jnp.arange(0, d_model, 2, dtype=jnp.float32)
                       * (-math.log(10000.0) / d_model))
    pe = jnp.zeros((context_size, d_model), jnp.float32)
    pe = pe.at[:, 0::2].set(jnp.sin(position * div_term))
    pe = pe.at[:, 1::2].set(jnp.cos(position * div_term))
    return pe


def init_params(key, vocab_size, embedding_dim, context_size, num_layers, projection=4):
    E = embedding_dim
    P = projection * E
    V_pad = ((vocab_size + 127) // 128) * 128
    keys = jax.random.split(key, 2 + num_layers)
    emb = 0.02 * jax.random.normal(keys[0], (vocab_size, E), jnp.float32)
    w_out = 0.02 * jax.random.normal(keys[1], (E, vocab_size), jnp.float32)
    # Pre-pad the vocab weight to a lane-dense width once at init.
    w_out = jnp.pad(w_out, ((0, 0), (0, V_pad - vocab_size))).astype(jnp.bfloat16)
    pe = positional_encoding(context_size, E)
    blocks = []
    for l in range(num_layers):
        ks = jax.random.split(keys[2 + l], 8)
        ln1w = jnp.ones((1, E), jnp.float32)
        ln1b = jnp.zeros((1, E), jnp.float32)
        wqkv = (0.05 * jax.random.normal(ks[0], (E, 3 * E), jnp.float32)).astype(jnp.bfloat16)
        bqkv = 0.01 * jax.random.normal(ks[1], (1, 3 * E), jnp.float32)
        wo = (0.05 * jax.random.normal(ks[2], (E, E), jnp.float32)).astype(jnp.bfloat16)
        bo = 0.01 * jax.random.normal(ks[3], (1, E), jnp.float32)
        ln2w = jnp.ones((1, E), jnp.float32)
        ln2b = jnp.zeros((1, E), jnp.float32)
        w1 = (0.05 * jax.random.normal(ks[4], (E, P), jnp.float32)).astype(jnp.bfloat16)
        b1 = 0.01 * jax.random.normal(ks[5], (1, P), jnp.float32)
        w2 = (0.05 * jax.random.normal(ks[6], (P, E), jnp.float32)).astype(jnp.bfloat16)
        b2 = 0.01 * jax.random.normal(ks[7], (1, E), jnp.float32)
        blocks.append((ln1w, ln1b, wqkv, bqkv, wo, bo, ln2w, ln2b, w1, b1, w2, b2))
    return emb, pe, blocks, w_out


def gpt_forward(token_ids, params, num_heads):
    emb_table, pe, block_params, w_out = params
    vocab_size, E = emb_table.shape
    B, T = token_ids.shape
    # Embedding lookup (gather) + positional encoding: plain-JAX glue.
    tok = jnp.take(emb_table, token_ids, axis=0)               # (B, T, E)
    # Reproduce the torch in-place aliasing: output = 2 * (token_emb + pe).
    x = 2.0 * (tok + pe[None, :T, :])
    # The padding_mask built in GPTModel.forward is dropped at runtime by
    # nn.MultiheadAttention (is_causal=True fast path); blocks use plain
    # causal attention.
    for bp in block_params:
        x = transformer_block(x, bp, num_heads)
    return vocab_projection(x, w_out, vocab_size)


# -------------------- pure-JAX reference (tolerance check) --------------------

def reference_forward(token_ids, params, num_heads):
    emb_table, pe, blocks, w_out = params
    vocab_size, E = emb_table.shape
    B, T = token_ids.shape
    H = num_heads
    hd = E // H
    tok = jnp.take(emb_table, token_ids, axis=0)
    x = 2.0 * (tok + pe[None, :T, :])
    causal = jnp.tril(jnp.ones((T, T), dtype=bool))
    for (ln1w, ln1b, wqkv, bqkv, wo, bo, ln2w, ln2b, w1, b1, w2, b2) in blocks:
        xn = _layernorm(x, ln1w, ln1b)
        qkv = xn @ wqkv.astype(jnp.float32) + bqkv
        q, k, v = jnp.split(qkv, 3, axis=-1)

        def heads(a):
            return a.reshape(B, T, H, hd).transpose(0, 2, 1, 3)

        q, k, v = heads(q), heads(k), heads(v)
        s = jnp.einsum('bhqd,bhkd->bhqk', q, k) / math.sqrt(hd)
        s = jnp.where(causal[None, None], s, -jnp.inf)
        p = jax.nn.softmax(s, axis=-1)
        ctx = jnp.einsum('bhqk,bhkd->bhqd', p, v)
        ctx = ctx.transpose(0, 2, 1, 3).reshape(B, T, E)
        x = x + ctx @ wo.astype(jnp.float32) + bo
        xn2 = _layernorm(x, ln2w, ln2b)
        h = xn2 @ w1.astype(jnp.float32) + b1
        h = 0.5 * h * (1.0 + jax.lax.erf(h / math.sqrt(2.0)))
        x = x + h @ w2.astype(jnp.float32) + b2
    logits = x @ w_out.astype(jnp.float32)
    return logits[..., :vocab_size]


# ----------------------------------- demo -------------------------------------

if __name__ == "__main__":
    VOCAB, EMB, CTX, HEADS, LAYERS = 64, 256, 8, 2, 2
    B, T = 2, CTX

    key = jax.random.PRNGKey(0)
    pkey, xkey = jax.random.split(key)
    params = init_params(pkey, VOCAB, EMB, CTX, LAYERS, projection=4)

    token_ids = jax.random.randint(xkey, (B, T), 0, VOCAB, dtype=jnp.int32)
    token_ids = token_ids.at[0, 0].set(0)     # include a "pad" token (id 0)

    fwd = jax.jit(functools.partial(gpt_forward, num_heads=HEADS))
    logits = jax.block_until_ready(fwd(token_ids, params))

    assert logits.shape == (B, T, VOCAB), logits.shape
    assert bool(jnp.all(jnp.isfinite(logits)))

    ref = reference_forward(token_ids, params, HEADS)
    err = float(jnp.max(jnp.abs(logits - ref)))
    assert err < 1.5e-1, f"max|diff| vs reference = {err}"
    print("KERNEL_OK")
</pallas_src>

<mosaic_0001>
module attributes {stable_mosaic.version = 11 : i64} {
  func.func @_flash_kernel(%arg0: i32, %arg1: i32, %arg2: i32, %arg3: memref<1x8x256xbf16, #tpu.memory_space<vmem>>, %arg4: memref<1x8x256xbf16, #tpu.memory_space<vmem>>, %arg5: memref<1x8x256xbf16, #tpu.memory_space<vmem>>, %arg6: memref<1x8x256xbf16, #tpu.memory_space<vmem>>, %arg7: memref<8x256xbf16, #tpu.memory_space<vmem>>, %arg8: memref<2x8x1xf32, #tpu.memory_space<vmem>>, %arg9: memref<2x8x1xf32, #tpu.memory_space<vmem>>, %arg10: memref<2x8x128xf32, #tpu.memory_space<vmem>>) attributes {dimension_semantics = [#tpu.dimension_semantics<parallel>, #tpu.dimension_semantics<parallel>, #tpu.dimension_semantics<arbitrary>], iteration_bounds = array<i64: 2, 1, 1>, scalar_prefetch = 0 : i64, scratch_operands = 4 : i64, tpu.core_type = #tpu.core_type<tc>, window_params = [{transform_indices = @transform_0, window_bounds = array<i64: 1, 8, 256>}, {transform_indices = @transform_1, window_bounds = array<i64: 1, 8, 256>}, {transform_indices = @transform_2, window_bounds = array<i64: 1, 8, 256>}, {transform_indices = @transform_3, window_bounds = array<i64: 1, 8, 256>}]} {
    %c0_i32 = arith.constant 0 : i32
    %0 = arith.cmpi eq, %arg2, %c0_i32 : i32
    %1 = arith.extui %0 : i1 to i32
    %c0_i32_0 = arith.constant 0 : i32
    %2 = arith.cmpi ne, %1, %c0_i32_0 : i32
    scf.if %2 {
      %c0 = arith.constant 0 : index
      %c0_5 = arith.constant 0 : index
      %c0_6 = arith.constant 0 : index
      %12 = vector.load %arg3[%c0, %c0_5, %c0_6] : memref<1x8x256xbf16, #tpu.memory_space<vmem>>, vector<1x8x256xbf16>
      %13 = vector.shape_cast %12 : vector<1x8x256xbf16> to vector<8x256xbf16>
      %14 = arith.extf %13 : vector<8x256xbf16> to vector<8x256xf32>
      %cst = arith.constant 0.0883883461 : f32
      %15 = vector.broadcast %cst : f32 to vector<8x256xf32>
      %16 = arith.mulf %14, %15 : vector<8x256xf32>
      %17 = arith.truncf %16 : vector<8x256xf32> to vector<8x256xbf16>
      %c0_7 = arith.constant 0 : index
      %c0_8 = arith.constant 0 : index
      %18 = vector.load %arg7[%c0_7, %c0_8] : memref<8x256xbf16, #tpu.memory_space<vmem>>, vector<8x256xbf16>
      tpu.vector_store %arg7[%c0_7, %c0_8], %17 {strides = array<i32>} : memref<8x256xbf16, #tpu.memory_space<vmem>>, vector<8x256xbf16>,
      %cst_9 = arith.constant -1.000000e+30 : f32
      %19 = vector.broadcast %cst_9 : f32 to vector<2x8x1xf32>
      %c0_10 = arith.constant 0 : index
      %c0_11 = arith.constant 0 : index
      %c0_12 = arith.constant 0 : index
      %20 = vector.load %arg8[%c0_10, %c0_11, %c0_12] : memref<2x8x1xf32, #tpu.memory_space<vmem>>, vector<2x8x1xf32>
      tpu.vector_store %arg8[%c0_10, %c0_11, %c0_12], %19 {strides = array<i32>} : memref<2x8x1xf32, #tpu.memory_space<vmem>>, vector<2x8x1xf32>,
      %cst_13 = arith.constant 0.000000e+00 : f32
      %21 = vector.broadcast %cst_13 : f32 to vector<2x8x1xf32>
      %c0_14 = arith.constant 0 : index
      %c0_15 = arith.constant 0 : index
      %c0_16 = arith.constant 0 : index
      %22 = vector.load %arg9[%c0_14, %c0_15, %c0_16] : memref<2x8x1xf32, #tpu.memory_space<vmem>>, vector<2x8x1xf32>
      tpu.vector_store %arg9[%c0_14, %c0_15, %c0_16], %21 {strides = array<i32>} : memref<2x8x1xf32, #tpu.memory_space<vmem>>, vector<2x8x1xf32>,
      %cst_17 = arith.constant 0.000000e+00 : f32
      %23 = vector.broadcast %cst_17 : f32 to vector<2x8x128xf32>
      %c0_18 = arith.constant 0 : index
      %c0_19 = arith.constant 0 : index
      %c0_20 = arith.constant 0 : index
      %24 = vector.load %arg10[%c0_18, %c0_19, %c0_20] : memref<2x8x128xf32, #tpu.memory_space<vmem>>, vector<2x8x128xf32>
      tpu.vector_store %arg10[%c0_18, %c0_19, %c0_20], %23 {strides = array<i32>} : memref<2x8x128xf32, #tpu.memory_space<vmem>>, vector<2x8x128xf32>,
    } else {
    }
    %c8_i32 = arith.constant 8 : i32
    %3 = arith.muli %arg2, %c8_i32 : i32
    %c8_i32_1 = arith.constant 8 : i32
    %4 = arith.muli %arg1, %c8_i32_1 : i32
    %c7_i32 = arith.constant 7 : i32
    %5 = arith.addi %4, %c7_i32 : i32
    %6 = arith.cmpi sle, %3, %5 : i32
    %7 = arith.extui %6 : i1 to i32
    %c0_i32_2 = arith.constant 0 : i32
    %8 = arith.cmpi ne, %7, %c0_i32_2 : i32
    scf.if %8 {
      %c0 = arith.constant 0 : index
      %c0_5 = arith.constant 0 : index
      %12 = vector.load %arg7[%c0, %c0_5] : memref<8x256xbf16, #tpu.memory_space<vmem>>, vector<8x256xbf16>
      %c0_6 = arith.constant 0 : index
      %c0_7 = arith.constant 0 : index
      %c0_8 = arith.constant 0 : index
      %13 = vector.load %arg4[%c0_6, %c0_7, %c0_8] : memref<1x8x256xbf16, #tpu.memory_space<vmem>>, vector<1x8x256xbf16>
      %14 = vector.shape_cast %13 : vector<1x8x256xbf16> to vector<8x256xbf16>
      %c0_9 = arith.constant 0 : index
      %c0_10 = arith.constant 0 : index
      %c0_11 = arith.constant 0 : index
      %15 = vector.load %arg5[%c0_9, %c0_10, %c0_11] : memref<1x8x256xbf16, #tpu.memory_space<vmem>>, vector<1x8x256xbf16>
      %16 = vector.shape_cast %15 : vector<1x8x256xbf16> to vector<8x256xbf16>
      %c8_i32_12 = arith.constant 8 : i32
      %17 = arith.muli %arg1, %c8_i32_12 : i32
      %18 = tpu.iota {dimensions = array<i32: 0>} : vector<8x8xi32>
      %19 = vector.broadcast %17 : i32 to vector<8x8xi32>
      %20 = arith.addi %19, %18 : vector<8x8xi32>
      %c8_i32_13 = arith.constant 8 : i32
      %21 = arith.muli %arg2, %c8_i32_13 : i32
      %22 = tpu.iota {dimensions = array<i32: 1>} : vector<8x8xi32>
      %23 = vector.broadcast %21 : i32 to vector<8x8xi32>
      %24 = arith.addi %23, %22 : vector<8x8xi32>
      %25 = arith.cmpi sle, %24, %20 : vector<8x8xi32>
      %26 = vector.extract_strided_slice %12 {offsets = [0, 0], sizes = [8, 128], strides = [1, 1]} : vector<8x256xbf16> to vector<8x128xbf16>
      %27 = vector.extract_strided_slice %14 {offsets = [0, 0], sizes = [8, 128], strides = [1, 1]} : vector<8x256xbf16> to vector<8x128xbf16>
      %cst = arith.constant dense<0.000000e+00> : vector<8x8xf32>
      %28 = tpu.matmul %26, %27, %cst {dimension_numbers = #tpu.dot_dimension_numbers<[1], [1], [0], [0], [0, 0, 1, 0], [], []>} : vector<8x128xbf16>, vector<8x128xbf16>, vector<8x8xf32> -> vector<8x8xf32>
      %cst_14 = arith.constant -1.000000e+30 : f32
      %29 = vector.broadcast %cst_14 : f32 to vector<8x8xf32>
      %30 = arith.select %25, %28, %29 : vector<8x8xi1>, vector<8x8xf32>
      %c0_15 = arith.constant 0 : index
      %c0_16 = arith.constant 0 : index
      %c0_17 = arith.constant 0 : index
      %31 = vector.load %arg8[%c0_15, %c0_16, %c0_17] : memref<2x8x1xf32, #tpu.memory_space<vmem>>, vector<1x8x1xf32>
      %32 = vector.shape_cast %31 : vector<1x8x1xf32> to vector<8x1xf32>
      %cst_18 = arith.constant dense<0xFF800000> : vector<8xf32>
      %33 = vector.multi_reduction <maximumf>, %30, %cst_18 [1] : vector<8x8xf32> to vector<8xf32>
      %34 = vector.shape_cast %33 : vector<8xf32> to vector<8x1xf32>
      %35 = arith.maximumf %32, %34 : vector<8x1xf32>
      %36 = arith.subf %32, %35 : vector<8x1xf32>
      %37 = math.exp %36 : vector<8x1xf32>
      %38 = vector.broadcast %35 : vector<8x1xf32> to vector<8x8xf32>
      %39 = arith.subf %30, %38 : vector<8x8xf32>
      %40 = math.exp %39 : vector<8x8xf32>
      %c0_19 = arith.constant 0 : index
      %c0_20 = arith.constant 0 : index
      %c0_21 = arith.constant 0 : index
      %41 = vector.load %arg9[%c0_19, %c0_20, %c0_21] : memref<2x8x1xf32, #tpu.memory_space<vmem>>, vector<1x8x1xf32>
      %42 = vector.shape_cast %41 : vector<1x8x1xf32> to vector<8x1xf32>
      %43 = arith.mulf %37, %42 : vector<8x1xf32>
      %cst_22 = arith.constant dense<0.000000e+00> : vector<8xf32>
      %44 = vector.multi_reduction <add>, %40, %cst_22 [1] : vector<8x8xf32> to vector<8xf32>
      %45 = vector.shape_cast %44 : vector<8xf32> to vector<8x1xf32>
      %46 = arith.addf %43, %45 : vector<8x1xf32>
      %c0_23 = arith.constant 0 : index
      %c0_24 = arith.constant 0 : index
      %c0_25 = arith.constant 0 : index
      %47 = vector.load %arg9[%c0_23, %c0_24, %c0_25] : memref<2x8x1xf32, #tpu.memory_space<vmem>>, vector<1x8x1xf32>
      %48 = vector.shape_cast %47 : vector<1x8x1xf32> to vector<8x1xf32>
      %49 = vector.shape_cast %46 : vector<8x1xf32> to vector<1x8x1xf32>
      tpu.vector_store %arg9[%c0_23, %c0_24, %c0_25], %49 {strides = array<i32>} : memref<2x8x1xf32, #tpu.memory_space<vmem>>, vector<1x8x1xf32>,
      %c0_26 = arith.constant 0 : index
      %c0_27 = arith.constant 0 : index
      %c0_28 = arith.constant 0 : index
      %50 = vector.load %arg10[%c0_26, %c0_27, %c0_28] : memref<2x8x128xf32, #tpu.memory_space<vmem>>, vector<1x8x128xf32>
      %51 = vector.shape_cast %50 : vector<1x8x128xf32> to vector<8x128xf32>
      %52 = vector.broadcast %37 : vector<8x1xf32> to vector<8x128xf32>
      %53 = arith.mulf %52, %51 : vector<8x128xf32>
      %54 = arith.truncf %40 : vector<8x8xf32> to vector<8x8xbf16>
      %55 = vector.extract_strided_slice %16 {offsets = [0, 0], sizes = [8, 128], strides = [1, 1]} : vector<8x256xbf16> to vector<8x128xbf16>
      %cst_29 = arith.constant dense<0.000000e+00> : vector<8x128xf32>
      %56 = tpu.matmul %54, %55, %cst_29 {dimension_numbers = #tpu.dot_dimension_numbers<[1], [0], [0], [1], [0, 0, 1, 1], [], []>} : vector<8x8xbf16>, vector<8x128xbf16>, vector<8x128xf32> -> vector<8x128xf32>
      %57 = arith.addf %53, %56 : vector<8x128xf32>
      %c0_30 = arith.constant 0 : index
      %c0_31 = arith.constant 0 : index
      %c0_32 = arith.constant 0 : index
      %58 = vector.load %arg10[%c0_30, %c0_31, %c0_32] : memref<2x8x128xf32, #tpu.memory_space<vmem>>, vector<1x8x128xf32>
      %59 = vector.shape_cast %58 : vector<1x8x128xf32> to vector<8x128xf32>
      %60 = vector.shape_cast %57 : vector<8x128xf32> to vector<1x8x128xf32>
      tpu.vector_store %arg10[%c0_30, %c0_31, %c0_32], %60 {strides = array<i32>} : memref<2x8x128xf32, #tpu.memory_space<vmem>>, vector<1x8x128xf32>,
      %c0_33 = arith.constant 0 : index
      %c0_34 = arith.constant 0 : index
      %c0_35 = arith.constant 0 : index
      %61 = vector.load %arg8[%c0_33, %c0_34, %c0_35] : memref<2x8x1xf32, #tpu.memory_space<vmem>>, vector<1x8x1xf32>
      %62 = vector.shape_cast %61 : vector<1x8x1xf32> to vector<8x1xf32>
      %63 = vector.shape_cast %35 : vector<8x1xf32> to vector<1x8x1xf32>
      tpu.vector_store %arg8[%c0_33, %c0_34, %c0_35], %63 {strides = array<i32>} : memref<2x8x1xf32, #tpu.memory_space<vmem>>, vector<1x8x1xf32>,
      %64 = vector.extract_strided_slice %12 {offsets = [0, 128], sizes = [8, 128], strides = [1, 1]} : vector<8x256xbf16> to vector<8x128xbf16>
      %65 = vector.extract_strided_slice %14 {offsets = [0, 128], sizes = [8, 128], strides = [1, 1]} : vector<8x256xbf16> to vector<8x128xbf16>
      %cst_36 = arith.constant dense<0.000000e+00> : vector<8x8xf32>
      %66 = tpu.matmul %64, %65, %cst_36 {dimension_numbers = #tpu.dot_dimension_numbers<[1], [1], [0], [0], [0, 0, 1, 0], [], []>} : vector<8x128xbf16>, vector<8x128xbf16>, vector<8x8xf32> -> vector<8x8xf32>
      %cst_37 = arith.constant -1.000000e+30 : f32
      %67 = vector.broadcast %cst_37 : f32 to vector<8x8xf32>
      %68 = arith.select %25, %66, %67 : vector<8x8xi1>, vector<8x8xf32>
      %c1 = arith.constant 1 : index
      %c0_38 = arith.constant 0 : index
      %c0_39 = arith.constant 0 : index
      %69 = vector.load %arg8[%c1, %c0_38, %c0_39] : memref<2x8x1xf32, #tpu.memory_space<vmem>>, vector<1x8x1xf32>
      %70 = vector.shape_cast %69 : vector<1x8x1xf32> to vector<8x1xf32>
      %cst_40 = arith.constant dense<0xFF800000> : vector<8xf32>
      %71 = vector.multi_reduction <maximumf>, %68, %cst_40 [1] : vector<8x8xf32> to vector<8xf32>
      %72 = vector.shape_cast %71 : vector<8xf32> to vector<8x1xf32>
      %73 = arith.maximumf %70, %72 : vector<8x1xf32>
      %74 = arith.subf %70, %73 : vector<8x1xf32>
      %75 = math.exp %74 : vector<8x1xf32>
      %76 = vector.broadcast %73 : vector<8x1xf32> to vector<8x8xf32>
      %77 = arith.subf %68, %76 : vector<8x8xf32>
      %78 = math.exp %77 : vector<8x8xf32>
      %c1_41 = arith.constant 1 : index
      %c0_42 = arith.constant 0 : index
      %c0_43 = arith.constant 0 : index
      %79 = vector.load %arg9[%c1_41, %c0_42, %c0_43] : memref<2x8x1xf32, #tpu.memory_space<vmem>>, vector<1x8x1xf32>
      %80 = vector.shape_cast %79 : vector<1x8x1xf32> to vector<8x1xf32>
      %81 = arith.mulf %75, %80 : vector<8x1xf32>
      %cst_44 = arith.constant dense<0.000000e+00> : vector<8xf32>
      %82 = vector.multi_reduction <add>, %78, %cst_44 [1] : vector<8x8xf32> to vector<8xf32>
      %83 = vector.shape_cast %82 : vector<8xf32> to vector<8x1xf32>
      %84 = arith.addf %81, %83 : vector<8x1xf32>
      %c1_45 = arith.constant 1 : index
      %c0_46 = arith.constant 0 : index
      %c0_47 = arith.constant 0 : index
      %85 = vector.load %arg9[%c1_45, %c0_46, %c0_47] : memref<2x8x1xf32, #tpu.memory_space<vmem>>, vector<1x8x1xf32>
      %86 = vector.shape_cast %85 : vector<1x8x1xf32> to vector<8x1xf32>
      %87 = vector.shape_cast %84 : vector<8x1xf32> to vector<1x8x1xf32>
      tpu.vector_store %arg9[%c1_45, %c0_46, %c0_47], %87 {strides = array<i32>} : memref<2x8x1xf32, #tpu.memory_space<vmem>>, vector<1x8x1xf32>,
      %c1_48 = arith.constant 1 : index
      %c0_49 = arith.constant 0 : index
      %c0_50 = arith.constant 0 : index
      %88 = vector.load %arg10[%c1_48, %c0_49, %c0_50] : memref<2x8x128xf32, #tpu.memory_space<vmem>>, vector<1x8x128xf32>
      %89 = vector.shape_cast %88 : vector<1x8x128xf32> to vector<8x128xf32>
      %90 = vector.broadcast %75 : vector<8x1xf32> to vector<8x128xf32>
      %91 = arith.mulf %90, %89 : vector<8x128xf32>
      %92 = arith.truncf %78 : vector<8x8xf32> to vector<8x8xbf16>
      %93 = vector.extract_strided_slice %16 {offsets = [0, 128], sizes = [8, 128], strides = [1, 1]} : vector<8x256xbf16> to vector<8x128xbf16>
      %cst_51 = arith.constant dense<0.000000e+00> : vector<8x128xf32>
      %94 = tpu.matmul %92, %93, %cst_51 {dimension_numbers = #tpu.dot_dimension_numbers<[1], [0], [0], [1], [0, 0, 1, 1], [], []>} : vector<8x8xbf16>, vector<8x128xbf16>, vector<8x128xf32> -> vector<8x128xf32>
      %95 = arith.addf %91, %94 : vector<8x128xf32>
      %c1_52 = arith.constant 1 : index
      %c0_53 = arith.constant 0 : index
      %c0_54 = arith.constant 0 : index
      %96 = vector.load %arg10[%c1_52, %c0_53, %c0_54] : memref<2x8x128xf32, #tpu.memory_space<vmem>>, vector<1x8x128xf32>
      %97 = vector.shape_cast %96 : vector<1x8x128xf32> to vector<8x128xf32>
      %98 = vector.shape_cast %95 : vector<8x128xf32> to vector<1x8x128xf32>
      tpu.vector_store %arg10[%c1_52, %c0_53, %c0_54], %98 {strides = array<i32>} : memref<2x8x128xf32, #tpu.memory_space<vmem>>, vector<1x8x128xf32>,
      %c1_55 = arith.constant 1 : index
      %c0_56 = arith.constant 0 : index
      %c0_57 = arith.constant 0 : index
      %99 = vector.load %arg8[%c1_55, %c0_56, %c0_57] : memref<2x8x1xf32, #tpu.memory_space<vmem>>, vector<1x8x1xf32>
      %100 = vector.shape_cast %99 : vector<1x8x1xf32> to vector<8x1xf32>
      %101 = vector.shape_cast %73 : vector<8x1xf32> to vector<1x8x1xf32>
      tpu.vector_store %arg8[%c1_55, %c0_56, %c0_57], %101 {strides = array<i32>} : memref<2x8x1xf32, #tpu.memory_space<vmem>>, vector<1x8x1xf32>,
    } else {
    }
    %c0_i32_3 = arith.constant 0 : i32
    %9 = arith.cmpi eq, %arg2, %c0_i32_3 : i32
    %10 = arith.extui %9 : i1 to i32
    %c0_i32_4 = arith.constant 0 : i32
    %11 = arith.cmpi ne, %10, %c0_i32_4 : i32
    scf.if %11 {
      %c0 = arith.constant 0 : index
      %c0_5 = arith.constant 0 : index
      %c0_6 = arith.constant 0 : index
      %12 = vector.load %arg9[%c0, %c0_5, %c0_6] : memref<2x8x1xf32, #tpu.memory_space<vmem>>, vector<1x8x1xf32>
      %13 = vector.shape_cast %12 : vector<1x8x1xf32> to vector<8x1xf32>
      %14 = tpu.reciprocal %13 {approx = true} : vector<8x1xf32> -> vector<8x1xf32>
      %c0_7 = arith.constant 0 : index
      %c0_8 = arith.constant 0 : index
      %c0_9 = arith.constant 0 : index
      %15 = vector.load %arg10[%c0_7, %c0_8, %c0_9] : memref<2x8x128xf32, #tpu.memory_space<vmem>>, vector<1x8x128xf32>
      %16 = vector.shape_cast %15 : vector<1x8x128xf32> to vector<8x128xf32>
      %17 = vector.broadcast %14 : vector<8x1xf32> to vector<8x128xf32>
      %18 = arith.mulf %16, %17 : vector<8x128xf32>
      %19 = arith.truncf %18 : vector<8x128xf32> to vector<8x128xbf16>
      %c1 = arith.constant 1 : index
      %c0_10 = arith.constant 0 : index
      %c0_11 = arith.constant 0 : index
      %20 = vector.load %arg9[%c1, %c0_10, %c0_11] : memref<2x8x1xf32, #tpu.memory_space<vmem>>, vector<1x8x1xf32>
      %21 = vector.shape_cast %20 : vector<1x8x1xf32> to vector<8x1xf32>
      %22 = tpu.reciprocal %21 {approx = true} : vector<8x1xf32> -> vector<8x1xf32>
      %c1_12 = arith.constant 1 : index
      %c0_13 = arith.constant 0 : index
      %c0_14 = arith.constant 0 : index
      %23 = vector.load %arg10[%c1_12, %c0_13, %c0_14] : memref<2x8x128xf32, #tpu.memory_space<vmem>>, vector<1x8x128xf32>
      %24 = vector.shape_cast %23 : vector<1x8x128xf32> to vector<8x128xf32>
      %25 = vector.broadcast %22 : vector<8x1xf32> to vector<8x128xf32>
      %26 = arith.mulf %24, %25 : vector<8x128xf32>
      %27 = arith.truncf %26 : vector<8x128xf32> to vector<8x128xbf16>
      %28 = tpu.concatenate %19, %27 in 1 : vector<8x128xbf16>, vector<8x128xbf16> -> vector<8x256xbf16>
      %c0_15 = arith.constant 0 : index
      %c0_16 = arith.constant 0 : index
      %c0_17 = arith.constant 0 : index
      %29 = vector.load %arg6[%c0_15, %c0_16, %c0_17] : memref<1x8x256xbf16, #tpu.memory_space<vmem>>, vector<1x8x256xbf16>
      %30 = vector.shape_cast %29 : vector<1x8x256xbf16> to vector<8x256xbf16>
      %31 = vector.shape_cast %28 : vector<8x256xbf16> to vector<1x8x256xbf16>
      tpu.vector_store %arg6[%c0_15, %c0_16, %c0_17], %31 {strides = array<i32>} : memref<1x8x256xbf16, #tpu.memory_space<vmem>>, vector<1x8x256xbf16>,
    } else {
    }
    return
  }
  func.func @transform_0(%arg0: i32, %arg1: i32, %arg2: i32) -> (i32, i32, i32) {
    %c0_i32 = arith.constant 0 : i32
    %c0_i32_0 = arith.constant 0 : i32
    return %arg0, %arg1, %c0_i32 : i32, i32, i32
  }
  func.func @transform_1(%arg0: i32, %arg1: i32, %arg2: i32) -> (i32, i32, i32) {
    %0 = arith.minsi %arg2, %arg1 : i32
    %c1_i32 = arith.constant 1 : i32
    %c0_i32 = arith.constant 0 : i32
    return %arg0, %0, %c1_i32 : i32, i32, i32
  }
  func.func @transform_2(%arg0: i32, %arg1: i32, %arg2: i32) -> (i32, i32, i32) {
    %0 = arith.minsi %arg2, %arg1 : i32
    %c2_i32 = arith.constant 2 : i32
    %c0_i32 = arith.constant 0 : i32
    return %arg0, %0, %c2_i32 : i32, i32, i32
  }
  func.func @transform_3(%arg0: i32, %arg1: i32, %arg2: i32) -> (i32, i32, i32) {
    %c0_i32 = arith.constant 0 : i32
    %c0_i32_0 = arith.constant 0 : i32
    return %arg0, %arg1, %c0_i32 : i32, i32, i32
  }
}

module attributes {stable_mosaic.version = 11 : i64} {
  func.func @_ln_qkv_kernel(%arg0: i32, %arg1: i32, %arg2: memref<16x256xf32, #tpu.memory_space<vmem>>, %arg3: memref<1x256xf32, #tpu.memory_space<vmem>>, %arg4: memref<1x256xf32, #tpu.memory_space<vmem>>, %arg5: memref<256x768xbf16, #tpu.memory_space<vmem>>, %arg6: memref<1x768xf32, #tpu.memory_space<vmem>>, %arg7: memref<16x768xbf16, #tpu.memory_space<vmem>>, %arg8: memref<16x256xbf16, #tpu.memory_space<vmem>>) attributes {dimension_semantics = [#tpu.dimension_semantics<parallel>, #tpu.dimension_semantics<arbitrary>], iteration_bounds = array<i64: 1, 1>, scalar_prefetch = 0 : i64, scratch_operands = 1 : i64, tpu.core_type = #tpu.core_type<tc>, window_params = [{transform_indices = @transform_0, window_bounds = array<i64: 16, 256>}, {pipeline_mode = #tpu.pipeline_mode<synchronous>, transform_indices = @transform_1, window_bounds = array<i64: 1, 256>}, {pipeline_mode = #tpu.pipeline_mode<synchronous>, transform_indices = @transform_2, window_bounds = array<i64: 1, 256>}, {transform_indices = @transform_3, window_bounds = array<i64: 256, 768>}, {transform_indices = @transform_4, window_bounds = array<i64: 1, 768>}, {transform_indices = @transform_5, window_bounds = array<i64: 16, 768>}]} {
    %c0_i32 = arith.constant 0 : i32
    %0 = arith.cmpi eq, %arg1, %c0_i32 : i32
    %1 = arith.extui %0 : i1 to i32
    %c0_i32_0 = arith.constant 0 : i32
    %2 = arith.cmpi ne, %1, %c0_i32_0 : i32
    scf.if %2 {
      %c0_8 = arith.constant 0 : index
      %c0_9 = arith.constant 0 : index
      %11 = vector.load %arg2[%c0_8, %c0_9] : memref<16x256xf32, #tpu.memory_space<vmem>>, vector<16x256xf32>
      %c0_10 = arith.constant 0 : index
      %c0_11 = arith.constant 0 : index
      %12 = vector.load %arg3[%c0_10, %c0_11] : memref<1x256xf32, #tpu.memory_space<vmem>>, vector<1x256xf32>
      %c0_12 = arith.constant 0 : index
      %c0_13 = arith.constant 0 : index
      %13 = vector.load %arg4[%c0_12, %c0_13] : memref<1x256xf32, #tpu.memory_space<vmem>>, vector<1x256xf32>
      %cst_14 = arith.constant dense<0.000000e+00> : vector<16xf32>
      %14 = vector.multi_reduction <add>, %11, %cst_14 [1] : vector<16x256xf32> to vector<16xf32>
      %15 = vector.shape_cast %14 : vector<16xf32> to vector<16x1xf32>
      %cst_15 = arith.constant 2.560000e+02 : f32
      %16 = vector.broadcast %cst_15 : f32 to vector<16x1xf32>
      %17 = arith.divf %15, %16 : vector<16x1xf32>
      %18 = vector.broadcast %17 : vector<16x1xf32> to vector<16x256xf32>
      %19 = arith.subf %11, %18 : vector<16x256xf32>
      %20 = arith.mulf %19, %19 : vector<16x256xf32>
      %cst_16 = arith.constant dense<0.000000e+00> : vector<16xf32>
      %21 = vector.multi_reduction <add>, %20, %cst_16 [1] : vector<16x256xf32> to vector<16xf32>
      %22 = vector.shape_cast %21 : vector<16xf32> to vector<16x1xf32>
      %cst_17 = arith.constant 2.560000e+02 : f32
      %23 = vector.broadcast %cst_17 : f32 to vector<16x1xf32>
      %24 = arith.divf %22, %23 : vector<16x1xf32>
      %25 = vector.broadcast %17 : vector<16x1xf32> to vector<16x256xf32>
      %26 = arith.subf %11, %25 : vector<16x256xf32>
      %cst_18 = arith.constant 9.99999974E-6 : f32
      %27 = vector.broadcast %cst_18 : f32 to vector<16x1xf32>
      %28 = arith.addf %24, %27 : vector<16x1xf32>
      %29 = math.rsqrt %28 : vector<16x1xf32>
      %30 = vector.broadcast %29 : vector<16x1xf32> to vector<16x256xf32>
      %31 = arith.mulf %26, %30 : vector<16x256xf32>
      %32 = vector.broadcast %12 : vector<1x256xf32> to vector<16x256xf32>
      %33 = arith.mulf %31, %32 : vector<16x256xf32>
      %34 = vector.broadcast %13 : vector<1x256xf32> to vector<16x256xf32>
      %35 = arith.addf %33, %34 : vector<16x256xf32>
      %36 = arith.truncf %35 : vector<16x256xf32> to vector<16x256xbf16>
      %c0_19 = arith.constant 0 : index
      %c0_20 = arith.constant 0 : index
      %37 = vector.load %arg8[%c0_19, %c0_20] : memref<16x256xbf16, #tpu.memory_space<vmem>>, vector<16x256xbf16>
      tpu.vector_store %arg8[%c0_19, %c0_20], %36 {strides = array<i32>} : memref<16x256xbf16, #tpu.memory_space<vmem>>, vector<16x256xbf16>,
    } else {
    }
    %c0 = arith.constant 0 : index
    %c0_1 = arith.constant 0 : index
    %3 = vector.load %arg8[%c0, %c0_1] : memref<16x256xbf16, #tpu.memory_space<vmem>>, vector<16x256xbf16>
    %c0_2 = arith.constant 0 : index
    %c0_3 = arith.constant 0 : index
    %4 = vector.load %arg5[%c0_2, %c0_3] : memref<256x768xbf16, #tpu.memory_space<vmem>>, vector<256x768xbf16>
    %cst = arith.constant dense<0.000000e+00> : vector<16x768xf32>
    %5 = tpu.matmul %3, %4, %cst {dimension_numbers = #tpu.dot_dimension_numbers<[1], [0], [0], [1], [0, 0, 1, 1], [], []>} : vector<16x256xbf16>, vector<256x768xbf16>, vector<16x768xf32> -> vector<16x768xf32>
    %c0_4 = arith.constant 0 : index
    %c0_5 = arith.constant 0 : index
    %6 = vector.load %arg6[%c0_4, %c0_5] : memref<1x768xf32, #tpu.memory_space<vmem>>, vector<1x768xf32>
    %7 = vector.broadcast %6 : vector<1x768xf32> to vector<16x768xf32>
    %8 = arith.addf %5, %7 : vector<16x768xf32>
    %9 = arith.truncf %8 : vector<16x768xf32> to vector<16x768xbf16>
    %c0_6 = arith.constant 0 : index
    %c0_7 = arith.constant 0 : index
    %10 = vector.load %arg7[%c0_6, %c0_7] : memref<16x768xbf16, #tpu.memory_space<vmem>>, vector<16x768xbf16>
    tpu.vector_store %arg7[%c0_6, %c0_7], %9 {strides = array<i32>} : memref<16x768xbf16, #tpu.memory_space<vmem>>, vector<16x768xbf16>,
    return
  }
  func.func @transform_0(%arg0: i32, %arg1: i32) -> (i32, i32) {
    %c0_i32 = arith.constant 0 : i32
    %c0_i32_0 = arith.constant 0 : i32
    return %arg0, %c0_i32 : i32, i32
  }
  func.func @transform_1(%arg0: i32, %arg1: i32) -> (i32, i32) {
    %c0_i32 = arith.constant 0 : i32
    %c0_i32_0 = arith.constant 0 : i32
    %c0_i32_1 = arith.constant 0 : i32
    return %c0_i32, %c0_i32_0 : i32, i32
  }
  func.func @transform_2(%arg0: i32, %arg1: i32) -> (i32, i32) {
    %c0_i32 = arith.constant 0 : i32
    %c0_i32_0 = arith.constant 0 : i32
    %c0_i32_1 = arith.constant 0 : i32
    return %c0_i32, %c0_i32_0 : i32, i32
  }
  func.func @transform_3(%arg0: i32, %arg1: i32) -> (i32, i32) {
    %c0_i32 = arith.constant 0 : i32
    %c0_i32_0 = arith.constant 0 : i32
    return %c0_i32, %arg1 : i32, i32
  }
  func.func @transform_4(%arg0: i32, %arg1: i32) -> (i32, i32) {
    %c0_i32 = arith.constant 0 : i32
    %c0_i32_0 = arith.constant 0 : i32
    return %c0_i32, %arg1 : i32, i32
  }
  func.func @transform_5(%arg0: i32, %arg1: i32) -> (i32, i32) {
    %c0_i32 = arith.constant 0 : i32
    return %arg0, %arg1 : i32, i32
  }
}

module attributes {stable_mosaic.version = 11 : i64} {
  func.func @_ln_qkv_kernel(%arg0: i32, %arg1: i32, %arg2: memref<16x256xf32, #tpu.memory_space<vmem>>, %arg3: memref<1x256xf32, #tpu.memory_space<vmem>>, %arg4: memref<1x256xf32, #tpu.memory_space<vmem>>, %arg5: memref<256x768xbf16, #tpu.memory_space<vmem>>, %arg6: memref<1x768xf32, #tpu.memory_space<vmem>>, %arg7: memref<16x768xbf16, #tpu.memory_space<vmem>>, %arg8: memref<16x256xbf16, #tpu.memory_space<vmem>>) attributes {dimension_semantics = [#tpu.dimension_semantics<parallel>, #tpu.dimension_semantics<arbitrary>], iteration_bounds = array<i64: 1, 1>, scalar_prefetch = 0 : i64, scratch_operands = 1 : i64, tpu.core_type = #tpu.core_type<tc>, window_params = [{transform_indices = @transform_0, window_bounds = array<i64: 16, 256>}, {pipeline_mode = #tpu.pipeline_mode<synchronous>, transform_indices = @transform_1, window_bounds = array<i64: 1, 256>}, {pipeline_mode = #tpu.pipeline_mode<synchronous>, transform_indices = @transform_2, window_bounds = array<i64: 1, 256>}, {transform_indices = @transform_3, window_bounds = array<i64: 256, 768>}, {transform_indices = @transform_4, window_bounds = array<i64: 1, 768>}, {transform_indices = @transform_5, window_bounds = array<i64: 16, 768>}]} {
    %c0_i32 = arith.constant 0 : i32
    %0 = arith.cmpi eq, %arg1, %c0_i32 : i32
    %1 = arith.extui %0 : i1 to i32
    %c0_i32_0 = arith.constant 0 : i32
    %2 = arith.cmpi ne, %1, %c0_i32_0 : i32
    scf.if %2 {
      %c0_8 = arith.constant 0 : index
      %c0_9 = arith.constant 0 : index
      %11 = vector.load %arg2[%c0_8, %c0_9] : memref<16x256xf32, #tpu.memory_space<vmem>>, vector<16x256xf32>
      %c0_10 = arith.constant 0 : index
      %c0_11 = arith.constant 0 : index
      %12 = vector.load %arg3[%c0_10, %c0_11] : memref<1x256xf32, #tpu.memory_space<vmem>>, vector<1x256xf32>
      %c0_12 = arith.constant 0 : index
      %c0_13 = arith.constant 0 : index
      %13 = vector.load %arg4[%c0_12, %c0_13] : memref<1x256xf32, #tpu.memory_space<vmem>>, vector<1x256xf32>
      %cst_14 = arith.constant dense<0.000000e+00> : vector<16xf32>
      %14 = vector.multi_reduction <add>, %11, %cst_14 [1] : vector<16x256xf32> to vector<16xf32>
      %15 = vector.shape_cast %14 : vector<16xf32> to vector<16x1xf32>
      %cst_15 = arith.constant 2.560000e+02 : f32
      %16 = vector.broadcast %cst_15 : f32 to vector<16x1xf32>
      %17 = arith.divf %15, %16 : vector<16x1xf32>
      %18 = vector.broadcast %17 : vector<16x1xf32> to vector<16x256xf32>
      %19 = arith.subf %11, %18 : vector<16x256xf32>
      %20 = arith.mulf %19, %19 : vector<16x256xf32>
      %cst_16 = arith.constant dense<0.000000e+00> : vector<16xf32>
      %21 = vector.multi_reduction <add>, %20, %cst_16 [1] : vector<16x256xf32> to vector<16xf32>
      %22 = vector.shape_cast %21 : vector<16xf32> to vector<16x1xf32>
      %cst_17 = arith.constant 2.560000e+02 : f32
      %23 = vector.broadcast %cst_17 : f32 to vector<16x1xf32>
      %24 = arith.divf %22, %23 : vector<16x1xf32>
      %25 = vector.broadcast %17 : vector<16x1xf32> to vector<16x256xf32>
      %26 = arith.subf %11, %25 : vector<16x256xf32>
      %cst_18 = arith.constant 9.99999974E-6 : f32
      %27 = vector.broadcast %cst_18 : f32 to vector<16x1xf32>
      %28 = arith.addf %24, %27 : vector<16x1xf32>
      %29 = math.rsqrt %28 : vector<16x1xf32>
      %30 = vector.broadcast %29 : vector<16x1xf32> to vector<16x256xf32>
      %31 = arith.mulf %26, %30 : vector<16x256xf32>
      %32 = vector.broadcast %12 : vector<1x256xf32> to vector<16x256xf32>
      %33 = arith.mulf %31, %32 : vector<16x256xf32>
      %34 = vector.broadcast %13 : vector<1x256xf32> to vector<16x256xf32>
      %35 = arith.addf %33, %34 : vector<16x256xf32>
      %36 = arith.truncf %35 : vector<16x256xf32> to vector<16x256xbf16>
      %c0_19 = arith.constant 0 : index
      %c0_20 = arith.constant 0 : index
      %37 = vector.load %arg8[%c0_19, %c0_20] : memref<16x256xbf16, #tpu.memory_space<vmem>>, vector<16x256xbf16>
      tpu.vector_store %arg8[%c0_19, %c0_20], %36 {strides = array<i32>} : memref<16x256xbf16, #tpu.memory_space<vmem>>, vector<16x256xbf16>,
    } else {
    }
    %c0 = arith.constant 0 : index
    %c0_1 = arith.constant 0 : index
    %3 = vector.load %arg8[%c0, %c0_1] : memref<16x256xbf16, #tpu.memory_space<vmem>>, vector<16x256xbf16>
    %c0_2 = arith.constant 0 : index
    %c0_3 = arith.constant 0 : index
    %4 = vector.load %arg5[%c0_2, %c0_3] : memref<256x768xbf16, #tpu.memory_space<vmem>>, vector<256x768xbf16>
    %cst = arith.constant dense<0.000000e+00> : vector<16x768xf32>
    %5 = tpu.matmul %3, %4, %cst {dimension_numbers = #tpu.dot_dimension_numbers<[1], [0], [0], [1], [0, 0, 1, 1], [], []>} : vector<16x256xbf16>, vector<256x768xbf16>, vector<16x768xf32> -> vector<16x768xf32>
    %c0_4 = arith.constant 0 : index
    %c0_5 = arith.constant 0 : index
    %6 = vector.load %arg6[%c0_4, %c0_5] : memref<1x768xf32, #tpu.memory_space<vmem>>, vector<1x768xf32>
    %7 = vector.broadcast %6 : vector<1x768xf32> to vector<16x768xf32>
    %8 = arith.addf %5, %7 : vector<16x768xf32>
    %9 = arith.truncf %8 : vector<16x768xf32> to vector<16x768xbf16>
    %c0_6 = arith.constant 0 : index
    %c0_7 = arith.constant 0 : index
    %10 = vector.load %arg7[%c0_6, %c0_7] : memref<16x768xbf16, #tpu.memory_space<vmem>>, vector<16x768xbf16>
    tpu.vector_store %arg7[%c0_6, %c0_7], %9 {strides = array<i32>} : memref<16x768xbf16, #tpu.memory_space<vmem>>, vector<16x768xbf16>,
    return
  }
  func.func @transform_0(%arg0: i32, %arg1: i32) -> (i32, i32) {
    %c0_i32 = arith.constant 0 : i32
    %c0_i32_0 = arith.constant 0 : i32
    return %arg0, %c0_i32 : i32, i32
  }
  func.func @transform_1(%arg0: i32, %arg1: i32) -> (i32, i32) {
    %c0_i32 = arith.constant 0 : i32
    %c0_i32_0 = arith.constant 0 : i32
    %c0_i32_1 = arith.constant 0 : i32
    return %c0_i32, %c0_i32_0 : i32, i32
  }
  func.func @transform_2(%arg0: i32, %arg1: i32) -> (i32, i32) {
    %c0_i32 = arith.constant 0 : i32
    %c0_i32_0 = arith.constant 0 : i32
    %c0_i32_1 = arith.constant 0 : i32
    return %c0_i32, %c0_i32_0 : i32, i32
  }
  func.func @transform_3(%arg0: i32, %arg1: i32) -> (i32, i32) {
    %c0_i32 = arith.constant 0 : i32
    %c0_i32_0 = arith.constant 0 : i32
    return %c0_i32, %arg1 : i32, i32
  }
  func.func @transform_4(%arg0: i32, %arg1: i32) -> (i32, i32) {
    %c0_i32 = arith.constant 0 : i32
    %c0_i32_0 = arith.constant 0 : i32
    return %c0_i32, %arg1 : i32, i32
  }
  func.func @transform_5(%arg0: i32, %arg1: i32) -> (i32, i32) {
    %c0_i32 = arith.constant 0 : i32
    return %arg0, %arg1 : i32, i32
  }
}

module attributes {stable_mosaic.version = 11 : i64} {
  func.func @_attn_ffn_kernel(%arg0: i32, %arg1: i32, %arg2: memref<16x256xbf16, #tpu.memory_space<vmem>>, %arg3: memref<16x256xf32, #tpu.memory_space<vmem>>, %arg4: memref<256x256xbf16, #tpu.memory_space<vmem>>, %arg5: memref<1x256xf32, #tpu.memory_space<vmem>>, %arg6: memref<1x256xf32, #tpu.memory_space<vmem>>, %arg7: memref<1x256xf32, #tpu.memory_space<vmem>>, %arg8: memref<256x1024xbf16, #tpu.memory_space<vmem>>, %arg9: memref<1x1024xf32, #tpu.memory_space<vmem>>, %arg10: memref<1024x256xbf16, #tpu.memory_space<vmem>>, %arg11: memref<1x256xf32, #tpu.memory_space<vmem>>, %arg12: memref<16x256xf32, #tpu.memory_space<vmem>>, %arg13: memref<16x256xf32, #tpu.memory_space<vmem>>, %arg14: memref<16x256xbf16, #tpu.memory_space<vmem>>, %arg15: memref<16x256xf32, #tpu.memory_space<vmem>>) attributes {dimension_semantics = [#tpu.dimension_semantics<parallel>, #tpu.dimension_semantics<arbitrary>], iteration_bounds = array<i64: 1, 1>, scalar_prefetch = 0 : i64, scratch_operands = 3 : i64, tpu.core_type = #tpu.core_type<tc>, window_params = [{transform_indices = @transform_0, window_bounds = array<i64: 16, 256>}, {transform_indices = @transform_1, window_bounds = array<i64: 16, 256>}, {pipeline_mode = #tpu.pipeline_mode<synchronous>, transform_indices = @transform_2, window_bounds = array<i64: 256, 256>}, {pipeline_mode = #tpu.pipeline_mode<synchronous>, transform_indices = @transform_3, window_bounds = array<i64: 1, 256>}, {pipeline_mode = #tpu.pipeline_mode<synchronous>, transform_indices = @transform_4, window_bounds = array<i64: 1, 256>}, {pipeline_mode = #tpu.pipeline_mode<synchronous>, transform_indices = @transform_5, window_bounds = array<i64: 1, 256>}, {transform_indices = @transform_6, window_bounds = array<i64: 256, 1024>}, {transform_indices = @transform_7, window_bounds = array<i64: 1, 1024>}, {transform_indices = @transform_8, window_bounds = array<i64: 1024, 256>}, {pipeline_mode = #tpu.pipeline_mode<synchronous>, transform_indices = @transform_9, window_bounds = array<i64: 1, 256>}, {transform_indices = @transform_10, window_bounds = array<i64: 16, 256>}]} {
    %c0_i32 = arith.constant 0 : i32
    %0 = arith.cmpi eq, %arg1, %c0_i32 : i32
    %1 = arith.extui %0 : i1 to i32
    %c0_i32_0 = arith.constant 0 : i32
    %2 = arith.cmpi ne, %1, %c0_i32_0 : i32
    scf.if %2 {
      %c0_31 = arith.constant 0 : index
      %c0_32 = arith.constant 0 : index
      %59 = vector.load %arg2[%c0_31, %c0_32] : memref<16x256xbf16, #tpu.memory_space<vmem>>, vector<16x256xbf16>
      %c0_33 = arith.constant 0 : index
      %c0_34 = arith.constant 0 : index
      %60 = vector.load %arg4[%c0_33, %c0_34] : memref<256x256xbf16, #tpu.memory_space<vmem>>, vector<256x256xbf16>
      %cst_35 = arith.constant dense<0.000000e+00> : vector<16x256xf32>
      %61 = tpu.matmul %59, %60, %cst_35 {dimension_numbers = #tpu.dot_dimension_numbers<[1], [0], [0], [1], [0, 0, 1, 1], [], []>} : vector<16x256xbf16>, vector<256x256xbf16>, vector<16x256xf32> -> vector<16x256xf32>
      %c0_36 = arith.constant 0 : index
      %c0_37 = arith.constant 0 : index
      %62 = vector.load %arg5[%c0_36, %c0_37] : memref<1x256xf32, #tpu.memory_space<vmem>>, vector<1x256xf32>
      %63 = vector.broadcast %62 : vector<1x256xf32> to vector<16x256xf32>
      %64 = arith.addf %61, %63 : vector<16x256xf32>
      %c0_38 = arith.constant 0 : index
      %c0_39 = arith.constant 0 : index
      %65 = vector.load %arg3[%c0_38, %c0_39] : memref<16x256xf32, #tpu.memory_space<vmem>>, vector<16x256xf32>
      %66 = arith.addf %65, %64 : vector<16x256xf32>
      %c0_40 = arith.constant 0 : index
      %c0_41 = arith.constant 0 : index
      %67 = vector.load %arg13[%c0_40, %c0_41] : memref<16x256xf32, #tpu.memory_space<vmem>>, vector<16x256xf32>
      tpu.vector_store %arg13[%c0_40, %c0_41], %66 {strides = array<i32>} : memref<16x256xf32, #tpu.memory_space<vmem>>, vector<16x256xf32>,
      %c0_42 = arith.constant 0 : index
      %c0_43 = arith.constant 0 : index
      %68 = vector.load %arg6[%c0_42, %c0_43] : memref<1x256xf32, #tpu.memory_space<vmem>>, vector<1x256xf32>
      %c0_44 = arith.constant 0 : index
      %c0_45 = arith.constant 0 : index
      %69 = vector.load %arg7[%c0_44, %c0_45] : memref<1x256xf32, #tpu.memory_space<vmem>>, vector<1x256xf32>
      %cst_46 = arith.constant dense<0.000000e+00> : vector<16xf32>
      %70 = vector.multi_reduction <add>, %66, %cst_46 [1] : vector<16x256xf32> to vector<16xf32>
      %71 = vector.shape_cast %70 : vector<16xf32> to vector<16x1xf32>
      %cst_47 = arith.constant 2.560000e+02 : f32
      %72 = vector.broadcast %cst_47 : f32 to vector<16x1xf32>
      %73 = arith.divf %71, %72 : vector<16x1xf32>
      %74 = vector.broadcast %73 : vector<16x1xf32> to vector<16x256xf32>
      %75 = arith.subf %66, %74 : vector<16x256xf32>
      %76 = arith.mulf %75, %75 : vector<16x256xf32>
      %cst_48 = arith.constant dense<0.000000e+00> : vector<16xf32>
      %77 = vector.multi_reduction <add>, %76, %cst_48 [1] : vector<16x256xf32> to vector<16xf32>
      %78 = vector.shape_cast %77 : vector<16xf32> to vector<16x1xf32>
      %cst_49 = arith.constant 2.560000e+02 : f32
      %79 = vector.broadcast %cst_49 : f32 to vector<16x1xf32>
      %80 = arith.divf %78, %79 : vector<16x1xf32>
      %81 = vector.broadcast %73 : vector<16x1xf32> to vector<16x256xf32>
      %82 = arith.subf %66, %81 : vector<16x256xf32>
      %cst_50 = arith.constant 9.99999974E-6 : f32
      %83 = vector.broadcast %cst_50 : f32 to vector<16x1xf32>
      %84 = arith.addf %80, %83 : vector<16x1xf32>
      %85 = math.rsqrt %84 : vector<16x1xf32>
      %86 = vector.broadcast %85 : vector<16x1xf32> to vector<16x256xf32>
      %87 = arith.mulf %82, %86 : vector<16x256xf32>
      %88 = vector.broadcast %68 : vector<1x256xf32> to vector<16x256xf32>
      %89 = arith.mulf %87, %88 : vector<16x256xf32>
      %90 = vector.broadcast %69 : vector<1x256xf32> to vector<16x256xf32>
      %91 = arith.addf %89, %90 : vector<16x256xf32>
      %92 = arith.truncf %91 : vector<16x256xf32> to vector<16x256xbf16>
      %c0_51 = arith.constant 0 : index
      %c0_52 = arith.constant 0 : index
      %93 = vector.load %arg14[%c0_51, %c0_52] : memref<16x256xbf16, #tpu.memory_space<vmem>>, vector<16x256xbf16>
      tpu.vector_store %arg14[%c0_51, %c0_52], %92 {strides = array<i32>} : memref<16x256xbf16, #tpu.memory_space<vmem>>, vector<16x256xbf16>,
      %cst_53 = arith.constant 0.000000e+00 : f32
      %94 = vector.broadcast %cst_53 : f32 to vector<16x256xf32>
      %c0_54 = arith.constant 0 : index
      %c0_55 = arith.constant 0 : index
      %95 = vector.load %arg15[%c0_54, %c0_55] : memref<16x256xf32, #tpu.memory_space<vmem>>, vector<16x256xf32>
      tpu.vector_store %arg15[%c0_54, %c0_55], %94 {strides = array<i32>} : memref<16x256xf32, #tpu.memory_space<vmem>>, vector<16x256xf32>,
    } else {
    }
    %c0 = arith.constant 0 : index
    %c0_1 = arith.constant 0 : index
    %3 = vector.load %arg14[%c0, %c0_1] : memref<16x256xbf16, #tpu.memory_space<vmem>>, vector<16x256xbf16>
    %c0_2 = arith.constant 0 : index
    %c0_3 = arith.constant 0 : index
    %4 = vector.load %arg8[%c0_2, %c0_3] : memref<256x1024xbf16, #tpu.memory_space<vmem>>, vector<256x1024xbf16>
    %cst = arith.constant dense<0.000000e+00> : vector<16x1024xf32>
    %5 = tpu.matmul %3, %4, %cst {dimension_numbers = #tpu.dot_dimension_numbers<[1], [0], [0], [1], [0, 0, 1, 1], [], []>} : vector<16x256xbf16>, vector<256x1024xbf16>, vector<16x1024xf32> -> vector<16x1024xf32>
    %c0_4 = arith.constant 0 : index
    %c0_5 = arith.constant 0 : index
    %6 = vector.load %arg9[%c0_4, %c0_5] : memref<1x1024xf32, #tpu.memory_space<vmem>>, vector<1x1024xf32>
    %7 = vector.broadcast %6 : vector<1x1024xf32> to vector<16x1024xf32>
    %8 = arith.addf %5, %7 : vector<16x1024xf32>
    %cst_6 = arith.constant 5.000000e-01 : f32
    %9 = vector.broadcast %cst_6 : f32 to vector<16x1024xf32>
    %10 = arith.mulf %9, %8 : vector<16x1024xf32>
    %cst_7 = arith.constant 0.707106769 : f32
    %11 = vector.broadcast %cst_7 : f32 to vector<16x1024xf32>
    %12 = arith.mulf %8, %11 : vector<16x1024xf32>
    %cst_8 = arith.constant 0.000000e+00 : f32
    %13 = vector.broadcast %cst_8 : f32 to vector<16x1024xf32>
    %14 = arith.cmpf oge, %12, %13 : vector<16x1024xf32>
    %cst_9 = arith.constant 1.000000e+00 : f32
    %cst_10 = arith.constant -1.000000e+00 : f32
    %15 = vector.broadcast %cst_9 : f32 to vector<16x1024xf32>
    %16 = vector.broadcast %cst_10 : f32 to vector<16x1024xf32>
    %17 = arith.select %14, %15, %16 : vector<16x1024xi1>, vector<16x1024xf32>
    %18 = math.absf %12 : vector<16x1024xf32>
    %cst_11 = arith.constant 0.327591091 : f32
    %19 = vector.broadcast %cst_11 : f32 to vector<16x1024xf32>
    %20 = arith.mulf %19, %18 : vector<16x1024xf32>
    %cst_12 = arith.constant 1.000000e+00 : f32
    %21 = vector.broadcast %cst_12 : f32 to vector<16x1024xf32>
    %22 = arith.addf %21, %20 : vector<16x1024xf32>
    %cst_13 = arith.constant 1.000000e+00 : f32
    %23 = vector.broadcast %cst_13 : f32 to vector<16x1024xf32>
    %24 = arith.divf %23, %22 : vector<16x1024xf32>
    %cst_14 = arith.constant 1.06140542 : f32
    %25 = vector.broadcast %cst_14 : f32 to vector<16x1024xf32>
    %26 = arith.mulf %25, %24 : vector<16x1024xf32>
    %cst_15 = arith.constant -1.45315206 : f32
    %27 = vector.broadcast %cst_15 : f32 to vector<16x1024xf32>
    %28 = arith.addf %26, %27 : vector<16x1024xf32>
    %29 = arith.mulf %28, %24 : vector<16x1024xf32>
    %cst_16 = arith.constant 1.42141378 : f32
    %30 = vector.broadcast %cst_16 : f32 to vector<16x1024xf32>
    %31 = arith.addf %29, %30 : vector<16x1024xf32>
    %32 = arith.mulf %31, %24 : vector<16x1024xf32>
    %cst_17 = arith.constant -0.284496725 : f32
    %33 = vector.broadcast %cst_17 : f32 to vector<16x1024xf32>
    %34 = arith.addf %32, %33 : vector<16x1024xf32>
    %35 = arith.mulf %34, %24 : vector<16x1024xf32>
    %cst_18 = arith.constant 0.254829586 : f32
    %36 = vector.broadcast %cst_18 : f32 to vector<16x1024xf32>
    %37 = arith.addf %35, %36 : vector<16x1024xf32>
    %38 = arith.mulf %37, %24 : vector<16x1024xf32>
    %cst_19 = arith.constant 0.000000e+00 : f32
    %39 = vector.broadcast %cst_19 : f32 to vector<16x1024xf32>
    %40 = arith.subf %39, %18 : vector<16x1024xf32>
    %41 = arith.mulf %40, %18 : vector<16x1024xf32>
    %42 = math.exp %41 : vector<16x1024xf32>
    %43 = arith.mulf %38, %42 : vector<16x1024xf32>
    %cst_20 = arith.constant 1.000000e+00 : f32
    %44 = vector.broadcast %cst_20 : f32 to vector<16x1024xf32>
    %45 = arith.subf %44, %43 : vector<16x1024xf32>
    %46 = arith.mulf %17, %45 : vector<16x1024xf32>
    %cst_21 = arith.constant 1.000000e+00 : f32
    %47 = vector.broadcast %cst_21 : f32 to vector<16x1024xf32>
    %48 = arith.addf %47, %46 : vector<16x1024xf32>
    %49 = arith.mulf %10, %48 : vector<16x1024xf32>
    %c0_22 = arith.constant 0 : index
    %c0_23 = arith.constant 0 : index
    %50 = vector.load %arg15[%c0_22, %c0_23] : memref<16x256xf32, #tpu.memory_space<vmem>>, vector<16x256xf32>
    %51 = arith.truncf %49 : vector<16x1024xf32> to vector<16x1024xbf16>
    %c0_24 = arith.constant 0 : index
    %c0_25 = arith.constant 0 : index
    %52 = vector.load %arg10[%c0_24, %c0_25] : memref<1024x256xbf16, #tpu.memory_space<vmem>>, vector<1024x256xbf16>
    %cst_26 = arith.constant dense<0.000000e+00> : vector<16x256xf32>
    %53 = tpu.matmul %51, %52, %cst_26 {dimension_numbers = #tpu.dot_dimension_numbers<[1], [0], [0], [1], [0, 0, 1, 1], [], []>} : vector<16x1024xbf16>, vector<1024x256xbf16>, vector<16x256xf32> -> vector<16x256xf32>
    %54 = arith.addf %50, %53 : vector<16x256xf32>
    %c0_27 = arith.constant 0 : index
    %c0_28 = arith.constant 0 : index
    %55 = vector.load %arg15[%c0_27, %c0_28] : memref<16x256xf32, #tpu.memory_space<vmem>>, vector<16x256xf32>
    tpu.vector_store %arg15[%c0_27, %c0_28], %54 {strides = array<i32>} : memref<16x256xf32, #tpu.memory_space<vmem>>, vector<16x256xf32>,
    %c0_i32_29 = arith.constant 0 : i32
    %56 = arith.cmpi eq, %arg1, %c0_i32_29 : i32
    %57 = arith.extui %56 : i1 to i32
    %c0_i32_30 = arith.constant 0 : i32
    %58 = arith.cmpi ne, %57, %c0_i32_30 : i32
    scf.if %58 {
      %c0_31 = arith.constant 0 : index
      %c0_32 = arith.constant 0 : index
      %59 = vector.load %arg13[%c0_31, %c0_32] : memref<16x256xf32, #tpu.memory_space<vmem>>, vector<16x256xf32>
      %c0_33 = arith.constant 0 : index
      %c0_34 = arith.constant 0 : index
      %60 = vector.load %arg15[%c0_33, %c0_34] : memref<16x256xf32, #tpu.memory_space<vmem>>, vector<16x256xf32>
      %61 = arith.addf %59, %60 : vector<16x256xf32>
      %c0_35 = arith.constant 0 : index
      %c0_36 = arith.constant 0 : index
      %62 = vector.load %arg11[%c0_35, %c0_36] : memref<1x256xf32, #tpu.memory_space<vmem>>, vector<1x256xf32>
      %63 = vector.broadcast %62 : vector<1x256xf32> to vector<16x256xf32>
      %64 = arith.addf %61, %63 : vector<16x256xf32>
      %c0_37 = arith.constant 0 : index
      %c0_38 = arith.constant 0 : index
      %65 = vector.load %arg12[%c0_37, %c0_38] : memref<16x256xf32, #tpu.memory_space<vmem>>, vector<16x256xf32>
      tpu.vector_store %arg12[%c0_37, %c0_38], %64 {strides = array<i32>} : memref<16x256xf32, #tpu.memory_space<vmem>>, vector<16x256xf32>,
    } else {
    }
    return
  }
  func.func @transform_0(%arg0: i32, %arg1: i32) -> (i32, i32) {
    %c0_i32 = arith.constant 0 : i32
    %c0_i32_0 = arith.constant 0 : i32
    return %arg0, %c0_i32 : i32, i32
  }
  func.func @transform_1(%arg0: i32, %arg1: i32) -> (i32, i32) {
    %c0_i32 = arith.constant 0 : i32
    %c0_i32_0 = arith.constant 0 : i32
    return %arg0, %c0_i32 : i32, i32
  }
  func.func @transform_2(%arg0: i32, %arg1: i32) -> (i32, i32) {
    %c0_i32 = arith.constant 0 : i32
    %c0_i32_0 = arith.constant 0 : i32
    %c0_i32_1 = arith.constant 0 : i32
    return %c0_i32, %c0_i32_0 : i32, i32
  }
  func.func @transform_3(%arg0: i32, %arg1: i32) -> (i32, i32) {
    %c0_i32 = arith.constant 0 : i32
    %c0_i32_0 = arith.constant 0 : i32
    %c0_i32_1 = arith.constant 0 : i32
    return %c0_i32, %c0_i32_0 : i32, i32
  }
  func.func @transform_4(%arg0: i32, %arg1: i32) -> (i32, i32) {
    %c0_i32 = arith.constant 0 : i32
    %c0_i32_0 = arith.constant 0 : i32
    %c0_i32_1 = arith.constant 0 : i32
    return %c0_i32, %c0_i32_0 : i32, i32
  }
  func.func @transform_5(%arg0: i32, %arg1: i32) -> (i32, i32) {
    %c0_i32 = arith.constant 0 : i32
    %c0_i32_0 = arith.constant 0 : i32
    %c0_i32_1 = arith.constant 0 : i32
    return %c0_i32, %c0_i32_0 : i32, i32
  }
  func.func @transform_6(%arg0: i32, %arg1: i32) -> (i32, i32) {
    %c0_i32 = arith.constant 0 : i32
    %c0_i32_0 = arith.constant 0 : i32
    return %c0_i32, %arg1 : i32, i32
  }
  func.func @transform_7(%arg0: i32, %arg1: i32) -> (i32, i32) {
    %c0_i32 = arith.constant 0 : i32
    %c0_i32_0 = arith.constant 0 : i32
    return %c0_i32, %arg1 : i32, i32
  }
  func.func @transform_8(%arg0: i32, %arg1: i32) -> (i32, i32) {
    %c0_i32 = arith.constant 0 : i32
    %c0_i32_0 = arith.constant 0 : i32
    return %arg1, %c0_i32 : i32, i32
  }
  func.func @transform_9(%arg0: i32, %arg1: i32) -> (i32, i32) {
    %c0_i32 = arith.constant 0 : i32
    %c0_i32_0 = arith.constant 0 : i32
    %c0_i32_1 = arith.constant 0 : i32
    return %c0_i32, %c0_i32_0 : i32, i32
  }
  func.func @transform_10(%arg0: i32, %arg1: i32) -> (i32, i32) {
    %c0_i32 = arith.constant 0 : i32
    %c0_i32_0 = arith.constant 0 : i32
    return %arg0, %c0_i32 : i32, i32
  }
}

module attributes {stable_mosaic.version = 11 : i64} {
  func.func @_vocab_proj_kernel(%arg0: i32, %arg1: i32, %arg2: memref<16x256xf32, #tpu.memory_space<vmem>>, %arg3: memref<256x128xbf16, #tpu.memory_space<vmem>>, %arg4: memref<16x128xf32, #tpu.memory_space<vmem>>) attributes {dimension_semantics = [#tpu.dimension_semantics<parallel>, #tpu.dimension_semantics<parallel>], iteration_bounds = array<i64: 1, 1>, scalar_prefetch = 0 : i64, scratch_operands = 0 : i64, tpu.core_type = #tpu.core_type<tc>, window_params = [{transform_indices = @transform_0, window_bounds = array<i64: 16, 256>}, {transform_indices = @transform_1, window_bounds = array<i64: 256, 128>}, {transform_indices = @transform_2, window_bounds = array<i64: 16, 128>}]} {
    %c0 = arith.constant 0 : index
    %c0_0 = arith.constant 0 : index
    %0 = vector.load %arg2[%c0, %c0_0] : memref<16x256xf32, #tpu.memory_space<vmem>>, vector<16x256xf32>
    %1 = arith.truncf %0 : vector<16x256xf32> to vector<16x256xbf16>
    %c0_1 = arith.constant 0 : index
    %c0_2 = arith.constant 0 : index
    %2 = vector.load %arg3[%c0_1, %c0_2] : memref<256x128xbf16, #tpu.memory_space<vmem>>, vector<256x128xbf16>
    %cst = arith.constant dense<0.000000e+00> : vector<16x128xf32>
    %3 = tpu.matmul %1, %2, %cst {dimension_numbers = #tpu.dot_dimension_numbers<[1], [0], [0], [1], [0, 0, 1, 1], [], []>} : vector<16x256xbf16>, vector<256x128xbf16>, vector<16x128xf32> -> vector<16x128xf32>
    %c0_3 = arith.constant 0 : index
    %c0_4 = arith.constant 0 : index
    %4 = vector.load %arg4[%c0_3, %c0_4] : memref<16x128xf32, #tpu.memory_space<vmem>>, vector<16x128xf32>
    tpu.vector_store %arg4[%c0_3, %c0_4], %3 {strides = array<i32>} : memref<16x128xf32, #tpu.memory_space<vmem>>, vector<16x128xf32>,
    return
  }
  func.func @transform_0(%arg0: i32, %arg1: i32) -> (i32, i32) {
    %c0_i32 = arith.constant 0 : i32
    %c0_i32_0 = arith.constant 0 : i32
    return %arg0, %c0_i32 : i32, i32
  }
  func.func @transform_1(%arg0: i32, %arg1: i32) -> (i32, i32) {
    %c0_i32 = arith.constant 0 : i32
    %c0_i32_0 = arith.constant 0 : i32
    return %c0_i32, %arg1 : i32, i32
  }
  func.func @transform_2(%arg0: i32, %arg1: i32) -> (i32, i32) {
    %c0_i32 = arith.constant 0 : i32
    return %arg0, %arg1 : i32, i32
  }
}

module attributes {stable_mosaic.version = 11 : i64} {
  func.func @_attn_ffn_kernel(%arg0: i32, %arg1: i32, %arg2: memref<16x256xbf16, #tpu.memory_space<vmem>>, %arg3: memref<16x256xf32, #tpu.memory_space<vmem>>, %arg4: memref<256x256xbf16, #tpu.memory_space<vmem>>, %arg5: memref<1x256xf32, #tpu.memory_space<vmem>>, %arg6: memref<1x256xf32, #tpu.memory_space<vmem>>, %arg7: memref<1x256xf32, #tpu.memory_space<vmem>>, %arg8: memref<256x1024xbf16, #tpu.memory_space<vmem>>, %arg9: memref<1x1024xf32, #tpu.memory_space<vmem>>, %arg10: memref<1024x256xbf16, #tpu.memory_space<vmem>>, %arg11: memref<1x256xf32, #tpu.memory_space<vmem>>, %arg12: memref<16x256xf32, #tpu.memory_space<vmem>>, %arg13: memref<16x256xf32, #tpu.memory_space<vmem>>, %arg14: memref<16x256xbf16, #tpu.memory_space<vmem>>, %arg15: memref<16x256xf32, #tpu.memory_space<vmem>>) attributes {dimension_semantics = [#tpu.dimension_semantics<parallel>, #tpu.dimension_semantics<arbitrary>], iteration_bounds = array<i64: 1, 1>, scalar_prefetch = 0 : i64, scratch_operands = 3 : i64, tpu.core_type = #tpu.core_type<tc>, window_params = [{transform_indices = @transform_0, window_bounds = array<i64: 16, 256>}, {transform_indices = @transform_1, window_bounds = array<i64: 16, 256>}, {pipeline_mode = #tpu.pipeline_mode<synchronous>, transform_indices = @transform_2, window_bounds = array<i64: 256, 256>}, {pipeline_mode = #tpu.pipeline_mode<synchronous>, transform_indices = @transform_3, window_bounds = array<i64: 1, 256>}, {pipeline_mode = #tpu.pipeline_mode<synchronous>, transform_indices = @transform_4, window_bounds = array<i64: 1, 256>}, {pipeline_mode = #tpu.pipeline_mode<synchronous>, transform_indices = @transform_5, window_bounds = array<i64: 1, 256>}, {transform_indices = @transform_6, window_bounds = array<i64: 256, 1024>}, {transform_indices = @transform_7, window_bounds = array<i64: 1, 1024>}, {transform_indices = @transform_8, window_bounds = array<i64: 1024, 256>}, {pipeline_mode = #tpu.pipeline_mode<synchronous>, transform_indices = @transform_9, window_bounds = array<i64: 1, 256>}, {transform_indices = @transform_10, window_bounds = array<i64: 16, 256>}]} {
    %c0_i32 = arith.constant 0 : i32
    %0 = arith.cmpi eq, %arg1, %c0_i32 : i32
    %1 = arith.extui %0 : i1 to i32
    %c0_i32_0 = arith.constant 0 : i32
    %2 = arith.cmpi ne, %1, %c0_i32_0 : i32
    scf.if %2 {
      %c0_31 = arith.constant 0 : index
      %c0_32 = arith.constant 0 : index
      %59 = vector.load %arg2[%c0_31, %c0_32] : memref<16x256xbf16, #tpu.memory_space<vmem>>, vector<16x256xbf16>
      %c0_33 = arith.constant 0 : index
      %c0_34 = arith.constant 0 : index
      %60 = vector.load %arg4[%c0_33, %c0_34] : memref<256x256xbf16, #tpu.memory_space<vmem>>, vector<256x256xbf16>
      %cst_35 = arith.constant dense<0.000000e+00> : vector<16x256xf32>
      %61 = tpu.matmul %59, %60, %cst_35 {dimension_numbers = #tpu.dot_dimension_numbers<[1], [0], [0], [1], [0, 0, 1, 1], [], []>} : vector<16x256xbf16>, vector<256x256xbf16>, vector<16x256xf32> -> vector<16x256xf32>
      %c0_36 = arith.constant 0 : index
      %c0_37 = arith.constant 0 : index
      %62 = vector.load %arg5[%c0_36, %c0_37] : memref<1x256xf32, #tpu.memory_space<vmem>>, vector<1x256xf32>
      %63 = vector.broadcast %62 : vector<1x256xf32> to vector<16x256xf32>
      %64 = arith.addf %61, %63 : vector<16x256xf32>
      %c0_38 = arith.constant 0 : index
      %c0_39 = arith.constant 0 : index
      %65 = vector.load %arg3[%c0_38, %c0_39] : memref<16x256xf32, #tpu.memory_space<vmem>>, vector<16x256xf32>
      %66 = arith.addf %65, %64 : vector<16x256xf32>
      %c0_40 = arith.constant 0 : index
      %c0_41 = arith.constant 0 : index
      %67 = vector.load %arg13[%c0_40, %c0_41] : memref<16x256xf32, #tpu.memory_space<vmem>>, vector<16x256xf32>
      tpu.vector_store %arg13[%c0_40, %c0_41], %66 {strides = array<i32>} : memref<16x256xf32, #tpu.memory_space<vmem>>, vector<16x256xf32>,
      %c0_42 = arith.constant 0 : index
      %c0_43 = arith.constant 0 : index
      %68 = vector.load %arg6[%c0_42, %c0_43] : memref<1x256xf32, #tpu.memory_space<vmem>>, vector<1x256xf32>
      %c0_44 = arith.constant 0 : index
      %c0_45 = arith.constant 0 : index
      %69 = vector.load %arg7[%c0_44, %c0_45] : memref<1x256xf32, #tpu.memory_space<vmem>>, vector<1x256xf32>
      %cst_46 = arith.constant dense<0.000000e+00> : vector<16xf32>
      %70 = vector.multi_reduction <add>, %66, %cst_46 [1] : vector<16x256xf32> to vector<16xf32>
      %71 = vector.shape_cast %70 : vector<16xf32> to vector<16x1xf32>
      %cst_47 = arith.constant 2.560000e+02 : f32
      %72 = vector.broadcast %cst_47 : f32 to vector<16x1xf32>
      %73 = arith.divf %71, %72 : vector<16x1xf32>
      %74 = vector.broadcast %73 : vector<16x1xf32> to vector<16x256xf32>
      %75 = arith.subf %66, %74 : vector<16x256xf32>
      %76 = arith.mulf %75, %75 : vector<16x256xf32>
      %cst_48 = arith.constant dense<0.000000e+00> : vector<16xf32>
      %77 = vector.multi_reduction <add>, %76, %cst_48 [1] : vector<16x256xf32> to vector<16xf32>
      %78 = vector.shape_cast %77 : vector<16xf32> to vector<16x1xf32>
      %cst_49 = arith.constant 2.560000e+02 : f32
      %79 = vector.broadcast %cst_49 : f32 to vector<16x1xf32>
      %80 = arith.divf %78, %79 : vector<16x1xf32>
      %81 = vector.broadcast %73 : vector<16x1xf32> to vector<16x256xf32>
      %82 = arith.subf %66, %81 : vector<16x256xf32>
      %cst_50 = arith.constant 9.99999974E-6 : f32
      %83 = vector.broadcast %cst_50 : f32 to vector<16x1xf32>
      %84 = arith.addf %80, %83 : vector<16x1xf32>
      %85 = math.rsqrt %84 : vector<16x1xf32>
      %86 = vector.broadcast %85 : vector<16x1xf32> to vector<16x256xf32>
      %87 = arith.mulf %82, %86 : vector<16x256xf32>
      %88 = vector.broadcast %68 : vector<1x256xf32> to vector<16x256xf32>
      %89 = arith.mulf %87, %88 : vector<16x256xf32>
      %90 = vector.broadcast %69 : vector<1x256xf32> to vector<16x256xf32>
      %91 = arith.addf %89, %90 : vector<16x256xf32>
      %92 = arith.truncf %91 : vector<16x256xf32> to vector<16x256xbf16>
      %c0_51 = arith.constant 0 : index
      %c0_52 = arith.constant 0 : index
      %93 = vector.load %arg14[%c0_51, %c0_52] : memref<16x256xbf16, #tpu.memory_space<vmem>>, vector<16x256xbf16>
      tpu.vector_store %arg14[%c0_51, %c0_52], %92 {strides = array<i32>} : memref<16x256xbf16, #tpu.memory_space<vmem>>, vector<16x256xbf16>,
      %cst_53 = arith.constant 0.000000e+00 : f32
      %94 = vector.broadcast %cst_53 : f32 to vector<16x256xf32>
      %c0_54 = arith.constant 0 : index
      %c0_55 = arith.constant 0 : index
      %95 = vector.load %arg15[%c0_54, %c0_55] : memref<16x256xf32, #tpu.memory_space<vmem>>, vector<16x256xf32>
      tpu.vector_store %arg15[%c0_54, %c0_55], %94 {strides = array<i32>} : memref<16x256xf32, #tpu.memory_space<vmem>>, vector<16x256xf32>,
    } else {
    }
    %c0 = arith.constant 0 : index
    %c0_1 = arith.constant 0 : index
    %3 = vector.load %arg14[%c0, %c0_1] : memref<16x256xbf16, #tpu.memory_space<vmem>>, vector<16x256xbf16>
    %c0_2 = arith.constant 0 : index
    %c0_3 = arith.constant 0 : index
    %4 = vector.load %arg8[%c0_2, %c0_3] : memref<256x1024xbf16, #tpu.memory_space<vmem>>, vector<256x1024xbf16>
    %cst = arith.constant dense<0.000000e+00> : vector<16x1024xf32>
    %5 = tpu.matmul %3, %4, %cst {dimension_numbers = #tpu.dot_dimension_numbers<[1], [0], [0], [1], [0, 0, 1, 1], [], []>} : vector<16x256xbf16>, vector<256x1024xbf16>, vector<16x1024xf32> -> vector<16x1024xf32>
    %c0_4 = arith.constant 0 : index
    %c0_5 = arith.constant 0 : index
    %6 = vector.load %arg9[%c0_4, %c0_5] : memref<1x1024xf32, #tpu.memory_space<vmem>>, vector<1x1024xf32>
    %7 = vector.broadcast %6 : vector<1x1024xf32> to vector<16x1024xf32>
    %8 = arith.addf %5, %7 : vector<16x1024xf32>
    %cst_6 = arith.constant 5.000000e-01 : f32
    %9 = vector.broadcast %cst_6 : f32 to vector<16x1024xf32>
    %10 = arith.mulf %9, %8 : vector<16x1024xf32>
    %cst_7 = arith.constant 0.707106769 : f32
    %11 = vector.broadcast %cst_7 : f32 to vector<16x1024xf32>
    %12 = arith.mulf %8, %11 : vector<16x1024xf32>
    %cst_8 = arith.constant 0.000000e+00 : f32
    %13 = vector.broadcast %cst_8 : f32 to vector<16x1024xf32>
    %14 = arith.cmpf oge, %12, %13 : vector<16x1024xf32>
    %cst_9 = arith.constant 1.000000e+00 : f32
    %cst_10 = arith.constant -1.000000e+00 : f32
    %15 = vector.broadcast %cst_9 : f32 to vector<16x1024xf32>
    %16 = vector.broadcast %cst_10 : f32 to vector<16x1024xf32>
    %17 = arith.select %14, %15, %16 : vector<16x1024xi1>, vector<16x1024xf32>
    %18 = math.absf %12 : vector<16x1024xf32>
    %cst_11 = arith.constant 0.327591091 : f32
    %19 = vector.broadcast %cst_11 : f32 to vector<16x1024xf32>
    %20 = arith.mulf %19, %18 : vector<16x1024xf32>
    %cst_12 = arith.constant 1.000000e+00 : f32
    %21 = vector.broadcast %cst_12 : f32 to vector<16x1024xf32>
    %22 = arith.addf %21, %20 : vector<16x1024xf32>
    %cst_13 = arith.constant 1.000000e+00 : f32
    %23 = vector.broadcast %cst_13 : f32 to vector<16x1024xf32>
    %24 = arith.divf %23, %22 : vector<16x1024xf32>
    %cst_14 = arith.constant 1.06140542 : f32
    %25 = vector.broadcast %cst_14 : f32 to vector<16x1024xf32>
    %26 = arith.mulf %25, %24 : vector<16x1024xf32>
    %cst_15 = arith.constant -1.45315206 : f32
    %27 = vector.broadcast %cst_15 : f32 to vector<16x1024xf32>
    %28 = arith.addf %26, %27 : vector<16x1024xf32>
    %29 = arith.mulf %28, %24 : vector<16x1024xf32>
    %cst_16 = arith.constant 1.42141378 : f32
    %30 = vector.broadcast %cst_16 : f32 to vector<16x1024xf32>
    %31 = arith.addf %29, %30 : vector<16x1024xf32>
    %32 = arith.mulf %31, %24 : vector<16x1024xf32>
    %cst_17 = arith.constant -0.284496725 : f32
    %33 = vector.broadcast %cst_17 : f32 to vector<16x1024xf32>
    %34 = arith.addf %32, %33 : vector<16x1024xf32>
    %35 = arith.mulf %34, %24 : vector<16x1024xf32>
    %cst_18 = arith.constant 0.254829586 : f32
    %36 = vector.broadcast %cst_18 : f32 to vector<16x1024xf32>
    %37 = arith.addf %35, %36 : vector<16x1024xf32>
    %38 = arith.mulf %37, %24 : vector<16x1024xf32>
    %cst_19 = arith.constant 0.000000e+00 : f32
    %39 = vector.broadcast %cst_19 : f32 to vector<16x1024xf32>
    %40 = arith.subf %39, %18 : vector<16x1024xf32>
    %41 = arith.mulf %40, %18 : vector<16x1024xf32>
    %42 = math.exp %41 : vector<16x1024xf32>
    %43 = arith.mulf %38, %42 : vector<16x1024xf32>
    %cst_20 = arith.constant 1.000000e+00 : f32
    %44 = vector.broadcast %cst_20 : f32 to vector<16x1024xf32>
    %45 = arith.subf %44, %43 : vector<16x1024xf32>
    %46 = arith.mulf %17, %45 : vector<16x1024xf32>
    %cst_21 = arith.constant 1.000000e+00 : f32
    %47 = vector.broadcast %cst_21 : f32 to vector<16x1024xf32>
    %48 = arith.addf %47, %46 : vector<16x1024xf32>
    %49 = arith.mulf %10, %48 : vector<16x1024xf32>
    %c0_22 = arith.constant 0 : index
    %c0_23 = arith.constant 0 : index
    %50 = vector.load %arg15[%c0_22, %c0_23] : memref<16x256xf32, #tpu.memory_space<vmem>>, vector<16x256xf32>
    %51 = arith.truncf %49 : vector<16x1024xf32> to vector<16x1024xbf16>
    %c0_24 = arith.constant 0 : index
    %c0_25 = arith.constant 0 : index
    %52 = vector.load %arg10[%c0_24, %c0_25] : memref<1024x256xbf16, #tpu.memory_space<vmem>>, vector<1024x256xbf16>
    %cst_26 = arith.constant dense<0.000000e+00> : vector<16x256xf32>
    %53 = tpu.matmul %51, %52, %cst_26 {dimension_numbers = #tpu.dot_dimension_numbers<[1], [0], [0], [1], [0, 0, 1, 1], [], []>} : vector<16x1024xbf16>, vector<1024x256xbf16>, vector<16x256xf32> -> vector<16x256xf32>
    %54 = arith.addf %50, %53 : vector<16x256xf32>
    %c0_27 = arith.constant 0 : index
    %c0_28 = arith.constant 0 : index
    %55 = vector.load %arg15[%c0_27, %c0_28] : memref<16x256xf32, #tpu.memory_space<vmem>>, vector<16x256xf32>
    tpu.vector_store %arg15[%c0_27, %c0_28], %54 {strides = array<i32>} : memref<16x256xf32, #tpu.memory_space<vmem>>, vector<16x256xf32>,
    %c0_i32_29 = arith.constant 0 : i32
    %56 = arith.cmpi eq, %arg1, %c0_i32_29 : i32
    %57 = arith.extui %56 : i1 to i32
    %c0_i32_30 = arith.constant 0 : i32
    %58 = arith.cmpi ne, %57, %c0_i32_30 : i32
    scf.if %58 {
      %c0_31 = arith.constant 0 : index
      %c0_32 = arith.constant 0 : index
      %59 = vector.load %arg13[%c0_31, %c0_32] : memref<16x256xf32, #tpu.memory_space<vmem>>, vector<16x256xf32>
      %c0_33 = arith.constant 0 : index
      %c0_34 = arith.constant 0 : index
      %60 = vector.load %arg15[%c0_33, %c0_34] : memref<16x256xf32, #tpu.memory_space<vmem>>, vector<16x256xf32>
      %61 = arith.addf %59, %60 : vector<16x256xf32>
      %c0_35 = arith.constant 0 : index
      %c0_36 = arith.constant 0 : index
      %62 = vector.load %arg11[%c0_35, %c0_36] : memref<1x256xf32, #tpu.memory_space<vmem>>, vector<1x256xf32>
      %63 = vector.broadcast %62 : vector<1x256xf32> to vector<16x256xf32>
      %64 = arith.addf %61, %63 : vector<16x256xf32>
      %c0_37 = arith.constant 0 : index
      %c0_38 = arith.constant 0 : index
      %65 = vector.load %arg12[%c0_37, %c0_38] : memref<16x256xf32, #tpu.memory_space<vmem>>, vector<16x256xf32>
      tpu.vector_store %arg12[%c0_37, %c0_38], %64 {strides = array<i32>} : memref<16x256xf32, #tpu.memory_space<vmem>>, vector<16x256xf32>,
    } else {
    }
    return
  }
  func.func @transform_0(%arg0: i32, %arg1: i32) -> (i32, i32) {
    %c0_i32 = arith.constant 0 : i32
    %c0_i32_0 = arith.constant 0 : i32
    return %arg0, %c0_i32 : i32, i32
  }
  func.func @transform_1(%arg0: i32, %arg1: i32) -> (i32, i32) {
    %c0_i32 = arith.constant 0 : i32
    %c0_i32_0 = arith.constant 0 : i32
    return %arg0, %c0_i32 : i32, i32
  }
  func.func @transform_2(%arg0: i32, %arg1: i32) -> (i32, i32) {
    %c0_i32 = arith.constant 0 : i32
    %c0_i32_0 = arith.constant 0 : i32
    %c0_i32_1 = arith.constant 0 : i32
    return %c0_i32, %c0_i32_0 : i32, i32
  }
  func.func @transform_3(%arg0: i32, %arg1: i32) -> (i32, i32) {
    %c0_i32 = arith.constant 0 : i32
    %c0_i32_0 = arith.constant 0 : i32
    %c0_i32_1 = arith.constant 0 : i32
    return %c0_i32, %c0_i32_0 : i32, i32
  }
  func.func @transform_4(%arg0: i32, %arg1: i32) -> (i32, i32) {
    %c0_i32 = arith.constant 0 : i32
    %c0_i32_0 = arith.constant 0 : i32
    %c0_i32_1 = arith.constant 0 : i32
    return %c0_i32, %c0_i32_0 : i32, i32
  }
  func.func @transform_5(%arg0: i32, %arg1: i32) -> (i32, i32) {
    %c0_i32 = arith.constant 0 : i32
    %c0_i32_0 = arith.constant 0 : i32
    %c0_i32_1 = arith.constant 0 : i32
    return %c0_i32, %c0_i32_0 : i32, i32
  }
  func.func @transform_6(%arg0: i32, %arg1: i32) -> (i32, i32) {
    %c0_i32 = arith.constant 0 : i32
    %c0_i32_0 = arith.constant 0 : i32
    return %c0_i32, %arg1 : i32, i32
  }
  func.func @transform_7(%arg0: i32, %arg1: i32) -> (i32, i32) {
    %c0_i32 = arith.constant 0 : i32
    %c0_i32_0 = arith.constant 0 : i32
    return %c0_i32, %arg1 : i32, i32
  }
  func.func @transform_8(%arg0: i32, %arg1: i32) -> (i32, i32) {
    %c0_i32 = arith.constant 0 : i32
    %c0_i32_0 = arith.constant 0 : i32
    return %arg1, %c0_i32 : i32, i32
  }
  func.func @transform_9(%arg0: i32, %arg1: i32) -> (i32, i32) {
    %c0_i32 = arith.constant 0 : i32
    %c0_i32_0 = arith.constant 0 : i32
    %c0_i32_1 = arith.constant 0 : i32
    return %c0_i32, %c0_i32_0 : i32, i32
  }
  func.func @transform_10(%arg0: i32, %arg1: i32) -> (i32, i32) {
    %c0_i32 = arith.constant 0 : i32
    %c0_i32_0 = arith.constant 0 : i32
    return %arg0, %c0_i32 : i32, i32
  }
}

</mosaic_0001>

<llo_original>
// kernel: gpt_forward.8
$region0: #{gpt_forward.8}
  #allocation0 [shape = 'u32[]', space=smem, size = 0x4, offset = 0x4, fixed_abs, tag = 'smem constant byte address 0x4 - core index']
  #allocation1 [shape = 'u32[144,128]{1,0:T(1,128)}', space=vmem, size = 0x12000, scoped, tag = 'internal scratch']
  #allocation2 [shape = 'bf16[8,256]{1,0:T(8,128)(2,1)}', space=vmem, size = 0x1000, scoped, tag = 'scratch operand']
  #allocation3 [shape = 'f32[2,8,1]{2,1,0:T(8,128)}', space=vmem, size = 0x2000, scoped, tag = 'scratch operand']
  #allocation4 [shape = 'f32[2,8,1]{2,1,0:T(8,128)}', space=vmem, size = 0x2000, scoped, tag = 'scratch operand']
  #allocation5 [shape = 'f32[2,8,128]{2,1,0:T(8,128)}', space=vmem, size = 0x2000, scoped, tag = 'scratch operand']
  %s0 = inlined_call_operand.vmem [shape: bf16[2,8,768], index: 0, kind: input, shape index: {}, may-alias: {0,1,2}]
  %s1 = inlined_call_operand.vmem [shape: bf16[2,8,768], index: 1, kind: input, shape index: {}, may-alias: {0,1,2}]
  %s2 = inlined_call_operand.vmem [shape: bf16[2,8,768], index: 2, kind: input, shape index: {}, may-alias: {0,1,2}]
  %s3 = inlined_call_operand.vmem [shape: bf16[2,8,256], index: 3, kind: output, shape index: {}]
  %s4 = sld [smem:[#allocation0]]
  $region57: #{gpt_forward.8} parent=0
    _
  %s6 = ssub.s32 1, %s4
  %s7 = scalar_select 0, %s6, %s4
  loop: start=0, step=1, limit=4
  $region2: #{gpt_forward.8} parent=0 // loop_pre_header
    _
  $region3: #{gpt_forward.8} parent=0 // loop_header
    %s9 = sphi 0, %s13
    %p10 = scmp.ge.s32.totalorder %s9, 4
    %s16 = sphi 0, %s35
    %s17 = sphi 0, %s31
    %s18 = sphi 0, %s27
    %s19 = sphi 0, %s16
    %s20 = sphi 0, %s17
    %s21 = sphi 0, %s18
    %s22 = sphi 0, %s19
    %s23 = sphi 0, %s20
    %s24 = sphi 0, %s21
    %s40 = sphi 0, %s42
    %s43 = sphi 0, %s40
    %s44 = sphi 0, %s43
    %s60 = sphi 0, %s44
    %s72 = sphi 0, %s74
    %s75 = sphi 0, %s72
    %s76 = sphi 0, %s75
    %s92 = sphi 0, %s76
    %s104 = sphi 0, %s106
    %s107 = sphi 0, %s104
    %s108 = sphi 0, %s107
    %s124 = sphi 0, %s108
    %s132 = sphi 0, %s134
    %s135 = sphi 0, %s132
    %s136 = sphi 0, %s135
    %s152 = sphi 0, %s136
  $region4: #{gpt_forward.8} parent=0 // loop_header_branch
    %12 = sbr.rel (%p10) target = $region8
  $region5: #{gpt_forward.8} parent=0 // loop_body
    %s14 = ssub.s32 %s9, 1
    %s15 = ssub.s32 %s9, 2
    %s25 = sadd.s32 1, %s18
    %p26 = scmp.ge.s32.totalorder %s25, 1
    %s27 = scalar_select %p26, 0, %s25
    %s28 = sadd.s32 1, %s17
    %s29 = scalar_select %p26, %s28, %s17
    %p30 = scmp.ge.s32.totalorder %s29, 1
    %s31 = scalar_select %p30, 0, %s29
    %s32 = sadd.s32 1, %s16
    %s33 = scalar_select %p30, %s32, %s16
    %p34 = scmp.ge.s32.totalorder %s33, 2
    %s35 = scalar_select %p34, 0, %s33
    %s36 = ssub.s32 %s16, %s35
    %s37 = ssub.s32 %s17, %s31
    %s38 = sor.u32 %s36, %s37
    %p39 = scmp.eq.s32.totalorder %s38, 0
    %s41 = sadd.s32 %s40, 1
    %s42 = scalar_select %p39, %s40, %s41
    %p45 = pneg %p39
    %p46 = scmp.eq.s32.totalorder %s9, 1
    %p47 = por %p45, %p46
    %p48 = scmp.ne.s32.totalorder %s40, %s43
    %p49 = scmp.eq.s32.totalorder %s9, 0
    %p50 = por %p48, %p49
    %p51 = scmp.ne.s32.totalorder %s40, %s43
    %p52 = scmp.eq.s32.totalorder %s14, 1
    %p53 = por %p51, %p52
    %p54 = scmp.ne.s32.totalorder %s43, %s44
    %p55 = scmp.eq.s32.totalorder %s14, 0
    %p56 = por %p54, %p55
    %p57 = scmp.ne.s32.totalorder %s43, %s44
    %p58 = scmp.eq.s32.totalorder %s15, 1
    %p59 = por %p57, %p58
    %p61 = scmp.ne.s32.totalorder %s44, %s60
    %p62 = scmp.eq.s32.totalorder %s15, 0
    %p63 = por %p61, %p62
    %p64 = scmp.lt.s32.totalorder %s18, %s17
    %s65 = scalar_select %p64, %s18, %s17
    %p66 = scmp.lt.s32.totalorder %s27, %s31
    %s67 = scalar_select %p66, %s27, %s31
    %s68 = ssub.s32 %s16, %s35
    %s69 = ssub.s32 %s65, %s67
    %s70 = sor.u32 %s68, %s69
    %p71 = scmp.eq.s32.totalorder %s70, 0
    %s73 = sadd.s32 %s72, 1
    %s74 = scalar_select %p71, %s72, %s73
    %p77 = pneg %p71
    %p78 = scmp.eq.s32.totalorder %s9, 1
    %p79 = por %p77, %p78
    %p80 = scmp.ne.s32.totalorder %s72, %s75
    %p81 = scmp.eq.s32.totalorder %s9, 0
    %p82 = por %p80, %p81
    %p83 = scmp.ne.s32.totalorder %s72, %s75
    %p84 = scmp.eq.s32.totalorder %s14, 1
    %p85 = por %p83, %p84
    %p86 = scmp.ne.s32.totalorder %s75, %s76
    %p87 = scmp.eq.s32.totalorder %s14, 0
    %p88 = por %p86, %p87
    %p89 = scmp.ne.s32.totalorder %s75, %s76
    %p90 = scmp.eq.s32.totalorder %s15, 1
    %p91 = por %p89, %p90
    %p93 = scmp.ne.s32.totalorder %s76, %s92
    %p94 = scmp.eq.s32.totalorder %s15, 0
    %p95 = por %p93, %p94
    %p96 = scmp.lt.s32.totalorder %s18, %s17
    %s97 = scalar_select %p96, %s18, %s17
    %p98 = scmp.lt.s32.totalorder %s27, %s31
    %s99 = scalar_select %p98, %s27, %s31
    %s100 = ssub.s32 %s16, %s35
    %s101 = ssub.s32 %s97, %s99
    %s102 = sor.u32 %s100, %s101
    %p103 = scmp.eq.s32.totalorder %s102, 0
    %s105 = sadd.s32 %s104, 1
    %s106 = scalar_select %p103, %s104, %s105
    %p109 = pneg %p103
    %p110 = scmp.eq.s32.totalorder %s9, 1
    %p111 = por %p109, %p110
    %p112 = scmp.ne.s32.totalorder %s104, %s107
    %p113 = scmp.eq.s32.totalorder %s9, 0
    %p114 = por %p112, %p113
    %p115 = scmp.ne.s32.totalorder %s104, %s107
    %p116 = scmp.eq.s32.totalorder %s14, 1
    %p117 = por %p115, %p116
    %p118 = scmp.ne.s32.totalorder %s107, %s108
    %p119 = scmp.eq.s32.totalorder %s14, 0
    %p120 = por %p118, %p119
    %p121 = scmp.ne.s32.totalorder %s107, %s108
    %p122 = scmp.eq.s32.totalorder %s15, 1
    %p123 = por %p121, %p122
    %p125 = scmp.ne.s32.totalorder %s108, %s124
    %p126 = scmp.eq.s32.totalorder %s15, 0
    %p127 = por %p125, %p126
    %s128 = ssub.s32 %s16, %s35
    %s129 = ssub.s32 %s17, %s31
    %s130 = sor.u32 %s128, %s129
    %p131 = scmp.eq.s32.totalorder %s130, 0
    %s133 = sadd.s32 %s132, 1
    %s134 = scalar_select %p131, %s132, %s133
    %p137 = pneg %p131
    %p138 = scmp.eq.s32.totalorder %s9, 1
    %p139 = por %p137, %p138
    %p140 = scmp.ne.s32.totalorder %s132, %s135
    %p141 = scmp.eq.s32.totalorder %s9, 0
    %p142 = por %p140, %p141
    %p143 = scmp.ne.s32.totalorder %s132, %s135
    %p144 = scmp.eq.s32.totalorder %s14, 1
    %p145 = por %p143, %p144
    %p146 = scmp.ne.s32.totalorder %s135, %s136
    %p147 = scmp.eq.s32.totalorder %s14, 0
    %p148 = por %p146, %p147
    %p149 = scmp.ne.s32.totalorder %s135, %s136
    %p150 = scmp.eq.s32.totalorder %s15, 1
    %p151 = por %p149, %p150
    %p153 = scmp.ne.s32.totalorder %s136, %s152
    %p154 = scmp.eq.s32.totalorder %s15, 0
    %p155 = por %p153, %p154
    %p156 = scmp.le.s32.totalorder 1, %s9
    %p157 = scmp.lt.s32.totalorder %s9, 3
    %p158 = pnand %p156, %p157
    %p159 = pneg %p158
    // Predicated region
    $region9: #{gpt_forward.8} parent=5 // pred_check
      _
    $region10: #{gpt_forward.8} parent=5 // pred_check_branch
      %161 = sbr.rel (%p158) target = $region12
    $region11: #{gpt_forward.8} parent=5 // pred_region
      %s162 = ssub.s32 %s9, 1
    $region12: #{gpt_forward.8} parent=5 // pred_fallthru
      _
    %p163 = scmp.lt.s32.totalorder %s9, 2
    // Predicated region
    $region13: #{gpt_forward.8} parent=5 // pred_check
      %p164 = pneg %p163
    $region14: #{gpt_forward.8} parent=5 // pred_check_branch
      %166 = sbr.rel (%p164) target = $region16
    $region15: #{gpt_forward.8} parent=5 // pred_region
      // Predicated region
      $region17: #{gpt_forward.8} parent=15 // pred_check
        %p167 = pneg %p50
      $region18: #{gpt_forward.8} parent=15 // pred_check_branch
        %169 = sbr.rel (%p167) target = $region20
      $region19: #{gpt_forward.8} parent=15 // pred_region
        %p170 = scmp.lt.s32.totalorder %s16, 1
        %s171 = scalar_select %p170, %s16, 1
        %p172 = scmp.lt.s32.totalorder %s17, 0
        %s173 = scalar_select %p172, %s17, 0
        %s174 = smul.addr %s173, 6
        %s175 = smul.addr %s171, 6
        %s176 = sadd.s32 %s174, %s175
        %s177 = smul.addr %s176, 4
        %s178 = scalar_lea.vmem %s0, %s177
      $region20: #{gpt_forward.8} parent=15 // pred_fallthru
        _
      // Predicated region
      $region21: #{gpt_forward.8} parent=15 // pred_check
        %p179 = pneg %p82
      $region22: #{gpt_forward.8} parent=15 // pred_check_branch
        %181 = sbr.rel (%p179) target = $region24
      $region23: #{gpt_forward.8} parent=15 // pred_region
        %p182 = scmp.lt.s32.totalorder %s18, %s17
        %s183 = scalar_select %p182, %s18, %s17
        %p184 = scmp.lt.s32.totalorder %s16, 1
        %s185 = scalar_select %p184, %s16, 1
        %p186 = scmp.lt.s32.totalorder %s183, 0
        %s187 = scalar_select %p186, %s183, 0
        %s188 = smul.addr %s187, 6
        %s189 = sadd.s32 2, %s188
        %s190 = smul.addr %s185, 6
        %s191 = sadd.s32 %s189, %s190
        %s192 = smul.addr %s191, 4
        %s193 = scalar_lea.vmem %s1, %s192
        %p194 = scmp.lt.s32.totalorder %s18, %s17
        %s195 = scalar_select %p194, %s18, %s17
      $region24: #{gpt_forward.8} parent=15 // pred_fallthru
        _
      // Predicated region
      $region25: #{gpt_forward.8} parent=15 // pred_check
        %p196 = pneg %p114
      $region26: #{gpt_forward.8} parent=15 // pred_check_branch
        %198 = sbr.rel (%p196) target = $region28
      $region27: #{gpt_forward.8} parent=15 // pred_region
        %p199 = scmp.lt.s32.totalorder %s18, %s17
        %s200 = scalar_select %p199, %s18, %s17
        %p201 = scmp.lt.s32.totalorder %s16, 1
        %s202 = scalar_select %p201, %s16, 1
        %p203 = scmp.lt.s32.totalorder %s200, 0
        %s204 = scalar_select %p203, %s200, 0
        %s205 = smul.addr %s204, 6
        %s206 = sadd.s32 4, %s205
        %s207 = smul.addr %s202, 6
        %s208 = sadd.s32 %s206, %s207
        %s209 = smul.addr %s208, 4
        %s210 = scalar_lea.vmem %s2, %s209
        %p211 = scmp.lt.s32.totalorder %s18, %s17
        %s212 = scalar_select %p211, %s18, %s17
      $region28: #{gpt_forward.8} parent=15 // pred_fallthru
        _
    $region16: #{gpt_forward.8} parent=5 // pred_fallthru
      _
    %p213 = scmp.le.s32.totalorder 1, %s9
    %p214 = scmp.lt.s32.totalorder %s9, 3
    %p215 = pnand %p213, %p214
    %p216 = pneg %p215
    // Predicated region
    $region29: #{gpt_forward.8} parent=5 // pred_check
      _
    $region30: #{gpt_forward.8} parent=5 // pred_check_branch
      %218 = sbr.rel (%p215) target = $region32
    $region31: #{gpt_forward.8} parent=5 // pred_region
      %s219 = ssub.s32 %s9, 1
      %p220 = scmp.lt.s32.totalorder %s19, 1
      %s221 = scalar_select %p220, %s19, 1
      %p222 = scmp.lt.s32.totalorder %s20, 0
      %s223 = scalar_select %p222, %s20, 0
      %s224 = smul.addr %s223, 6
      %s225 = smul.addr %s221, 6
      %s226 = sadd.s32 %s224, %s225
      %s227 = smul.addr %s226, 4
      %s228 = scalar_lea.vmem %s0, %s227
      %p229 = pneg %p56
      %p230 = pneg %p53
      %p231 = scmp.lt.s32.totalorder %s21, %s20
      %s232 = scalar_select %p231, %s21, %s20
      %p233 = scmp.lt.s32.totalorder %s19, 1
      %s234 = scalar_select %p233, %s19, 1
      %p235 = scmp.lt.s32.totalorder %s232, 0
      %s236 = scalar_select %p235, %s232, 0
      %s237 = smul.addr %s236, 6
      %s238 = sadd.s32 2, %s237
      %s239 = smul.addr %s234, 6
      %s240 = sadd.s32 %s238, %s239
      %s241 = smul.addr %s240, 4
      %s242 = scalar_lea.vmem %s1, %s241
      %p243 = pneg %p88
      %p244 = pneg %p85
      %p245 = scmp.lt.s32.totalorder %s21, %s20
      %s246 = scalar_select %p245, %s21, %s20
      %p247 = scmp.lt.s32.totalorder %s19, 1
      %s248 = scalar_select %p247, %s19, 1
      %p249 = scmp.lt.s32.totalorder %s246, 0
      %s250 = scalar_select %p249, %s246, 0
      %s251 = smul.addr %s250, 6
      %s252 = sadd.s32 4, %s251
      %s253 = smul.addr %s248, 6
      %s254 = sadd.s32 %s252, %s253
      %s255 = smul.addr %s254, 4
      %s256 = scalar_lea.vmem %s2, %s255
      %p257 = pneg %p120
      %p258 = pneg %p117
      %p259 = pneg %p148
      %p260 = pneg %p145
      %p261 = scmp.lt.s32.totalorder %s19, 1
      %s262 = scalar_select %p261, %s19, 1
      %p263 = scmp.lt.s32.totalorder %s20, 0
      %s264 = scalar_select %p263, %s20, 0
      %s265 = smul.addr %s264, 2
      %s266 = smul.addr %s262, 2
      %s267 = sadd.s32 %s265, %s266
      %s268 = smul.addr %s267, 4
      %s269 = scalar_lea.vmem %s3, %s268
      %p270 = scmp.lt.s32.totalorder %s19, 1
      %s271 = scalar_select %p270, %s19, 1
      %p272 = scmp.lt.s32.totalorder %s20, 0
      %s273 = scalar_select %p272, %s20, 0
      %s274 = smul.addr %s273, 6
      %s275 = smul.addr %s271, 6
      %s276 = sadd.s32 %s274, %s275
      %s277 = smul.addr %s276, 4
      %s278 = scalar_lea.vmem %s0, %s277
      %p279 = scmp.lt.s32.totalorder %s21, %s20
      %s280 = scalar_select %p279, %s21, %s20
      %p281 = scmp.lt.s32.totalorder %s19, 1
      %s282 = scalar_select %p281, %s19, 1
      %p283 = scmp.lt.s32.totalorder %s280, 0
      %s284 = scalar_select %p283, %s280, 0
      %s285 = smul.addr %s284, 6
      %s286 = sadd.s32 2, %s285
      %s287 = smul.addr %s282, 6
      %s288 = sadd.s32 %s286, %s287
      %s289 = smul.addr %s288, 4
      %s290 = scalar_lea.vmem %s1, %s289
      %p291 = scmp.lt.s32.totalorder %s21, %s20
      %s292 = scalar_select %p291, %s21, %s20
      %p293 = scmp.lt.s32.totalorder %s21, %s20
      %s294 = scalar_select %p293, %s21, %s20
      %p295 = scmp.lt.s32.totalorder %s19, 1
      %s296 = scalar_select %p295, %s19, 1
      %p297 = scmp.lt.s32.totalorder %s294, 0
      %s298 = scalar_select %p297, %s294, 0
      %s299 = smul.addr %s298, 6
      %s300 = sadd.s32 4, %s299
      %s301 = smul.addr %s296, 6
      %s302 = sadd.s32 %s300, %s301
      %s303 = smul.addr %s302, 4
      %s304 = scalar_lea.vmem %s2, %s303
      %p305 = scmp.lt.s32.totalorder %s21, %s20
      %s306 = scalar_select %p305, %s21, %s20
      %p307 = scmp.lt.s32.totalorder %s19, 1
      %s308 = scalar_select %p307, %s19, 1
      %p309 = scmp.lt.s32.totalorder %s20, 0
      %s310 = scalar_select %p309, %s20, 0
      %s311 = smul.addr %s310, 2
      %s312 = smul.addr %s308, 2
      %s313 = sadd.s32 %s311, %s312
      %s314 = smul.addr %s313, 4
      %s315 = scalar_lea.vmem %s3, %s314
      %p317 = scmp.eq.s32.totalorder %s21, 0
      // Predicated region
      $region33: #{gpt_forward.8} parent=31 // pred_check
        %p318 = pneg %p317
      $region34: #{gpt_forward.8} parent=31 // pred_check_branch
        %320 = sbr.rel (%p318) target = $region36
      $region35: #{gpt_forward.8} parent=31 // pred_region
        %v321 = vld [vmem:[%s278] sm:$0xff]
        %v322 = vunpack.c.l.bf16 %v321
        %v323 = vunpack.c.h.bf16 %v321
        %v324 = vmul.f32 %v322, 0.088388346
        %v325 = vmul.f32 %v323, 0.088388346
        %v326 = vpack.c.bf16 %v324, %v324
        %v327 = vpack.c.bf16 %v325, %v325
        %v330 = vunpack.c.l.b16 %v326
        %v331 = vunpack.c.l.b16 %v327
        %v332 = vpack.c.b16 %v331, %v330
        %334 = vst [vmem:[#allocation2] sm:$0xff] %v332
        %vm335 = vcmask 7168
        %336 = vst.msk [vmem:[#allocation3] sm:$0xff] %vm335, -1e+30
        %337 = vst.msk [vmem:[#allocation3 + $0x8] sm:$0xff] %vm335, -1e+30
        %338 = vst.msk [vmem:[#allocation4] sm:$0xff] %vm335, 0.0
        %339 = vst.msk [vmem:[#allocation4 + $0x8] sm:$0xff] %vm335, 0.0
        %340 = vst [vmem:[#allocation5] sm:$0xff] 0.0
        %341 = vst [vmem:[#allocation5 + $0x8] sm:$0xff] 0.0
      $region36: #{gpt_forward.8} parent=31 // pred_fallthru
        _
      %s342 = smul.u32 %s21, 8
      %s343 = smul.u32 %s20, 8
      %s344 = sadd.s32 %s343, 7
      %p345 = scmp.le.s32.totalorder %s342, %s344
      // Predicated region
      $region37: #{gpt_forward.8} parent=31 // pred_check
        %p346 = pneg %p345
      $region38: #{gpt_forward.8} parent=31 // pred_check_branch
        %348 = sbr.rel (%p346) target = $region40
      $region39: #{gpt_forward.8} parent=31 // pred_region
        %v349 = vld [vmem:[#allocation2] sm:$0xff]
        %v350 = vld [vmem:[%s290] sm:$0xff]
        %v351 = vld [vmem:[%s304] sm:$0xff]
        %v352 = vlaneseq
        %v353 = vshrl.u32 %v352, 7
        %v354 = vstv %s343
        %v355 = vadd.s32 %v354, %v353
        %v356 = vlaneseq
        %v357 = vand.u32 %v356, 127
        %v358 = vstv %s342
        %v359 = vadd.s32 %v358, %v357
        %vm360 = vcmp.le.s32.totalorder %v359, %v355
        %361 = vmatprep.subr.bf16.mxu0 0
        %362 = vmatpush1.bf16.xpose.msra.mxu0 %v350
        %363 = vmatprep.subr.bf16.mxu0 0
        %364 = vmatpush1.bf16.xpose.msra.mxu0 0
        %365 = vmatprep.subr.bf16.mxu0 0
        %366 = vmatpush1.bf16.xpose.msra.mxu0 0
        %367 = vmatprep.subr.bf16.mxu0 0
        %368 = vmatpush1.bf16.xpose.msra.mxu0 0
        %369 = vmatprep.subr.bf16.mxu0 0
        %370 = vmatpush1.bf16.xpose.msra.mxu0 0
        %371 = vmatprep.subr.bf16.mxu0 0
        %372 = vmatpush1.bf16.xpose.msra.mxu0 0
        %373 = vmatprep.subr.bf16.mxu0 0
        %374 = vmatpush1.bf16.xpose.msra.mxu0 0
        %375 = vmatprep.subr.bf16.mxu0 0
        %376 = vmatpush1.bf16.xpose.msra.mxu0 0
        %377 = vmatprep.subr.bf16.mxu0 0
        %378 = vmatpush1.bf16.xpose.msra.mxu0 0
        %379 = vmatprep.subr.bf16.mxu0 0
        %380 = vmatpush1.bf16.xpose.msra.mxu0 0
        %381 = vmatprep.subr.bf16.mxu0 0
        %382 = vmatpush1.bf16.xpose.msra.mxu0 0
        %383 = vmatprep.subr.bf16.mxu0 0
        %384 = vmatpush1.bf16.xpose.msra.mxu0 0
        %385 = vmatprep.subr.bf16.mxu0 0
        %386 = vmatpush1.bf16.xpose.msra.mxu0 0
        %387 = vmatprep.subr.bf16.mxu0 0
        %388 = vmatpush1.bf16.xpose.msra.mxu0 0
        %389 = vmatprep.subr.bf16.mxu0 0
        %390 = vmatpush1.bf16.xpose.msra.mxu0 0
        %391 = vmatprep.subr.bf16.mxu0 0
        %392 = vmatpush1.bf16.xpose.msra.mxu0 0
        %393 = vmatprep.mubr.bf16.mxu0 0
        %394 = vmatmul.mubr.bf16.gmra.mrb[0].mxu0 %v349
        %v395 = vpop.f32.mrb[0].mxu0
        %v396 = vadd.f32 0.0, %v395
        %v397 = vpop.f32.mrb[0].mxu0
        %v398 = vpop.f32.mrb[0].mxu0
        %v399 = vpop.f32.mrb[0].mxu0
        %400 = vdwg.mxu0
        %v401 = vsel %vm360, %v396, -1e+30
        %v402 = vld [vmem:[#allocation3] sm:$0xff]
        %vm403 = vcmask 64512
        %v404 = vsel %vm403, %v401, -inf
        %405 = vmax.xlane.f32.xlu0 %v404
        %v406 = vpop.xlane.xlu0 %405
        %v407 = vmax.f32 %v402, %v406
        %v408 = vsub.f32 %v402, %v407
        %v409 = vmul.f32 %v408, 1.442695
        %v410 = vpow.pop %v409
        %412 = vset.pattern.permute.xlu0 0
        %413 = vperm.xlu0 %412, %v407
        %v414 = vpop.permute.xlu0 %413
        %v416 = vsub.f32 %v401, %v414
        %v417 = vmul.f32 %v416, 1.442695
        %v418 = vpow.pop %v417
        %v419 = vld [vmem:[#allocation4] sm:$0xff]
        %v420 = vmul.f32 %v410, %v419
        %v421 = vsel %vm403, %v418, 0.0
        %422 = vadd.xlane.f32.xlu0 %v421
        %v423 = vpop.xlane.xlu0 %422
        %v424 = vadd.f32 %v420, %v423
        %vm425 = vcmask 7168
        %426 = vst.msk [vmem:[#allocation4] sm:$0xff] %vm425, %v424
        %v427 = vld [vmem:[#allocation5] sm:$0xff]
        %429 = vset.pattern.permute.xlu0 0
        %430 = vperm.xlu0 %429, %v410
        %v431 = vpop.permute.xlu0 %430
        %v433 = vmul.f32 %v431, %v427
        %v434 = vpack.c.bf16 %v418, %v418
        %v436 = vsel %vm403, %v434, 0
        %vm438 = vcmask 1043456
        %v440 = vsel %vm438, %v351, 0
        %442 = vmatprep.subr.bf16.mxu0 0
        %443 = vmatpush1.bf16.msra.mxu0 %v440
        %444 = vmatprep.subr.bf16.mxu0 0
        %445 = vmatpush1.bf16.msra.mxu0 0
        %446 = vmatprep.subr.bf16.mxu0 0
        %447 = vmatpush1.bf16.msra.mxu0 0
        %448 = vmatprep.subr.bf16.mxu0 0
        %449 = vmatpush1.bf16.msra.mxu0 0
        %450 = vmatprep.subr.bf16.mxu0 0
        %451 = vmatpush1.bf16.msra.mxu0 0
        %452 = vmatprep.subr.bf16.mxu0 0
        %453 = vmatpush1.bf16.msra.mxu0 0
        %454 = vmatprep.subr.bf16.mxu0 0
        %455 = vmatpush1.bf16.msra.mxu0 0
        %456 = vmatprep.subr.bf16.mxu0 0
        %457 = vmatpush1.bf16.msra.mxu0 0
        %458 = vmatprep.subr.bf16.mxu0 0
        %459 = vmatpush1.bf16.msra.mxu0 0
        %460 = vmatprep.subr.bf16.mxu0 0
        %461 = vmatpush1.bf16.msra.mxu0 0
        %462 = vmatprep.subr.bf16.mxu0 0
        %463 = vmatpush1.bf16.msra.mxu0 0
        %464 = vmatprep.subr.bf16.mxu0 0
        %465 = vmatpush1.bf16.msra.mxu0 0
        %466 = vmatprep.subr.bf16.mxu0 0
        %467 = vmatpush1.bf16.msra.mxu0 0
        %468 = vmatprep.subr.bf16.mxu0 0
        %469 = vmatpush1.bf16.msra.mxu0 0
        %470 = vmatprep.subr.bf16.mxu0 0
        %471 = vmatpush1.bf16.msra.mxu0 0
        %472 = vmatprep.subr.bf16.mxu0 0
        %473 = vmatpush1.bf16.msra.mxu0 0
        %474 = vmatprep.mubr.bf16.mxu0 0
        %475 = vmatmul.mubr.bf16.gmra.mrb[0].mxu0 %v436
        %v476 = vpop.f32.mrb[0].mxu0
        %v477 = vadd.f32 0.0, %v476
        %v478 = vpop.f32.mrb[0].mxu0
        %v479 = vpop.f32.mrb[0].mxu0
        %v480 = vpop.f32.mrb[0].mxu0
        %481 = vdwg.mxu0
        %v482 = vadd.f32 %v433, %v477
        %483 = vst [vmem:[#allocation5] sm:$0xff] %v482
        %484 = vst.msk [vmem:[#allocation3] sm:$0xff] %vm425, %v407
        %v486 = vunpack.c.h.b16 %v349
        %v487 = vpack.c.b16 %v486, %v486
        %v490 = vunpack.c.h.b16 %v350
        %v491 = vpack.c.b16 %v490, %v490
        %493 = vmatprep.subr.bf16.mxu0 0
        %494 = vmatpush1.bf16.xpose.msra.mxu0 %v491
        %495 = vmatprep.subr.bf16.mxu0 0
        %496 = vmatpush1.bf16.xpose.msra.mxu0 0
        %497 = vmatprep.subr.bf16.mxu0 0
        %498 = vmatpush1.bf16.xpose.msra.mxu0 0
        %499 = vmatprep.subr.bf16.mxu0 0
        %500 = vmatpush1.bf16.xpose.msra.mxu0 0
        %501 = vmatprep.subr.bf16.mxu0 0
        %502 = vmatpush1.bf16.xpose.msra.mxu0 0
        %503 = vmatprep.subr.bf16.mxu0 0
        %504 = vmatpush1.bf16.xpose.msra.mxu0 0
        %505 = vmatprep.subr.bf16.mxu0 0
        %506 = vmatpush1.bf16.xpose.msra.mxu0 0
        %507 = vmatprep.subr.bf16.mxu0 0
        %508 = vmatpush1.bf16.xpose.msra.mxu0 0
        %509 = vmatprep.subr.bf16.mxu0 0
        %510 = vmatpush1.bf16.xpose.msra.mxu0 0
        %511 = vmatprep.subr.bf16.mxu0 0
        %512 = vmatpush1.bf16.xpose.msra.mxu0 0
        %513 = vmatprep.subr.bf16.mxu0 0
        %514 = vmatpush1.bf16.xpose.msra.mxu0 0
        %515 = vmatprep.subr.bf16.mxu0 0
        %516 = vmatpush1.bf16.xpose.msra.mxu0 0
        %517 = vmatprep.subr.bf16.mxu0 0
        %518 = vmatpush1.bf16.xpose.msra.mxu0 0
        %519 = vmatprep.subr.bf16.mxu0 0
        %520 = vmatpush1.bf16.xpose.msra.mxu0 0
        %521 = vmatprep.subr.bf16.mxu0 0
        %522 = vmatpush1.bf16.xpose.msra.mxu0 0
        %523 = vmatprep.subr.bf16.mxu0 0
        %524 = vmatpush1.bf16.xpose.msra.mxu0 0
        %525 = vmatprep.mubr.bf16.mxu0 0
        %526 = vmatmul.mubr.bf16.gmra.mrb[0].mxu0 %v487
        %v527 = vpop.f32.mrb[0].mxu0
        %v528 = vadd.f32 0.0, %v527
        %v529 = vpop.f32.mrb[0].mxu0
        %v530 = vpop.f32.mrb[0].mxu0
        %v531 = vpop.f32.mrb[0].mxu0
        %532 = vdwg.mxu0
        %v533 = vsel %vm360, %v528, -1e+30
        %s534 = scalar_lea.vmem [#allocation3], 8
        %v535 = vld [vmem:[%s534] sm:$0xff]
        %v536 = vsel %vm403, %v533, -inf
        %537 = vmax.xlane.f32.xlu0 %v536
        %v538 = vpop.xlane.xlu0 %537
        %v539 = vmax.f32 %v535, %v538
        %v540 = vsub.f32 %v535, %v539
        %v541 = vmul.f32 %v540, 1.442695
        %v542 = vpow.pop %v541
        %544 = vset.pattern.permute.xlu0 0
        %545 = vperm.xlu0 %544, %v539
        %v546 = vpop.permute.xlu0 %545
        %v548 = vsub.f32 %v533, %v546
        %v549 = vmul.f32 %v548, 1.442695
        %v550 = vpow.pop %v549
        %s551 = scalar_lea.vmem [#allocation4], 8
        %v552 = vld [vmem:[%s551] sm:$0xff]
        %v553 = vmul.f32 %v542, %v552
        %v554 = vsel %vm403, %v550, 0.0
        %555 = vadd.xlane.f32.xlu0 %v554
        %v556 = vpop.xlane.xlu0 %555
        %v557 = vadd.f32 %v553, %v556
        %558 = vst.msk [vmem:[%s551] sm:$0xff] %vm425, %v557
        %s559 = scalar_lea.vmem [#allocation5], 8
        %v560 = vld [vmem:[%s559] sm:$0xff]
        %562 = vset.pattern.permute.xlu0 0
        %563 = vperm.xlu0 %562, %v542
        %v564 = vpop.permute.xlu0 %563
        %v566 = vmul.f32 %v564, %v560
        %v567 = vpack.c.bf16 %v550, %v550
        %v569 = vunpack.c.h.b16 %v351
        %v570 = vpack.c.b16 %v569, %v569
        %v572 = vsel %vm403, %v567, 0
        %v575 = vsel %vm438, %v570, 0
        %577 = vmatprep.subr.bf16.mxu0 0
        %578 = vmatpush1.bf16.msra.mxu0 %v575
        %579 = vmatprep.subr.bf16.mxu0 0
        %580 = vmatpush1.bf16.msra.mxu0 0
        %581 = vmatprep.subr.bf16.mxu0 0
        %582 = vmatpush1.bf16.msra.mxu0 0
        %583 = vmatprep.subr.bf16.mxu0 0
        %584 = vmatpush1.bf16.msra.mxu0 0
        %585 = vmatprep.subr.bf16.mxu0 0
        %586 = vmatpush1.bf16.msra.mxu0 0
        %587 = vmatprep.subr.bf16.mxu0 0
        %588 = vmatpush1.bf16.msra.mxu0 0
        %589 = vmatprep.subr.bf16.mxu0 0
        %590 = vmatpush1.bf16.msra.mxu0 0
        %591 = vmatprep.subr.bf16.mxu0 0
        %592 = vmatpush1.bf16.msra.mxu0 0
        %593 = vmatprep.subr.bf16.mxu0 0
        %594 = vmatpush1.bf16.msra.mxu0 0
        %595 = vmatprep.subr.bf16.mxu0 0
        %596 = vmatpush1.bf16.msra.mxu0 0
        %597 = vmatprep.subr.bf16.mxu0 0
        %598 = vmatpush1.bf16.msra.mxu0 0
        %599 = vmatprep.subr.bf16.mxu0 0
        %600 = vmatpush1.bf16.msra.mxu0 0
        %601 = vmatprep.subr.bf16.mxu0 0
        %602 = vmatpush1.bf16.msra.mxu0 0
        %603 = vmatprep.subr.bf16.mxu0 0
        %604 = vmatpush1.bf16.msra.mxu0 0
        %605 = vmatprep.subr.bf16.mxu0 0
        %606 = vmatpush1.bf16.msra.mxu0 0
        %607 = vmatprep.subr.bf16.mxu0 0
        %608 = vmatpush1.bf16.msra.mxu0 0
        %609 = vmatprep.mubr.bf16.mxu0 0
        %610 = vmatmul.mubr.bf16.gmra.mrb[0].mxu0 %v572
        %v611 = vpop.f32.mrb[0].mxu0
        %v612 = vadd.f32 0.0, %v611
        %v613 = vpop.f32.mrb[0].mxu0
        %v614 = vpop.f32.mrb[0].mxu0
        %v615 = vpop.f32.mrb[0].mxu0
        %616 = vdwg.mxu0
        %v617 = vadd.f32 %v566, %v612
        %618 = vst [vmem:[%s559] sm:$0xff] %v617
        %619 = vst.msk [vmem:[%s534] sm:$0xff] %vm425, %v539
      $region40: #{gpt_forward.8} parent=31 // pred_fallthru
        _
      // Predicated region
      $region41: #{gpt_forward.8} parent=31 // pred_check
        %p620 = pneg %p317
      $region42: #{gpt_forward.8} parent=31 // pred_check_branch
        %622 = sbr.rel (%p620) target = $region44
      $region43: #{gpt_forward.8} parent=31 // pred_region
        %v623 = vld [vmem:[#allocation4] sm:$0xff]
        %v624 = vrcp.pop %v623
        %v625 = vld [vmem:[#allocation5] sm:$0xff]
        %627 = vset.pattern.permute.xlu0 0
        %628 = vperm.xlu0 %627, %v624
        %v629 = vpop.permute.xlu0 %628
        %v631 = vmul.f32 %v625, %v629
        %v632 = vpack.c.bf16 %v631, %v631
        %s633 = scalar_lea.vmem [#allocation4], 8
        %v634 = vld [vmem:[%s633] sm:$0xff]
        %v635 = vrcp.pop %v634
        %s636 = scalar_lea.vmem [#allocation5], 8
        %v637 = vld [vmem:[%s636] sm:$0xff]
        %639 = vset.pattern.permute.xlu0 0
        %640 = vperm.xlu0 %639, %v635
        %v641 = vpop.permute.xlu0 %640
        %v643 = vmul.f32 %v637, %v641
        %v644 = vpack.c.bf16 %v643, %v643
        %v647 = vunpack.c.l.b16 %v632
        %v648 = vunpack.c.l.b16 %v644
        %v649 = vpack.c.b16 %v648, %v647
        %651 = vst [vmem:[%s315] sm:$0xff] %v649
      $region44: #{gpt_forward.8} parent=31 // pred_fallthru
        _
      %p652 = scmp.lt.s32.totalorder %s19, 1
      %s653 = scalar_select %p652, %s19, 1
      %p654 = scmp.lt.s32.totalorder %s20, 0
      %s655 = scalar_select %p654, %s20, 0
      %s656 = smul.addr %s655, 2
      %s657 = smul.addr %s653, 2
      %s658 = sadd.s32 %s656, %s657
      %s659 = smul.addr %s658, 4
      %s660 = scalar_lea.vmem %s3, %s659
      // Predicated region
      $region45: #{gpt_forward.8} parent=31 // pred_check
        %p661 = pneg %p145
      $region46: #{gpt_forward.8} parent=31 // pred_check_branch
        %663 = sbr.rel (%p661) target = $region48
      $region47: #{gpt_forward.8} parent=31 // pred_region
        _
      $region48: #{gpt_forward.8} parent=31 // pred_fallthru
        _
    $region32: #{gpt_forward.8} parent=5 // pred_fallthru
      _
    %p664 = scmp.le.s32.totalorder 2, %s9
    // Predicated region
    $region49: #{gpt_forward.8} parent=5 // pred_check
      %p665 = pneg %p664
    $region50: #{gpt_forward.8} parent=5 // pred_check_branch
      %667 = sbr.rel (%p665) target = $region52
    $region51: #{gpt_forward.8} parent=5 // pred_region
      %s668 = ssub.s32 %s9, 2
      // Predicated region
      $region53: #{gpt_forward.8} parent=51 // pred_check
        %p669 = pneg %p151
      $region54: #{gpt_forward.8} parent=51 // pred_check_branch
        %671 = sbr.rel (%p669) target = $region56
      $region55: #{gpt_forward.8} parent=51 // pred_region
        %p672 = scmp.lt.s32.totalorder %s22, 1
        %s673 = scalar_select %p672, %s22, 1
        %p674 = scmp.lt.s32.totalorder %s23, 0
        %s675 = scalar_select %p674, %s23, 0
        %s676 = smul.addr %s675, 2
        %s677 = smul.addr %s673, 2
        %s678 = sadd.s32 %s676, %s677
        %s679 = smul.addr %s678, 4
        %s680 = scalar_lea.vmem %s3, %s679
      $region56: #{gpt_forward.8} parent=51 // pred_fallthru
        _
    $region52: #{gpt_forward.8} parent=5 // pred_fallthru
      _
  $region6: #{gpt_forward.8} parent=0 // loop_footer
    %s13 = sadd.s32 1, %s9
  $region7: #{gpt_forward.8} parent=0 // loop_footer_branch
    %8 = sbr.rel target = $region3
  $region8: #{gpt_forward.8} parent=0 // loop_exit
    _

// kernel: gpt_forward.7
$region0: #{gpt_forward.7}
  #allocation0 [shape = 'u32[]', space=smem, size = 0x4, offset = 0x4, fixed_abs, tag = 'smem constant byte address 0x4 - core index']
  #allocation1 [shape = 'u32[144,128]{1,0:T(1,128)}', space=vmem, size = 0x12000, scoped, tag = 'internal scratch']
  #allocation2 [shape = 'bf16[16,256]{1,0:T(16,128)(2,1)}', space=vmem, size = 0x2000, scoped, tag = 'scratch operand']
  %s0 = inlined_call_operand.vmem [shape: f32[16,256], index: 0, kind: input, shape index: {}]
  %s1 = inlined_call_operand.hbm [shape: f32[1,256], index: 1, kind: input, shape index: {}]
  %s2 = inlined_call_operand.hbm [shape: f32[1,256], index: 2, kind: input, shape index: {}]
  %s3 = inlined_call_operand.hbm [shape: bf16[256,768], index: 3, kind: input, shape index: {}]
  %s4 = inlined_call_operand.hbm [shape: f32[1,768], index: 4, kind: input, shape index: {}]
  %s5 = inlined_call_operand.vmem [shape: bf16[16,768], index: 5, kind: output, shape index: {}]
  %s6 = sld [smem:[#allocation0]]
  $region50: #{gpt_forward.7} parent=0
    _
  %s8 = ssub.s32 1, %s6
  %s9 = scalar_select 0, %s8, %s6
  $region1: #{gpt_forward.7} parent=0
    #allocation3 [shape = 'u8[1024]{0}', space=vmem, size = 0x400, scoped, tag = 'input window, operand 1, single buffered']
    #allocation4 [shape = 's32[1]{0}', space=sflag, size = 0x4, scoped, tag = 'scoped memory for gpt_forward.7']
    #allocation5 [shape = 'u8[1024]{0}', space=vmem, size = 0x400, scoped, tag = 'input window, operand 2, single buffered']
    #allocation6 [shape = 's32[1]{0}', space=sflag, size = 0x4, scoped, tag = 'scoped memory for gpt_forward.7']
    #allocation7 [shape = 'u8[393216]{0}', space=vmem, size = 0x60000, scoped, tag = 'input window, operand 3, single buffered']
    #allocation8 [shape = 'u8[3072]{0}', space=vmem, size = 0xc00, scoped, tag = 'input window, operand 4, single buffered']
    #allocation9 [shape = 's32[1]{0}', space=sflag, size = 0x4, scoped, tag = 'scoped memory for gpt_forward.7']
    %10 = vsyncpa [#allocation4], 0
    %11 = vsyncpa [#allocation6], 0
    %12 = vsyncpa [#allocation9], 0
    // Predicated region
    $region2: #{gpt_forward.7} parent=1 // pred_check
      _
    $region3: #{gpt_forward.7} parent=1 // pred_check_branch
      %14 = sbr.rel (0) target = $region5
    $region4: #{gpt_forward.7} parent=1 // pred_region
      _
    $region5: #{gpt_forward.7} parent=1 // pred_fallthru
      _
    // Predicated region
    $region6: #{gpt_forward.7} parent=1 // pred_check
      _
    $region7: #{gpt_forward.7} parent=1 // pred_check_branch
      %16 = sbr.rel (0) target = $region9
    $region8: #{gpt_forward.7} parent=1 // pred_region
      %s18 = ssub.s32 32, 32
      %19 = vsyncadd [#allocation4], %s18
      %s21 = sshll.u32 [#allocation3], 4
      %s22 = int_to_ptr.vmem [resolvable:$true] %s21
      %24 = dma.hbm_to_vmem [thread:$0]  %s1, 32, %s22, [#allocation4]
    $region9: #{gpt_forward.7} parent=1 // pred_fallthru
      _
    // Predicated region
    $region10: #{gpt_forward.7} parent=1 // pred_check
      _
    $region11: #{gpt_forward.7} parent=1 // pred_check_branch
      %26 = sbr.rel (0) target = $region13
    $region12: #{gpt_forward.7} parent=1 // pred_region
      %s28 = ssub.s32 32, 32
      %29 = vsyncadd [#allocation6], %s28
      %s31 = sshll.u32 [#allocation5], 4
      %s32 = int_to_ptr.vmem [resolvable:$true] %s31
      %34 = dma.hbm_to_vmem [thread:$0]  %s2, 32, %s32, [#allocation6]
    $region13: #{gpt_forward.7} parent=1 // pred_fallthru
      _
    // Predicated region
    $region14: #{gpt_forward.7} parent=1 // pred_check
      _
    $region15: #{gpt_forward.7} parent=1 // pred_check_branch
      %36 = sbr.rel (0) target = $region17
    $region16: #{gpt_forward.7} parent=1 // pred_region
      %s38 = ssub.s32 12288, 12288
      %39 = vsyncadd [#allocation6], %s38
      %s40 = sshll.u32 [#allocation7], 4
      %s41 = int_to_ptr.vmem [resolvable:$true] %s40
      %46 = dma.hbm_to_vmem [thread:$0]  %s3, 12288, %s41, [#allocation6], 384, 384, 24
    $region17: #{gpt_forward.7} parent=1 // pred_fallthru
      _
    // Predicated region
    $region18: #{gpt_forward.7} parent=1 // pred_check
      _
    $region19: #{gpt_forward.7} parent=1 // pred_check_branch
      %48 = sbr.rel (0) target = $region21
    $region20: #{gpt_forward.7} parent=1 // pred_region
      %s50 = ssub.s32 96, 96
      %51 = vsyncadd [#allocation9], %s50
      %s53 = sshll.u32 [#allocation8], 4
      %s54 = int_to_ptr.vmem [resolvable:$true] %s53
      %56 = dma.hbm_to_vmem [thread:$0]  %s4, 96, %s54, [#allocation9]
    $region21: #{gpt_forward.7} parent=1 // pred_fallthru
      _
    // Predicated region
    $region22: #{gpt_forward.7} parent=1 // pred_check
      _
    $region23: #{gpt_forward.7} parent=1 // pred_check_branch
      %58 = sbr.rel (0) target = $region25
    $region24: #{gpt_forward.7} parent=1 // pred_region
      %59 = dma.done [#allocation4], 32
    $region25: #{gpt_forward.7} parent=1 // pred_fallthru
      _
    // Predicated region
    $region26: #{gpt_forward.7} parent=1 // pred_check
      _
    $region27: #{gpt_forward.7} parent=1 // pred_check_branch
      %61 = sbr.rel (0) target = $region29
    $region28: #{gpt_forward.7} parent=1 // pred_region
      %62 = dma.done [#allocation6], 32
    $region29: #{gpt_forward.7} parent=1 // pred_fallthru
      _
    // Predicated region
    $region30: #{gpt_forward.7} parent=1 // pred_check
      _
    $region31: #{gpt_forward.7} parent=1 // pred_check_branch
      %64 = sbr.rel (0) target = $region33
    $region32: #{gpt_forward.7} parent=1 // pred_region
      %65 = dma.done [#allocation6], 12288
    $region33: #{gpt_forward.7} parent=1 // pred_fallthru
      _
    // Predicated region
    $region34: #{gpt_forward.7} parent=1 // pred_check
      _
    $region35: #{gpt_forward.7} parent=1 // pred_check_branch
      %67 = sbr.rel (0) target = $region37
    $region36: #{gpt_forward.7} parent=1 // pred_region
      %68 = dma.done [#allocation9], 96
    $region37: #{gpt_forward.7} parent=1 // pred_fallthru
      _
    %p69 = scmp.eq.s32.totalorder 0, 0
    // Predicated region
    $region38: #{gpt_forward.7} parent=1 // pred_check
      %p70 = pneg %p69
    $region39: #{gpt_forward.7} parent=1 // pred_check_branch
      %72 = sbr.rel (%p70) target = $region41
    $region40: #{gpt_forward.7} parent=1 // pred_region
      %v73 = vld [vmem:[%s0] sm:$0xff]
      %v74 = vld [vmem:[%s0 + $0x8] sm:$0xff]
      %v75 = vld [vmem:[%s0 + $0x10] sm:$0xff]
      %v76 = vld [vmem:[%s0 + $0x18] sm:$0xff]
      %v77 = vld [vmem:[#allocation3] sm:$0x3]
      %v78 = vld [vmem:[#allocation5] sm:$0x3]
      %v79 = vadd.f32 %v73, %v74
      %80 = vadd.xlane.f32.xlu0 %v79
      %v81 = vpop.xlane.xlu0 %80
      %v82 = vadd.f32 %v75, %v76
      %83 = vadd.xlane.f32.xlu0 %v82
      %v84 = vpop.xlane.xlu0 %83
      %v85 = vrcp.pop 256.0
      %v86 = vmul.f32 %v81, %v85
      %v87 = vmul.f32 %v84, %v85
      %v88 = vsub.f32 %v73, %v86
      %v89 = vsub.f32 %v74, %v86
      %v90 = vsub.f32 %v75, %v87
      %v91 = vsub.f32 %v76, %v87
      %v92 = vmul.f32 %v88, %v88
      %v93 = vmul.f32 %v89, %v89
      %v94 = vmul.f32 %v90, %v90
      %v95 = vmul.f32 %v91, %v91
      %v96 = vadd.f32 %v92, %v93
      %97 = vadd.xlane.f32.xlu0 %v96
      %v98 = vpop.xlane.xlu0 %97
      %v99 = vadd.f32 %v94, %v95
      %100 = vadd.xlane.f32.xlu0 %v99
      %v101 = vpop.xlane.xlu0 %100
      %v102 = vmul.f32 %v98, %v85
      %v103 = vmul.f32 %v101, %v85
      %v104 = vadd.f32 %v102, 1e-05
      %v105 = vadd.f32 %v103, 1e-05
      %v106 = vrsqrt.pop %v104
      %v107 = vrsqrt.pop %v105
      %v108 = vmul.f32 %v88, %v106
      %v109 = vmul.f32 %v89, %v106
      %v110 = vmul.f32 %v90, %v107
      %v111 = vmul.f32 %v91, %v107
      %v113 = vlaneseq
      %v114 = vshrl.u32 %v113, 7
      %v115 = vsub.s32 0, %v114
      %v116 = vrot.slane %v77, %v115
      %v117 = vlaneseq
      %v118 = vshrl.u32 %v117, 7
      %v119 = vsub.s32 1, %v118
      %v120 = vrot.slane %v77, %v119
      %v123 = vmul.f32 %v108, %v116
      %v124 = vmul.f32 %v109, %v120
      %v125 = vmul.f32 %v110, %v116
      %v126 = vmul.f32 %v111, %v120
      %v128 = vlaneseq
      %v129 = vshrl.u32 %v128, 7
      %v130 = vsub.s32 0, %v129
      %v131 = vrot.slane %v78, %v130
      %v132 = vlaneseq
      %v133 = vshrl.u32 %v132, 7
      %v134 = vsub.s32 1, %v133
      %v135 = vrot.slane %v78, %v134
      %v138 = vadd.f32 %v123, %v131
      %v139 = vadd.f32 %v124, %v135
      %v140 = vadd.f32 %v125, %v131
      %v141 = vadd.f32 %v126, %v135
      %v142 = vpack.c.bf16 %v140, %v138
      %v143 = vpack.c.bf16 %v141, %v139
      %144 = vst [vmem:[#allocation2] sm:$0xff] %v142
      %145 = vst [vmem:[#allocation2 + $0x8] sm:$0xff] %v143
    $region41: #{gpt_forward.7} parent=1 // pred_fallthru
      _
    %v146 = vld [vmem:[#allocation2] sm:$0xff]
    %v147 = vld [vmem:[#allocation2 + $0x8] sm:$0xff]
    %v148 = vld [vmem:[#allocation7] sm:$0xff]
    %v149 = vld [vmem:[#allocation7 + $0x8] sm:$0xff]
    %v150 = vld [vmem:[#allocation7 + $0x10] sm:$0xff]
    %v151 = vld [vmem:[#allocation7 + $0x18] sm:$0xff]
    %v152 = vld [vmem:[#allocation7 + $0x20] sm:$0xff]
    %v153 = vld [vmem:[#allocation7 + $0x28] sm:$0xff]
    %v154 = vld [vmem:[#allocation7 + $0x30] sm:$0xff]
    %v155 = vld [vmem:[#allocation7 + $0x38] sm:$0xff]
    %v156 = vld [vmem:[#allocation7 + $0x40] sm:$0xff]
    %v157 = vld [vmem:[#allocation7 + $0x48] sm:$0xff]
    %v158 = vld [vmem:[#allocation7 + $0x50] sm:$0xff]
    %v159 = vld [vmem:[#allocation7 + $0x58] sm:$0xff]
    %v160 = vld [vmem:[#allocation7 + $0x60] sm:$0xff]
    %v161 = vld [vmem:[#allocation7 + $0x68] sm:$0xff]
    %v162 = vld [vmem:[#allocation7 + $0x70] sm:$0xff]
    %v163 = vld [vmem:[#allocation7 + $0x78] sm:$0xff]
    %v164 = vld [vmem:[#allocation7 + $0x80] sm:$0xff]
    %v165 = vld [vmem:[#allocation7 + $0x88] sm:$0xff]
    %v166 = vld [vmem:[#allocation7 + $0x90] sm:$0xff]
    %v167 = vld [vmem:[#allocation7 + $0x98] sm:$0xff]
    %v168 = vld [vmem:[#allocation7 + $0xa0] sm:$0xff]
    %v169 = vld [vmem:[#allocation7 + $0xa8] sm:$0xff]
    %v170 = vld [vmem:[#allocation7 + $0xb0] sm:$0xff]
    %v171 = vld [vmem:[#allocation7 + $0xb8] sm:$0xff]
    %v172 = vld [vmem:[#allocation7 + $0xc0] sm:$0xff]
    %v173 = vld [vmem:[#allocation7 + $0xc8] sm:$0xff]
    %v174 = vld [vmem:[#allocation7 + $0xd0] sm:$0xff]
    %v175 = vld [vmem:[#allocation7 + $0xd8] sm:$0xff]
    %v176 = vld [vmem:[#allocation7 + $0xe0] sm:$0xff]
    %v177 = vld [vmem:[#allocation7 + $0xe8] sm:$0xff]
    %v178 = vld [vmem:[#allocation7 + $0xf0] sm:$0xff]
    %v179 = vld [vmem:[#allocation7 + $0xf8] sm:$0xff]
    %v180 = vld [vmem:[#allocation7 + $0x100] sm:$0xff]
    %v181 = vld [vmem:[#allocation7 + $0x108] sm:$0xff]
    %v182 = vld [vmem:[#allocation7 + $0x110] sm:$0xff]
    %v183 = vld [vmem:[#allocation7 + $0x118] sm:$0xff]
    %v184 = vld [vmem:[#allocation7 + $0x120] sm:$0xff]
    %v185 = vld [vmem:[#allocation7 + $0x128] sm:$0xff]
    %v186 = vld [vmem:[#allocation7 + $0x130] sm:$0xff]
    %v187 = vld [vmem:[#allocation7 + $0x138] sm:$0xff]
    %v188 = vld [vmem:[#allocation7 + $0x140] sm:$0xff]
    %v189 = vld [vmem:[#allocation7 + $0x148] sm:$0xff]
    %v190 = vld [vmem:[#allocation7 + $0x150] sm:$0xff]
    %v191 = vld [vmem:[#allocation7 + $0x158] sm:$0xff]
    %v192 = vld [vmem:[#allocation7 + $0x160] sm:$0xff]
    %v193 = vld [vmem:[#allocation7 + $0x168] sm:$0xff]
    %v194 = vld [vmem:[#allocation7 + $0x170] sm:$0xff]
    %v195 = vld [vmem:[#allocation7 + $0x178] sm:$0xff]
    %v196 = vld [vmem:[#allocation7 + $0x180] sm:$0xff]
    %v197 = vld [vmem:[#allocation7 + $0x188] sm:$0xff]
    %v198 = vld [vmem:[#allocation7 + $0x190] sm:$0xff]
    %v199 = vld [vmem:[#allocation7 + $0x198] sm:$0xff]
    %v200 = vld [vmem:[#allocation7 + $0x1a0] sm:$0xff]
    %v201 = vld [vmem:[#allocation7 + $0x1a8] sm:$0xff]
    %v202 = vld [vmem:[#allocation7 + $0x1b0] sm:$0xff]
    %v203 = vld [vmem:[#allocation7 + $0x1b8] sm:$0xff]
    %v204 = vld [vmem:[#allocation7 + $0x1c0] sm:$0xff]
    %v205 = vld [vmem:[#allocation7 + $0x1c8] sm:$0xff]
    %v206 = vld [vmem:[#allocation7 + $0x1d0] sm:$0xff]
    %v207 = vld [vmem:[#allocation7 + $0x1d8] sm:$0xff]
    %v208 = vld [vmem:[#allocation7 + $0x1e0] sm:$0xff]
    %v209 = vld [vmem:[#allocation7 + $0x1e8] sm:$0xff]
    %v210 = vld [vmem:[#allocation7 + $0x1f0] sm:$0xff]
    %v211 = vld [vmem:[#allocation7 + $0x1f8] sm:$0xff]
    %v212 = vld [vmem:[#allocation7 + $0x200] sm:$0xff]
    %v213 = vld [vmem:[#allocation7 + $0x208] sm:$0xff]
    %v214 = vld [vmem:[#allocation7 + $0x210] sm:$0xff]
    %v215 = vld [vmem:[#allocation7 + $0x218] sm:$0xff]
    %v216 = vld [vmem:[#allocation7 + $0x220] sm:$0xff]
    %v217 = vld [vmem:[#allocation7 + $0x228] sm:$0xff]
    %v218 = vld [vmem:[#allocation7 + $0x230] sm:$0xff]
    %v219 = vld [vmem:[#allocation7 + $0x238] sm:$0xff]
    %v220 = vld [vmem:[#allocation7 + $0x240] sm:$0xff]
    %v221 = vld [vmem:[#allocation7 + $0x248] sm:$0xff]
    %v222 = vld [vmem:[#allocation7 + $0x250] sm:$0xff]
    %v223 = vld [vmem:[#allocation7 + $0x258] sm:$0xff]
    %v224 = vld [vmem:[#allocation7 + $0x260] sm:$0xff]
    %v225 = vld [vmem:[#allocation7 + $0x268] sm:$0xff]
    %v226 = vld [vmem:[#allocation7 + $0x270] sm:$0xff]
    %v227 = vld [vmem:[#allocation7 + $0x278] sm:$0xff]
    %v228 = vld [vmem:[#allocation7 + $0x280] sm:$0xff]
    %v229 = vld [vmem:[#allocation7 + $0x288] sm:$0xff]
    %v230 = vld [vmem:[#allocation7 + $0x290] sm:$0xff]
    %v231 = vld [vmem:[#allocation7 + $0x298] sm:$0xff]
    %v232 = vld [vmem:[#allocation7 + $0x2a0] sm:$0xff]
    %v233 = vld [vmem:[#allocation7 + $0x2a8] sm:$0xff]
    %v234 = vld [vmem:[#allocation7 + $0x2b0] sm:$0xff]
    %v235 = vld [vmem:[#allocation7 + $0x2b8] sm:$0xff]
    %v236 = vld [vmem:[#allocation7 + $0x2c0] sm:$0xff]
    %v237 = vld [vmem:[#allocation7 + $0x2c8] sm:$0xff]
    %v238 = vld [vmem:[#allocation7 + $0x2d0] sm:$0xff]
    %v239 = vld [vmem:[#allocation7 + $0x2d8] sm:$0xff]
    %v240 = vld [vmem:[#allocation7 + $0x2e0] sm:$0xff]
    %v241 = vld [vmem:[#allocation7 + $0x2e8] sm:$0xff]
    %v242 = vld [vmem:[#allocation7 + $0x2f0] sm:$0xff]
    %v243 = vld [vmem:[#allocation7 + $0x2f8] sm:$0xff]
    %v244 = vld [vmem:[#allocation8] sm:$0x3f]
    %v246 = vlaneseq
    %v247 = vshrl.u32 %v246, 7
    %v248 = vsub.s32 0, %v247
    %v249 = vrot.slane %v244, %v248
    %v250 = vlaneseq
    %v251 = vshrl.u32 %v250, 7
    %v252 = vsub.s32 1, %v251
    %v253 = vrot.slane %v244, %v252
    %v254 = vlaneseq
    %v255 = vshrl.u32 %v254, 7
    %v256 = vsub.s32 2, %v255
    %v257 = vrot.slane %v244, %v256
    %v258 = vlaneseq
    %v259 = vshrl.u32 %v258, 7
    %v260 = vsub.s32 3, %v259
    %v261 = vrot.slane %v244, %v260
    %v262 = vlaneseq
    %v263 = vshrl.u32 %v262, 7
    %v264 = vsub.s32 4, %v263
    %v265 = vrot.slane %v244, %v264
    %v266 = vlaneseq
    %v267 = vshrl.u32 %v266, 7
    %v268 = vsub.s32 5, %v267
    %v269 = vrot.slane %v244, %v268
    %v372 = vunpack.c.l.b16 %v148
    %v373 = vunpack.c.h.b16 %v148
    %v374 = vunpack.c.l.b16 %v149
    %v375 = vunpack.c.h.b16 %v149
    %v376 = vunpack.c.l.b16 %v150
    %v377 = vunpack.c.h.b16 %v150
    %v378 = vunpack.c.l.b16 %v151
    %v379 = vunpack.c.h.b16 %v151
    %v380 = vunpack.c.l.b16 %v152
    %v381 = vunpack.c.h.b16 %v152
    %v382 = vunpack.c.l.b16 %v153
    %v383 = vunpack.c.h.b16 %v153
    %v384 = vunpack.c.l.b16 %v154
    %v385 = vunpack.c.h.b16 %v154
    %v386 = vunpack.c.l.b16 %v155
    %v387 = vunpack.c.h.b16 %v155
    %v388 = vunpack.c.l.b16 %v156
    %v389 = vunpack.c.h.b16 %v156
    %v390 = vunpack.c.l.b16 %v157
    %v391 = vunpack.c.h.b16 %v157
    %v392 = vunpack.c.l.b16 %v158
    %v393 = vunpack.c.h.b16 %v158
    %v394 = vunpack.c.l.b16 %v159
    %v395 = vunpack.c.h.b16 %v159
    %v396 = vunpack.c.l.b16 %v160
    %v397 = vunpack.c.h.b16 %v160
    %v398 = vunpack.c.l.b16 %v161
    %v399 = vunpack.c.h.b16 %v161
    %v400 = vunpack.c.l.b16 %v162
    %v401 = vunpack.c.h.b16 %v162
    %v402 = vunpack.c.l.b16 %v163
    %v403 = vunpack.c.h.b16 %v163
    %v404 = vunpack.c.l.b16 %v164
    %v405 = vunpack.c.h.b16 %v164
    %v406 = vunpack.c.l.b16 %v165
    %v407 = vunpack.c.h.b16 %v165
    %v408 = vunpack.c.l.b16 %v166
    %v409 = vunpack.c.h.b16 %v166
    %v410 = vunpack.c.l.b16 %v167
    %v411 = vunpack.c.h.b16 %v167
    %v412 = vunpack.c.l.b16 %v168
    %v413 = vunpack.c.h.b16 %v168
    %v414 = vunpack.c.l.b16 %v169
    %v415 = vunpack.c.h.b16 %v169
    %v416 = vunpack.c.l.b16 %v170
    %v417 = vunpack.c.h.b16 %v170
    %v418 = vunpack.c.l.b16 %v171
    %v419 = vunpack.c.h.b16 %v171
    %v420 = vunpack.c.l.b16 %v172
    %v421 = vunpack.c.h.b16 %v172
    %v422 = vunpack.c.l.b16 %v173
    %v423 = vunpack.c.h.b16 %v173
    %v424 = vunpack.c.l.b16 %v174
    %v425 = vunpack.c.h.b16 %v174
    %v426 = vunpack.c.l.b16 %v175
    %v427 = vunpack.c.h.b16 %v175
    %v428 = vunpack.c.l.b16 %v176
    %v429 = vunpack.c.h.b16 %v176
    %v430 = vunpack.c.l.b16 %v177
    %v431 = vunpack.c.h.b16 %v177
    %v432 = vunpack.c.l.b16 %v178
    %v433 = vunpack.c.h.b16 %v178
    %v434 = vunpack.c.l.b16 %v179
    %v435 = vunpack.c.h.b16 %v179
    %v436 = vunpack.c.l.b16 %v180
    %v437 = vunpack.c.h.b16 %v180
    %v438 = vunpack.c.l.b16 %v181
    %v439 = vunpack.c.h.b16 %v181
    %v440 = vunpack.c.l.b16 %v182
    %v441 = vunpack.c.h.b16 %v182
    %v442 = vunpack.c.l.b16 %v183
    %v443 = vunpack.c.h.b16 %v183
    %v444 = vunpack.c.l.b16 %v184
    %v445 = vunpack.c.h.b16 %v184
    %v446 = vunpack.c.l.b16 %v185
    %v447 = vunpack.c.h.b16 %v185
    %v448 = vunpack.c.l.b16 %v186
    %v449 = vunpack.c.h.b16 %v186
    %v450 = vunpack.c.l.b16 %v187
    %v451 = vunpack.c.h.b16 %v187
    %v452 = vunpack.c.l.b16 %v188
    %v453 = vunpack.c.h.b16 %v188
    %v454 = vunpack.c.l.b16 %v189
    %v455 = vunpack.c.h.b16 %v189
    %v456 = vunpack.c.l.b16 %v190
    %v457 = vunpack.c.h.b16 %v190
    %v458 = vunpack.c.l.b16 %v191
    %v459 = vunpack.c.h.b16 %v191
    %v460 = vunpack.c.l.b16 %v192
    %v461 = vunpack.c.h.b16 %v192
    %v462 = vunpack.c.l.b16 %v193
    %v463 = vunpack.c.h.b16 %v193
    %v464 = vunpack.c.l.b16 %v194
    %v465 = vunpack.c.h.b16 %v194
    %v466 = vunpack.c.l.b16 %v195
    %v467 = vunpack.c.h.b16 %v195
    %v468 = vunpack.c.l.b16 %v196
    %v469 = vunpack.c.h.b16 %v196
    %v470 = vunpack.c.l.b16 %v197
    %v471 = vunpack.c.h.b16 %v197
    %v472 = vunpack.c.l.b16 %v198
    %v473 = vunpack.c.h.b16 %v198
    %v474 = vunpack.c.l.b16 %v199
    %v475 = vunpack.c.h.b16 %v199
    %v476 = vunpack.c.l.b16 %v200
    %v477 = vunpack.c.h.b16 %v200
    %v478 = vunpack.c.l.b16 %v201
    %v479 = vunpack.c.h.b16 %v201
    %v480 = vunpack.c.l.b16 %v202
    %v481 = vunpack.c.h.b16 %v202
    %v482 = vunpack.c.l.b16 %v203
    %v483 = vunpack.c.h.b16 %v203
    %v484 = vunpack.c.l.b16 %v204
    %v485 = vunpack.c.h.b16 %v204
    %v486 = vunpack.c.l.b16 %v205
    %v487 = vunpack.c.h.b16 %v205
    %v488 = vunpack.c.l.b16 %v206
    %v489 = vunpack.c.h.b16 %v206
    %v490 = vunpack.c.l.b16 %v207
    %v491 = vunpack.c.h.b16 %v207
    %v492 = vunpack.c.l.b16 %v208
    %v493 = vunpack.c.h.b16 %v208
    %v494 = vunpack.c.l.b16 %v209
    %v495 = vunpack.c.h.b16 %v209
    %v496 = vunpack.c.l.b16 %v210
    %v497 = vunpack.c.h.b16 %v210
    %v498 = vunpack.c.l.b16 %v211
    %v499 = vunpack.c.h.b16 %v211
    %v500 = vunpack.c.l.b16 %v212
    %v501 = vunpack.c.h.b16 %v212
    %v502 = vunpack.c.l.b16 %v213
    %v503 = vunpack.c.h.b16 %v213
    %v504 = vunpack.c.l.b16 %v214
    %v505 = vunpack.c.h.b16 %v214
    %v506 = vunpack.c.l.b16 %v215
    %v507 = vunpack.c.h.b16 %v215
    %v508 = vunpack.c.l.b16 %v216
    %v509 = vunpack.c.h.b16 %v216
    %v510 = vunpack.c.l.b16 %v217
    %v511 = vunpack.c.h.b16 %v217
    %v512 = vunpack.c.l.b16 %v218
    %v513 = vunpack.c.h.b16 %v218
    %v514 = vunpack.c.l.b16 %v219
    %v515 = vunpack.c.h.b16 %v219
    %v516 = vunpack.c.l.b16 %v220
    %v517 = vunpack.c.h.b16 %v220
    %v518 = vunpack.c.l.b16 %v221
    %v519 = vunpack.c.h.b16 %v221
    %v520 = vunpack.c.l.b16 %v222
    %v521 = vunpack.c.h.b16 %v222
    %v522 = vunpack.c.l.b16 %v223
    %v523 = vunpack.c.h.b16 %v223
    %v524 = vunpack.c.l.b16 %v224
    %v525 = vunpack.c.h.b16 %v224
    %v526 = vunpack.c.l.b16 %v225
    %v527 = vunpack.c.h.b16 %v225
    %v528 = vunpack.c.l.b16 %v226
    %v529 = vunpack.c.h.b16 %v226
    %v530 = vunpack.c.l.b16 %v227
    %v531 = vunpack.c.h.b16 %v227
    %v532 = vunpack.c.l.b16 %v228
    %v533 = vunpack.c.h.b16 %v228
    %v534 = vunpack.c.l.b16 %v229
    %v535 = vunpack.c.h.b16 %v229
    %v536 = vunpack.c.l.b16 %v230
    %v537 = vunpack.c.h.b16 %v230
    %v538 = vunpack.c.l.b16 %v231
    %v539 = vunpack.c.h.b16 %v231
    %v540 = vunpack.c.l.b16 %v232
    %v541 = vunpack.c.h.b16 %v232
    %v542 = vunpack.c.l.b16 %v233
    %v543 = vunpack.c.h.b16 %v233
    %v544 = vunpack.c.l.b16 %v234
    %v545 = vunpack.c.h.b16 %v234
    %v546 = vunpack.c.l.b16 %v235
    %v547 = vunpack.c.h.b16 %v235
    %v548 = vunpack.c.l.b16 %v236
    %v549 = vunpack.c.h.b16 %v236
    %v550 = vunpack.c.l.b16 %v237
    %v551 = vunpack.c.h.b16 %v237
    %v552 = vunpack.c.l.b16 %v238
    %v553 = vunpack.c.h.b16 %v238
    %v554 = vunpack.c.l.b16 %v239
    %v555 = vunpack.c.h.b16 %v239
    %v556 = vunpack.c.l.b16 %v240
    %v557 = vunpack.c.h.b16 %v240
    %v558 = vunpack.c.l.b16 %v241
    %v559 = vunpack.c.h.b16 %v241
    %v560 = vunpack.c.l.b16 %v242
    %v561 = vunpack.c.h.b16 %v242
    %v562 = vunpack.c.l.b16 %v243
    %v563 = vunpack.c.h.b16 %v243
    %v564 = vpack.c.b16 %v378, %v372
    %v565 = vpack.c.b16 %v379, %v373
    %v566 = vpack.c.b16 %v380, %v374
    %v567 = vpack.c.b16 %v381, %v375
    %v568 = vpack.c.b16 %v382, %v376
    %v569 = vpack.c.b16 %v383, %v377
    %v570 = vpack.c.b16 %v390, %v384
    %v571 = vpack.c.b16 %v391, %v385
    %v572 = vpack.c.b16 %v392, %v386
    %v573 = vpack.c.b16 %v393, %v387
    %v574 = vpack.c.b16 %v394, %v388
    %v575 = vpack.c.b16 %v395, %v389
    %v576 = vpack.c.b16 %v402, %v396
    %v577 = vpack.c.b16 %v403, %v397
    %v578 = vpack.c.b16 %v404, %v398
    %v579 = vpack.c.b16 %v405, %v399
    %v580 = vpack.c.b16 %v406, %v400
    %v581 = vpack.c.b16 %v407, %v401
    %v582 = vpack.c.b16 %v414, %v408
    %v583 = vpack.c.b16 %v415, %v409
    %v584 = vpack.c.b16 %v416, %v410
    %v585 = vpack.c.b16 %v417, %v411
    %v586 = vpack.c.b16 %v418, %v412
    %v587 = vpack.c.b16 %v419, %v413
    %v588 = vpack.c.b16 %v426, %v420
    %v589 = vpack.c.b16 %v427, %v421
    %v590 = vpack.c.b16 %v428, %v422
    %v591 = vpack.c.b16 %v429, %v423
    %v592 = vpack.c.b16 %v430, %v424
    %v593 = vpack.c.b16 %v431, %v425
    %v594 = vpack.c.b16 %v438, %v432
    %v595 = vpack.c.b16 %v439, %v433
    %v596 = vpack.c.b16 %v440, %v434
    %v597 = vpack.c.b16 %v441, %v435
    %v598 = vpack.c.b16 %v442, %v436
    %v599 = vpack.c.b16 %v443, %v437
    %v600 = vpack.c.b16 %v450, %v444
    %v601 = vpack.c.b16 %v451, %v445
    %v602 = vpack.c.b16 %v452, %v446
    %v603 = vpack.c.b16 %v453, %v447
    %v604 = vpack.c.b16 %v454, %v448
    %v605 = vpack.c.b16 %v455, %v449
    %v606 = vpack.c.b16 %v462, %v456
    %v607 = vpack.c.b16 %v463, %v457
    %v608 = vpack.c.b16 %v464, %v458
    %v609 = vpack.c.b16 %v465, %v459
    %v610 = vpack.c.b16 %v466, %v460
    %v611 = vpack.c.b16 %v467, %v461
    %v612 = vpack.c.b16 %v474, %v468
    %v613 = vpack.c.b16 %v475, %v469
    %v614 = vpack.c.b16 %v476, %v470
    %v615 = vpack.c.b16 %v477, %v471
    %v616 = vpack.c.b16 %v478, %v472
    %v617 = vpack.c.b16 %v479, %v473
    %v618 = vpack.c.b16 %v486, %v480
    %v619 = vpack.c.b16 %v487, %v481
    %v620 = vpack.c.b16 %v488, %v482
    %v621 = vpack.c.b16 %v489, %v483
    %v622 = vpack.c.b16 %v490, %v484
    %v623 = vpack.c.b16 %v491, %v485
    %v624 = vpack.c.b16 %v498, %v492
    %v625 = vpack.c.b16 %v499, %v493
    %v626 = vpack.c.b16 %v500, %v494
    %v627 = vpack.c.b16 %v501, %v495
    %v628 = vpack.c.b16 %v502, %v496
    %v629 = vpack.c.b16 %v503, %v497
    %v630 = vpack.c.b16 %v510, %v504
    %v631 = vpack.c.b16 %v511, %v505
    %v632 = vpack.c.b16 %v512, %v506
    %v633 = vpack.c.b16 %v513, %v507
    %v634 = vpack.c.b16 %v514, %v508
    %v635 = vpack.c.b16 %v515, %v509
    %v636 = vpack.c.b16 %v522, %v516
    %v637 = vpack.c.b16 %v523, %v517
    %v638 = vpack.c.b16 %v524, %v518
    %v639 = vpack.c.b16 %v525, %v519
    %v640 = vpack.c.b16 %v526, %v520
    %v641 = vpack.c.b16 %v527, %v521
    %v642 = vpack.c.b16 %v534, %v528
    %v643 = vpack.c.b16 %v535, %v529
    %v644 = vpack.c.b16 %v536, %v530
    %v645 = vpack.c.b16 %v537, %v531
    %v646 = vpack.c.b16 %v538, %v532
    %v647 = vpack.c.b16 %v539, %v533
    %v648 = vpack.c.b16 %v546, %v540
    %v649 = vpack.c.b16 %v547, %v541
    %v650 = vpack.c.b16 %v548, %v542
    %v651 = vpack.c.b16 %v549, %v543
    %v652 = vpack.c.b16 %v550, %v544
    %v653 = vpack.c.b16 %v551, %v545
    %v654 = vpack.c.b16 %v558, %v552
    %v655 = vpack.c.b16 %v559, %v553
    %v656 = vpack.c.b16 %v560, %v554
    %v657 = vpack.c.b16 %v561, %v555
    %v658 = vpack.c.b16 %v562, %v556
    %v659 = vpack.c.b16 %v563, %v557
    %756 = vmatprep.subr.bf16.mxu0 %v565
    %757 = vmatpush1.bf16.msra.mxu0 %v564
    %758 = vmatprep.subr.bf16.mxu0 %v571
    %759 = vmatpush1.bf16.msra.mxu0 %v570
    %760 = vmatprep.subr.bf16.mxu0 %v577
    %761 = vmatpush1.bf16.msra.mxu0 %v576
    %762 = vmatprep.subr.bf16.mxu0 %v583
    %763 = vmatpush1.bf16.msra.mxu0 %v582
    %764 = vmatprep.subr.bf16.mxu0 %v589
    %765 = vmatpush1.bf16.msra.mxu0 %v588
    %766 = vmatprep.subr.bf16.mxu0 %v595
    %767 = vmatpush1.bf16.msra.mxu0 %v594
    %768 = vmatprep.subr.bf16.mxu0 %v601
    %769 = vmatpush1.bf16.msra.mxu0 %v600
    %770 = vmatprep.subr.bf16.mxu0 %v607
    %771 = vmatpush1.bf16.msra.mxu0 %v606
    %772 = vmatprep.subr.bf16.mxu0 %v613
    %773 = vmatpush1.bf16.msra.mxu0 %v612
    %774 = vmatprep.subr.bf16.mxu0 %v619
    %775 = vmatpush1.bf16.msra.mxu0 %v618
    %776 = vmatprep.subr.bf16.mxu0 %v625
    %777 = vmatpush1.bf16.msra.mxu0 %v624
    %778 = vmatprep.subr.bf16.mxu0 %v631
    %779 = vmatpush1.bf16.msra.mxu0 %v630
    %780 = vmatprep.subr.bf16.mxu0 %v637
    %781 = vmatpush1.bf16.msra.mxu0 %v636
    %782 = vmatprep.subr.bf16.mxu0 %v643
    %783 = vmatpush1.bf16.msra.mxu0 %v642
    %784 = vmatprep.subr.bf16.mxu0 %v649
    %785 = vmatpush1.bf16.msra.mxu0 %v648
    %786 = vmatprep.subr.bf16.mxu0 %v655
    %787 = vmatpush1.bf16.msra.mxu0 %v654
    %788 = vmatprep.mubr.bf16.mxu0 %v147
    %789 = vmatmul.mubr.bf16.gmra.mrb[0].mxu0 %v146
    %v790 = vpop.f32.mrb[0].mxu0
    %v791 = vadd.f32 %v249, %v790
    %v792 = vpop.f32.mrb[0].mxu0
    %v793 = vadd.f32 %v253, %v792
    %v794 = vpop.f32.mrb[0].mxu0
    %v795 = vadd.f32 %v249, %v794
    %v796 = vpop.f32.mrb[0].mxu0
    %v797 = vadd.f32 %v253, %v796
    %798 = vdwg.mxu0
    %799 = vmatprep.subr.bf16.mxu0 %v567
    %800 = vmatpush1.bf16.msra.mxu0 %v566
    %801 = vmatprep.subr.bf16.mxu0 %v573
    %802 = vmatpush1.bf16.msra.mxu0 %v572
    %803 = vmatprep.subr.bf16.mxu0 %v579
    %804 = vmatpush1.bf16.msra.mxu0 %v578
    %805 = vmatprep.subr.bf16.mxu0 %v585
    %806 = vmatpush1.bf16.msra.mxu0 %v584
    %807 = vmatprep.subr.bf16.mxu0 %v591
    %808 = vmatpush1.bf16.msra.mxu0 %v590
    %809 = vmatprep.subr.bf16.mxu0 %v597
    %810 = vmatpush1.bf16.msra.mxu0 %v596
    %811 = vmatprep.subr.bf16.mxu0 %v603
    %812 = vmatpush1.bf16.msra.mxu0 %v602
    %813 = vmatprep.subr.bf16.mxu0 %v609
    %814 = vmatpush1.bf16.msra.mxu0 %v608
    %815 = vmatprep.subr.bf16.mxu0 %v615
    %816 = vmatpush1.bf16.msra.mxu0 %v614
    %817 = vmatprep.subr.bf16.mxu0 %v621
    %818 = vmatpush1.bf16.msra.mxu0 %v620
    %819 = vmatprep.subr.bf16.mxu0 %v627
    %820 = vmatpush1.bf16.msra.mxu0 %v626
    %821 = vmatprep.subr.bf16.mxu0 %v633
    %822 = vmatpush1.bf16.msra.mxu0 %v632
    %823 = vmatprep.subr.bf16.mxu0 %v639
    %824 = vmatpush1.bf16.msra.mxu0 %v638
    %825 = vmatprep.subr.bf16.mxu0 %v645
    %826 = vmatpush1.bf16.msra.mxu0 %v644
    %827 = vmatprep.subr.bf16.mxu0 %v651
    %828 = vmatpush1.bf16.msra.mxu0 %v650
    %829 = vmatprep.subr.bf16.mxu0 %v657
    %830 = vmatpush1.bf16.msra.mxu0 %v656
    %831 = vmatprep.mubr.bf16.mxu0 %v147
    %832 = vmatmul.mubr.bf16.gmra.mrb[0].mxu0 %v146
    %v833 = vpop.f32.mrb[0].mxu0
    %v834 = vadd.f32 %v257, %v833
    %v835 = vpop.f32.mrb[0].mxu0
    %v836 = vadd.f32 %v261, %v835
    %v837 = vpop.f32.mrb[0].mxu0
    %v838 = vadd.f32 %v257, %v837
    %v839 = vpop.f32.mrb[0].mxu0
    %v840 = vadd.f32 %v261, %v839
    %841 = vdwg.mxu0
    %842 = vmatprep.subr.bf16.mxu0 %v569
    %843 = vmatpush1.bf16.msra.mxu0 %v568
    %844 = vmatprep.subr.bf16.mxu0 %v575
    %845 = vmatpush1.bf16.msra.mxu0 %v574
    %846 = vmatprep.subr.bf16.mxu0 %v581
    %847 = vmatpush1.bf16.msra.mxu0 %v580
    %848 = vmatprep.subr.bf16.mxu0 %v587
    %849 = vmatpush1.bf16.msra.mxu0 %v586
    %850 = vmatprep.subr.bf16.mxu0 %v593
    %851 = vmatpush1.bf16.msra.mxu0 %v592
    %852 = vmatprep.subr.bf16.mxu0 %v599
    %853 = vmatpush1.bf16.msra.mxu0 %v598
    %854 = vmatprep.subr.bf16.mxu0 %v605
    %855 = vmatpush1.bf16.msra.mxu0 %v604
    %856 = vmatprep.subr.bf16.mxu0 %v611
    %857 = vmatpush1.bf16.msra.mxu0 %v610
    %858 = vmatprep.subr.bf16.mxu0 %v617
    %859 = vmatpush1.bf16.msra.mxu0 %v616
    %860 = vmatprep.subr.bf16.mxu0 %v623
    %861 = vmatpush1.bf16.msra.mxu0 %v622
    %862 = vmatprep.subr.bf16.mxu0 %v629
    %863 = vmatpush1.bf16.msra.mxu0 %v628
    %864 = vmatprep.subr.bf16.mxu0 %v635
    %865 = vmatpush1.bf16.msra.mxu0 %v634
    %866 = vmatprep.subr.bf16.mxu0 %v641
    %867 = vmatpush1.bf16.msra.mxu0 %v640
    %868 = vmatprep.subr.bf16.mxu0 %v647
    %869 = vmatpush1.bf16.msra.mxu0 %v646
    %870 = vmatprep.subr.bf16.mxu0 %v653
    %871 = vmatpush1.bf16.msra.mxu0 %v652
    %872 = vmatprep.subr.bf16.mxu0 %v659
    %873 = vmatpush1.bf16.msra.mxu0 %v658
    %874 = vmatprep.mubr.bf16.mxu0 %v147
    %875 = vmatmul.mubr.bf16.gmra.mrb[0].mxu0 %v146
    %v876 = vpop.f32.mrb[0].mxu0
    %v877 = vadd.f32 %v265, %v876
    %v878 = vpop.f32.mrb[0].mxu0
    %v879 = vadd.f32 %v269, %v878
    %v880 = vpop.f32.mrb[0].mxu0
    %v881 = vadd.f32 %v265, %v880
    %v882 = vpop.f32.mrb[0].mxu0
    %v883 = vadd.f32 %v269, %v882
    %884 = vdwg.mxu0
    %v885 = vpack.c.bf16 %v795, %v791
    %v886 = vpack.c.bf16 %v797, %v793
    %v887 = vpack.c.bf16 %v838, %v834
    %v888 = vpack.c.bf16 %v840, %v836
    %v889 = vpack.c.bf16 %v881, %v877
    %v890 = vpack.c.bf16 %v883, %v879
    %v897 = vunpack.c.l.b16 %v885
    %v898 = vunpack.c.l.b16 %v886
    %v899 = vunpack.c.l.b16 %v887
    %v900 = vunpack.c.l.b16 %v888
    %v901 = vunpack.c.l.b16 %v889
    %v902 = vunpack.c.l.b16 %v890
    %v903 = vunpack.c.h.b16 %v885
    %v904 = vunpack.c.h.b16 %v886
    %v905 = vunpack.c.h.b16 %v887
    %v906 = vunpack.c.h.b16 %v888
    %v907 = vunpack.c.h.b16 %v889
    %v908 = vunpack.c.h.b16 %v890
    %v909 = vpack.c.b16 %v898, %v897
    %v910 = vpack.c.b16 %v900, %v899
    %v911 = vpack.c.b16 %v902, %v901
    %v912 = vpack.c.b16 %v904, %v903
    %v913 = vpack.c.b16 %v906, %v905
    %v914 = vpack.c.b16 %v908, %v907
    %921 = vst [vmem:[%s5] sm:$0xff] %v909
    %922 = vst [vmem:[%s5 + $0x8] sm:$0xff] %v910
    %923 = vst [vmem:[%s5 + $0x10] sm:$0xff] %v911
    %924 = vst [vmem:[%s5 + $0x18] sm:$0xff] %v912
    %925 = vst [vmem:[%s5 + $0x20] sm:$0xff] %v913
    %926 = vst [vmem:[%s5 + $0x28] sm:$0xff] %v914
    // Predicated region
    $region42: #{gpt_forward.7} parent=1 // pred_check
      _
    $region43: #{gpt_forward.7} parent=1 // pred_check_branch
      %928 = sbr.rel (0) target = $region45
    $region44: #{gpt_forward.7} parent=1 // pred_region
      _
    $region45: #{gpt_forward.7} parent=1 // pred_fallthru
      _
    // Predicated region
    $region46: #{gpt_forward.7} parent=1 // pred_check
      _
    $region47: #{gpt_forward.7} parent=1 // pred_check_branch
      %930 = sbr.rel (0) target = $region49
    $region48: #{gpt_forward.7} parent=1 // pred_region
      _
    $region49: #{gpt_forward.7} parent=1 // pred_fallthru
      _
    %931 = vsyncpa [#allocation4], 1
    %932 = vsyncpa [#allocation6], 1
    %933 = vsyncpa [#allocation9], 1

// kernel: gpt_forward.10
$region0: #{gpt_forward.10}
  #allocation0 [shape = 'u32[]', space=smem, size = 0x4, offset = 0x4, fixed_abs, tag = 'smem constant byte address 0x4 - core index']
  #allocation1 [shape = 'u32[144,128]{1,0:T(1,128)}', space=vmem, size = 0x12000, scoped, tag = 'internal scratch']
  #allocation2 [shape = 'bf16[16,256]{1,0:T(16,128)(2,1)}', space=vmem, size = 0x2000, scoped, tag = 'scratch operand']
  %s0 = inlined_call_operand.vmem [shape: f32[16,256], index: 0, kind: input, shape index: {}]
  %s1 = inlined_call_operand.vmem [shape: f32[1,256], index: 1, kind: input, shape index: {}]
  %s2 = inlined_call_operand.vmem [shape: f32[1,256], index: 2, kind: input, shape index: {}]
  %s3 = inlined_call_operand.vmem [shape: bf16[256,768], index: 3, kind: input, shape index: {}]
  %s4 = inlined_call_operand.vmem [shape: f32[1,768], index: 4, kind: input, shape index: {}]
  %s5 = inlined_call_operand.vmem [shape: bf16[16,768], index: 5, kind: output, shape index: {}]
  %s6 = sld [smem:[#allocation0]]
  $region34: #{gpt_forward.10} parent=0
    _
  %s8 = ssub.s32 1, %s6
  %s9 = scalar_select 0, %s8, %s6
  // Predicated region
  $region2: #{gpt_forward.10} parent=0 // pred_check
    _
  $region3: #{gpt_forward.10} parent=0 // pred_check_branch
    %11 = sbr.rel (0) target = $region5
  $region4: #{gpt_forward.10} parent=0 // pred_region
    _
  $region5: #{gpt_forward.10} parent=0 // pred_fallthru
    _
  // Predicated region
  $region6: #{gpt_forward.10} parent=0 // pred_check
    _
  $region7: #{gpt_forward.10} parent=0 // pred_check_branch
    %13 = sbr.rel (0) target = $region9
  $region8: #{gpt_forward.10} parent=0 // pred_region
    _
  $region9: #{gpt_forward.10} parent=0 // pred_fallthru
    _
  // Predicated region
  $region10: #{gpt_forward.10} parent=0 // pred_check
    _
  $region11: #{gpt_forward.10} parent=0 // pred_check_branch
    %15 = sbr.rel (0) target = $region13
  $region12: #{gpt_forward.10} parent=0 // pred_region
    _
  $region13: #{gpt_forward.10} parent=0 // pred_fallthru
    _
  // Predicated region
  $region14: #{gpt_forward.10} parent=0 // pred_check
    _
  $region15: #{gpt_forward.10} parent=0 // pred_check_branch
    %17 = sbr.rel (0) target = $region17
  $region16: #{gpt_forward.10} parent=0 // pred_region
    _
  $region17: #{gpt_forward.10} parent=0 // pred_fallthru
    _
  // Predicated region
  $region18: #{gpt_forward.10} parent=0 // pred_check
    _
  $region19: #{gpt_forward.10} parent=0 // pred_check_branch
    %19 = sbr.rel (0) target = $region21
  $region20: #{gpt_forward.10} parent=0 // pred_region
    _
  $region21: #{gpt_forward.10} parent=0 // pred_fallthru
    _
  %p20 = scmp.eq.s32.totalorder 0, 0
  // Predicated region
  $region22: #{gpt_forward.10} parent=0 // pred_check
    %p21 = pneg %p20
  $region23: #{gpt_forward.10} parent=0 // pred_check_branch
    %23 = sbr.rel (%p21) target = $region25
  $region24: #{gpt_forward.10} parent=0 // pred_region
    %v24 = vld [vmem:[%s0] sm:$0xff]
    %v25 = vld [vmem:[%s0 + $0x8] sm:$0xff]
    %v26 = vld [vmem:[%s0 + $0x10] sm:$0xff]
    %v27 = vld [vmem:[%s0 + $0x18] sm:$0xff]
    %v28 = vld [vmem:[%s1] sm:$0x3]
    %v29 = vld [vmem:[%s2] sm:$0x3]
    %v30 = vadd.f32 %v24, %v25
    %31 = vadd.xlane.f32.xlu0 %v30
    %v32 = vpop.xlane.xlu0 %31
    %v33 = vadd.f32 %v26, %v27
    %34 = vadd.xlane.f32.xlu0 %v33
    %v35 = vpop.xlane.xlu0 %34
    %v36 = vrcp.pop 256.0
    %v37 = vmul.f32 %v32, %v36
    %v38 = vmul.f32 %v35, %v36
    %v39 = vsub.f32 %v24, %v37
    %v40 = vsub.f32 %v25, %v37
    %v41 = vsub.f32 %v26, %v38
    %v42 = vsub.f32 %v27, %v38
    %v43 = vmul.f32 %v39, %v39
    %v44 = vmul.f32 %v40, %v40
    %v45 = vmul.f32 %v41, %v41
    %v46 = vmul.f32 %v42, %v42
    %v47 = vadd.f32 %v43, %v44
    %48 = vadd.xlane.f32.xlu0 %v47
    %v49 = vpop.xlane.xlu0 %48
    %v50 = vadd.f32 %v45, %v46
    %51 = vadd.xlane.f32.xlu0 %v50
    %v52 = vpop.xlane.xlu0 %51
    %v53 = vmul.f32 %v49, %v36
    %v54 = vmul.f32 %v52, %v36
    %v55 = vadd.f32 %v53, 1e-05
    %v56 = vadd.f32 %v54, 1e-05
    %v57 = vrsqrt.pop %v55
    %v58 = vrsqrt.pop %v56
    %v59 = vmul.f32 %v39, %v57
    %v60 = vmul.f32 %v40, %v57
    %v61 = vmul.f32 %v41, %v58
    %v62 = vmul.f32 %v42, %v58
    %v64 = vlaneseq
    %v65 = vshrl.u32 %v64, 7
    %v66 = vsub.s32 0, %v65
    %v67 = vrot.slane %v28, %v66
    %v68 = vlaneseq
    %v69 = vshrl.u32 %v68, 7
    %v70 = vsub.s32 1, %v69
    %v71 = vrot.slane %v28, %v70
    %v74 = vmul.f32 %v59, %v67
    %v75 = vmul.f32 %v60, %v71
    %v76 = vmul.f32 %v61, %v67
    %v77 = vmul.f32 %v62, %v71
    %v79 = vlaneseq
    %v80 = vshrl.u32 %v79, 7
    %v81 = vsub.s32 0, %v80
    %v82 = vrot.slane %v29, %v81
    %v83 = vlaneseq
    %v84 = vshrl.u32 %v83, 7
    %v85 = vsub.s32 1, %v84
    %v86 = vrot.slane %v29, %v85
    %v89 = vadd.f32 %v74, %v82
    %v90 = vadd.f32 %v75, %v86
    %v91 = vadd.f32 %v76, %v82
    %v92 = vadd.f32 %v77, %v86
    %v93 = vpack.c.bf16 %v91, %v89
    %v94 = vpack.c.bf16 %v92, %v90
    %95 = vst [vmem:[#allocation2] sm:$0xff] %v93
    %96 = vst [vmem:[#allocation2 + $0x8] sm:$0xff] %v94
  $region25: #{gpt_forward.10} parent=0 // pred_fallthru
    _
  %v97 = vld [vmem:[#allocation2] sm:$0xff]
  %v98 = vld [vmem:[#allocation2 + $0x8] sm:$0xff]
  %v99 = vld [vmem:[%s3] sm:$0xff]
  %v100 = vld [vmem:[%s3 + $0x8] sm:$0xff]
  %v101 = vld [vmem:[%s3 + $0x10] sm:$0xff]
  %v102 = vld [vmem:[%s3 + $0x18] sm:$0xff]
  %v103 = vld [vmem:[%s3 + $0x20] sm:$0xff]
  %v104 = vld [vmem:[%s3 + $0x28] sm:$0xff]
  %v105 = vld [vmem:[%s3 + $0x30] sm:$0xff]
  %v106 = vld [vmem:[%s3 + $0x38] sm:$0xff]
  %v107 = vld [vmem:[%s3 + $0x40] sm:$0xff]
  %v108 = vld [vmem:[%s3 + $0x48] sm:$0xff]
  %v109 = vld [vmem:[%s3 + $0x50] sm:$0xff]
  %v110 = vld [vmem:[%s3 + $0x58] sm:$0xff]
  %v111 = vld [vmem:[%s3 + $0x60] sm:$0xff]
  %v112 = vld [vmem:[%s3 + $0x68] sm:$0xff]
  %v113 = vld [vmem:[%s3 + $0x70] sm:$0xff]
  %v114 = vld [vmem:[%s3 + $0x78] sm:$0xff]
  %v115 = vld [vmem:[%s3 + $0x80] sm:$0xff]
  %v116 = vld [vmem:[%s3 + $0x88] sm:$0xff]
  %v117 = vld [vmem:[%s3 + $0x90] sm:$0xff]
  %v118 = vld [vmem:[%s3 + $0x98] sm:$0xff]
  %v119 = vld [vmem:[%s3 + $0xa0] sm:$0xff]
  %v120 = vld [vmem:[%s3 + $0xa8] sm:$0xff]
  %v121 = vld [vmem:[%s3 + $0xb0] sm:$0xff]
  %v122 = vld [vmem:[%s3 + $0xb8] sm:$0xff]
  %v123 = vld [vmem:[%s3 + $0xc0] sm:$0xff]
  %v124 = vld [vmem:[%s3 + $0xc8] sm:$0xff]
  %v125 = vld [vmem:[%s3 + $0xd0] sm:$0xff]
  %v126 = vld [vmem:[%s3 + $0xd8] sm:$0xff]
  %v127 = vld [vmem:[%s3 + $0xe0] sm:$0xff]
  %v128 = vld [vmem:[%s3 + $0xe8] sm:$0xff]
  %v129 = vld [vmem:[%s3 + $0xf0] sm:$0xff]
  %v130 = vld [vmem:[%s3 + $0xf8] sm:$0xff]
  %v131 = vld [vmem:[%s3 + $0x100] sm:$0xff]
  %v132 = vld [vmem:[%s3 + $0x108] sm:$0xff]
  %v133 = vld [vmem:[%s3 + $0x110] sm:$0xff]
  %v134 = vld [vmem:[%s3 + $0x118] sm:$0xff]
  %v135 = vld [vmem:[%s3 + $0x120] sm:$0xff]
  %v136 = vld [vmem:[%s3 + $0x128] sm:$0xff]
  %v137 = vld [vmem:[%s3 + $0x130] sm:$0xff]
  %v138 = vld [vmem:[%s3 + $0x138] sm:$0xff]
  %v139 = vld [vmem:[%s3 + $0x140] sm:$0xff]
  %v140 = vld [vmem:[%s3 + $0x148] sm:$0xff]
  %v141 = vld [vmem:[%s3 + $0x150] sm:$0xff]
  %v142 = vld [vmem:[%s3 + $0x158] sm:$0xff]
  %v143 = vld [vmem:[%s3 + $0x160] sm:$0xff]
  %v144 = vld [vmem:[%s3 + $0x168] sm:$0xff]
  %v145 = vld [vmem:[%s3 + $0x170] sm:$0xff]
  %v146 = vld [vmem:[%s3 + $0x178] sm:$0xff]
  %v147 = vld [vmem:[%s3 + $0x180] sm:$0xff]
  %v148 = vld [vmem:[%s3 + $0x188] sm:$0xff]
  %v149 = vld [vmem:[%s3 + $0x190] sm:$0xff]
  %v150 = vld [vmem:[%s3 + $0x198] sm:$0xff]
  %v151 = vld [vmem:[%s3 + $0x1a0] sm:$0xff]
  %v152 = vld [vmem:[%s3 + $0x1a8] sm:$0xff]
  %v153 = vld [vmem:[%s3 + $0x1b0] sm:$0xff]
  %v154 = vld [vmem:[%s3 + $0x1b8] sm:$0xff]
  %v155 = vld [vmem:[%s3 + $0x1c0] sm:$0xff]
  %v156 = vld [vmem:[%s3 + $0x1c8] sm:$0xff]
  %v157 = vld [vmem:[%s3 + $0x1d0] sm:$0xff]
  %v158 = vld [vmem:[%s3 + $0x1d8] sm:$0xff]
  %v159 = vld [vmem:[%s3 + $0x1e0] sm:$0xff]
  %v160 = vld [vmem:[%s3 + $0x1e8] sm:$0xff]
  %v161 = vld [vmem:[%s3 + $0x1f0] sm:$0xff]
  %v162 = vld [vmem:[%s3 + $0x1f8] sm:$0xff]
  %v163 = vld [vmem:[%s3 + $0x200] sm:$0xff]
  %v164 = vld [vmem:[%s3 + $0x208] sm:$0xff]
  %v165 = vld [vmem:[%s3 + $0x210] sm:$0xff]
  %v166 = vld [vmem:[%s3 + $0x218] sm:$0xff]
  %v167 = vld [vmem:[%s3 + $0x220] sm:$0xff]
  %v168 = vld [vmem:[%s3 + $0x228] sm:$0xff]
  %v169 = vld [vmem:[%s3 + $0x230] sm:$0xff]
  %v170 = vld [vmem:[%s3 + $0x238] sm:$0xff]
  %v171 = vld [vmem:[%s3 + $0x240] sm:$0xff]
  %v172 = vld [vmem:[%s3 + $0x248] sm:$0xff]
  %v173 = vld [vmem:[%s3 + $0x250] sm:$0xff]
  %v174 = vld [vmem:[%s3 + $0x258] sm:$0xff]
  %v175 = vld [vmem:[%s3 + $0x260] sm:$0xff]
  %v176 = vld [vmem:[%s3 + $0x268] sm:$0xff]
  %v177 = vld [vmem:[%s3 + $0x270] sm:$0xff]
  %v178 = vld [vmem:[%s3 + $0x278] sm:$0xff]
  %v179 = vld [vmem:[%s3 + $0x280] sm:$0xff]
  %v180 = vld [vmem:[%s3 + $0x288] sm:$0xff]
  %v181 = vld [vmem:[%s3 + $0x290] sm:$0xff]
  %v182 = vld [vmem:[%s3 + $0x298] sm:$0xff]
  %v183 = vld [vmem:[%s3 + $0x2a0] sm:$0xff]
  %v184 = vld [vmem:[%s3 + $0x2a8] sm:$0xff]
  %v185 = vld [vmem:[%s3 + $0x2b0] sm:$0xff]
  %v186 = vld [vmem:[%s3 + $0x2b8] sm:$0xff]
  %v187 = vld [vmem:[%s3 + $0x2c0] sm:$0xff]
  %v188 = vld [vmem:[%s3 + $0x2c8] sm:$0xff]
  %v189 = vld [vmem:[%s3 + $0x2d0] sm:$0xff]
  %v190 = vld [vmem:[%s3 + $0x2d8] sm:$0xff]
  %v191 = vld [vmem:[%s3 + $0x2e0] sm:$0xff]
  %v192 = vld [vmem:[%s3 + $0x2e8] sm:$0xff]
  %v193 = vld [vmem:[%s3 + $0x2f0] sm:$0xff]
  %v194 = vld [vmem:[%s3 + $0x2f8] sm:$0xff]
  %v195 = vld [vmem:[%s4] sm:$0x3f]
  %v197 = vlaneseq
  %v198 = vshrl.u32 %v197, 7
  %v199 = vsub.s32 0, %v198
  %v200 = vrot.slane %v195, %v199
  %v201 = vlaneseq
  %v202 = vshrl.u32 %v201, 7
  %v203 = vsub.s32 1, %v202
  %v204 = vrot.slane %v195, %v203
  %v205 = vlaneseq
  %v206 = vshrl.u32 %v205, 7
  %v207 = vsub.s32 2, %v206
  %v208 = vrot.slane %v195, %v207
  %v209 = vlaneseq
  %v210 = vshrl.u32 %v209, 7
  %v211 = vsub.s32 3, %v210
  %v212 = vrot.slane %v195, %v211
  %v213 = vlaneseq
  %v214 = vshrl.u32 %v213, 7
  %v215 = vsub.s32 4, %v214
  %v216 = vrot.slane %v195, %v215
  %v217 = vlaneseq
  %v218 = vshrl.u32 %v217, 7
  %v219 = vsub.s32 5, %v218
  %v220 = vrot.slane %v195, %v219
  %v323 = vunpack.c.l.b16 %v99
  %v324 = vunpack.c.h.b16 %v99
  %v325 = vunpack.c.l.b16 %v100
  %v326 = vunpack.c.h.b16 %v100
  %v327 = vunpack.c.l.b16 %v101
  %v328 = vunpack.c.h.b16 %v101
  %v329 = vunpack.c.l.b16 %v102
  %v330 = vunpack.c.h.b16 %v102
  %v331 = vunpack.c.l.b16 %v103
  %v332 = vunpack.c.h.b16 %v103
  %v333 = vunpack.c.l.b16 %v104
  %v334 = vunpack.c.h.b16 %v104
  %v335 = vunpack.c.l.b16 %v105
  %v336 = vunpack.c.h.b16 %v105
  %v337 = vunpack.c.l.b16 %v106
  %v338 = vunpack.c.h.b16 %v106
  %v339 = vunpack.c.l.b16 %v107
  %v340 = vunpack.c.h.b16 %v107
  %v341 = vunpack.c.l.b16 %v108
  %v342 = vunpack.c.h.b16 %v108
  %v343 = vunpack.c.l.b16 %v109
  %v344 = vunpack.c.h.b16 %v109
  %v345 = vunpack.c.l.b16 %v110
  %v346 = vunpack.c.h.b16 %v110
  %v347 = vunpack.c.l.b16 %v111
  %v348 = vunpack.c.h.b16 %v111
  %v349 = vunpack.c.l.b16 %v112
  %v350 = vunpack.c.h.b16 %v112
  %v351 = vunpack.c.l.b16 %v113
  %v352 = vunpack.c.h.b16 %v113
  %v353 = vunpack.c.l.b16 %v114
  %v354 = vunpack.c.h.b16 %v114
  %v355 = vunpack.c.l.b16 %v115
  %v356 = vunpack.c.h.b16 %v115
  %v357 = vunpack.c.l.b16 %v116
  %v358 = vunpack.c.h.b16 %v116
  %v359 = vunpack.c.l.b16 %v117
  %v360 = vunpack.c.h.b16 %v117
  %v361 = vunpack.c.l.b16 %v118
  %v362 = vunpack.c.h.b16 %v118
  %v363 = vunpack.c.l.b16 %v119
  %v364 = vunpack.c.h.b16 %v119
  %v365 = vunpack.c.l.b16 %v120
  %v366 = vunpack.c.h.b16 %v120
  %v367 = vunpack.c.l.b16 %v121
  %v368 = vunpack.c.h.b16 %v121
  %v369 = vunpack.c.l.b16 %v122
  %v370 = vunpack.c.h.b16 %v122
  %v371 = vunpack.c.l.b16 %v123
  %v372 = vunpack.c.h.b16 %v123
  %v373 = vunpack.c.l.b16 %v124
  %v374 = vunpack.c.h.b16 %v124
  %v375 = vunpack.c.l.b16 %v125
  %v376 = vunpack.c.h.b16 %v125
  %v377 = vunpack.c.l.b16 %v126
  %v378 = vunpack.c.h.b16 %v126
  %v379 = vunpack.c.l.b16 %v127
  %v380 = vunpack.c.h.b16 %v127
  %v381 = vunpack.c.l.b16 %v128
  %v382 = vunpack.c.h.b16 %v128
  %v383 = vunpack.c.l.b16 %v129
  %v384 = vunpack.c.h.b16 %v129
  %v385 = vunpack.c.l.b16 %v130
  %v386 = vunpack.c.h.b16 %v130
  %v387 = vunpack.c.l.b16 %v131
  %v388 = vunpack.c.h.b16 %v131
  %v389 = vunpack.c.l.b16 %v132
  %v390 = vunpack.c.h.b16 %v132
  %v391 = vunpack.c.l.b16 %v133
  %v392 = vunpack.c.h.b16 %v133
  %v393 = vunpack.c.l.b16 %v134
  %v394 = vunpack.c.h.b16 %v134
  %v395 = vunpack.c.l.b16 %v135
  %v396 = vunpack.c.h.b16 %v135
  %v397 = vunpack.c.l.b16 %v136
  %v398 = vunpack.c.h.b16 %v136
  %v399 = vunpack.c.l.b16 %v137
  %v400 = vunpack.c.h.b16 %v137
  %v401 = vunpack.c.l.b16 %v138
  %v402 = vunpack.c.h.b16 %v138
  %v403 = vunpack.c.l.b16 %v139
  %v404 = vunpack.c.h.b16 %v139
  %v405 = vunpack.c.l.b16 %v140
  %v406 = vunpack.c.h.b16 %v140
  %v407 = vunpack.c.l.b16 %v141
  %v408 = vunpack.c.h.b16 %v141
  %v409 = vunpack.c.l.b16 %v142
  %v410 = vunpack.c.h.b16 %v142
  %v411 = vunpack.c.l.b16 %v143
  %v412 = vunpack.c.h.b16 %v143
  %v413 = vunpack.c.l.b16 %v144
  %v414 = vunpack.c.h.b16 %v144
  %v415 = vunpack.c.l.b16 %v145
  %v416 = vunpack.c.h.b16 %v145
  %v417 = vunpack.c.l.b16 %v146
  %v418 = vunpack.c.h.b16 %v146
  %v419 = vunpack.c.l.b16 %v147
  %v420 = vunpack.c.h.b16 %v147
  %v421 = vunpack.c.l.b16 %v148
  %v422 = vunpack.c.h.b16 %v148
  %v423 = vunpack.c.l.b16 %v149
  %v424 = vunpack.c.h.b16 %v149
  %v425 = vunpack.c.l.b16 %v150
  %v426 = vunpack.c.h.b16 %v150
  %v427 = vunpack.c.l.b16 %v151
  %v428 = vunpack.c.h.b16 %v151
  %v429 = vunpack.c.l.b16 %v152
  %v430 = vunpack.c.h.b16 %v152
  %v431 = vunpack.c.l.b16 %v153
  %v432 = vunpack.c.h.b16 %v153
  %v433 = vunpack.c.l.b16 %v154
  %v434 = vunpack.c.h.b16 %v154
  %v435 = vunpack.c.l.b16 %v155
  %v436 = vunpack.c.h.b16 %v155
  %v437 = vunpack.c.l.b16 %v156
  %v438 = vunpack.c.h.b16 %v156
  %v439 = vunpack.c.l.b16 %v157
  %v440 = vunpack.c.h.b16 %v157
  %v441 = vunpack.c.l.b16 %v158
  %v442 = vunpack.c.h.b16 %v158
  %v443 = vunpack.c.l.b16 %v159
  %v444 = vunpack.c.h.b16 %v159
  %v445 = vunpack.c.l.b16 %v160
  %v446 = vunpack.c.h.b16 %v160
  %v447 = vunpack.c.l.b16 %v161
  %v448 = vunpack.c.h.b16 %v161
  %v449 = vunpack.c.l.b16 %v162
  %v450 = vunpack.c.h.b16 %v162
  %v451 = vunpack.c.l.b16 %v163
  %v452 = vunpack.c.h.b16 %v163
  %v453 = vunpack.c.l.b16 %v164
  %v454 = vunpack.c.h.b16 %v164
  %v455 = vunpack.c.l.b16 %v165
  %v456 = vunpack.c.h.b16 %v165
  %v457 = vunpack.c.l.b16 %v166
  %v458 = vunpack.c.h.b16 %v166
  %v459 = vunpack.c.l.b16 %v167
  %v460 = vunpack.c.h.b16 %v167
  %v461 = vunpack.c.l.b16 %v168
  %v462 = vunpack.c.h.b16 %v168
  %v463 = vunpack.c.l.b16 %v169
  %v464 = vunpack.c.h.b16 %v169
  %v465 = vunpack.c.l.b16 %v170
  %v466 = vunpack.c.h.b16 %v170
  %v467 = vunpack.c.l.b16 %v171
  %v468 = vunpack.c.h.b16 %v171
  %v469 = vunpack.c.l.b16 %v172
  %v470 = vunpack.c.h.b16 %v172
  %v471 = vunpack.c.l.b16 %v173
  %v472 = vunpack.c.h.b16 %v173
  %v473 = vunpack.c.l.b16 %v174
  %v474 = vunpack.c.h.b16 %v174
  %v475 = vunpack.c.l.b16 %v175
  %v476 = vunpack.c.h.b16 %v175
  %v477 = vunpack.c.l.b16 %v176
  %v478 = vunpack.c.h.b16 %v176
  %v479 = vunpack.c.l.b16 %v177
  %v480 = vunpack.c.h.b16 %v177
  %v481 = vunpack.c.l.b16 %v178
  %v482 = vunpack.c.h.b16 %v178
  %v483 = vunpack.c.l.b16 %v179
  %v484 = vunpack.c.h.b16 %v179
  %v485 = vunpack.c.l.b16 %v180
  %v486 = vunpack.c.h.b16 %v180
  %v487 = vunpack.c.l.b16 %v181
  %v488 = vunpack.c.h.b16 %v181
  %v489 = vunpack.c.l.b16 %v182
  %v490 = vunpack.c.h.b16 %v182
  %v491 = vunpack.c.l.b16 %v183
  %v492 = vunpack.c.h.b16 %v183
  %v493 = vunpack.c.l.b16 %v184
  %v494 = vunpack.c.h.b16 %v184
  %v495 = vunpack.c.l.b16 %v185
  %v496 = vunpack.c.h.b16 %v185
  %v497 = vunpack.c.l.b16 %v186
  %v498 = vunpack.c.h.b16 %v186
  %v499 = vunpack.c.l.b16 %v187
  %v500 = vunpack.c.h.b16 %v187
  %v501 = vunpack.c.l.b16 %v188
  %v502 = vunpack.c.h.b16 %v188
  %v503 = vunpack.c.l.b16 %v189
  %v504 = vunpack.c.h.b16 %v189
  %v505 = vunpack.c.l.b16 %v190
  %v506 = vunpack.c.h.b16 %v190
  %v507 = vunpack.c.l.b16 %v191
  %v508 = vunpack.c.h.b16 %v191
  %v509 = vunpack.c.l.b16 %v192
  %v510 = vunpack.c.h.b16 %v192
  %v511 = vunpack.c.l.b16 %v193
  %v512 = vunpack.c.h.b16 %v193
  %v513 = vunpack.c.l.b16 %v194
  %v514 = vunpack.c.h.b16 %v194
  %v515 = vpack.c.b16 %v329, %v323
  %v516 = vpack.c.b16 %v330, %v324
  %v517 = vpack.c.b16 %v331, %v325
  %v518 = vpack.c.b16 %v332, %v326
  %v519 = vpack.c.b16 %v333, %v327
  %v520 = vpack.c.b16 %v334, %v328
  %v521 = vpack.c.b16 %v341, %v335
  %v522 = vpack.c.b16 %v342, %v336
  %v523 = vpack.c.b16 %v343, %v337
  %v524 = vpack.c.b16 %v344, %v338
  %v525 = vpack.c.b16 %v345, %v339
  %v526 = vpack.c.b16 %v346, %v340
  %v527 = vpack.c.b16 %v353, %v347
  %v528 = vpack.c.b16 %v354, %v348
  %v529 = vpack.c.b16 %v355, %v349
  %v530 = vpack.c.b16 %v356, %v350
  %v531 = vpack.c.b16 %v357, %v351
  %v532 = vpack.c.b16 %v358, %v352
  %v533 = vpack.c.b16 %v365, %v359
  %v534 = vpack.c.b16 %v366, %v360
  %v535 = vpack.c.b16 %v367, %v361
  %v536 = vpack.c.b16 %v368, %v362
  %v537 = vpack.c.b16 %v369, %v363
  %v538 = vpack.c.b16 %v370, %v364
  %v539 = vpack.c.b16 %v377, %v371
  %v540 = vpack.c.b16 %v378, %v372
  %v541 = vpack.c.b16 %v379, %v373
  %v542 = vpack.c.b16 %v380, %v374
  %v543 = vpack.c.b16 %v381, %v375
  %v544 = vpack.c.b16 %v382, %v376
  %v545 = vpack.c.b16 %v389, %v383
  %v546 = vpack.c.b16 %v390, %v384
  %v547 = vpack.c.b16 %v391, %v385
  %v548 = vpack.c.b16 %v392, %v386
  %v549 = vpack.c.b16 %v393, %v387
  %v550 = vpack.c.b16 %v394, %v388
  %v551 = vpack.c.b16 %v401, %v395
  %v552 = vpack.c.b16 %v402, %v396
  %v553 = vpack.c.b16 %v403, %v397
  %v554 = vpack.c.b16 %v404, %v398
  %v555 = vpack.c.b16 %v405, %v399
  %v556 = vpack.c.b16 %v406, %v400
  %v557 = vpack.c.b16 %v413, %v407
  %v558 = vpack.c.b16 %v414, %v408
  %v559 = vpack.c.b16 %v415, %v409
  %v560 = vpack.c.b16 %v416, %v410
  %v561 = vpack.c.b16 %v417, %v411
  %v562 = vpack.c.b16 %v418, %v412
  %v563 = vpack.c.b16 %v425, %v419
  %v564 = vpack.c.b16 %v426, %v420
  %v565 = vpack.c.b16 %v427, %v421
  %v566 = vpack.c.b16 %v428, %v422
  %v567 = vpack.c.b16 %v429, %v423
  %v568 = vpack.c.b16 %v430, %v424
  %v569 = vpack.c.b16 %v437, %v431
  %v570 = vpack.c.b16 %v438, %v432
  %v571 = vpack.c.b16 %v439, %v433
  %v572 = vpack.c.b16 %v440, %v434
  %v573 = vpack.c.b16 %v441, %v435
  %v574 = vpack.c.b16 %v442, %v436
  %v575 = vpack.c.b16 %v449, %v443
  %v576 = vpack.c.b16 %v450, %v444
  %v577 = vpack.c.b16 %v451, %v445
  %v578 = vpack.c.b16 %v452, %v446
  %v579 = vpack.c.b16 %v453, %v447
  %v580 = vpack.c.b16 %v454, %v448
  %v581 = vpack.c.b16 %v461, %v455
  %v582 = vpack.c.b16 %v462, %v456
  %v583 = vpack.c.b16 %v463, %v457
  %v584 = vpack.c.b16 %v464, %v458
  %v585 = vpack.c.b16 %v465, %v459
  %v586 = vpack.c.b16 %v466, %v460
  %v587 = vpack.c.b16 %v473, %v467
  %v588 = vpack.c.b16 %v474, %v468
  %v589 = vpack.c.b16 %v475, %v469
  %v590 = vpack.c.b16 %v476, %v470
  %v591 = vpack.c.b16 %v477, %v471
  %v592 = vpack.c.b16 %v478, %v472
  %v593 = vpack.c.b16 %v485, %v479
  %v594 = vpack.c.b16 %v486, %v480
  %v595 = vpack.c.b16 %v487, %v481
  %v596 = vpack.c.b16 %v488, %v482
  %v597 = vpack.c.b16 %v489, %v483
  %v598 = vpack.c.b16 %v490, %v484
  %v599 = vpack.c.b16 %v497, %v491
  %v600 = vpack.c.b16 %v498, %v492
  %v601 = vpack.c.b16 %v499, %v493
  %v602 = vpack.c.b16 %v500, %v494
  %v603 = vpack.c.b16 %v501, %v495
  %v604 = vpack.c.b16 %v502, %v496
  %v605 = vpack.c.b16 %v509, %v503
  %v606 = vpack.c.b16 %v510, %v504
  %v607 = vpack.c.b16 %v511, %v505
  %v608 = vpack.c.b16 %v512, %v506
  %v609 = vpack.c.b16 %v513, %v507
  %v610 = vpack.c.b16 %v514, %v508
  %707 = vmatprep.subr.bf16.mxu0 %v516
  %708 = vmatpush1.bf16.msra.mxu0 %v515
  %709 = vmatprep.subr.bf16.mxu0 %v522
  %710 = vmatpush1.bf16.msra.mxu0 %v521
  %711 = vmatprep.subr.bf16.mxu0 %v528
  %712 = vmatpush1.bf16.msra.mxu0 %v527
  %713 = vmatprep.subr.bf16.mxu0 %v534
  %714 = vmatpush1.bf16.msra.mxu0 %v533
  %715 = vmatprep.subr.bf16.mxu0 %v540
  %716 = vmatpush1.bf16.msra.mxu0 %v539
  %717 = vmatprep.subr.bf16.mxu0 %v546
  %718 = vmatpush1.bf16.msra.mxu0 %v545
  %719 = vmatprep.subr.bf16.mxu0 %v552
  %720 = vmatpush1.bf16.msra.mxu0 %v551
  %721 = vmatprep.subr.bf16.mxu0 %v558
  %722 = vmatpush1.bf16.msra.mxu0 %v557
  %723 = vmatprep.subr.bf16.mxu0 %v564
  %724 = vmatpush1.bf16.msra.mxu0 %v563
  %725 = vmatprep.subr.bf16.mxu0 %v570
  %726 = vmatpush1.bf16.msra.mxu0 %v569
  %727 = vmatprep.subr.bf16.mxu0 %v576
  %728 = vmatpush1.bf16.msra.mxu0 %v575
  %729 = vmatprep.subr.bf16.mxu0 %v582
  %730 = vmatpush1.bf16.msra.mxu0 %v581
  %731 = vmatprep.subr.bf16.mxu0 %v588
  %732 = vmatpush1.bf16.msra.mxu0 %v587
  %733 = vmatprep.subr.bf16.mxu0 %v594
  %734 = vmatpush1.bf16.msra.mxu0 %v593
  %735 = vmatprep.subr.bf16.mxu0 %v600
  %736 = vmatpush1.bf16.msra.mxu0 %v599
  %737 = vmatprep.subr.bf16.mxu0 %v606
  %738 = vmatpush1.bf16.msra.mxu0 %v605
  %739 = vmatprep.mubr.bf16.mxu0 %v98
  %740 = vmatmul.mubr.bf16.gmra.mrb[0].mxu0 %v97
  %v741 = vpop.f32.mrb[0].mxu0
  %v742 = vadd.f32 %v200, %v741
  %v743 = vpop.f32.mrb[0].mxu0
  %v744 = vadd.f32 %v204, %v743
  %v745 = vpop.f32.mrb[0].mxu0
  %v746 = vadd.f32 %v200, %v745
  %v747 = vpop.f32.mrb[0].mxu0
  %v748 = vadd.f32 %v204, %v747
  %749 = vdwg.mxu0
  %750 = vmatprep.subr.bf16.mxu0 %v518
  %751 = vmatpush1.bf16.msra.mxu0 %v517
  %752 = vmatprep.subr.bf16.mxu0 %v524
  %753 = vmatpush1.bf16.msra.mxu0 %v523
  %754 = vmatprep.subr.bf16.mxu0 %v530
  %755 = vmatpush1.bf16.msra.mxu0 %v529
  %756 = vmatprep.subr.bf16.mxu0 %v536
  %757 = vmatpush1.bf16.msra.mxu0 %v535
  %758 = vmatprep.subr.bf16.mxu0 %v542
  %759 = vmatpush1.bf16.msra.mxu0 %v541
  %760 = vmatprep.subr.bf16.mxu0 %v548
  %761 = vmatpush1.bf16.msra.mxu0 %v547
  %762 = vmatprep.subr.bf16.mxu0 %v554
  %763 = vmatpush1.bf16.msra.mxu0 %v553
  %764 = vmatprep.subr.bf16.mxu0 %v560
  %765 = vmatpush1.bf16.msra.mxu0 %v559
  %766 = vmatprep.subr.bf16.mxu0 %v566
  %767 = vmatpush1.bf16.msra.mxu0 %v565
  %768 = vmatprep.subr.bf16.mxu0 %v572
  %769 = vmatpush1.bf16.msra.mxu0 %v571
  %770 = vmatprep.subr.bf16.mxu0 %v578
  %771 = vmatpush1.bf16.msra.mxu0 %v577
  %772 = vmatprep.subr.bf16.mxu0 %v584
  %773 = vmatpush1.bf16.msra.mxu0 %v583
  %774 = vmatprep.subr.bf16.mxu0 %v590
  %775 = vmatpush1.bf16.msra.mxu0 %v589
  %776 = vmatprep.subr.bf16.mxu0 %v596
  %777 = vmatpush1.bf16.msra.mxu0 %v595
  %778 = vmatprep.subr.bf16.mxu0 %v602
  %779 = vmatpush1.bf16.msra.mxu0 %v601
  %780 = vmatprep.subr.bf16.mxu0 %v608
  %781 = vmatpush1.bf16.msra.mxu0 %v607
  %782 = vmatprep.mubr.bf16.mxu0 %v98
  %783 = vmatmul.mubr.bf16.gmra.mrb[0].mxu0 %v97
  %v784 = vpop.f32.mrb[0].mxu0
  %v785 = vadd.f32 %v208, %v784
  %v786 = vpop.f32.mrb[0].mxu0
  %v787 = vadd.f32 %v212, %v786
  %v788 = vpop.f32.mrb[0].mxu0
  %v789 = vadd.f32 %v208, %v788
  %v790 = vpop.f32.mrb[0].mxu0
  %v791 = vadd.f32 %v212, %v790
  %792 = vdwg.mxu0
  %793 = vmatprep.subr.bf16.mxu0 %v520
  %794 = vmatpush1.bf16.msra.mxu0 %v519
  %795 = vmatprep.subr.bf16.mxu0 %v526
  %796 = vmatpush1.bf16.msra.mxu0 %v525
  %797 = vmatprep.subr.bf16.mxu0 %v532
  %798 = vmatpush1.bf16.msra.mxu0 %v531
  %799 = vmatprep.subr.bf16.mxu0 %v538
  %800 = vmatpush1.bf16.msra.mxu0 %v537
  %801 = vmatprep.subr.bf16.mxu0 %v544
  %802 = vmatpush1.bf16.msra.mxu0 %v543
  %803 = vmatprep.subr.bf16.mxu0 %v550
  %804 = vmatpush1.bf16.msra.mxu0 %v549
  %805 = vmatprep.subr.bf16.mxu0 %v556
  %806 = vmatpush1.bf16.msra.mxu0 %v555
  %807 = vmatprep.subr.bf16.mxu0 %v562
  %808 = vmatpush1.bf16.msra.mxu0 %v561
  %809 = vmatprep.subr.bf16.mxu0 %v568
  %810 = vmatpush1.bf16.msra.mxu0 %v567
  %811 = vmatprep.subr.bf16.mxu0 %v574
  %812 = vmatpush1.bf16.msra.mxu0 %v573
  %813 = vmatprep.subr.bf16.mxu0 %v580
  %814 = vmatpush1.bf16.msra.mxu0 %v579
  %815 = vmatprep.subr.bf16.mxu0 %v586
  %816 = vmatpush1.bf16.msra.mxu0 %v585
  %817 = vmatprep.subr.bf16.mxu0 %v592
  %818 = vmatpush1.bf16.msra.mxu0 %v591
  %819 = vmatprep.subr.bf16.mxu0 %v598
  %820 = vmatpush1.bf16.msra.mxu0 %v597
  %821 = vmatprep.subr.bf16.mxu0 %v604
  %822 = vmatpush1.bf16.msra.mxu0 %v603
  %823 = vmatprep.subr.bf16.mxu0 %v610
  %824 = vmatpush1.bf16.msra.mxu0 %v609
  %825 = vmatprep.mubr.bf16.mxu0 %v98
  %826 = vmatmul.mubr.bf16.gmra.mrb[0].mxu0 %v97
  %v827 = vpop.f32.mrb[0].mxu0
  %v828 = vadd.f32 %v216, %v827
  %v829 = vpop.f32.mrb[0].mxu0
  %v830 = vadd.f32 %v220, %v829
  %v831 = vpop.f32.mrb[0].mxu0
  %v832 = vadd.f32 %v216, %v831
  %v833 = vpop.f32.mrb[0].mxu0
  %v834 = vadd.f32 %v220, %v833
  %835 = vdwg.mxu0
  %v836 = vpack.c.bf16 %v746, %v742
  %v837 = vpack.c.bf16 %v748, %v744
  %v838 = vpack.c.bf16 %v789, %v785
  %v839 = vpack.c.bf16 %v791, %v787
  %v840 = vpack.c.bf16 %v832, %v828
  %v841 = vpack.c.bf16 %v834, %v830
  %v848 = vunpack.c.l.b16 %v836
  %v849 = vunpack.c.l.b16 %v837
  %v850 = vunpack.c.l.b16 %v838
  %v851 = vunpack.c.l.b16 %v839
  %v852 = vunpack.c.l.b16 %v840
  %v853 = vunpack.c.l.b16 %v841
  %v854 = vunpack.c.h.b16 %v836
  %v855 = vunpack.c.h.b16 %v837
  %v856 = vunpack.c.h.b16 %v838
  %v857 = vunpack.c.h.b16 %v839
  %v858 = vunpack.c.h.b16 %v840
  %v859 = vunpack.c.h.b16 %v841
  %v860 = vpack.c.b16 %v849, %v848
  %v861 = vpack.c.b16 %v851, %v850
  %v862 = vpack.c.b16 %v853, %v852
  %v863 = vpack.c.b16 %v855, %v854
  %v864 = vpack.c.b16 %v857, %v856
  %v865 = vpack.c.b16 %v859, %v858
  %872 = vst [vmem:[%s5] sm:$0xff] %v860
  %873 = vst [vmem:[%s5 + $0x8] sm:$0xff] %v861
  %874 = vst [vmem:[%s5 + $0x10] sm:$0xff] %v862
  %875 = vst [vmem:[%s5 + $0x18] sm:$0xff] %v863
  %876 = vst [vmem:[%s5 + $0x20] sm:$0xff] %v864
  %877 = vst [vmem:[%s5 + $0x28] sm:$0xff] %v865
  // Predicated region
  $region26: #{gpt_forward.10} parent=0 // pred_check
    _
  $region27: #{gpt_forward.10} parent=0 // pred_check_branch
    %879 = sbr.rel (0) target = $region29
  $region28: #{gpt_forward.10} parent=0 // pred_region
    _
  $region29: #{gpt_forward.10} parent=0 // pred_fallthru
    _
  // Predicated region
  $region30: #{gpt_forward.10} parent=0 // pred_check
    _
  $region31: #{gpt_forward.10} parent=0 // pred_check_branch
    %881 = sbr.rel (0) target = $region33
  $region32: #{gpt_forward.10} parent=0 // pred_region
    _
  $region33: #{gpt_forward.10} parent=0 // pred_fallthru
    _

// kernel: gpt_forward.13
$region0: #{gpt_forward.13}
  #allocation0 [shape = 'u32[]', space=smem, size = 0x4, offset = 0x4, fixed_abs, tag = 'smem constant byte address 0x4 - core index']
  #allocation1 [shape = 'u32[144,128]{1,0:T(1,128)}', space=vmem, size = 0x12000, scoped, tag = 'internal scratch']
  %s0 = inlined_call_operand.vmem [shape: f32[16,256], index: 0, kind: input, shape index: {}]
  %s1 = inlined_call_operand.vmem [shape: bf16[256,128], index: 1, kind: input, shape index: {}]
  %s2 = inlined_call_operand.hbm [shape: f32[16,128], index: 2, kind: output, shape index: {}]
  %s3 = sld [smem:[#allocation0]]
  $region18: #{gpt_forward.13} parent=0
    _
  %s5 = ssub.s32 1, %s3
  %s6 = scalar_select 0, %s5, %s3
  $region1: #{gpt_forward.13} parent=0
    #allocation2 [shape = 'u8[8192]{0}', space=vmem, size = 0x2000, scoped, tag = 'output window, operand 0, single buffered']
    #allocation3 [shape = 's32[1]{0}', space=sflag, size = 0x4, scoped, tag = 'scoped memory for gpt_forward.13']
    %7 = vsyncpa [#allocation3], 0
    // Predicated region
    $region2: #{gpt_forward.13} parent=1 // pred_check
      _
    $region3: #{gpt_forward.13} parent=1 // pred_check_branch
      %9 = sbr.rel (0) target = $region5
    $region4: #{gpt_forward.13} parent=1 // pred_region
      _
    $region5: #{gpt_forward.13} parent=1 // pred_fallthru
      _
    // Predicated region
    $region6: #{gpt_forward.13} parent=1 // pred_check
      _
    $region7: #{gpt_forward.13} parent=1 // pred_check_branch
      %11 = sbr.rel (0) target = $region9
    $region8: #{gpt_forward.13} parent=1 // pred_region
      _
    $region9: #{gpt_forward.13} parent=1 // pred_fallthru
      _
    %v13 = vld [vmem:[%s0] sm:$0xff]
    %v14 = vld [vmem:[%s0 + $0x8] sm:$0xff]
    %v15 = vld [vmem:[%s0 + $0x10] sm:$0xff]
    %v16 = vld [vmem:[%s0 + $0x18] sm:$0xff]
    %v17 = vpack.c.bf16 %v15, %v13
    %v18 = vpack.c.bf16 %v16, %v14
    %v19 = vld [vmem:[%s1] sm:$0xf]
    %v20 = vld [vmem:[%s1 + $0x4] sm:$0xf]
    %v21 = vld [vmem:[%s1 + $0x8] sm:$0xf]
    %v22 = vld [vmem:[%s1 + $0xc] sm:$0xf]
    %v23 = vld [vmem:[%s1 + $0x10] sm:$0xf]
    %v24 = vld [vmem:[%s1 + $0x14] sm:$0xf]
    %v25 = vld [vmem:[%s1 + $0x18] sm:$0xf]
    %v26 = vld [vmem:[%s1 + $0x1c] sm:$0xf]
    %v27 = vld [vmem:[%s1 + $0x20] sm:$0xf]
    %v28 = vld [vmem:[%s1 + $0x24] sm:$0xf]
    %v29 = vld [vmem:[%s1 + $0x28] sm:$0xf]
    %v30 = vld [vmem:[%s1 + $0x2c] sm:$0xf]
    %v31 = vld [vmem:[%s1 + $0x30] sm:$0xf]
    %v32 = vld [vmem:[%s1 + $0x34] sm:$0xf]
    %v33 = vld [vmem:[%s1 + $0x38] sm:$0xf]
    %v34 = vld [vmem:[%s1 + $0x3c] sm:$0xf]
    %v35 = vld [vmem:[%s1 + $0x40] sm:$0xf]
    %v36 = vld [vmem:[%s1 + $0x44] sm:$0xf]
    %v37 = vld [vmem:[%s1 + $0x48] sm:$0xf]
    %v38 = vld [vmem:[%s1 + $0x4c] sm:$0xf]
    %v39 = vld [vmem:[%s1 + $0x50] sm:$0xf]
    %v40 = vld [vmem:[%s1 + $0x54] sm:$0xf]
    %v41 = vld [vmem:[%s1 + $0x58] sm:$0xf]
    %v42 = vld [vmem:[%s1 + $0x5c] sm:$0xf]
    %v43 = vld [vmem:[%s1 + $0x60] sm:$0xf]
    %v44 = vld [vmem:[%s1 + $0x64] sm:$0xf]
    %v45 = vld [vmem:[%s1 + $0x68] sm:$0xf]
    %v46 = vld [vmem:[%s1 + $0x6c] sm:$0xf]
    %v47 = vld [vmem:[%s1 + $0x70] sm:$0xf]
    %v48 = vld [vmem:[%s1 + $0x74] sm:$0xf]
    %v49 = vld [vmem:[%s1 + $0x78] sm:$0xf]
    %v50 = vld [vmem:[%s1 + $0x7c] sm:$0xf]
    %v83 = vunpack.c.l.b16 %v19
    %v84 = vunpack.c.l.b16 %v20
    %v85 = vunpack.c.l.b16 %v21
    %v86 = vunpack.c.l.b16 %v22
    %v87 = vunpack.c.l.b16 %v23
    %v88 = vunpack.c.l.b16 %v24
    %v89 = vunpack.c.l.b16 %v25
    %v90 = vunpack.c.l.b16 %v26
    %v91 = vunpack.c.l.b16 %v27
    %v92 = vunpack.c.l.b16 %v28
    %v93 = vunpack.c.l.b16 %v29
    %v94 = vunpack.c.l.b16 %v30
    %v95 = vunpack.c.l.b16 %v31
    %v96 = vunpack.c.l.b16 %v32
    %v97 = vunpack.c.l.b16 %v33
    %v98 = vunpack.c.l.b16 %v34
    %v99 = vunpack.c.l.b16 %v35
    %v100 = vunpack.c.l.b16 %v36
    %v101 = vunpack.c.l.b16 %v37
    %v102 = vunpack.c.l.b16 %v38
    %v103 = vunpack.c.l.b16 %v39
    %v104 = vunpack.c.l.b16 %v40
    %v105 = vunpack.c.l.b16 %v41
    %v106 = vunpack.c.l.b16 %v42
    %v107 = vunpack.c.l.b16 %v43
    %v108 = vunpack.c.l.b16 %v44
    %v109 = vunpack.c.l.b16 %v45
    %v110 = vunpack.c.l.b16 %v46
    %v111 = vunpack.c.l.b16 %v47
    %v112 = vunpack.c.l.b16 %v48
    %v113 = vunpack.c.l.b16 %v49
    %v114 = vunpack.c.l.b16 %v50
    %v115 = vpack.c.b16 %v84, %v83
    %v116 = vpack.c.b16 %v86, %v85
    %v117 = vpack.c.b16 %v88, %v87
    %v118 = vpack.c.b16 %v90, %v89
    %v119 = vpack.c.b16 %v92, %v91
    %v120 = vpack.c.b16 %v94, %v93
    %v121 = vpack.c.b16 %v96, %v95
    %v122 = vpack.c.b16 %v98, %v97
    %v123 = vpack.c.b16 %v100, %v99
    %v124 = vpack.c.b16 %v102, %v101
    %v125 = vpack.c.b16 %v104, %v103
    %v126 = vpack.c.b16 %v106, %v105
    %v127 = vpack.c.b16 %v108, %v107
    %v128 = vpack.c.b16 %v110, %v109
    %v129 = vpack.c.b16 %v112, %v111
    %v130 = vpack.c.b16 %v114, %v113
    %147 = vmatprep.subr.bf16.mxu0 0
    %148 = vmatpush1.bf16.msra.mxu0 %v115
    %149 = vmatprep.subr.bf16.mxu0 0
    %150 = vmatpush1.bf16.msra.mxu0 %v116
    %151 = vmatprep.subr.bf16.mxu0 0
    %152 = vmatpush1.bf16.msra.mxu0 %v117
    %153 = vmatprep.subr.bf16.mxu0 0
    %154 = vmatpush1.bf16.msra.mxu0 %v118
    %155 = vmatprep.subr.bf16.mxu0 0
    %156 = vmatpush1.bf16.msra.mxu0 %v119
    %157 = vmatprep.subr.bf16.mxu0 0
    %158 = vmatpush1.bf16.msra.mxu0 %v120
    %159 = vmatprep.subr.bf16.mxu0 0
    %160 = vmatpush1.bf16.msra.mxu0 %v121
    %161 = vmatprep.subr.bf16.mxu0 0
    %162 = vmatpush1.bf16.msra.mxu0 %v122
    %163 = vmatprep.subr.bf16.mxu0 0
    %164 = vmatpush1.bf16.msra.mxu0 %v123
    %165 = vmatprep.subr.bf16.mxu0 0
    %166 = vmatpush1.bf16.msra.mxu0 %v124
    %167 = vmatprep.subr.bf16.mxu0 0
    %168 = vmatpush1.bf16.msra.mxu0 %v125
    %169 = vmatprep.subr.bf16.mxu0 0
    %170 = vmatpush1.bf16.msra.mxu0 %v126
    %171 = vmatprep.subr.bf16.mxu0 0
    %172 = vmatpush1.bf16.msra.mxu0 %v127
    %173 = vmatprep.subr.bf16.mxu0 0
    %174 = vmatpush1.bf16.msra.mxu0 %v128
    %175 = vmatprep.subr.bf16.mxu0 0
    %176 = vmatpush1.bf16.msra.mxu0 %v129
    %177 = vmatprep.subr.bf16.mxu0 0
    %178 = vmatpush1.bf16.msra.mxu0 %v130
    %179 = vmatprep.mubr.bf16.mxu0 %v18
    %180 = vmatmul.mubr.bf16.gmra.mrb[0].mxu0 %v17
    %v181 = vpop.f32.mrb[0].mxu0
    %v182 = vadd.f32 0.0, %v181
    %v183 = vpop.f32.mrb[0].mxu0
    %v184 = vpop.f32.mrb[0].mxu0
    %v185 = vadd.f32 0.0, %v184
    %v186 = vpop.f32.mrb[0].mxu0
    %187 = vdwg.mxu0
    %188 = vst [vmem:[#allocation2] sm:$0xff] %v182
    %189 = vst [vmem:[#allocation2 + $0x8] sm:$0xff] %v185
    // Predicated region
    $region10: #{gpt_forward.13} parent=1 // pred_check
      _
    $region11: #{gpt_forward.13} parent=1 // pred_check_branch
      %191 = sbr.rel (0) target = $region13
    $region12: #{gpt_forward.13} parent=1 // pred_region
      %s193 = ssub.s32 256, 256
      %194 = vsyncadd [#allocation3], %s193
      %s195 = sshll.u32 [#allocation2], 4
      %s196 = int_to_ptr.vmem [resolvable:$true] %s195
      %201 = dma.vmem_to_hbm [thread:$0]  %s196, 256, %s2, [#allocation3], 128, 128, 8
    $region13: #{gpt_forward.13} parent=1 // pred_fallthru
      _
    // Predicated region
    $region14: #{gpt_forward.13} parent=1 // pred_check
      _
    $region15: #{gpt_forward.13} parent=1 // pred_check_branch
      %203 = sbr.rel (0) target = $region17
    $region16: #{gpt_forward.13} parent=1 // pred_region
      %204 = dma.done [#allocation3], 256
    $region17: #{gpt_forward.13} parent=1 // pred_fallthru
      _
    %205 = vsyncpa [#allocation3], 1

// kernel: gpt_forward.9
$region0: #{gpt_forward.9}
  #allocation0 [shape = 'u32[]', space=smem, size = 0x4, offset = 0x4, fixed_abs, tag = 'smem constant byte address 0x4 - core index']
  #allocation1 [shape = 'u32[144,128]{1,0:T(1,128)}', space=vmem, size = 0x12000, scoped, tag = 'internal scratch']
  #allocation2 [shape = 'f32[16,256]{1,0:T(8,128)}', space=vmem, size = 0x4000, scoped, tag = 'scratch operand']
  #allocation3 [shape = 'bf16[16,256]{1,0:T(16,128)(2,1)}', space=vmem, size = 0x2000, scoped, tag = 'scratch operand']
  #allocation4 [shape = 'f32[16,256]{1,0:T(8,128)}', space=vmem, size = 0x4000, scoped, tag = 'scratch operand']
  %s0 = inlined_call_operand.vmem [shape: bf16[16,256], index: 0, kind: input, shape index: {}]
  %s1 = inlined_call_operand.vmem [shape: f32[16,256], index: 1, kind: input, shape index: {}]
  %s2 = inlined_call_operand.vmem [shape: bf16[256,256], index: 2, kind: input, shape index: {}]
  %s3 = inlined_call_operand.vmem [shape: f32[1,256], index: 3, kind: input, shape index: {}]
  %s4 = inlined_call_operand.vmem [shape: f32[1,256], index: 4, kind: input, shape index: {}]
  %s5 = inlined_call_operand.vmem [shape: f32[1,256], index: 5, kind: input, shape index: {}]
  %s6 = inlined_call_operand.vmem [shape: bf16[256,1024], index: 6, kind: input, shape index: {}]
  %s7 = inlined_call_operand.vmem [shape: f32[1,1024], index: 7, kind: input, shape index: {}]
  %s8 = inlined_call_operand.hbm [shape: bf16[1024,256], index: 8, kind: input, shape index: {}]
  %s9 = inlined_call_operand.vmem [shape: f32[1,256], index: 9, kind: input, shape index: {}]
  %s10 = inlined_call_operand.vmem [shape: f32[16,256], index: 10, kind: output, shape index: {}]
  %s11 = sld [smem:[#allocation0]]
  $region62: #{gpt_forward.9} parent=0
    _
  %s13 = ssub.s32 1, %s11
  %s14 = scalar_select 0, %s13, %s11
  $region1: #{gpt_forward.9} parent=0
    #allocation5 [shape = 'u8[524288]{0}', space=vmem, size = 0x80000, scoped, tag = 'input window, operand 8, single buffered']
    #allocation6 [shape = 's32[1]{0}', space=sflag, size = 0x4, scoped, tag = 'scoped memory for gpt_forward.9']
    %15 = vsyncpa [#allocation6], 0
    // Predicated region
    $region2: #{gpt_forward.9} parent=1 // pred_check
      _
    $region3: #{gpt_forward.9} parent=1 // pred_check_branch
      %17 = sbr.rel (0) target = $region5
    $region4: #{gpt_forward.9} parent=1 // pred_region
      _
    $region5: #{gpt_forward.9} parent=1 // pred_fallthru
      _
    // Predicated region
    $region6: #{gpt_forward.9} parent=1 // pred_check
      _
    $region7: #{gpt_forward.9} parent=1 // pred_check_branch
      %19 = sbr.rel (0) target = $region9
    $region8: #{gpt_forward.9} parent=1 // pred_region
      _
    $region9: #{gpt_forward.9} parent=1 // pred_fallthru
      _
    // Predicated region
    $region10: #{gpt_forward.9} parent=1 // pred_check
      _
    $region11: #{gpt_forward.9} parent=1 // pred_check_branch
      %21 = sbr.rel (0) target = $region13
    $region12: #{gpt_forward.9} parent=1 // pred_region
      _
    $region13: #{gpt_forward.9} parent=1 // pred_fallthru
      _
    // Predicated region
    $region14: #{gpt_forward.9} parent=1 // pred_check
      _
    $region15: #{gpt_forward.9} parent=1 // pred_check_branch
      %23 = sbr.rel (0) target = $region17
    $region16: #{gpt_forward.9} parent=1 // pred_region
      _
    $region17: #{gpt_forward.9} parent=1 // pred_fallthru
      _
    // Predicated region
    $region18: #{gpt_forward.9} parent=1 // pred_check
      _
    $region19: #{gpt_forward.9} parent=1 // pred_check_branch
      %25 = sbr.rel (0) target = $region21
    $region20: #{gpt_forward.9} parent=1 // pred_region
      _
    $region21: #{gpt_forward.9} parent=1 // pred_fallthru
      _
    // Predicated region
    $region22: #{gpt_forward.9} parent=1 // pred_check
      _
    $region23: #{gpt_forward.9} parent=1 // pred_check_branch
      %27 = sbr.rel (0) target = $region25
    $region24: #{gpt_forward.9} parent=1 // pred_region
      _
    $region25: #{gpt_forward.9} parent=1 // pred_fallthru
      _
    // Predicated region
    $region26: #{gpt_forward.9} parent=1 // pred_check
      _
    $region27: #{gpt_forward.9} parent=1 // pred_check_branch
      %29 = sbr.rel (0) target = $region29
    $region28: #{gpt_forward.9} parent=1 // pred_region
      _
    $region29: #{gpt_forward.9} parent=1 // pred_fallthru
      _
    // Predicated region
    $region30: #{gpt_forward.9} parent=1 // pred_check
      _
    $region31: #{gpt_forward.9} parent=1 // pred_check_branch
      %31 = sbr.rel (0) target = $region33
    $region32: #{gpt_forward.9} parent=1 // pred_region
      _
    $region33: #{gpt_forward.9} parent=1 // pred_fallthru
      _
    // Predicated region
    $region34: #{gpt_forward.9} parent=1 // pred_check
      _
    $region35: #{gpt_forward.9} parent=1 // pred_check_branch
      %33 = sbr.rel (0) target = $region37
    $region36: #{gpt_forward.9} parent=1 // pred_region
      %s35 = ssub.s32 16384, 16384
      %36 = vsyncadd [#allocation6], %s35
      %s37 = sshll.u32 [#allocation5], 4
      %s38 = int_to_ptr.vmem [resolvable:$true] %s37
      %43 = dma.hbm_to_vmem [thread:$0]  %s8, 16384, %s38, [#allocation6], 128, 128, 8
    $region37: #{gpt_forward.9} parent=1 // pred_fallthru
      _
    // Predicated region
    $region38: #{gpt_forward.9} parent=1 // pred_check
      _
    $region39: #{gpt_forward.9} parent=1 // pred_check_branch
      %45 = sbr.rel (0) target = $region41
    $region40: #{gpt_forward.9} parent=1 // pred_region
      _
    $region41: #{gpt_forward.9} parent=1 // pred_fallthru
      _
    // Predicated region
    $region42: #{gpt_forward.9} parent=1 // pred_check
      _
    $region43: #{gpt_forward.9} parent=1 // pred_check_branch
      %47 = sbr.rel (0) target = $region45
    $region44: #{gpt_forward.9} parent=1 // pred_region
      %48 = dma.done [#allocation6], 16384
    $region45: #{gpt_forward.9} parent=1 // pred_fallthru
      _
    %p49 = scmp.eq.s32.totalorder 0, 0
    // Predicated region
    $region46: #{gpt_forward.9} parent=1 // pred_check
      %p50 = pneg %p49
    $region47: #{gpt_forward.9} parent=1 // pred_check_branch
      %52 = sbr.rel (%p50) target = $region49
    $region48: #{gpt_forward.9} parent=1 // pred_region
      %v53 = vld [vmem:[%s0] sm:$0xff]
      %v54 = vld [vmem:[%s0 + $0x8] sm:$0xff]
      %v55 = vld [vmem:[%s2] sm:$0xff]
      %v56 = vld [vmem:[%s2 + $0x8] sm:$0xff]
      %v57 = vld [vmem:[%s2 + $0x10] sm:$0xff]
      %v58 = vld [vmem:[%s2 + $0x18] sm:$0xff]
      %v59 = vld [vmem:[%s2 + $0x20] sm:$0xff]
      %v60 = vld [vmem:[%s2 + $0x28] sm:$0xff]
      %v61 = vld [vmem:[%s2 + $0x30] sm:$0xff]
      %v62 = vld [vmem:[%s2 + $0x38] sm:$0xff]
      %v63 = vld [vmem:[%s2 + $0x40] sm:$0xff]
      %v64 = vld [vmem:[%s2 + $0x48] sm:$0xff]
      %v65 = vld [vmem:[%s2 + $0x50] sm:$0xff]
      %v66 = vld [vmem:[%s2 + $0x58] sm:$0xff]
      %v67 = vld [vmem:[%s2 + $0x60] sm:$0xff]
      %v68 = vld [vmem:[%s2 + $0x68] sm:$0xff]
      %v69 = vld [vmem:[%s2 + $0x70] sm:$0xff]
      %v70 = vld [vmem:[%s2 + $0x78] sm:$0xff]
      %v71 = vld [vmem:[%s2 + $0x80] sm:$0xff]
      %v72 = vld [vmem:[%s2 + $0x88] sm:$0xff]
      %v73 = vld [vmem:[%s2 + $0x90] sm:$0xff]
      %v74 = vld [vmem:[%s2 + $0x98] sm:$0xff]
      %v75 = vld [vmem:[%s2 + $0xa0] sm:$0xff]
      %v76 = vld [vmem:[%s2 + $0xa8] sm:$0xff]
      %v77 = vld [vmem:[%s2 + $0xb0] sm:$0xff]
      %v78 = vld [vmem:[%s2 + $0xb8] sm:$0xff]
      %v79 = vld [vmem:[%s2 + $0xc0] sm:$0xff]
      %v80 = vld [vmem:[%s2 + $0xc8] sm:$0xff]
      %v81 = vld [vmem:[%s2 + $0xd0] sm:$0xff]
      %v82 = vld [vmem:[%s2 + $0xd8] sm:$0xff]
      %v83 = vld [vmem:[%s2 + $0xe0] sm:$0xff]
      %v84 = vld [vmem:[%s2 + $0xe8] sm:$0xff]
      %v85 = vld [vmem:[%s2 + $0xf0] sm:$0xff]
      %v86 = vld [vmem:[%s2 + $0xf8] sm:$0xff]
      %v87 = vld [vmem:[%s3] sm:$0x3]
      %v89 = vlaneseq
      %v90 = vshrl.u32 %v89, 7
      %v91 = vsub.s32 0, %v90
      %v92 = vrot.slane %v87, %v91
      %v93 = vlaneseq
      %v94 = vshrl.u32 %v93, 7
      %v95 = vsub.s32 1, %v94
      %v96 = vrot.slane %v87, %v95
      %v101 = vunpack.c.l.b16 %v53
      %v102 = vunpack.c.h.b16 %v53
      %v103 = vunpack.c.l.b16 %v54
      %v104 = vunpack.c.h.b16 %v54
      %v105 = vpack.c.b16 %v103, %v101
      %v106 = vpack.c.b16 %v104, %v102
      %v141 = vunpack.c.l.b16 %v55
      %v142 = vunpack.c.h.b16 %v55
      %v143 = vunpack.c.l.b16 %v56
      %v144 = vunpack.c.h.b16 %v56
      %v145 = vunpack.c.l.b16 %v57
      %v146 = vunpack.c.h.b16 %v57
      %v147 = vunpack.c.l.b16 %v58
      %v148 = vunpack.c.h.b16 %v58
      %v149 = vunpack.c.l.b16 %v59
      %v150 = vunpack.c.h.b16 %v59
      %v151 = vunpack.c.l.b16 %v60
      %v152 = vunpack.c.h.b16 %v60
      %v153 = vunpack.c.l.b16 %v61
      %v154 = vunpack.c.h.b16 %v61
      %v155 = vunpack.c.l.b16 %v62
      %v156 = vunpack.c.h.b16 %v62
      %v157 = vunpack.c.l.b16 %v63
      %v158 = vunpack.c.h.b16 %v63
      %v159 = vunpack.c.l.b16 %v64
      %v160 = vunpack.c.h.b16 %v64
      %v161 = vunpack.c.l.b16 %v65
      %v162 = vunpack.c.h.b16 %v65
      %v163 = vunpack.c.l.b16 %v66
      %v164 = vunpack.c.h.b16 %v66
      %v165 = vunpack.c.l.b16 %v67
      %v166 = vunpack.c.h.b16 %v67
      %v167 = vunpack.c.l.b16 %v68
      %v168 = vunpack.c.h.b16 %v68
      %v169 = vunpack.c.l.b16 %v69
      %v170 = vunpack.c.h.b16 %v69
      %v171 = vunpack.c.l.b16 %v70
      %v172 = vunpack.c.h.b16 %v70
      %v173 = vunpack.c.l.b16 %v71
      %v174 = vunpack.c.h.b16 %v71
      %v175 = vunpack.c.l.b16 %v72
      %v176 = vunpack.c.h.b16 %v72
      %v177 = vunpack.c.l.b16 %v73
      %v178 = vunpack.c.h.b16 %v73
      %v179 = vunpack.c.l.b16 %v74
      %v180 = vunpack.c.h.b16 %v74
      %v181 = vunpack.c.l.b16 %v75
      %v182 = vunpack.c.h.b16 %v75
      %v183 = vunpack.c.l.b16 %v76
      %v184 = vunpack.c.h.b16 %v76
      %v185 = vunpack.c.l.b16 %v77
      %v186 = vunpack.c.h.b16 %v77
      %v187 = vunpack.c.l.b16 %v78
      %v188 = vunpack.c.h.b16 %v78
      %v189 = vunpack.c.l.b16 %v79
      %v190 = vunpack.c.h.b16 %v79
      %v191 = vunpack.c.l.b16 %v80
      %v192 = vunpack.c.h.b16 %v80
      %v193 = vunpack.c.l.b16 %v81
      %v194 = vunpack.c.h.b16 %v81
      %v195 = vunpack.c.l.b16 %v82
      %v196 = vunpack.c.h.b16 %v82
      %v197 = vunpack.c.l.b16 %v83
      %v198 = vunpack.c.h.b16 %v83
      %v199 = vunpack.c.l.b16 %v84
      %v200 = vunpack.c.h.b16 %v84
      %v201 = vunpack.c.l.b16 %v85
      %v202 = vunpack.c.h.b16 %v85
      %v203 = vunpack.c.l.b16 %v86
      %v204 = vunpack.c.h.b16 %v86
      %v205 = vpack.c.b16 %v143, %v141
      %v206 = vpack.c.b16 %v144, %v142
      %v207 = vpack.c.b16 %v147, %v145
      %v208 = vpack.c.b16 %v148, %v146
      %v209 = vpack.c.b16 %v151, %v149
      %v210 = vpack.c.b16 %v152, %v150
      %v211 = vpack.c.b16 %v155, %v153
      %v212 = vpack.c.b16 %v156, %v154
      %v213 = vpack.c.b16 %v159, %v157
      %v214 = vpack.c.b16 %v160, %v158
      %v215 = vpack.c.b16 %v163, %v161
      %v216 = vpack.c.b16 %v164, %v162
      %v217 = vpack.c.b16 %v167, %v165
      %v218 = vpack.c.b16 %v168, %v166
      %v219 = vpack.c.b16 %v171, %v169
      %v220 = vpack.c.b16 %v172, %v170
      %v221 = vpack.c.b16 %v175, %v173
      %v222 = vpack.c.b16 %v176, %v174
      %v223 = vpack.c.b16 %v179, %v177
      %v224 = vpack.c.b16 %v180, %v178
      %v225 = vpack.c.b16 %v183, %v181
      %v226 = vpack.c.b16 %v184, %v182
      %v227 = vpack.c.b16 %v187, %v185
      %v228 = vpack.c.b16 %v188, %v186
      %v229 = vpack.c.b16 %v191, %v189
      %v230 = vpack.c.b16 %v192, %v190
      %v231 = vpack.c.b16 %v195, %v193
      %v232 = vpack.c.b16 %v196, %v194
      %v233 = vpack.c.b16 %v199, %v197
      %v234 = vpack.c.b16 %v200, %v198
      %v235 = vpack.c.b16 %v203, %v201
      %v236 = vpack.c.b16 %v204, %v202
      %269 = vmatprep.subr.bf16.mxu0 %v206
      %270 = vmatpush1.bf16.msra.mxu0 %v205
      %271 = vmatprep.subr.bf16.mxu0 %v208
      %272 = vmatpush1.bf16.msra.mxu0 %v207
      %273 = vmatprep.subr.bf16.mxu0 %v210
      %274 = vmatpush1.bf16.msra.mxu0 %v209
      %275 = vmatprep.subr.bf16.mxu0 %v212
      %276 = vmatpush1.bf16.msra.mxu0 %v211
      %277 = vmatprep.subr.bf16.mxu0 %v214
      %278 = vmatpush1.bf16.msra.mxu0 %v213
      %279 = vmatprep.subr.bf16.mxu0 %v216
      %280 = vmatpush1.bf16.msra.mxu0 %v215
      %281 = vmatprep.subr.bf16.mxu0 %v218
      %282 = vmatpush1.bf16.msra.mxu0 %v217
      %283 = vmatprep.subr.bf16.mxu0 %v220
      %284 = vmatpush1.bf16.msra.mxu0 %v219
      %285 = vmatprep.subr.bf16.mxu0 %v222
      %286 = vmatpush1.bf16.msra.mxu0 %v221
      %287 = vmatprep.subr.bf16.mxu0 %v224
      %288 = vmatpush1.bf16.msra.mxu0 %v223
      %289 = vmatprep.subr.bf16.mxu0 %v226
      %290 = vmatpush1.bf16.msra.mxu0 %v225
      %291 = vmatprep.subr.bf16.mxu0 %v228
      %292 = vmatpush1.bf16.msra.mxu0 %v227
      %293 = vmatprep.subr.bf16.mxu0 %v230
      %294 = vmatpush1.bf16.msra.mxu0 %v229
      %295 = vmatprep.subr.bf16.mxu0 %v232
      %296 = vmatpush1.bf16.msra.mxu0 %v231
      %297 = vmatprep.subr.bf16.mxu0 %v234
      %298 = vmatpush1.bf16.msra.mxu0 %v233
      %299 = vmatprep.subr.bf16.mxu0 %v236
      %300 = vmatpush1.bf16.msra.mxu0 %v235
      %301 = vmatprep.mubr.bf16.mxu0 %v106
      %302 = vmatmul.mubr.bf16.gmra.mrb[0].mxu0 %v105
      %v303 = vpop.f32.mrb[0].mxu0
      %v304 = vadd.f32 %v92, %v303
      %v305 = vpop.f32.mrb[0].mxu0
      %v306 = vadd.f32 %v96, %v305
      %v307 = vpop.f32.mrb[0].mxu0
      %v308 = vadd.f32 %v92, %v307
      %v309 = vpop.f32.mrb[0].mxu0
      %v310 = vadd.f32 %v96, %v309
      %311 = vdwg.mxu0
      %v312 = vld [vmem:[%s1] sm:$0xff]
      %v313 = vld [vmem:[%s1 + $0x8] sm:$0xff]
      %v314 = vld [vmem:[%s1 + $0x10] sm:$0xff]
      %v315 = vld [vmem:[%s1 + $0x18] sm:$0xff]
      %v316 = vadd.f32 %v312, %v304
      %v317 = vadd.f32 %v313, %v306
      %v318 = vadd.f32 %v314, %v308
      %v319 = vadd.f32 %v315, %v310
      %320 = vst [vmem:[#allocation2] sm:$0xff] %v316
      %321 = vst [vmem:[#allocation2 + $0x8] sm:$0xff] %v317
      %322 = vst [vmem:[#allocation2 + $0x10] sm:$0xff] %v318
      %323 = vst [vmem:[#allocation2 + $0x18] sm:$0xff] %v319
      %v324 = vld [vmem:[%s4] sm:$0x3]
      %v325 = vld [vmem:[%s5] sm:$0x3]
      %v326 = vadd.f32 %v316, %v317
      %327 = vadd.xlane.f32.xlu0 %v326
      %v328 = vpop.xlane.xlu0 %327
      %v329 = vadd.f32 %v318, %v319
      %330 = vadd.xlane.f32.xlu0 %v329
      %v331 = vpop.xlane.xlu0 %330
      %v332 = vrcp.pop 256.0
      %v333 = vmul.f32 %v328, %v332
      %v334 = vmul.f32 %v331, %v332
      %v335 = vsub.f32 %v316, %v333
      %v336 = vsub.f32 %v317, %v333
      %v337 = vsub.f32 %v318, %v334
      %v338 = vsub.f32 %v319, %v334
      %v339 = vmul.f32 %v335, %v335
      %v340 = vmul.f32 %v336, %v336
      %v341 = vmul.f32 %v337, %v337
      %v342 = vmul.f32 %v338, %v338
      %v343 = vadd.f32 %v339, %v340
      %344 = vadd.xlane.f32.xlu0 %v343
      %v345 = vpop.xlane.xlu0 %344
      %v346 = vadd.f32 %v341, %v342
      %347 = vadd.xlane.f32.xlu0 %v346
      %v348 = vpop.xlane.xlu0 %347
      %v349 = vmul.f32 %v345, %v332
      %v350 = vmul.f32 %v348, %v332
      %v351 = vadd.f32 %v349, 1e-05
      %v352 = vadd.f32 %v350, 1e-05
      %v353 = vrsqrt.pop %v351
      %v354 = vrsqrt.pop %v352
      %v355 = vmul.f32 %v335, %v353
      %v356 = vmul.f32 %v336, %v353
      %v357 = vmul.f32 %v337, %v354
      %v358 = vmul.f32 %v338, %v354
      %v360 = vlaneseq
      %v361 = vshrl.u32 %v360, 7
      %v362 = vsub.s32 0, %v361
      %v363 = vrot.slane %v324, %v362
      %v364 = vlaneseq
      %v365 = vshrl.u32 %v364, 7
      %v366 = vsub.s32 1, %v365
      %v367 = vrot.slane %v324, %v366
      %v370 = vmul.f32 %v355, %v363
      %v371 = vmul.f32 %v356, %v367
      %v372 = vmul.f32 %v357, %v363
      %v373 = vmul.f32 %v358, %v367
      %v375 = vlaneseq
      %v376 = vshrl.u32 %v375, 7
      %v377 = vsub.s32 0, %v376
      %v378 = vrot.slane %v325, %v377
      %v379 = vlaneseq
      %v380 = vshrl.u32 %v379, 7
      %v381 = vsub.s32 1, %v380
      %v382 = vrot.slane %v325, %v381
      %v385 = vadd.f32 %v370, %v378
      %v386 = vadd.f32 %v371, %v382
      %v387 = vadd.f32 %v372, %v378
      %v388 = vadd.f32 %v373, %v382
      %v389 = vpack.c.bf16 %v387, %v385
      %v390 = vpack.c.bf16 %v388, %v386
      %391 = vst [vmem:[#allocation3] sm:$0xff] %v389
      %392 = vst [vmem:[#allocation3 + $0x8] sm:$0xff] %v390
      %393 = vst [vmem:[#allocation4] sm:$0xff] 0.0
      %394 = vst [vmem:[#allocation4 + $0x8] sm:$0xff] 0.0
      %395 = vst [vmem:[#allocation4 + $0x10] sm:$0xff] 0.0
      %396 = vst [vmem:[#allocation4 + $0x18] sm:$0xff] 0.0
    $region49: #{gpt_forward.9} parent=1 // pred_fallthru
      _
    %v397 = vld [vmem:[#allocation3] sm:$0xff]
    %v398 = vld [vmem:[#allocation3 + $0x8] sm:$0xff]
    %v399 = vld [vmem:[%s6] sm:$0xff]
    %v400 = vld [vmem:[%s6 + $0x8] sm:$0xff]
    %v401 = vld [vmem:[%s6 + $0x10] sm:$0xff]
    %v402 = vld [vmem:[%s6 + $0x18] sm:$0xff]
    %v403 = vld [vmem:[%s6 + $0x20] sm:$0xff]
    %v404 = vld [vmem:[%s6 + $0x28] sm:$0xff]
    %v405 = vld [vmem:[%s6 + $0x30] sm:$0xff]
    %v406 = vld [vmem:[%s6 + $0x38] sm:$0xff]
    %v407 = vld [vmem:[%s6 + $0x40] sm:$0xff]
    %v408 = vld [vmem:[%s6 + $0x48] sm:$0xff]
    %v409 = vld [vmem:[%s6 + $0x50] sm:$0xff]
    %v410 = vld [vmem:[%s6 + $0x58] sm:$0xff]
    %v411 = vld [vmem:[%s6 + $0x60] sm:$0xff]
    %v412 = vld [vmem:[%s6 + $0x68] sm:$0xff]
    %v413 = vld [vmem:[%s6 + $0x70] sm:$0xff]
    %v414 = vld [vmem:[%s6 + $0x78] sm:$0xff]
    %v415 = vld [vmem:[%s6 + $0x80] sm:$0xff]
    %v416 = vld [vmem:[%s6 + $0x88] sm:$0xff]
    %v417 = vld [vmem:[%s6 + $0x90] sm:$0xff]
    %v418 = vld [vmem:[%s6 + $0x98] sm:$0xff]
    %v419 = vld [vmem:[%s6 + $0xa0] sm:$0xff]
    %v420 = vld [vmem:[%s6 + $0xa8] sm:$0xff]
    %v421 = vld [vmem:[%s6 + $0xb0] sm:$0xff]
    %v422 = vld [vmem:[%s6 + $0xb8] sm:$0xff]
    %v423 = vld [vmem:[%s6 + $0xc0] sm:$0xff]
    %v424 = vld [vmem:[%s6 + $0xc8] sm:$0xff]
    %v425 = vld [vmem:[%s6 + $0xd0] sm:$0xff]
    %v426 = vld [vmem:[%s6 + $0xd8] sm:$0xff]
    %v427 = vld [vmem:[%s6 + $0xe0] sm:$0xff]
    %v428 = vld [vmem:[%s6 + $0xe8] sm:$0xff]
    %v429 = vld [vmem:[%s6 + $0xf0] sm:$0xff]
    %v430 = vld [vmem:[%s6 + $0xf8] sm:$0xff]
    %v431 = vld [vmem:[%s6 + $0x100] sm:$0xff]
    %v432 = vld [vmem:[%s6 + $0x108] sm:$0xff]
    %v433 = vld [vmem:[%s6 + $0x110] sm:$0xff]
    %v434 = vld [vmem:[%s6 + $0x118] sm:$0xff]
    %v435 = vld [vmem:[%s6 + $0x120] sm:$0xff]
    %v436 = vld [vmem:[%s6 + $0x128] sm:$0xff]
    %v437 = vld [vmem:[%s6 + $0x130] sm:$0xff]
    %v438 = vld [vmem:[%s6 + $0x138] sm:$0xff]
    %v439 = vld [vmem:[%s6 + $0x140] sm:$0xff]
    %v440 = vld [vmem:[%s6 + $0x148] sm:$0xff]
    %v441 = vld [vmem:[%s6 + $0x150] sm:$0xff]
    %v442 = vld [vmem:[%s6 + $0x158] sm:$0xff]
    %v443 = vld [vmem:[%s6 + $0x160] sm:$0xff]
    %v444 = vld [vmem:[%s6 + $0x168] sm:$0xff]
    %v445 = vld [vmem:[%s6 + $0x170] sm:$0xff]
    %v446 = vld [vmem:[%s6 + $0x178] sm:$0xff]
    %v447 = vld [vmem:[%s6 + $0x180] sm:$0xff]
    %v448 = vld [vmem:[%s6 + $0x188] sm:$0xff]
    %v449 = vld [vmem:[%s6 + $0x190] sm:$0xff]
    %v450 = vld [vmem:[%s6 + $0x198] sm:$0xff]
    %v451 = vld [vmem:[%s6 + $0x1a0] sm:$0xff]
    %v452 = vld [vmem:[%s6 + $0x1a8] sm:$0xff]
    %v453 = vld [vmem:[%s6 + $0x1b0] sm:$0xff]
    %v454 = vld [vmem:[%s6 + $0x1b8] sm:$0xff]
    %v455 = vld [vmem:[%s6 + $0x1c0] sm:$0xff]
    %v456 = vld [vmem:[%s6 + $0x1c8] sm:$0xff]
    %v457 = vld [vmem:[%s6 + $0x1d0] sm:$0xff]
    %v458 = vld [vmem:[%s6 + $0x1d8] sm:$0xff]
    %v459 = vld [vmem:[%s6 + $0x1e0] sm:$0xff]
    %v460 = vld [vmem:[%s6 + $0x1e8] sm:$0xff]
    %v461 = vld [vmem:[%s6 + $0x1f0] sm:$0xff]
    %v462 = vld [vmem:[%s6 + $0x1f8] sm:$0xff]
    %v463 = vld [vmem:[%s6 + $0x200] sm:$0xff]
    %v464 = vld [vmem:[%s6 + $0x208] sm:$0xff]
    %v465 = vld [vmem:[%s6 + $0x210] sm:$0xff]
    %v466 = vld [vmem:[%s6 + $0x218] sm:$0xff]
    %v467 = vld [vmem:[%s6 + $0x220] sm:$0xff]
    %v468 = vld [vmem:[%s6 + $0x228] sm:$0xff]
    %v469 = vld [vmem:[%s6 + $0x230] sm:$0xff]
    %v470 = vld [vmem:[%s6 + $0x238] sm:$0xff]
    %v471 = vld [vmem:[%s6 + $0x240] sm:$0xff]
    %v472 = vld [vmem:[%s6 + $0x248] sm:$0xff]
    %v473 = vld [vmem:[%s6 + $0x250] sm:$0xff]
    %v474 = vld [vmem:[%s6 + $0x258] sm:$0xff]
    %v475 = vld [vmem:[%s6 + $0x260] sm:$0xff]
    %v476 = vld [vmem:[%s6 + $0x268] sm:$0xff]
    %v477 = vld [vmem:[%s6 + $0x270] sm:$0xff]
    %v478 = vld [vmem:[%s6 + $0x278] sm:$0xff]
    %v479 = vld [vmem:[%s6 + $0x280] sm:$0xff]
    %v480 = vld [vmem:[%s6 + $0x288] sm:$0xff]
    %v481 = vld [vmem:[%s6 + $0x290] sm:$0xff]
    %v482 = vld [vmem:[%s6 + $0x298] sm:$0xff]
    %v483 = vld [vmem:[%s6 + $0x2a0] sm:$0xff]
    %v484 = vld [vmem:[%s6 + $0x2a8] sm:$0xff]
    %v485 = vld [vmem:[%s6 + $0x2b0] sm:$0xff]
    %v486 = vld [vmem:[%s6 + $0x2b8] sm:$0xff]
    %v487 = vld [vmem:[%s6 + $0x2c0] sm:$0xff]
    %v488 = vld [vmem:[%s6 + $0x2c8] sm:$0xff]
    %v489 = vld [vmem:[%s6 + $0x2d0] sm:$0xff]
    %v490 = vld [vmem:[%s6 + $0x2d8] sm:$0xff]
    %v491 = vld [vmem:[%s6 + $0x2e0] sm:$0xff]
    %v492 = vld [vmem:[%s6 + $0x2e8] sm:$0xff]
    %v493 = vld [vmem:[%s6 + $0x2f0] sm:$0xff]
    %v494 = vld [vmem:[%s6 + $0x2f8] sm:$0xff]
    %v495 = vld [vmem:[%s6 + $0x300] sm:$0xff]
    %v496 = vld [vmem:[%s6 + $0x308] sm:$0xff]
    %v497 = vld [vmem:[%s6 + $0x310] sm:$0xff]
    %v498 = vld [vmem:[%s6 + $0x318] sm:$0xff]
    %v499 = vld [vmem:[%s6 + $0x320] sm:$0xff]
    %v500 = vld [vmem:[%s6 + $0x328] sm:$0xff]
    %v501 = vld [vmem:[%s6 + $0x330] sm:$0xff]
    %v502 = vld [vmem:[%s6 + $0x338] sm:$0xff]
    %v503 = vld [vmem:[%s6 + $0x340] sm:$0xff]
    %v504 = vld [vmem:[%s6 + $0x348] sm:$0xff]
    %v505 = vld [vmem:[%s6 + $0x350] sm:$0xff]
    %v506 = vld [vmem:[%s6 + $0x358] sm:$0xff]
    %v507 = vld [vmem:[%s6 + $0x360] sm:$0xff]
    %v508 = vld [vmem:[%s6 + $0x368] sm:$0xff]
    %v509 = vld [vmem:[%s6 + $0x370] sm:$0xff]
    %v510 = vld [vmem:[%s6 + $0x378] sm:$0xff]
    %v511 = vld [vmem:[%s6 + $0x380] sm:$0xff]
    %v512 = vld [vmem:[%s6 + $0x388] sm:$0xff]
    %v513 = vld [vmem:[%s6 + $0x390] sm:$0xff]
    %v514 = vld [vmem:[%s6 + $0x398] sm:$0xff]
    %v515 = vld [vmem:[%s6 + $0x3a0] sm:$0xff]
    %v516 = vld [vmem:[%s6 + $0x3a8] sm:$0xff]
    %v517 = vld [vmem:[%s6 + $0x3b0] sm:$0xff]
    %v518 = vld [vmem:[%s6 + $0x3b8] sm:$0xff]
    %v519 = vld [vmem:[%s6 + $0x3c0] sm:$0xff]
    %v520 = vld [vmem:[%s6 + $0x3c8] sm:$0xff]
    %v521 = vld [vmem:[%s6 + $0x3d0] sm:$0xff]
    %v522 = vld [vmem:[%s6 + $0x3d8] sm:$0xff]
    %v523 = vld [vmem:[%s6 + $0x3e0] sm:$0xff]
    %v524 = vld [vmem:[%s6 + $0x3e8] sm:$0xff]
    %v525 = vld [vmem:[%s6 + $0x3f0] sm:$0xff]
    %v526 = vld [vmem:[%s6 + $0x3f8] sm:$0xff]
    %v527 = vld [vmem:[%s7] sm:$0xff]
    %v529 = vlaneseq
    %v530 = vshrl.u32 %v529, 7
    %v531 = vsub.s32 0, %v530
    %v532 = vrot.slane %v527, %v531
    %v533 = vlaneseq
    %v534 = vshrl.u32 %v533, 7
    %v535 = vsub.s32 1, %v534
    %v536 = vrot.slane %v527, %v535
    %v537 = vlaneseq
    %v538 = vshrl.u32 %v537, 7
    %v539 = vsub.s32 2, %v538
    %v540 = vrot.slane %v527, %v539
    %v541 = vlaneseq
    %v542 = vshrl.u32 %v541, 7
    %v543 = vsub.s32 3, %v542
    %v544 = vrot.slane %v527, %v543
    %v545 = vlaneseq
    %v546 = vshrl.u32 %v545, 7
    %v547 = vsub.s32 4, %v546
    %v548 = vrot.slane %v527, %v547
    %v549 = vlaneseq
    %v550 = vshrl.u32 %v549, 7
    %v551 = vsub.s32 5, %v550
    %v552 = vrot.slane %v527, %v551
    %v553 = vlaneseq
    %v554 = vshrl.u32 %v553, 7
    %v555 = vsub.s32 6, %v554
    %v556 = vrot.slane %v527, %v555
    %v557 = vlaneseq
    %v558 = vshrl.u32 %v557, 7
    %v559 = vsub.s32 7, %v558
    %v560 = vrot.slane %v527, %v559
    %v697 = vunpack.c.l.b16 %v399
    %v698 = vunpack.c.h.b16 %v399
    %v699 = vunpack.c.l.b16 %v400
    %v700 = vunpack.c.h.b16 %v400
    %v701 = vunpack.c.l.b16 %v401
    %v702 = vunpack.c.h.b16 %v401
    %v703 = vunpack.c.l.b16 %v402
    %v704 = vunpack.c.h.b16 %v402
    %v705 = vunpack.c.l.b16 %v403
    %v706 = vunpack.c.h.b16 %v403
    %v707 = vunpack.c.l.b16 %v404
    %v708 = vunpack.c.h.b16 %v404
    %v709 = vunpack.c.l.b16 %v405
    %v710 = vunpack.c.h.b16 %v405
    %v711 = vunpack.c.l.b16 %v406
    %v712 = vunpack.c.h.b16 %v406
    %v713 = vunpack.c.l.b16 %v407
    %v714 = vunpack.c.h.b16 %v407
    %v715 = vunpack.c.l.b16 %v408
    %v716 = vunpack.c.h.b16 %v408
    %v717 = vunpack.c.l.b16 %v409
    %v718 = vunpack.c.h.b16 %v409
    %v719 = vunpack.c.l.b16 %v410
    %v720 = vunpack.c.h.b16 %v410
    %v721 = vunpack.c.l.b16 %v411
    %v722 = vunpack.c.h.b16 %v411
    %v723 = vunpack.c.l.b16 %v412
    %v724 = vunpack.c.h.b16 %v412
    %v725 = vunpack.c.l.b16 %v413
    %v726 = vunpack.c.h.b16 %v413
    %v727 = vunpack.c.l.b16 %v414
    %v728 = vunpack.c.h.b16 %v414
    %v729 = vunpack.c.l.b16 %v415
    %v730 = vunpack.c.h.b16 %v415
    %v731 = vunpack.c.l.b16 %v416
    %v732 = vunpack.c.h.b16 %v416
    %v733 = vunpack.c.l.b16 %v417
    %v734 = vunpack.c.h.b16 %v417
    %v735 = vunpack.c.l.b16 %v418
    %v736 = vunpack.c.h.b16 %v418
    %v737 = vunpack.c.l.b16 %v419
    %v738 = vunpack.c.h.b16 %v419
    %v739 = vunpack.c.l.b16 %v420
    %v740 = vunpack.c.h.b16 %v420
    %v741 = vunpack.c.l.b16 %v421
    %v742 = vunpack.c.h.b16 %v421
    %v743 = vunpack.c.l.b16 %v422
    %v744 = vunpack.c.h.b16 %v422
    %v745 = vunpack.c.l.b16 %v423
    %v746 = vunpack.c.h.b16 %v423
    %v747 = vunpack.c.l.b16 %v424
    %v748 = vunpack.c.h.b16 %v424
    %v749 = vunpack.c.l.b16 %v425
    %v750 = vunpack.c.h.b16 %v425
    %v751 = vunpack.c.l.b16 %v426
    %v752 = vunpack.c.h.b16 %v426
    %v753 = vunpack.c.l.b16 %v427
    %v754 = vunpack.c.h.b16 %v427
    %v755 = vunpack.c.l.b16 %v428
    %v756 = vunpack.c.h.b16 %v428
    %v757 = vunpack.c.l.b16 %v429
    %v758 = vunpack.c.h.b16 %v429
    %v759 = vunpack.c.l.b16 %v430
    %v760 = vunpack.c.h.b16 %v430
    %v761 = vunpack.c.l.b16 %v431
    %v762 = vunpack.c.h.b16 %v431
    %v763 = vunpack.c.l.b16 %v432
    %v764 = vunpack.c.h.b16 %v432
    %v765 = vunpack.c.l.b16 %v433
    %v766 = vunpack.c.h.b16 %v433
    %v767 = vunpack.c.l.b16 %v434
    %v768 = vunpack.c.h.b16 %v434
    %v769 = vunpack.c.l.b16 %v435
    %v770 = vunpack.c.h.b16 %v435
    %v771 = vunpack.c.l.b16 %v436
    %v772 = vunpack.c.h.b16 %v436
    %v773 = vunpack.c.l.b16 %v437
    %v774 = vunpack.c.h.b16 %v437
    %v775 = vunpack.c.l.b16 %v438
    %v776 = vunpack.c.h.b16 %v438
    %v777 = vunpack.c.l.b16 %v439
    %v778 = vunpack.c.h.b16 %v439
    %v779 = vunpack.c.l.b16 %v440
    %v780 = vunpack.c.h.b16 %v440
    %v781 = vunpack.c.l.b16 %v441
    %v782 = vunpack.c.h.b16 %v441
    %v783 = vunpack.c.l.b16 %v442
    %v784 = vunpack.c.h.b16 %v442
    %v785 = vunpack.c.l.b16 %v443
    %v786 = vunpack.c.h.b16 %v443
    %v787 = vunpack.c.l.b16 %v444
    %v788 = vunpack.c.h.b16 %v444
    %v789 = vunpack.c.l.b16 %v445
    %v790 = vunpack.c.h.b16 %v445
    %v791 = vunpack.c.l.b16 %v446
    %v792 = vunpack.c.h.b16 %v446
    %v793 = vunpack.c.l.b16 %v447
    %v794 = vunpack.c.h.b16 %v447
    %v795 = vunpack.c.l.b16 %v448
    %v796 = vunpack.c.h.b16 %v448
    %v797 = vunpack.c.l.b16 %v449
    %v798 = vunpack.c.h.b16 %v449
    %v799 = vunpack.c.l.b16 %v450
    %v800 = vunpack.c.h.b16 %v450
    %v801 = vunpack.c.l.b16 %v451
    %v802 = vunpack.c.h.b16 %v451
    %v803 = vunpack.c.l.b16 %v452
    %v804 = vunpack.c.h.b16 %v452
    %v805 = vunpack.c.l.b16 %v453
    %v806 = vunpack.c.h.b16 %v453
    %v807 = vunpack.c.l.b16 %v454
    %v808 = vunpack.c.h.b16 %v454
    %v809 = vunpack.c.l.b16 %v455
    %v810 = vunpack.c.h.b16 %v455
    %v811 = vunpack.c.l.b16 %v456
    %v812 = vunpack.c.h.b16 %v456
    %v813 = vunpack.c.l.b16 %v457
    %v814 = vunpack.c.h.b16 %v457
    %v815 = vunpack.c.l.b16 %v458
    %v816 = vunpack.c.h.b16 %v458
    %v817 = vunpack.c.l.b16 %v459
    %v818 = vunpack.c.h.b16 %v459
    %v819 = vunpack.c.l.b16 %v460
    %v820 = vunpack.c.h.b16 %v460
    %v821 = vunpack.c.l.b16 %v461
    %v822 = vunpack.c.h.b16 %v461
    %v823 = vunpack.c.l.b16 %v462
    %v824 = vunpack.c.h.b16 %v462
    %v825 = vunpack.c.l.b16 %v463
    %v826 = vunpack.c.h.b16 %v463
    %v827 = vunpack.c.l.b16 %v464
    %v828 = vunpack.c.h.b16 %v464
    %v829 = vunpack.c.l.b16 %v465
    %v830 = vunpack.c.h.b16 %v465
    %v831 = vunpack.c.l.b16 %v466
    %v832 = vunpack.c.h.b16 %v466
    %v833 = vunpack.c.l.b16 %v467
    %v834 = vunpack.c.h.b16 %v467
    %v835 = vunpack.c.l.b16 %v468
    %v836 = vunpack.c.h.b16 %v468
    %v837 = vunpack.c.l.b16 %v469
    %v838 = vunpack.c.h.b16 %v469
    %v839 = vunpack.c.l.b16 %v470
    %v840 = vunpack.c.h.b16 %v470
    %v841 = vunpack.c.l.b16 %v471
    %v842 = vunpack.c.h.b16 %v471
    %v843 = vunpack.c.l.b16 %v472
    %v844 = vunpack.c.h.b16 %v472
    %v845 = vunpack.c.l.b16 %v473
    %v846 = vunpack.c.h.b16 %v473
    %v847 = vunpack.c.l.b16 %v474
    %v848 = vunpack.c.h.b16 %v474
    %v849 = vunpack.c.l.b16 %v475
    %v850 = vunpack.c.h.b16 %v475
    %v851 = vunpack.c.l.b16 %v476
    %v852 = vunpack.c.h.b16 %v476
    %v853 = vunpack.c.l.b16 %v477
    %v854 = vunpack.c.h.b16 %v477
    %v855 = vunpack.c.l.b16 %v478
    %v856 = vunpack.c.h.b16 %v478
    %v857 = vunpack.c.l.b16 %v479
    %v858 = vunpack.c.h.b16 %v479
    %v859 = vunpack.c.l.b16 %v480
    %v860 = vunpack.c.h.b16 %v480
    %v861 = vunpack.c.l.b16 %v481
    %v862 = vunpack.c.h.b16 %v481
    %v863 = vunpack.c.l.b16 %v482
    %v864 = vunpack.c.h.b16 %v482
    %v865 = vunpack.c.l.b16 %v483
    %v866 = vunpack.c.h.b16 %v483
    %v867 = vunpack.c.l.b16 %v484
    %v868 = vunpack.c.h.b16 %v484
    %v869 = vunpack.c.l.b16 %v485
    %v870 = vunpack.c.h.b16 %v485
    %v871 = vunpack.c.l.b16 %v486
    %v872 = vunpack.c.h.b16 %v486
    %v873 = vunpack.c.l.b16 %v487
    %v874 = vunpack.c.h.b16 %v487
    %v875 = vunpack.c.l.b16 %v488
    %v876 = vunpack.c.h.b16 %v488
    %v877 = vunpack.c.l.b16 %v489
    %v878 = vunpack.c.h.b16 %v489
    %v879 = vunpack.c.l.b16 %v490
    %v880 = vunpack.c.h.b16 %v490
    %v881 = vunpack.c.l.b16 %v491
    %v882 = vunpack.c.h.b16 %v491
    %v883 = vunpack.c.l.b16 %v492
    %v884 = vunpack.c.h.b16 %v492
    %v885 = vunpack.c.l.b16 %v493
    %v886 = vunpack.c.h.b16 %v493
    %v887 = vunpack.c.l.b16 %v494
    %v888 = vunpack.c.h.b16 %v494
    %v889 = vunpack.c.l.b16 %v495
    %v890 = vunpack.c.h.b16 %v495
    %v891 = vunpack.c.l.b16 %v496
    %v892 = vunpack.c.h.b16 %v496
    %v893 = vunpack.c.l.b16 %v497
    %v894 = vunpack.c.h.b16 %v497
    %v895 = vunpack.c.l.b16 %v498
    %v896 = vunpack.c.h.b16 %v498
    %v897 = vunpack.c.l.b16 %v499
    %v898 = vunpack.c.h.b16 %v499
    %v899 = vunpack.c.l.b16 %v500
    %v900 = vunpack.c.h.b16 %v500
    %v901 = vunpack.c.l.b16 %v501
    %v902 = vunpack.c.h.b16 %v501
    %v903 = vunpack.c.l.b16 %v502
    %v904 = vunpack.c.h.b16 %v502
    %v905 = vunpack.c.l.b16 %v503
    %v906 = vunpack.c.h.b16 %v503
    %v907 = vunpack.c.l.b16 %v504
    %v908 = vunpack.c.h.b16 %v504
    %v909 = vunpack.c.l.b16 %v505
    %v910 = vunpack.c.h.b16 %v505
    %v911 = vunpack.c.l.b16 %v506
    %v912 = vunpack.c.h.b16 %v506
    %v913 = vunpack.c.l.b16 %v507
    %v914 = vunpack.c.h.b16 %v507
    %v915 = vunpack.c.l.b16 %v508
    %v916 = vunpack.c.h.b16 %v508
    %v917 = vunpack.c.l.b16 %v509
    %v918 = vunpack.c.h.b16 %v509
    %v919 = vunpack.c.l.b16 %v510
    %v920 = vunpack.c.h.b16 %v510
    %v921 = vunpack.c.l.b16 %v511
    %v922 = vunpack.c.h.b16 %v511
    %v923 = vunpack.c.l.b16 %v512
    %v924 = vunpack.c.h.b16 %v512
    %v925 = vunpack.c.l.b16 %v513
    %v926 = vunpack.c.h.b16 %v513
    %v927 = vunpack.c.l.b16 %v514
    %v928 = vunpack.c.h.b16 %v514
    %v929 = vunpack.c.l.b16 %v515
    %v930 = vunpack.c.h.b16 %v515
    %v931 = vunpack.c.l.b16 %v516
    %v932 = vunpack.c.h.b16 %v516
    %v933 = vunpack.c.l.b16 %v517
    %v934 = vunpack.c.h.b16 %v517
    %v935 = vunpack.c.l.b16 %v518
    %v936 = vunpack.c.h.b16 %v518
    %v937 = vunpack.c.l.b16 %v519
    %v938 = vunpack.c.h.b16 %v519
    %v939 = vunpack.c.l.b16 %v520
    %v940 = vunpack.c.h.b16 %v520
    %v941 = vunpack.c.l.b16 %v521
    %v942 = vunpack.c.h.b16 %v521
    %v943 = vunpack.c.l.b16 %v522
    %v944 = vunpack.c.h.b16 %v522
    %v945 = vunpack.c.l.b16 %v523
    %v946 = vunpack.c.h.b16 %v523
    %v947 = vunpack.c.l.b16 %v524
    %v948 = vunpack.c.h.b16 %v524
    %v949 = vunpack.c.l.b16 %v525
    %v950 = vunpack.c.h.b16 %v525
    %v951 = vunpack.c.l.b16 %v526
    %v952 = vunpack.c.h.b16 %v526
    %v953 = vpack.c.b16 %v705, %v697
    %v954 = vpack.c.b16 %v706, %v698
    %v955 = vpack.c.b16 %v707, %v699
    %v956 = vpack.c.b16 %v708, %v700
    %v957 = vpack.c.b16 %v709, %v701
    %v958 = vpack.c.b16 %v710, %v702
    %v959 = vpack.c.b16 %v711, %v703
    %v960 = vpack.c.b16 %v712, %v704
    %v961 = vpack.c.b16 %v721, %v713
    %v962 = vpack.c.b16 %v722, %v714
    %v963 = vpack.c.b16 %v723, %v715
    %v964 = vpack.c.b16 %v724, %v716
    %v965 = vpack.c.b16 %v725, %v717
    %v966 = vpack.c.b16 %v726, %v718
    %v967 = vpack.c.b16 %v727, %v719
    %v968 = vpack.c.b16 %v728, %v720
    %v969 = vpack.c.b16 %v737, %v729
    %v970 = vpack.c.b16 %v738, %v730
    %v971 = vpack.c.b16 %v739, %v731
    %v972 = vpack.c.b16 %v740, %v732
    %v973 = vpack.c.b16 %v741, %v733
    %v974 = vpack.c.b16 %v742, %v734
    %v975 = vpack.c.b16 %v743, %v735
    %v976 = vpack.c.b16 %v744, %v736
    %v977 = vpack.c.b16 %v753, %v745
    %v978 = vpack.c.b16 %v754, %v746
    %v979 = vpack.c.b16 %v755, %v747
    %v980 = vpack.c.b16 %v756, %v748
    %v981 = vpack.c.b16 %v757, %v749
    %v982 = vpack.c.b16 %v758, %v750
    %v983 = vpack.c.b16 %v759, %v751
    %v984 = vpack.c.b16 %v760, %v752
    %v985 = vpack.c.b16 %v769, %v761
    %v986 = vpack.c.b16 %v770, %v762
    %v987 = vpack.c.b16 %v771, %v763
    %v988 = vpack.c.b16 %v772, %v764
    %v989 = vpack.c.b16 %v773, %v765
    %v990 = vpack.c.b16 %v774, %v766
    %v991 = vpack.c.b16 %v775, %v767
    %v992 = vpack.c.b16 %v776, %v768
    %v993 = vpack.c.b16 %v785, %v777
    %v994 = vpack.c.b16 %v786, %v778
    %v995 = vpack.c.b16 %v787, %v779
    %v996 = vpack.c.b16 %v788, %v780
    %v997 = vpack.c.b16 %v789, %v781
    %v998 = vpack.c.b16 %v790, %v782
    %v999 = vpack.c.b16 %v791, %v783
    %v1000 = vpack.c.b16 %v792, %v784
    %v1001 = vpack.c.b16 %v801, %v793
    %v1002 = vpack.c.b16 %v802, %v794
    %v1003 = vpack.c.b16 %v803, %v795
    %v1004 = vpack.c.b16 %v804, %v796
    %v1005 = vpack.c.b16 %v805, %v797
    %v1006 = vpack.c.b16 %v806, %v798
    %v1007 = vpack.c.b16 %v807, %v799
    %v1008 = vpack.c.b16 %v808, %v800
    %v1009 = vpack.c.b16 %v817, %v809
    %v1010 = vpack.c.b16 %v818, %v810
    %v1011 = vpack.c.b16 %v819, %v811
    %v1012 = vpack.c.b16 %v820, %v812
    %v1013 = vpack.c.b16 %v821, %v813
    %v1014 = vpack.c.b16 %v822, %v814
    %v1015 = vpack.c.b16 %v823, %v815
    %v1016 = vpack.c.b16 %v824, %v816
    %v1017 = vpack.c.b16 %v833, %v825
    %v1018 = vpack.c.b16 %v834, %v826
    %v1019 = vpack.c.b16 %v835, %v827
    %v1020 = vpack.c.b16 %v836, %v828
    %v1021 = vpack.c.b16 %v837, %v829
    %v1022 = vpack.c.b16 %v838, %v830
    %v1023 = vpack.c.b16 %v839, %v831
    %v1024 = vpack.c.b16 %v840, %v832
    %v1025 = vpack.c.b16 %v849, %v841
    %v1026 = vpack.c.b16 %v850, %v842
    %v1027 = vpack.c.b16 %v851, %v843
    %v1028 = vpack.c.b16 %v852, %v844
    %v1029 = vpack.c.b16 %v853, %v845
    %v1030 = vpack.c.b16 %v854, %v846
    %v1031 = vpack.c.b16 %v855, %v847
    %v1032 = vpack.c.b16 %v856, %v848
    %v1033 = vpack.c.b16 %v865, %v857
    %v1034 = vpack.c.b16 %v866, %v858
    %v1035 = vpack.c.b16 %v867, %v859
    %v1036 = vpack.c.b16 %v868, %v860
    %v1037 = vpack.c.b16 %v869, %v861
    %v1038 = vpack.c.b16 %v870, %v862
    %v1039 = vpack.c.b16 %v871, %v863
    %v1040 = vpack.c.b16 %v872, %v864
    %v1041 = vpack.c.b16 %v881, %v873
    %v1042 = vpack.c.b16 %v882, %v874
    %v1043 = vpack.c.b16 %v883, %v875
    %v1044 = vpack.c.b16 %v884, %v876
    %v1045 = vpack.c.b16 %v885, %v877
    %v1046 = vpack.c.b16 %v886, %v878
    %v1047 = vpack.c.b16 %v887, %v879
    %v1048 = vpack.c.b16 %v888, %v880
    %v1049 = vpack.c.b16 %v897, %v889
    %v1050 = vpack.c.b16 %v898, %v890
    %v1051 = vpack.c.b16 %v899, %v891
    %v1052 = vpack.c.b16 %v900, %v892
    %v1053 = vpack.c.b16 %v901, %v893
    %v1054 = vpack.c.b16 %v902, %v894
    %v1055 = vpack.c.b16 %v903, %v895
    %v1056 = vpack.c.b16 %v904, %v896
    %v1057 = vpack.c.b16 %v913, %v905
    %v1058 = vpack.c.b16 %v914, %v906
    %v1059 = vpack.c.b16 %v915, %v907
    %v1060 = vpack.c.b16 %v916, %v908
    %v1061 = vpack.c.b16 %v917, %v909
    %v1062 = vpack.c.b16 %v918, %v910
    %v1063 = vpack.c.b16 %v919, %v911
    %v1064 = vpack.c.b16 %v920, %v912
    %v1065 = vpack.c.b16 %v929, %v921
    %v1066 = vpack.c.b16 %v930, %v922
    %v1067 = vpack.c.b16 %v931, %v923
    %v1068 = vpack.c.b16 %v932, %v924
    %v1069 = vpack.c.b16 %v933, %v925
    %v1070 = vpack.c.b16 %v934, %v926
    %v1071 = vpack.c.b16 %v935, %v927
    %v1072 = vpack.c.b16 %v936, %v928
    %v1073 = vpack.c.b16 %v945, %v937
    %v1074 = vpack.c.b16 %v946, %v938
    %v1075 = vpack.c.b16 %v947, %v939
    %v1076 = vpack.c.b16 %v948, %v940
    %v1077 = vpack.c.b16 %v949, %v941
    %v1078 = vpack.c.b16 %v950, %v942
    %v1079 = vpack.c.b16 %v951, %v943
    %v1080 = vpack.c.b16 %v952, %v944
    %1209 = vmatprep.subr.bf16.mxu0 %v954
    %1210 = vmatpush1.bf16.msra.mxu0 %v953
    %1211 = vmatprep.subr.bf16.mxu0 %v962
    %1212 = vmatpush1.bf16.msra.mxu0 %v961
    %1213 = vmatprep.subr.bf16.mxu0 %v970
    %1214 = vmatpush1.bf16.msra.mxu0 %v969
    %1215 = vmatprep.subr.bf16.mxu0 %v978
    %1216 = vmatpush1.bf16.msra.mxu0 %v977
    %1217 = vmatprep.subr.bf16.mxu0 %v986
    %1218 = vmatpush1.bf16.msra.mxu0 %v985
    %1219 = vmatprep.subr.bf16.mxu0 %v994
    %1220 = vmatpush1.bf16.msra.mxu0 %v993
    %1221 = vmatprep.subr.bf16.mxu0 %v1002
    %1222 = vmatpush1.bf16.msra.mxu0 %v1001
    %1223 = vmatprep.subr.bf16.mxu0 %v1010
    %1224 = vmatpush1.bf16.msra.mxu0 %v1009
    %1225 = vmatprep.subr.bf16.mxu0 %v1018
    %1226 = vmatpush1.bf16.msra.mxu0 %v1017
    %1227 = vmatprep.subr.bf16.mxu0 %v1026
    %1228 = vmatpush1.bf16.msra.mxu0 %v1025
    %1229 = vmatprep.subr.bf16.mxu0 %v1034
    %1230 = vmatpush1.bf16.msra.mxu0 %v1033
    %1231 = vmatprep.subr.bf16.mxu0 %v1042
    %1232 = vmatpush1.bf16.msra.mxu0 %v1041
    %1233 = vmatprep.subr.bf16.mxu0 %v1050
    %1234 = vmatpush1.bf16.msra.mxu0 %v1049
    %1235 = vmatprep.subr.bf16.mxu0 %v1058
    %1236 = vmatpush1.bf16.msra.mxu0 %v1057
    %1237 = vmatprep.subr.bf16.mxu0 %v1066
    %1238 = vmatpush1.bf16.msra.mxu0 %v1065
    %1239 = vmatprep.subr.bf16.mxu0 %v1074
    %1240 = vmatpush1.bf16.msra.mxu0 %v1073
    %1241 = vmatprep.mubr.bf16.mxu0 %v398
    %1242 = vmatmul.mubr.bf16.gmra.mrb[0].mxu0 %v397
    %v1243 = vpop.f32.mrb[0].mxu0
    %v1244 = vadd.f32 %v532, %v1243
    %v1245 = vpop.f32.mrb[0].mxu0
    %v1246 = vadd.f32 %v536, %v1245
    %v1247 = vpop.f32.mrb[0].mxu0
    %v1248 = vadd.f32 %v532, %v1247
    %v1249 = vpop.f32.mrb[0].mxu0
    %v1250 = vadd.f32 %v536, %v1249
    %1251 = vdwg.mxu0
    %1252 = vmatprep.subr.bf16.mxu0 %v956
    %1253 = vmatpush1.bf16.msra.mxu0 %v955
    %1254 = vmatprep.subr.bf16.mxu0 %v964
    %1255 = vmatpush1.bf16.msra.mxu0 %v963
    %1256 = vmatprep.subr.bf16.mxu0 %v972
    %1257 = vmatpush1.bf16.msra.mxu0 %v971
    %1258 = vmatprep.subr.bf16.mxu0 %v980
    %1259 = vmatpush1.bf16.msra.mxu0 %v979
    %1260 = vmatprep.subr.bf16.mxu0 %v988
    %1261 = vmatpush1.bf16.msra.mxu0 %v987
    %1262 = vmatprep.subr.bf16.mxu0 %v996
    %1263 = vmatpush1.bf16.msra.mxu0 %v995
    %1264 = vmatprep.subr.bf16.mxu0 %v1004
    %1265 = vmatpush1.bf16.msra.mxu0 %v1003
    %1266 = vmatprep.subr.bf16.mxu0 %v1012
    %1267 = vmatpush1.bf16.msra.mxu0 %v1011
    %1268 = vmatprep.subr.bf16.mxu0 %v1020
    %1269 = vmatpush1.bf16.msra.mxu0 %v1019
    %1270 = vmatprep.subr.bf16.mxu0 %v1028
    %1271 = vmatpush1.bf16.msra.mxu0 %v1027
    %1272 = vmatprep.subr.bf16.mxu0 %v1036
    %1273 = vmatpush1.bf16.msra.mxu0 %v1035
    %1274 = vmatprep.subr.bf16.mxu0 %v1044
    %1275 = vmatpush1.bf16.msra.mxu0 %v1043
    %1276 = vmatprep.subr.bf16.mxu0 %v1052
    %1277 = vmatpush1.bf16.msra.mxu0 %v1051
    %1278 = vmatprep.subr.bf16.mxu0 %v1060
    %1279 = vmatpush1.bf16.msra.mxu0 %v1059
    %1280 = vmatprep.subr.bf16.mxu0 %v1068
    %1281 = vmatpush1.bf16.msra.mxu0 %v1067
    %1282 = vmatprep.subr.bf16.mxu0 %v1076
    %1283 = vmatpush1.bf16.msra.mxu0 %v1075
    %1284 = vmatprep.mubr.bf16.mxu0 %v398
    %1285 = vmatmul.mubr.bf16.gmra.mrb[0].mxu0 %v397
    %v1286 = vpop.f32.mrb[0].mxu0
    %v1287 = vadd.f32 %v540, %v1286
    %v1288 = vpop.f32.mrb[0].mxu0
    %v1289 = vadd.f32 %v544, %v1288
    %v1290 = vpop.f32.mrb[0].mxu0
    %v1291 = vadd.f32 %v540, %v1290
    %v1292 = vpop.f32.mrb[0].mxu0
    %v1293 = vadd.f32 %v544, %v1292
    %1294 = vdwg.mxu0
    %1295 = vmatprep.subr.bf16.mxu0 %v958
    %1296 = vmatpush1.bf16.msra.mxu0 %v957
    %1297 = vmatprep.subr.bf16.mxu0 %v966
    %1298 = vmatpush1.bf16.msra.mxu0 %v965
    %1299 = vmatprep.subr.bf16.mxu0 %v974
    %1300 = vmatpush1.bf16.msra.mxu0 %v973
    %1301 = vmatprep.subr.bf16.mxu0 %v982
    %1302 = vmatpush1.bf16.msra.mxu0 %v981
    %1303 = vmatprep.subr.bf16.mxu0 %v990
    %1304 = vmatpush1.bf16.msra.mxu0 %v989
    %1305 = vmatprep.subr.bf16.mxu0 %v998
    %1306 = vmatpush1.bf16.msra.mxu0 %v997
    %1307 = vmatprep.subr.bf16.mxu0 %v1006
    %1308 = vmatpush1.bf16.msra.mxu0 %v1005
    %1309 = vmatprep.subr.bf16.mxu0 %v1014
    %1310 = vmatpush1.bf16.msra.mxu0 %v1013
    %1311 = vmatprep.subr.bf16.mxu0 %v1022
    %1312 = vmatpush1.bf16.msra.mxu0 %v1021
    %1313 = vmatprep.subr.bf16.mxu0 %v1030
    %1314 = vmatpush1.bf16.msra.mxu0 %v1029
    %1315 = vmatprep.subr.bf16.mxu0 %v1038
    %1316 = vmatpush1.bf16.msra.mxu0 %v1037
    %1317 = vmatprep.subr.bf16.mxu0 %v1046
    %1318 = vmatpush1.bf16.msra.mxu0 %v1045
    %1319 = vmatprep.subr.bf16.mxu0 %v1054
    %1320 = vmatpush1.bf16.msra.mxu0 %v1053
    %1321 = vmatprep.subr.bf16.mxu0 %v1062
    %1322 = vmatpush1.bf16.msra.mxu0 %v1061
    %1323 = vmatprep.subr.bf16.mxu0 %v1070
    %1324 = vmatpush1.bf16.msra.mxu0 %v1069
    %1325 = vmatprep.subr.bf16.mxu0 %v1078
    %1326 = vmatpush1.bf16.msra.mxu0 %v1077
    %1327 = vmatprep.mubr.bf16.mxu0 %v398
    %1328 = vmatmul.mubr.bf16.gmra.mrb[0].mxu0 %v397
    %v1329 = vpop.f32.mrb[0].mxu0
    %v1330 = vadd.f32 %v548, %v1329
    %v1331 = vpop.f32.mrb[0].mxu0
    %v1332 = vadd.f32 %v552, %v1331
    %v1333 = vpop.f32.mrb[0].mxu0
    %v1334 = vadd.f32 %v548, %v1333
    %v1335 = vpop.f32.mrb[0].mxu0
    %v1336 = vadd.f32 %v552, %v1335
    %1337 = vdwg.mxu0
    %1338 = vmatprep.subr.bf16.mxu0 %v960
    %1339 = vmatpush1.bf16.msra.mxu0 %v959
    %1340 = vmatprep.subr.bf16.mxu0 %v968
    %1341 = vmatpush1.bf16.msra.mxu0 %v967
    %1342 = vmatprep.subr.bf16.mxu0 %v976
    %1343 = vmatpush1.bf16.msra.mxu0 %v975
    %1344 = vmatprep.subr.bf16.mxu0 %v984
    %1345 = vmatpush1.bf16.msra.mxu0 %v983
    %1346 = vmatprep.subr.bf16.mxu0 %v992
    %1347 = vmatpush1.bf16.msra.mxu0 %v991
    %1348 = vmatprep.subr.bf16.mxu0 %v1000
    %1349 = vmatpush1.bf16.msra.mxu0 %v999
    %1350 = vmatprep.subr.bf16.mxu0 %v1008
    %1351 = vmatpush1.bf16.msra.mxu0 %v1007
    %1352 = vmatprep.subr.bf16.mxu0 %v1016
    %1353 = vmatpush1.bf16.msra.mxu0 %v1015
    %1354 = vmatprep.subr.bf16.mxu0 %v1024
    %1355 = vmatpush1.bf16.msra.mxu0 %v1023
    %1356 = vmatprep.subr.bf16.mxu0 %v1032
    %1357 = vmatpush1.bf16.msra.mxu0 %v1031
    %1358 = vmatprep.subr.bf16.mxu0 %v1040
    %1359 = vmatpush1.bf16.msra.mxu0 %v1039
    %1360 = vmatprep.subr.bf16.mxu0 %v1048
    %1361 = vmatpush1.bf16.msra.mxu0 %v1047
    %1362 = vmatprep.subr.bf16.mxu0 %v1056
    %1363 = vmatpush1.bf16.msra.mxu0 %v1055
    %1364 = vmatprep.subr.bf16.mxu0 %v1064
    %1365 = vmatpush1.bf16.msra.mxu0 %v1063
    %1366 = vmatprep.subr.bf16.mxu0 %v1072
    %1367 = vmatpush1.bf16.msra.mxu0 %v1071
    %1368 = vmatprep.subr.bf16.mxu0 %v1080
    %1369 = vmatpush1.bf16.msra.mxu0 %v1079
    %1370 = vmatprep.mubr.bf16.mxu0 %v398
    %1371 = vmatmul.mubr.bf16.gmra.mrb[0].mxu0 %v397
    %v1372 = vpop.f32.mrb[0].mxu0
    %v1373 = vadd.f32 %v556, %v1372
    %v1374 = vpop.f32.mrb[0].mxu0
    %v1375 = vadd.f32 %v560, %v1374
    %v1376 = vpop.f32.mrb[0].mxu0
    %v1377 = vadd.f32 %v556, %v1376
    %v1378 = vpop.f32.mrb[0].mxu0
    %v1379 = vadd.f32 %v560, %v1378
    %1380 = vdwg.mxu0
    %v1381 = vmul.f32 %v1244, 0.5
    %v1382 = vmul.f32 %v1246, 0.5
    %v1383 = vmul.f32 %v1287, 0.5
    %v1384 = vmul.f32 %v1289, 0.5
    %v1385 = vmul.f32 %v1330, 0.5
    %v1386 = vmul.f32 %v1332, 0.5
    %v1387 = vmul.f32 %v1373, 0.5
    %v1388 = vmul.f32 %v1375, 0.5
    %v1389 = vmul.f32 %v1248, 0.5
    %v1390 = vmul.f32 %v1250, 0.5
    %v1391 = vmul.f32 %v1291, 0.5
    %v1392 = vmul.f32 %v1293, 0.5
    %v1393 = vmul.f32 %v1334, 0.5
    %v1394 = vmul.f32 %v1336, 0.5
    %v1395 = vmul.f32 %v1377, 0.5
    %v1396 = vmul.f32 %v1379, 0.5
    %v1397 = vmul.f32 %v1244, 0.70710677
    %v1398 = vmul.f32 %v1246, 0.70710677
    %v1399 = vmul.f32 %v1287, 0.70710677
    %v1400 = vmul.f32 %v1289, 0.70710677
    %v1401 = vmul.f32 %v1330, 0.70710677
    %v1402 = vmul.f32 %v1332, 0.70710677
    %v1403 = vmul.f32 %v1373, 0.70710677
    %v1404 = vmul.f32 %v1375, 0.70710677
    %v1405 = vmul.f32 %v1248, 0.70710677
    %v1406 = vmul.f32 %v1250, 0.70710677
    %v1407 = vmul.f32 %v1291, 0.70710677
    %v1408 = vmul.f32 %v1293, 0.70710677
    %v1409 = vmul.f32 %v1334, 0.70710677
    %v1410 = vmul.f32 %v1336, 0.70710677
    %v1411 = vmul.f32 %v1377, 0.70710677
    %v1412 = vmul.f32 %v1379, 0.70710677
    %vm1413 = vcmp.ge.f32.partialorder %v1397, 0.0
    %vm1414 = vcmp.ge.f32.partialorder %v1398, 0.0
    %vm1415 = vcmp.ge.f32.partialorder %v1399, 0.0
    %vm1416 = vcmp.ge.f32.partialorder %v1400, 0.0
    %vm1417 = vcmp.ge.f32.partialorder %v1401, 0.0
    %vm1418 = vcmp.ge.f32.partialorder %v1402, 0.0
    %vm1419 = vcmp.ge.f32.partialorder %v1403, 0.0
    %vm1420 = vcmp.ge.f32.partialorder %v1404, 0.0
    %vm1421 = vcmp.ge.f32.partialorder %v1405, 0.0
    %vm1422 = vcmp.ge.f32.partialorder %v1406, 0.0
    %vm1423 = vcmp.ge.f32.partialorder %v1407, 0.0
    %vm1424 = vcmp.ge.f32.partialorder %v1408, 0.0
    %vm1425 = vcmp.ge.f32.partialorder %v1409, 0.0
    %vm1426 = vcmp.ge.f32.partialorder %v1410, 0.0
    %vm1427 = vcmp.ge.f32.partialorder %v1411, 0.0
    %vm1428 = vcmp.ge.f32.partialorder %v1412, 0.0
    %v1429 = vsel %vm1413, 1.0, -1.0
    %v1430 = vsel %vm1414, 1.0, -1.0
    %v1431 = vsel %vm1415, 1.0, -1.0
    %v1432 = vsel %vm1416, 1.0, -1.0
    %v1433 = vsel %vm1417, 1.0, -1.0
    %v1434 = vsel %vm1418, 1.0, -1.0
    %v1435 = vsel %vm1419, 1.0, -1.0
    %v1436 = vsel %vm1420, 1.0, -1.0
    %v1437 = vsel %vm1421, 1.0, -1.0
    %v1438 = vsel %vm1422, 1.0, -1.0
    %v1439 = vsel %vm1423, 1.0, -1.0
    %v1440 = vsel %vm1424, 1.0, -1.0
    %v1441 = vsel %vm1425, 1.0, -1.0
    %v1442 = vsel %vm1426, 1.0, -1.0
    %v1443 = vsel %vm1427, 1.0, -1.0
    %v1444 = vsel %vm1428, 1.0, -1.0
    %v1445 = vand.u32 2147483647, %v1397
    %v1446 = vand.u32 2147483647, %v1398
    %v1447 = vand.u32 2147483647, %v1399
    %v1448 = vand.u32 2147483647, %v1400
    %v1449 = vand.u32 2147483647, %v1401
    %v1450 = vand.u32 2147483647, %v1402
    %v1451 = vand.u32 2147483647, %v1403
    %v1452 = vand.u32 2147483647, %v1404
    %v1453 = vand.u32 2147483647, %v1405
    %v1454 = vand.u32 2147483647, %v1406
    %v1455 = vand.u32 2147483647, %v1407
    %v1456 = vand.u32 2147483647, %v1408
    %v1457 = vand.u32 2147483647, %v1409
    %v1458 = vand.u32 2147483647, %v1410
    %v1459 = vand.u32 2147483647, %v1411
    %v1460 = vand.u32 2147483647, %v1412
    %v1461 = vmul.f32 %v1445, 0.3275911
    %v1462 = vmul.f32 %v1446, 0.3275911
    %v1463 = vmul.f32 %v1447, 0.3275911
    %v1464 = vmul.f32 %v1448, 0.3275911
    %v1465 = vmul.f32 %v1449, 0.3275911
    %v1466 = vmul.f32 %v1450, 0.3275911
    %v1467 = vmul.f32 %v1451, 0.3275911
    %v1468 = vmul.f32 %v1452, 0.3275911
    %v1469 = vmul.f32 %v1453, 0.3275911
    %v1470 = vmul.f32 %v1454, 0.3275911
    %v1471 = vmul.f32 %v1455, 0.3275911
    %v1472 = vmul.f32 %v1456, 0.3275911
    %v1473 = vmul.f32 %v1457, 0.3275911
    %v1474 = vmul.f32 %v1458, 0.3275911
    %v1475 = vmul.f32 %v1459, 0.3275911
    %v1476 = vmul.f32 %v1460, 0.3275911
    %v1477 = vadd.f32 %v1461, 1.0
    %v1478 = vadd.f32 %v1462, 1.0
    %v1479 = vadd.f32 %v1463, 1.0
    %v1480 = vadd.f32 %v1464, 1.0
    %v1481 = vadd.f32 %v1465, 1.0
    %v1482 = vadd.f32 %v1466, 1.0
    %v1483 = vadd.f32 %v1467, 1.0
    %v1484 = vadd.f32 %v1468, 1.0
    %v1485 = vadd.f32 %v1469, 1.0
    %v1486 = vadd.f32 %v1470, 1.0
    %v1487 = vadd.f32 %v1471, 1.0
    %v1488 = vadd.f32 %v1472, 1.0
    %v1489 = vadd.f32 %v1473, 1.0
    %v1490 = vadd.f32 %v1474, 1.0
    %v1491 = vadd.f32 %v1475, 1.0
    %v1492 = vadd.f32 %v1476, 1.0
    %v1493 = vrcp.pop %v1477
    %v1494 = vmul.f32 1.0, %v1493
    %v1495 = vrcp.pop %v1478
    %v1496 = vmul.f32 1.0, %v1495
    %v1497 = vrcp.pop %v1479
    %v1498 = vmul.f32 1.0, %v1497
    %v1499 = vrcp.pop %v1480
    %v1500 = vmul.f32 1.0, %v1499
    %v1501 = vrcp.pop %v1481
    %v1502 = vmul.f32 1.0, %v1501
    %v1503 = vrcp.pop %v1482
    %v1504 = vmul.f32 1.0, %v1503
    %v1505 = vrcp.pop %v1483
    %v1506 = vmul.f32 1.0, %v1505
    %v1507 = vrcp.pop %v1484
    %v1508 = vmul.f32 1.0, %v1507
    %v1509 = vrcp.pop %v1485
    %v1510 = vmul.f32 1.0, %v1509
    %v1511 = vrcp.pop %v1486
    %v1512 = vmul.f32 1.0, %v1511
    %v1513 = vrcp.pop %v1487
    %v1514 = vmul.f32 1.0, %v1513
    %v1515 = vrcp.pop %v1488
    %v1516 = vmul.f32 1.0, %v1515
    %v1517 = vrcp.pop %v1489
    %v1518 = vmul.f32 1.0, %v1517
    %v1519 = vrcp.pop %v1490
    %v1520 = vmul.f32 1.0, %v1519
    %v1521 = vrcp.pop %v1491
    %v1522 = vmul.f32 1.0, %v1521
    %v1523 = vrcp.pop %v1492
    %v1524 = vmul.f32 1.0, %v1523
    %v1525 = vmul.f32 %v1494, 1.0614054
    %v1526 = vmul.f32 %v1496, 1.0614054
    %v1527 = vmul.f32 %v1498, 1.0614054
    %v1528 = vmul.f32 %v1500, 1.0614054
    %v1529 = vmul.f32 %v1502, 1.0614054
    %v1530 = vmul.f32 %v1504, 1.0614054
    %v1531 = vmul.f32 %v1506, 1.0614054
    %v1532 = vmul.f32 %v1508, 1.0614054
    %v1533 = vmul.f32 %v1510, 1.0614054
    %v1534 = vmul.f32 %v1512, 1.0614054
    %v1535 = vmul.f32 %v1514, 1.0614054
    %v1536 = vmul.f32 %v1516, 1.0614054
    %v1537 = vmul.f32 %v1518, 1.0614054
    %v1538 = vmul.f32 %v1520, 1.0614054
    %v1539 = vmul.f32 %v1522, 1.0614054
    %v1540 = vmul.f32 %v1524, 1.0614054
    %v1541 = vadd.f32 %v1525, -1.4531521
    %v1542 = vadd.f32 %v1526, -1.4531521
    %v1543 = vadd.f32 %v1527, -1.4531521
    %v1544 = vadd.f32 %v1528, -1.4531521
    %v1545 = vadd.f32 %v1529, -1.4531521
    %v1546 = vadd.f32 %v1530, -1.4531521
    %v1547 = vadd.f32 %v1531, -1.4531521
    %v1548 = vadd.f32 %v1532, -1.4531521
    %v1549 = vadd.f32 %v1533, -1.4531521
    %v1550 = vadd.f32 %v1534, -1.4531521
    %v1551 = vadd.f32 %v1535, -1.4531521
    %v1552 = vadd.f32 %v1536, -1.4531521
    %v1553 = vadd.f32 %v1537, -1.4531521
    %v1554 = vadd.f32 %v1538, -1.4531521
    %v1555 = vadd.f32 %v1539, -1.4531521
    %v1556 = vadd.f32 %v1540, -1.4531521
    %v1557 = vmul.f32 %v1541, %v1494
    %v1558 = vmul.f32 %v1542, %v1496
    %v1559 = vmul.f32 %v1543, %v1498
    %v1560 = vmul.f32 %v1544, %v1500
    %v1561 = vmul.f32 %v1545, %v1502
    %v1562 = vmul.f32 %v1546, %v1504
    %v1563 = vmul.f32 %v1547, %v1506
    %v1564 = vmul.f32 %v1548, %v1508
    %v1565 = vmul.f32 %v1549, %v1510
    %v1566 = vmul.f32 %v1550, %v1512
    %v1567 = vmul.f32 %v1551, %v1514
    %v1568 = vmul.f32 %v1552, %v1516
    %v1569 = vmul.f32 %v1553, %v1518
    %v1570 = vmul.f32 %v1554, %v1520
    %v1571 = vmul.f32 %v1555, %v1522
    %v1572 = vmul.f32 %v1556, %v1524
    %v1573 = vadd.f32 %v1557, 1.4214138
    %v1574 = vadd.f32 %v1558, 1.4214138
    %v1575 = vadd.f32 %v1559, 1.4214138
    %v1576 = vadd.f32 %v1560, 1.4214138
    %v1577 = vadd.f32 %v1561, 1.4214138
    %v1578 = vadd.f32 %v1562, 1.4214138
    %v1579 = vadd.f32 %v1563, 1.4214138
    %v1580 = vadd.f32 %v1564, 1.4214138
    %v1581 = vadd.f32 %v1565, 1.4214138
    %v1582 = vadd.f32 %v1566, 1.4214138
    %v1583 = vadd.f32 %v1567, 1.4214138
    %v1584 = vadd.f32 %v1568, 1.4214138
    %v1585 = vadd.f32 %v1569, 1.4214138
    %v1586 = vadd.f32 %v1570, 1.4214138
    %v1587 = vadd.f32 %v1571, 1.4214138
    %v1588 = vadd.f32 %v1572, 1.4214138
    %v1589 = vmul.f32 %v1573, %v1494
    %v1590 = vmul.f32 %v1574, %v1496
    %v1591 = vmul.f32 %v1575, %v1498
    %v1592 = vmul.f32 %v1576, %v1500
    %v1593 = vmul.f32 %v1577, %v1502
    %v1594 = vmul.f32 %v1578, %v1504
    %v1595 = vmul.f32 %v1579, %v1506
    %v1596 = vmul.f32 %v1580, %v1508
    %v1597 = vmul.f32 %v1581, %v1510
    %v1598 = vmul.f32 %v1582, %v1512
    %v1599 = vmul.f32 %v1583, %v1514
    %v1600 = vmul.f32 %v1584, %v1516
    %v1601 = vmul.f32 %v1585, %v1518
    %v1602 = vmul.f32 %v1586, %v1520
    %v1603 = vmul.f32 %v1587, %v1522
    %v1604 = vmul.f32 %v1588, %v1524
    %v1605 = vadd.f32 %v1589, -0.28449672
    %v1606 = vadd.f32 %v1590, -0.28449672
    %v1607 = vadd.f32 %v1591, -0.28449672
    %v1608 = vadd.f32 %v1592, -0.28449672
    %v1609 = vadd.f32 %v1593, -0.28449672
    %v1610 = vadd.f32 %v1594, -0.28449672
    %v1611 = vadd.f32 %v1595, -0.28449672
    %v1612 = vadd.f32 %v1596, -0.28449672
    %v1613 = vadd.f32 %v1597, -0.28449672
    %v1614 = vadd.f32 %v1598, -0.28449672
    %v1615 = vadd.f32 %v1599, -0.28449672
    %v1616 = vadd.f32 %v1600, -0.28449672
    %v1617 = vadd.f32 %v1601, -0.28449672
    %v1618 = vadd.f32 %v1602, -0.28449672
    %v1619 = vadd.f32 %v1603, -0.28449672
    %v1620 = vadd.f32 %v1604, -0.28449672
    %v1621 = vmul.f32 %v1605, %v1494
    %v1622 = vmul.f32 %v1606, %v1496
    %v1623 = vmul.f32 %v1607, %v1498
    %v1624 = vmul.f32 %v1608, %v1500
    %v1625 = vmul.f32 %v1609, %v1502
    %v1626 = vmul.f32 %v1610, %v1504
    %v1627 = vmul.f32 %v1611, %v1506
    %v1628 = vmul.f32 %v1612, %v1508
    %v1629 = vmul.f32 %v1613, %v1510
    %v1630 = vmul.f32 %v1614, %v1512
    %v1631 = vmul.f32 %v1615, %v1514
    %v1632 = vmul.f32 %v1616, %v1516
    %v1633 = vmul.f32 %v1617, %v1518
    %v1634 = vmul.f32 %v1618, %v1520
    %v1635 = vmul.f32 %v1619, %v1522
    %v1636 = vmul.f32 %v1620, %v1524
    %v1637 = vadd.f32 %v1621, 0.2548296
    %v1638 = vadd.f32 %v1622, 0.2548296
    %v1639 = vadd.f32 %v1623, 0.2548296
    %v1640 = vadd.f32 %v1624, 0.2548296
    %v1641 = vadd.f32 %v1625, 0.2548296
    %v1642 = vadd.f32 %v1626, 0.2548296
    %v1643 = vadd.f32 %v1627, 0.2548296
    %v1644 = vadd.f32 %v1628, 0.2548296
    %v1645 = vadd.f32 %v1629, 0.2548296
    %v1646 = vadd.f32 %v1630, 0.2548296
    %v1647 = vadd.f32 %v1631, 0.2548296
    %v1648 = vadd.f32 %v1632, 0.2548296
    %v1649 = vadd.f32 %v1633, 0.2548296
    %v1650 = vadd.f32 %v1634, 0.2548296
    %v1651 = vadd.f32 %v1635, 0.2548296
    %v1652 = vadd.f32 %v1636, 0.2548296
    %v1653 = vmul.f32 %v1637, %v1494
    %v1654 = vmul.f32 %v1638, %v1496
    %v1655 = vmul.f32 %v1639, %v1498
    %v1656 = vmul.f32 %v1640, %v1500
    %v1657 = vmul.f32 %v1641, %v1502
    %v1658 = vmul.f32 %v1642, %v1504
    %v1659 = vmul.f32 %v1643, %v1506
    %v1660 = vmul.f32 %v1644, %v1508
    %v1661 = vmul.f32 %v1645, %v1510
    %v1662 = vmul.f32 %v1646, %v1512
    %v1663 = vmul.f32 %v1647, %v1514
    %v1664 = vmul.f32 %v1648, %v1516
    %v1665 = vmul.f32 %v1649, %v1518
    %v1666 = vmul.f32 %v1650, %v1520
    %v1667 = vmul.f32 %v1651, %v1522
    %v1668 = vmul.f32 %v1652, %v1524
    %v1669 = vsub.f32 0.0, %v1445
    %v1670 = vsub.f32 0.0, %v1446
    %v1671 = vsub.f32 0.0, %v1447
    %v1672 = vsub.f32 0.0, %v1448
    %v1673 = vsub.f32 0.0, %v1449
    %v1674 = vsub.f32 0.0, %v1450
    %v1675 = vsub.f32 0.0, %v1451
    %v1676 = vsub.f32 0.0, %v1452
    %v1677 = vsub.f32 0.0, %v1453
    %v1678 = vsub.f32 0.0, %v1454
    %v1679 = vsub.f32 0.0, %v1455
    %v1680 = vsub.f32 0.0, %v1456
    %v1681 = vsub.f32 0.0, %v1457
    %v1682 = vsub.f32 0.0, %v1458
    %v1683 = vsub.f32 0.0, %v1459
    %v1684 = vsub.f32 0.0, %v1460
    %v1685 = vmul.f32 %v1669, %v1445
    %v1686 = vmul.f32 %v1670, %v1446
    %v1687 = vmul.f32 %v1671, %v1447
    %v1688 = vmul.f32 %v1672, %v1448
    %v1689 = vmul.f32 %v1673, %v1449
    %v1690 = vmul.f32 %v1674, %v1450
    %v1691 = vmul.f32 %v1675, %v1451
    %v1692 = vmul.f32 %v1676, %v1452
    %v1693 = vmul.f32 %v1677, %v1453
    %v1694 = vmul.f32 %v1678, %v1454
    %v1695 = vmul.f32 %v1679, %v1455
    %v1696 = vmul.f32 %v1680, %v1456
    %v1697 = vmul.f32 %v1681, %v1457
    %v1698 = vmul.f32 %v1682, %v1458
    %v1699 = vmul.f32 %v1683, %v1459
    %v1700 = vmul.f32 %v1684, %v1460
    %v1701 = vmul.f32 %v1685, 1.442695
    %v1702 = vpow.pop %v1701
    %v1703 = vmul.f32 %v1686, 1.442695
    %v1704 = vpow.pop %v1703
    %v1705 = vmul.f32 %v1687, 1.442695
    %v1706 = vpow.pop %v1705
    %v1707 = vmul.f32 %v1688, 1.442695
    %v1708 = vpow.pop %v1707
    %v1709 = vmul.f32 %v1689, 1.442695
    %v1710 = vpow.pop %v1709
    %v1711 = vmul.f32 %v1690, 1.442695
    %v1712 = vpow.pop %v1711
    %v1713 = vmul.f32 %v1691, 1.442695
    %v1714 = vpow.pop %v1713
    %v1715 = vmul.f32 %v1692, 1.442695
    %v1716 = vpow.pop %v1715
    %v1717 = vmul.f32 %v1693, 1.442695
    %v1718 = vpow.pop %v1717
    %v1719 = vmul.f32 %v1694, 1.442695
    %v1720 = vpow.pop %v1719
    %v1721 = vmul.f32 %v1695, 1.442695
    %v1722 = vpow.pop %v1721
    %v1723 = vmul.f32 %v1696, 1.442695
    %v1724 = vpow.pop %v1723
    %v1725 = vmul.f32 %v1697, 1.442695
    %v1726 = vpow.pop %v1725
    %v1727 = vmul.f32 %v1698, 1.442695
    %v1728 = vpow.pop %v1727
    %v1729 = vmul.f32 %v1699, 1.442695
    %v1730 = vpow.pop %v1729
    %v1731 = vmul.f32 %v1700, 1.442695
    %v1732 = vpow.pop %v1731
    %v1733 = vmul.f32 %v1653, %v1702
    %v1734 = vmul.f32 %v1654, %v1704
    %v1735 = vmul.f32 %v1655, %v1706
    %v1736 = vmul.f32 %v1656, %v1708
    %v1737 = vmul.f32 %v1657, %v1710
    %v1738 = vmul.f32 %v1658, %v1712
    %v1739 = vmul.f32 %v1659, %v1714
    %v1740 = vmul.f32 %v1660, %v1716
    %v1741 = vmul.f32 %v1661, %v1718
    %v1742 = vmul.f32 %v1662, %v1720
    %v1743 = vmul.f32 %v1663, %v1722
    %v1744 = vmul.f32 %v1664, %v1724
    %v1745 = vmul.f32 %v1665, %v1726
    %v1746 = vmul.f32 %v1666, %v1728
    %v1747 = vmul.f32 %v1667, %v1730
    %v1748 = vmul.f32 %v1668, %v1732
    %v1749 = vsub.f32 1.0, %v1733
    %v1750 = vsub.f32 1.0, %v1734
    %v1751 = vsub.f32 1.0, %v1735
    %v1752 = vsub.f32 1.0, %v1736
    %v1753 = vsub.f32 1.0, %v1737
    %v1754 = vsub.f32 1.0, %v1738
    %v1755 = vsub.f32 1.0, %v1739
    %v1756 = vsub.f32 1.0, %v1740
    %v1757 = vsub.f32 1.0, %v1741
    %v1758 = vsub.f32 1.0, %v1742
    %v1759 = vsub.f32 1.0, %v1743
    %v1760 = vsub.f32 1.0, %v1744
    %v1761 = vsub.f32 1.0, %v1745
    %v1762 = vsub.f32 1.0, %v1746
    %v1763 = vsub.f32 1.0, %v1747
    %v1764 = vsub.f32 1.0, %v1748
    %v1765 = vmul.f32 %v1429, %v1749
    %v1766 = vmul.f32 %v1430, %v1750
    %v1767 = vmul.f32 %v1431, %v1751
    %v1768 = vmul.f32 %v1432, %v1752
    %v1769 = vmul.f32 %v1433, %v1753
    %v1770 = vmul.f32 %v1434, %v1754
    %v1771 = vmul.f32 %v1435, %v1755
    %v1772 = vmul.f32 %v1436, %v1756
    %v1773 = vmul.f32 %v1437, %v1757
    %v1774 = vmul.f32 %v1438, %v1758
    %v1775 = vmul.f32 %v1439, %v1759
    %v1776 = vmul.f32 %v1440, %v1760
    %v1777 = vmul.f32 %v1441, %v1761
    %v1778 = vmul.f32 %v1442, %v1762
    %v1779 = vmul.f32 %v1443, %v1763
    %v1780 = vmul.f32 %v1444, %v1764
    %v1781 = vadd.f32 %v1765, 1.0
    %v1782 = vadd.f32 %v1766, 1.0
    %v1783 = vadd.f32 %v1767, 1.0
    %v1784 = vadd.f32 %v1768, 1.0
    %v1785 = vadd.f32 %v1769, 1.0
    %v1786 = vadd.f32 %v1770, 1.0
    %v1787 = vadd.f32 %v1771, 1.0
    %v1788 = vadd.f32 %v1772, 1.0
    %v1789 = vadd.f32 %v1773, 1.0
    %v1790 = vadd.f32 %v1774, 1.0
    %v1791 = vadd.f32 %v1775, 1.0
    %v1792 = vadd.f32 %v1776, 1.0
    %v1793 = vadd.f32 %v1777, 1.0
    %v1794 = vadd.f32 %v1778, 1.0
    %v1795 = vadd.f32 %v1779, 1.0
    %v1796 = vadd.f32 %v1780, 1.0
    %v1797 = vmul.f32 %v1381, %v1781
    %v1798 = vmul.f32 %v1382, %v1782
    %v1799 = vmul.f32 %v1383, %v1783
    %v1800 = vmul.f32 %v1384, %v1784
    %v1801 = vmul.f32 %v1385, %v1785
    %v1802 = vmul.f32 %v1386, %v1786
    %v1803 = vmul.f32 %v1387, %v1787
    %v1804 = vmul.f32 %v1388, %v1788
    %v1805 = vmul.f32 %v1389, %v1789
    %v1806 = vmul.f32 %v1390, %v1790
    %v1807 = vmul.f32 %v1391, %v1791
    %v1808 = vmul.f32 %v1392, %v1792
    %v1809 = vmul.f32 %v1393, %v1793
    %v1810 = vmul.f32 %v1394, %v1794
    %v1811 = vmul.f32 %v1395, %v1795
    %v1812 = vmul.f32 %v1396, %v1796
    %v1813 = vld [vmem:[#allocation4] sm:$0xff]
    %v1814 = vld [vmem:[#allocation4 + $0x8] sm:$0xff]
    %v1815 = vld [vmem:[#allocation4 + $0x10] sm:$0xff]
    %v1816 = vld [vmem:[#allocation4 + $0x18] sm:$0xff]
    %v1817 = vpack.c.bf16 %v1805, %v1797
    %v1818 = vpack.c.bf16 %v1806, %v1798
    %v1819 = vpack.c.bf16 %v1807, %v1799
    %v1820 = vpack.c.bf16 %v1808, %v1800
    %v1821 = vpack.c.bf16 %v1809, %v1801
    %v1822 = vpack.c.bf16 %v1810, %v1802
    %v1823 = vpack.c.bf16 %v1811, %v1803
    %v1824 = vpack.c.bf16 %v1812, %v1804
    %v1825 = vld [vmem:[#allocation5] sm:$0xff]
    %v1826 = vld [vmem:[#allocation5 + $0x8] sm:$0xff]
    %v1827 = vld [vmem:[#allocation5 + $0x10] sm:$0xff]
    %v1828 = vld [vmem:[#allocation5 + $0x18] sm:$0xff]
    %v1829 = vld [vmem:[#allocation5 + $0x20] sm:$0xff]
    %v1830 = vld [vmem:[#allocation5 + $0x28] sm:$0xff]
    %v1831 = vld [vmem:[#allocation5 + $0x30] sm:$0xff]
    %v1832 = vld [vmem:[#allocation5 + $0x38] sm:$0xff]
    %v1833 = vld [vmem:[#allocation5 + $0x40] sm:$0xff]
    %v1834 = vld [vmem:[#allocation5 + $0x48] sm:$0xff]
    %v1835 = vld [vmem:[#allocation5 + $0x50] sm:$0xff]
    %v1836 = vld [vmem:[#allocation5 + $0x58] sm:$0xff]
    %v1837 = vld [vmem:[#allocation5 + $0x60] sm:$0xff]
    %v1838 = vld [vmem:[#allocation5 + $0x68] sm:$0xff]
    %v1839 = vld [vmem:[#allocation5 + $0x70] sm:$0xff]
    %v1840 = vld [vmem:[#allocation5 + $0x78] sm:$0xff]
    %v1841 = vld [vmem:[#allocation5 + $0x80] sm:$0xff]
    %v1842 = vld [vmem:[#allocation5 + $0x88] sm:$0xff]
    %v1843 = vld [vmem:[#allocation5 + $0x90] sm:$0xff]
    %v1844 = vld [vmem:[#allocation5 + $0x98] sm:$0xff]
    %v1845 = vld [vmem:[#allocation5 + $0xa0] sm:$0xff]
    %v1846 = vld [vmem:[#allocation5 + $0xa8] sm:$0xff]
    %v1847 = vld [vmem:[#allocation5 + $0xb0] sm:$0xff]
    %v1848 = vld [vmem:[#allocation5 + $0xb8] sm:$0xff]
    %v1849 = vld [vmem:[#allocation5 + $0xc0] sm:$0xff]
    %v1850 = vld [vmem:[#allocation5 + $0xc8] sm:$0xff]
    %v1851 = vld [vmem:[#allocation5 + $0xd0] sm:$0xff]
    %v1852 = vld [vmem:[#allocation5 + $0xd8] sm:$0xff]
    %v1853 = vld [vmem:[#allocation5 + $0xe0] sm:$0xff]
    %v1854 = vld [vmem:[#allocation5 + $0xe8] sm:$0xff]
    %v1855 = vld [vmem:[#allocation5 + $0xf0] sm:$0xff]
    %v1856 = vld [vmem:[#allocation5 + $0xf8] sm:$0xff]
    %v1857 = vld [vmem:[#allocation5 + $0x100] sm:$0xff]
    %v1858 = vld [vmem:[#allocation5 + $0x108] sm:$0xff]
    %v1859 = vld [vmem:[#allocation5 + $0x110] sm:$0xff]
    %v1860 = vld [vmem:[#allocation5 + $0x118] sm:$0xff]
    %v1861 = vld [vmem:[#allocation5 + $0x120] sm:$0xff]
    %v1862 = vld [vmem:[#allocation5 + $0x128] sm:$0xff]
    %v1863 = vld [vmem:[#allocation5 + $0x130] sm:$0xff]
    %v1864 = vld [vmem:[#allocation5 + $0x138] sm:$0xff]
    %v1865 = vld [vmem:[#allocation5 + $0x140] sm:$0xff]
    %v1866 = vld [vmem:[#allocation5 + $0x148] sm:$0xff]
    %v1867 = vld [vmem:[#allocation5 + $0x150] sm:$0xff]
    %v1868 = vld [vmem:[#allocation5 + $0x158] sm:$0xff]
    %v1869 = vld [vmem:[#allocation5 + $0x160] sm:$0xff]
    %v1870 = vld [vmem:[#allocation5 + $0x168] sm:$0xff]
    %v1871 = vld [vmem:[#allocation5 + $0x170] sm:$0xff]
    %v1872 = vld [vmem:[#allocation5 + $0x178] sm:$0xff]
    %v1873 = vld [vmem:[#allocation5 + $0x180] sm:$0xff]
    %v1874 = vld [vmem:[#allocation5 + $0x188] sm:$0xff]
    %v1875 = vld [vmem:[#allocation5 + $0x190] sm:$0xff]
    %v1876 = vld [vmem:[#allocation5 + $0x198] sm:$0xff]
    %v1877 = vld [vmem:[#allocation5 + $0x1a0] sm:$0xff]
    %v1878 = vld [vmem:[#allocation5 + $0x1a8] sm:$0xff]
    %v1879 = vld [vmem:[#allocation5 + $0x1b0] sm:$0xff]
    %v1880 = vld [vmem:[#allocation5 + $0x1b8] sm:$0xff]
    %v1881 = vld [vmem:[#allocation5 + $0x1c0] sm:$0xff]
    %v1882 = vld [vmem:[#allocation5 + $0x1c8] sm:$0xff]
    %v1883 = vld [vmem:[#allocation5 + $0x1d0] sm:$0xff]
    %v1884 = vld [vmem:[#allocation5 + $0x1d8] sm:$0xff]
    %v1885 = vld [vmem:[#allocation5 + $0x1e0] sm:$0xff]
    %v1886 = vld [vmem:[#allocation5 + $0x1e8] sm:$0xff]
    %v1887 = vld [vmem:[#allocation5 + $0x1f0] sm:$0xff]
    %v1888 = vld [vmem:[#allocation5 + $0x1f8] sm:$0xff]
    %v1889 = vld [vmem:[#allocation5 + $0x200] sm:$0xff]
    %v1890 = vld [vmem:[#allocation5 + $0x208] sm:$0xff]
    %v1891 = vld [vmem:[#allocation5 + $0x210] sm:$0xff]
    %v1892 = vld [vmem:[#allocation5 + $0x218] sm:$0xff]
    %v1893 = vld [vmem:[#allocation5 + $0x220] sm:$0xff]
    %v1894 = vld [vmem:[#allocation5 + $0x228] sm:$0xff]
    %v1895 = vld [vmem:[#allocation5 + $0x230] sm:$0xff]
    %v1896 = vld [vmem:[#allocation5 + $0x238] sm:$0xff]
    %v1897 = vld [vmem:[#allocation5 + $0x240] sm:$0xff]
    %v1898 = vld [vmem:[#allocation5 + $0x248] sm:$0xff]
    %v1899 = vld [vmem:[#allocation5 + $0x250] sm:$0xff]
    %v1900 = vld [vmem:[#allocation5 + $0x258] sm:$0xff]
    %v1901 = vld [vmem:[#allocation5 + $0x260] sm:$0xff]
    %v1902 = vld [vmem:[#allocation5 + $0x268] sm:$0xff]
    %v1903 = vld [vmem:[#allocation5 + $0x270] sm:$0xff]
    %v1904 = vld [vmem:[#allocation5 + $0x278] sm:$0xff]
    %v1905 = vld [vmem:[#allocation5 + $0x280] sm:$0xff]
    %v1906 = vld [vmem:[#allocation5 + $0x288] sm:$0xff]
    %v1907 = vld [vmem:[#allocation5 + $0x290] sm:$0xff]
    %v1908 = vld [vmem:[#allocation5 + $0x298] sm:$0xff]
    %v1909 = vld [vmem:[#allocation5 + $0x2a0] sm:$0xff]
    %v1910 = vld [vmem:[#allocation5 + $0x2a8] sm:$0xff]
    %v1911 = vld [vmem:[#allocation5 + $0x2b0] sm:$0xff]
    %v1912 = vld [vmem:[#allocation5 + $0x2b8] sm:$0xff]
    %v1913 = vld [vmem:[#allocation5 + $0x2c0] sm:$0xff]
    %v1914 = vld [vmem:[#allocation5 + $0x2c8] sm:$0xff]
    %v1915 = vld [vmem:[#allocation5 + $0x2d0] sm:$0xff]
    %v1916 = vld [vmem:[#allocation5 + $0x2d8] sm:$0xff]
    %v1917 = vld [vmem:[#allocation5 + $0x2e0] sm:$0xff]
    %v1918 = vld [vmem:[#allocation5 + $0x2e8] sm:$0xff]
    %v1919 = vld [vmem:[#allocation5 + $0x2f0] sm:$0xff]
    %v1920 = vld [vmem:[#allocation5 + $0x2f8] sm:$0xff]
    %v1921 = vld [vmem:[#allocation5 + $0x300] sm:$0xff]
    %v1922 = vld [vmem:[#allocation5 + $0x308] sm:$0xff]
    %v1923 = vld [vmem:[#allocation5 + $0x310] sm:$0xff]
    %v1924 = vld [vmem:[#allocation5 + $0x318] sm:$0xff]
    %v1925 = vld [vmem:[#allocation5 + $0x320] sm:$0xff]
    %v1926 = vld [vmem:[#allocation5 + $0x328] sm:$0xff]
    %v1927 = vld [vmem:[#allocation5 + $0x330] sm:$0xff]
    %v1928 = vld [vmem:[#allocation5 + $0x338] sm:$0xff]
    %v1929 = vld [vmem:[#allocation5 + $0x340] sm:$0xff]
    %v1930 = vld [vmem:[#allocation5 + $0x348] sm:$0xff]
    %v1931 = vld [vmem:[#allocation5 + $0x350] sm:$0xff]
    %v1932 = vld [vmem:[#allocation5 + $0x358] sm:$0xff]
    %v1933 = vld [vmem:[#allocation5 + $0x360] sm:$0xff]
    %v1934 = vld [vmem:[#allocation5 + $0x368] sm:$0xff]
    %v1935 = vld [vmem:[#allocation5 + $0x370] sm:$0xff]
    %v1936 = vld [vmem:[#allocation5 + $0x378] sm:$0xff]
    %v1937 = vld [vmem:[#allocation5 + $0x380] sm:$0xff]
    %v1938 = vld [vmem:[#allocation5 + $0x388] sm:$0xff]
    %v1939 = vld [vmem:[#allocation5 + $0x390] sm:$0xff]
    %v1940 = vld [vmem:[#allocation5 + $0x398] sm:$0xff]
    %v1941 = vld [vmem:[#allocation5 + $0x3a0] sm:$0xff]
    %v1942 = vld [vmem:[#allocation5 + $0x3a8] sm:$0xff]
    %v1943 = vld [vmem:[#allocation5 + $0x3b0] sm:$0xff]
    %v1944 = vld [vmem:[#allocation5 + $0x3b8] sm:$0xff]
    %v1945 = vld [vmem:[#allocation5 + $0x3c0] sm:$0xff]
    %v1946 = vld [vmem:[#allocation5 + $0x3c8] sm:$0xff]
    %v1947 = vld [vmem:[#allocation5 + $0x3d0] sm:$0xff]
    %v1948 = vld [vmem:[#allocation5 + $0x3d8] sm:$0xff]
    %v1949 = vld [vmem:[#allocation5 + $0x3e0] sm:$0xff]
    %v1950 = vld [vmem:[#allocation5 + $0x3e8] sm:$0xff]
    %v1951 = vld [vmem:[#allocation5 + $0x3f0] sm:$0xff]
    %v1952 = vld [vmem:[#allocation5 + $0x3f8] sm:$0xff]
    %v2081 = vunpack.c.l.b16 %v1825
    %v2082 = vunpack.c.h.b16 %v1825
    %v2083 = vunpack.c.l.b16 %v1826
    %v2084 = vunpack.c.h.b16 %v1826
    %v2085 = vunpack.c.l.b16 %v1827
    %v2086 = vunpack.c.h.b16 %v1827
    %v2087 = vunpack.c.l.b16 %v1828
    %v2088 = vunpack.c.h.b16 %v1828
    %v2089 = vunpack.c.l.b16 %v1829
    %v2090 = vunpack.c.h.b16 %v1829
    %v2091 = vunpack.c.l.b16 %v1830
    %v2092 = vunpack.c.h.b16 %v1830
    %v2093 = vunpack.c.l.b16 %v1831
    %v2094 = vunpack.c.h.b16 %v1831
    %v2095 = vunpack.c.l.b16 %v1832
    %v2096 = vunpack.c.h.b16 %v1832
    %v2097 = vunpack.c.l.b16 %v1833
    %v2098 = vunpack.c.h.b16 %v1833
    %v2099 = vunpack.c.l.b16 %v1834
    %v2100 = vunpack.c.h.b16 %v1834
    %v2101 = vunpack.c.l.b16 %v1835
    %v2102 = vunpack.c.h.b16 %v1835
    %v2103 = vunpack.c.l.b16 %v1836
    %v2104 = vunpack.c.h.b16 %v1836
    %v2105 = vunpack.c.l.b16 %v1837
    %v2106 = vunpack.c.h.b16 %v1837
    %v2107 = vunpack.c.l.b16 %v1838
    %v2108 = vunpack.c.h.b16 %v1838
    %v2109 = vunpack.c.l.b16 %v1839
    %v2110 = vunpack.c.h.b16 %v1839
    %v2111 = vunpack.c.l.b16 %v1840
    %v2112 = vunpack.c.h.b16 %v1840
    %v2113 = vunpack.c.l.b16 %v1841
    %v2114 = vunpack.c.h.b16 %v1841
    %v2115 = vunpack.c.l.b16 %v1842
    %v2116 = vunpack.c.h.b16 %v1842
    %v2117 = vunpack.c.l.b16 %v1843
    %v2118 = vunpack.c.h.b16 %v1843
    %v2119 = vunpack.c.l.b16 %v1844
    %v2120 = vunpack.c.h.b16 %v1844
    %v2121 = vunpack.c.l.b16 %v1845
    %v2122 = vunpack.c.h.b16 %v1845
    %v2123 = vunpack.c.l.b16 %v1846
    %v2124 = vunpack.c.h.b16 %v1846
    %v2125 = vunpack.c.l.b16 %v1847
    %v2126 = vunpack.c.h.b16 %v1847
    %v2127 = vunpack.c.l.b16 %v1848
    %v2128 = vunpack.c.h.b16 %v1848
    %v2129 = vunpack.c.l.b16 %v1849
    %v2130 = vunpack.c.h.b16 %v1849
    %v2131 = vunpack.c.l.b16 %v1850
    %v2132 = vunpack.c.h.b16 %v1850
    %v2133 = vunpack.c.l.b16 %v1851
    %v2134 = vunpack.c.h.b16 %v1851
    %v2135 = vunpack.c.l.b16 %v1852
    %v2136 = vunpack.c.h.b16 %v1852
    %v2137 = vunpack.c.l.b16 %v1853
    %v2138 = vunpack.c.h.b16 %v1853
    %v2139 = vunpack.c.l.b16 %v1854
    %v2140 = vunpack.c.h.b16 %v1854
    %v2141 = vunpack.c.l.b16 %v1855
    %v2142 = vunpack.c.h.b16 %v1855
    %v2143 = vunpack.c.l.b16 %v1856
    %v2144 = vunpack.c.h.b16 %v1856
    %v2145 = vunpack.c.l.b16 %v1857
    %v2146 = vunpack.c.h.b16 %v1857
    %v2147 = vunpack.c.l.b16 %v1858
    %v2148 = vunpack.c.h.b16 %v1858
    %v2149 = vunpack.c.l.b16 %v1859
    %v2150 = vunpack.c.h.b16 %v1859
    %v2151 = vunpack.c.l.b16 %v1860
    %v2152 = vunpack.c.h.b16 %v1860
    %v2153 = vunpack.c.l.b16 %v1861
    %v2154 = vunpack.c.h.b16 %v1861
    %v2155 = vunpack.c.l.b16 %v1862
    %v2156 = vunpack.c.h.b16 %v1862
    %v2157 = vunpack.c.l.b16 %v1863
    %v2158 = vunpack.c.h.b16 %v1863
    %v2159 = vunpack.c.l.b16 %v1864
    %v2160 = vunpack.c.h.b16 %v1864
    %v2161 = vunpack.c.l.b16 %v1865
    %v2162 = vunpack.c.h.b16 %v1865
    %v2163 = vunpack.c.l.b16 %v1866
    %v2164 = vunpack.c.h.b16 %v1866
    %v2165 = vunpack.c.l.b16 %v1867
    %v2166 = vunpack.c.h.b16 %v1867
    %v2167 = vunpack.c.l.b16 %v1868
    %v2168 = vunpack.c.h.b16 %v1868
    %v2169 = vunpack.c.l.b16 %v1869
    %v2170 = vunpack.c.h.b16 %v1869
    %v2171 = vunpack.c.l.b16 %v1870
    %v2172 = vunpack.c.h.b16 %v1870
    %v2173 = vunpack.c.l.b16 %v1871
    %v2174 = vunpack.c.h.b16 %v1871
    %v2175 = vunpack.c.l.b16 %v1872
    %v2176 = vunpack.c.h.b16 %v1872
    %v2177 = vunpack.c.l.b16 %v1873
    %v2178 = vunpack.c.h.b16 %v1873
    %v2179 = vunpack.c.l.b16 %v1874
    %v2180 = vunpack.c.h.b16 %v1874
    %v2181 = vunpack.c.l.b16 %v1875
    %v2182 = vunpack.c.h.b16 %v1875
    %v2183 = vunpack.c.l.b16 %v1876
    %v2184 = vunpack.c.h.b16 %v1876
    %v2185 = vunpack.c.l.b16 %v1877
    %v2186 = vunpack.c.h.b16 %v1877
    %v2187 = vunpack.c.l.b16 %v1878
    %v2188 = vunpack.c.h.b16 %v1878
    %v2189 = vunpack.c.l.b16 %v1879
    %v2190 = vunpack.c.h.b16 %v1879
    %v2191 = vunpack.c.l.b16 %v1880
    %v2192 = vunpack.c.h.b16 %v1880
    %v2193 = vunpack.c.l.b16 %v1881
    %v2194 = vunpack.c.h.b16 %v1881
    %v2195 = vunpack.c.l.b16 %v1882
    %v2196 = vunpack.c.h.b16 %v1882
    %v2197 = vunpack.c.l.b16 %v1883
    %v2198 = vunpack.c.h.b16 %v1883
    %v2199 = vunpack.c.l.b16 %v1884
    %v2200 = vunpack.c.h.b16 %v1884
    %v2201 = vunpack.c.l.b16 %v1885
    %v2202 = vunpack.c.h.b16 %v1885
    %v2203 = vunpack.c.l.b16 %v1886
    %v2204 = vunpack.c.h.b16 %v1886
    %v2205 = vunpack.c.l.b16 %v1887
    %v2206 = vunpack.c.h.b16 %v1887
    %v2207 = vunpack.c.l.b16 %v1888
    %v2208 = vunpack.c.h.b16 %v1888
    %v2209 = vunpack.c.l.b16 %v1889
    %v2210 = vunpack.c.h.b16 %v1889
    %v2211 = vunpack.c.l.b16 %v1890
    %v2212 = vunpack.c.h.b16 %v1890
    %v2213 = vunpack.c.l.b16 %v1891
    %v2214 = vunpack.c.h.b16 %v1891
    %v2215 = vunpack.c.l.b16 %v1892
    %v2216 = vunpack.c.h.b16 %v1892
    %v2217 = vunpack.c.l.b16 %v1893
    %v2218 = vunpack.c.h.b16 %v1893
    %v2219 = vunpack.c.l.b16 %v1894
    %v2220 = vunpack.c.h.b16 %v1894
    %v2221 = vunpack.c.l.b16 %v1895
    %v2222 = vunpack.c.h.b16 %v1895
    %v2223 = vunpack.c.l.b16 %v1896
    %v2224 = vunpack.c.h.b16 %v1896
    %v2225 = vunpack.c.l.b16 %v1897
    %v2226 = vunpack.c.h.b16 %v1897
    %v2227 = vunpack.c.l.b16 %v1898
    %v2228 = vunpack.c.h.b16 %v1898
    %v2229 = vunpack.c.l.b16 %v1899
    %v2230 = vunpack.c.h.b16 %v1899
    %v2231 = vunpack.c.l.b16 %v1900
    %v2232 = vunpack.c.h.b16 %v1900
    %v2233 = vunpack.c.l.b16 %v1901
    %v2234 = vunpack.c.h.b16 %v1901
    %v2235 = vunpack.c.l.b16 %v1902
    %v2236 = vunpack.c.h.b16 %v1902
    %v2237 = vunpack.c.l.b16 %v1903
    %v2238 = vunpack.c.h.b16 %v1903
    %v2239 = vunpack.c.l.b16 %v1904
    %v2240 = vunpack.c.h.b16 %v1904
    %v2241 = vunpack.c.l.b16 %v1905
    %v2242 = vunpack.c.h.b16 %v1905
    %v2243 = vunpack.c.l.b16 %v1906
    %v2244 = vunpack.c.h.b16 %v1906
    %v2245 = vunpack.c.l.b16 %v1907
    %v2246 = vunpack.c.h.b16 %v1907
    %v2247 = vunpack.c.l.b16 %v1908
    %v2248 = vunpack.c.h.b16 %v1908
    %v2249 = vunpack.c.l.b16 %v1909
    %v2250 = vunpack.c.h.b16 %v1909
    %v2251 = vunpack.c.l.b16 %v1910
    %v2252 = vunpack.c.h.b16 %v1910
    %v2253 = vunpack.c.l.b16 %v1911
    %v2254 = vunpack.c.h.b16 %v1911
    %v2255 = vunpack.c.l.b16 %v1912
    %v2256 = vunpack.c.h.b16 %v1912
    %v2257 = vunpack.c.l.b16 %v1913
    %v2258 = vunpack.c.h.b16 %v1913
    %v2259 = vunpack.c.l.b16 %v1914
    %v2260 = vunpack.c.h.b16 %v1914
    %v2261 = vunpack.c.l.b16 %v1915
    %v2262 = vunpack.c.h.b16 %v1915
    %v2263 = vunpack.c.l.b16 %v1916
    %v2264 = vunpack.c.h.b16 %v1916
    %v2265 = vunpack.c.l.b16 %v1917
    %v2266 = vunpack.c.h.b16 %v1917
    %v2267 = vunpack.c.l.b16 %v1918
    %v2268 = vunpack.c.h.b16 %v1918
    %v2269 = vunpack.c.l.b16 %v1919
    %v2270 = vunpack.c.h.b16 %v1919
    %v2271 = vunpack.c.l.b16 %v1920
    %v2272 = vunpack.c.h.b16 %v1920
    %v2273 = vunpack.c.l.b16 %v1921
    %v2274 = vunpack.c.h.b16 %v1921
    %v2275 = vunpack.c.l.b16 %v1922
    %v2276 = vunpack.c.h.b16 %v1922
    %v2277 = vunpack.c.l.b16 %v1923
    %v2278 = vunpack.c.h.b16 %v1923
    %v2279 = vunpack.c.l.b16 %v1924
    %v2280 = vunpack.c.h.b16 %v1924
    %v2281 = vunpack.c.l.b16 %v1925
    %v2282 = vunpack.c.h.b16 %v1925
    %v2283 = vunpack.c.l.b16 %v1926
    %v2284 = vunpack.c.h.b16 %v1926
    %v2285 = vunpack.c.l.b16 %v1927
    %v2286 = vunpack.c.h.b16 %v1927
    %v2287 = vunpack.c.l.b16 %v1928
    %v2288 = vunpack.c.h.b16 %v1928
    %v2289 = vunpack.c.l.b16 %v1929
    %v2290 = vunpack.c.h.b16 %v1929
    %v2291 = vunpack.c.l.b16 %v1930
    %v2292 = vunpack.c.h.b16 %v1930
    %v2293 = vunpack.c.l.b16 %v1931
    %v2294 = vunpack.c.h.b16 %v1931
    %v2295 = vunpack.c.l.b16 %v1932
    %v2296 = vunpack.c.h.b16 %v1932
    %v2297 = vunpack.c.l.b16 %v1933
    %v2298 = vunpack.c.h.b16 %v1933
    %v2299 = vunpack.c.l.b16 %v1934
    %v2300 = vunpack.c.h.b16 %v1934
    %v2301 = vunpack.c.l.b16 %v1935
    %v2302 = vunpack.c.h.b16 %v1935
    %v2303 = vunpack.c.l.b16 %v1936
    %v2304 = vunpack.c.h.b16 %v1936
    %v2305 = vunpack.c.l.b16 %v1937
    %v2306 = vunpack.c.h.b16 %v1937
    %v2307 = vunpack.c.l.b16 %v1938
    %v2308 = vunpack.c.h.b16 %v1938
    %v2309 = vunpack.c.l.b16 %v1939
    %v2310 = vunpack.c.h.b16 %v1939
    %v2311 = vunpack.c.l.b16 %v1940
    %v2312 = vunpack.c.h.b16 %v1940
    %v2313 = vunpack.c.l.b16 %v1941
    %v2314 = vunpack.c.h.b16 %v1941
    %v2315 = vunpack.c.l.b16 %v1942
    %v2316 = vunpack.c.h.b16 %v1942
    %v2317 = vunpack.c.l.b16 %v1943
    %v2318 = vunpack.c.h.b16 %v1943
    %v2319 = vunpack.c.l.b16 %v1944
    %v2320 = vunpack.c.h.b16 %v1944
    %v2321 = vunpack.c.l.b16 %v1945
    %v2322 = vunpack.c.h.b16 %v1945
    %v2323 = vunpack.c.l.b16 %v1946
    %v2324 = vunpack.c.h.b16 %v1946
    %v2325 = vunpack.c.l.b16 %v1947
    %v2326 = vunpack.c.h.b16 %v1947
    %v2327 = vunpack.c.l.b16 %v1948
    %v2328 = vunpack.c.h.b16 %v1948
    %v2329 = vunpack.c.l.b16 %v1949
    %v2330 = vunpack.c.h.b16 %v1949
    %v2331 = vunpack.c.l.b16 %v1950
    %v2332 = vunpack.c.h.b16 %v1950
    %v2333 = vunpack.c.l.b16 %v1951
    %v2334 = vunpack.c.h.b16 %v1951
    %v2335 = vunpack.c.l.b16 %v1952
    %v2336 = vunpack.c.h.b16 %v1952
    %v2337 = vpack.c.b16 %v2083, %v2081
    %v2338 = vpack.c.b16 %v2084, %v2082
    %v2339 = vpack.c.b16 %v2087, %v2085
    %v2340 = vpack.c.b16 %v2088, %v2086
    %v2341 = vpack.c.b16 %v2091, %v2089
    %v2342 = vpack.c.b16 %v2092, %v2090
    %v2343 = vpack.c.b16 %v2095, %v2093
    %v2344 = vpack.c.b16 %v2096, %v2094
    %v2345 = vpack.c.b16 %v2099, %v2097
    %v2346 = vpack.c.b16 %v2100, %v2098
    %v2347 = vpack.c.b16 %v2103, %v2101
    %v2348 = vpack.c.b16 %v2104, %v2102
    %v2349 = vpack.c.b16 %v2107, %v2105
    %v2350 = vpack.c.b16 %v2108, %v2106
    %v2351 = vpack.c.b16 %v2111, %v2109
    %v2352 = vpack.c.b16 %v2112, %v2110
    %v2353 = vpack.c.b16 %v2115, %v2113
    %v2354 = vpack.c.b16 %v2116, %v2114
    %v2355 = vpack.c.b16 %v2119, %v2117
    %v2356 = vpack.c.b16 %v2120, %v2118
    %v2357 = vpack.c.b16 %v2123, %v2121
    %v2358 = vpack.c.b16 %v2124, %v2122
    %v2359 = vpack.c.b16 %v2127, %v2125
    %v2360 = vpack.c.b16 %v2128, %v2126
    %v2361 = vpack.c.b16 %v2131, %v2129
    %v2362 = vpack.c.b16 %v2132, %v2130
    %v2363 = vpack.c.b16 %v2135, %v2133
    %v2364 = vpack.c.b16 %v2136, %v2134
    %v2365 = vpack.c.b16 %v2139, %v2137
    %v2366 = vpack.c.b16 %v2140, %v2138
    %v2367 = vpack.c.b16 %v2143, %v2141
    %v2368 = vpack.c.b16 %v2144, %v2142
    %v2369 = vpack.c.b16 %v2147, %v2145
    %v2370 = vpack.c.b16 %v2148, %v2146
    %v2371 = vpack.c.b16 %v2151, %v2149
    %v2372 = vpack.c.b16 %v2152, %v2150
    %v2373 = vpack.c.b16 %v2155, %v2153
    %v2374 = vpack.c.b16 %v2156, %v2154
    %v2375 = vpack.c.b16 %v2159, %v2157
    %v2376 = vpack.c.b16 %v2160, %v2158
    %v2377 = vpack.c.b16 %v2163, %v2161
    %v2378 = vpack.c.b16 %v2164, %v2162
    %v2379 = vpack.c.b16 %v2167, %v2165
    %v2380 = vpack.c.b16 %v2168, %v2166
    %v2381 = vpack.c.b16 %v2171, %v2169
    %v2382 = vpack.c.b16 %v2172, %v2170
    %v2383 = vpack.c.b16 %v2175, %v2173
    %v2384 = vpack.c.b16 %v2176, %v2174
    %v2385 = vpack.c.b16 %v2179, %v2177
    %v2386 = vpack.c.b16 %v2180, %v2178
    %v2387 = vpack.c.b16 %v2183, %v2181
    %v2388 = vpack.c.b16 %v2184, %v2182
    %v2389 = vpack.c.b16 %v2187, %v2185
    %v2390 = vpack.c.b16 %v2188, %v2186
    %v2391 = vpack.c.b16 %v2191, %v2189
    %v2392 = vpack.c.b16 %v2192, %v2190
    %v2393 = vpack.c.b16 %v2195, %v2193
    %v2394 = vpack.c.b16 %v2196, %v2194
    %v2395 = vpack.c.b16 %v2199, %v2197
    %v2396 = vpack.c.b16 %v2200, %v2198
    %v2397 = vpack.c.b16 %v2203, %v2201
    %v2398 = vpack.c.b16 %v2204, %v2202
    %v2399 = vpack.c.b16 %v2207, %v2205
    %v2400 = vpack.c.b16 %v2208, %v2206
    %v2401 = vpack.c.b16 %v2211, %v2209
    %v2402 = vpack.c.b16 %v2212, %v2210
    %v2403 = vpack.c.b16 %v2215, %v2213
    %v2404 = vpack.c.b16 %v2216, %v2214
    %v2405 = vpack.c.b16 %v2219, %v2217
    %v2406 = vpack.c.b16 %v2220, %v2218
    %v2407 = vpack.c.b16 %v2223, %v2221
    %v2408 = vpack.c.b16 %v2224, %v2222
    %v2409 = vpack.c.b16 %v2227, %v2225
    %v2410 = vpack.c.b16 %v2228, %v2226
    %v2411 = vpack.c.b16 %v2231, %v2229
    %v2412 = vpack.c.b16 %v2232, %v2230
    %v2413 = vpack.c.b16 %v2235, %v2233
    %v2414 = vpack.c.b16 %v2236, %v2234
    %v2415 = vpack.c.b16 %v2239, %v2237
    %v2416 = vpack.c.b16 %v2240, %v2238
    %v2417 = vpack.c.b16 %v2243, %v2241
    %v2418 = vpack.c.b16 %v2244, %v2242
    %v2419 = vpack.c.b16 %v2247, %v2245
    %v2420 = vpack.c.b16 %v2248, %v2246
    %v2421 = vpack.c.b16 %v2251, %v2249
    %v2422 = vpack.c.b16 %v2252, %v2250
    %v2423 = vpack.c.b16 %v2255, %v2253
    %v2424 = vpack.c.b16 %v2256, %v2254
    %v2425 = vpack.c.b16 %v2259, %v2257
    %v2426 = vpack.c.b16 %v2260, %v2258
    %v2427 = vpack.c.b16 %v2263, %v2261
    %v2428 = vpack.c.b16 %v2264, %v2262
    %v2429 = vpack.c.b16 %v2267, %v2265
    %v2430 = vpack.c.b16 %v2268, %v2266
    %v2431 = vpack.c.b16 %v2271, %v2269
    %v2432 = vpack.c.b16 %v2272, %v2270
    %v2433 = vpack.c.b16 %v2275, %v2273
    %v2434 = vpack.c.b16 %v2276, %v2274
    %v2435 = vpack.c.b16 %v2279, %v2277
    %v2436 = vpack.c.b16 %v2280, %v2278
    %v2437 = vpack.c.b16 %v2283, %v2281
    %v2438 = vpack.c.b16 %v2284, %v2282
    %v2439 = vpack.c.b16 %v2287, %v2285
    %v2440 = vpack.c.b16 %v2288, %v2286
    %v2441 = vpack.c.b16 %v2291, %v2289
    %v2442 = vpack.c.b16 %v2292, %v2290
    %v2443 = vpack.c.b16 %v2295, %v2293
    %v2444 = vpack.c.b16 %v2296, %v2294
    %v2445 = vpack.c.b16 %v2299, %v2297
    %v2446 = vpack.c.b16 %v2300, %v2298
    %v2447 = vpack.c.b16 %v2303, %v2301
    %v2448 = vpack.c.b16 %v2304, %v2302
    %v2449 = vpack.c.b16 %v2307, %v2305
    %v2450 = vpack.c.b16 %v2308, %v2306
    %v2451 = vpack.c.b16 %v2311, %v2309
    %v2452 = vpack.c.b16 %v2312, %v2310
    %v2453 = vpack.c.b16 %v2315, %v2313
    %v2454 = vpack.c.b16 %v2316, %v2314
    %v2455 = vpack.c.b16 %v2319, %v2317
    %v2456 = vpack.c.b16 %v2320, %v2318
    %v2457 = vpack.c.b16 %v2323, %v2321
    %v2458 = vpack.c.b16 %v2324, %v2322
    %v2459 = vpack.c.b16 %v2327, %v2325
    %v2460 = vpack.c.b16 %v2328, %v2326
    %v2461 = vpack.c.b16 %v2331, %v2329
    %v2462 = vpack.c.b16 %v2332, %v2330
    %v2463 = vpack.c.b16 %v2335, %v2333
    %v2464 = vpack.c.b16 %v2336, %v2334
    %2593 = vmatprep.subr.bf16.mxu0 %v2338
    %2594 = vmatpush1.bf16.msra.mxu0 %v2337
    %2595 = vmatprep.subr.bf16.mxu0 %v2340
    %2596 = vmatpush1.bf16.msra.mxu0 %v2339
    %2597 = vmatprep.subr.bf16.mxu0 %v2342
    %2598 = vmatpush1.bf16.msra.mxu0 %v2341
    %2599 = vmatprep.subr.bf16.mxu0 %v2344
    %2600 = vmatpush1.bf16.msra.mxu0 %v2343
    %2601 = vmatprep.subr.bf16.mxu0 %v2346
    %2602 = vmatpush1.bf16.msra.mxu0 %v2345
    %2603 = vmatprep.subr.bf16.mxu0 %v2348
    %2604 = vmatpush1.bf16.msra.mxu0 %v2347
    %2605 = vmatprep.subr.bf16.mxu0 %v2350
    %2606 = vmatpush1.bf16.msra.mxu0 %v2349
    %2607 = vmatprep.subr.bf16.mxu0 %v2352
    %2608 = vmatpush1.bf16.msra.mxu0 %v2351
    %2609 = vmatprep.subr.bf16.mxu0 %v2354
    %2610 = vmatpush1.bf16.msra.mxu0 %v2353
    %2611 = vmatprep.subr.bf16.mxu0 %v2356
    %2612 = vmatpush1.bf16.msra.mxu0 %v2355
    %2613 = vmatprep.subr.bf16.mxu0 %v2358
    %2614 = vmatpush1.bf16.msra.mxu0 %v2357
    %2615 = vmatprep.subr.bf16.mxu0 %v2360
    %2616 = vmatpush1.bf16.msra.mxu0 %v2359
    %2617 = vmatprep.subr.bf16.mxu0 %v2362
    %2618 = vmatpush1.bf16.msra.mxu0 %v2361
    %2619 = vmatprep.subr.bf16.mxu0 %v2364
    %2620 = vmatpush1.bf16.msra.mxu0 %v2363
    %2621 = vmatprep.subr.bf16.mxu0 %v2366
    %2622 = vmatpush1.bf16.msra.mxu0 %v2365
    %2623 = vmatprep.subr.bf16.mxu0 %v2368
    %2624 = vmatpush1.bf16.msra.mxu0 %v2367
    %2625 = vmatprep.mubr.bf16.mxu0 %v1818
    %2626 = vmatmul.mubr.bf16.gmra.mrb[0].mxu0 %v1817
    %v2627 = vpop.f32.mrb[0].mxu0
    %v2628 = vadd.f32 0.0, %v2627
    %v2629 = vpop.f32.mrb[0].mxu0
    %v2630 = vadd.f32 0.0, %v2629
    %v2631 = vpop.f32.mrb[0].mxu0
    %v2632 = vadd.f32 0.0, %v2631
    %v2633 = vpop.f32.mrb[0].mxu0
    %v2634 = vadd.f32 0.0, %v2633
    %2635 = vdwg.mxu0
    %2636 = vmatprep.subr.bf16.mxu0 %v2370
    %2637 = vmatpush1.bf16.msra.mxu0 %v2369
    %2638 = vmatprep.subr.bf16.mxu0 %v2372
    %2639 = vmatpush1.bf16.msra.mxu0 %v2371
    %2640 = vmatprep.subr.bf16.mxu0 %v2374
    %2641 = vmatpush1.bf16.msra.mxu0 %v2373
    %2642 = vmatprep.subr.bf16.mxu0 %v2376
    %2643 = vmatpush1.bf16.msra.mxu0 %v2375
    %2644 = vmatprep.subr.bf16.mxu0 %v2378
    %2645 = vmatpush1.bf16.msra.mxu0 %v2377
    %2646 = vmatprep.subr.bf16.mxu0 %v2380
    %2647 = vmatpush1.bf16.msra.mxu0 %v2379
    %2648 = vmatprep.subr.bf16.mxu0 %v2382
    %2649 = vmatpush1.bf16.msra.mxu0 %v2381
    %2650 = vmatprep.subr.bf16.mxu0 %v2384
    %2651 = vmatpush1.bf16.msra.mxu0 %v2383
    %2652 = vmatprep.subr.bf16.mxu0 %v2386
    %2653 = vmatpush1.bf16.msra.mxu0 %v2385
    %2654 = vmatprep.subr.bf16.mxu0 %v2388
    %2655 = vmatpush1.bf16.msra.mxu0 %v2387
    %2656 = vmatprep.subr.bf16.mxu0 %v2390
    %2657 = vmatpush1.bf16.msra.mxu0 %v2389
    %2658 = vmatprep.subr.bf16.mxu0 %v2392
    %2659 = vmatpush1.bf16.msra.mxu0 %v2391
    %2660 = vmatprep.subr.bf16.mxu0 %v2394
    %2661 = vmatpush1.bf16.msra.mxu0 %v2393
    %2662 = vmatprep.subr.bf16.mxu0 %v2396
    %2663 = vmatpush1.bf16.msra.mxu0 %v2395
    %2664 = vmatprep.subr.bf16.mxu0 %v2398
    %2665 = vmatpush1.bf16.msra.mxu0 %v2397
    %2666 = vmatprep.subr.bf16.mxu0 %v2400
    %2667 = vmatpush1.bf16.msra.mxu0 %v2399
    %2668 = vmatprep.mubr.bf16.mxu0 %v1820
    %2669 = vmatmul.mubr.bf16.gmra.mrb[0].mxu0 %v1819
    %v2670 = vpop.f32.mrb[0].mxu0
    %v2671 = vadd.f32 %v2628, %v2670
    %v2672 = vpop.f32.mrb[0].mxu0
    %v2673 = vadd.f32 %v2630, %v2672
    %v2674 = vpop.f32.mrb[0].mxu0
    %v2675 = vadd.f32 %v2632, %v2674
    %v2676 = vpop.f32.mrb[0].mxu0
    %v2677 = vadd.f32 %v2634, %v2676
    %2678 = vdwg.mxu0
    %2679 = vmatprep.subr.bf16.mxu0 %v2402
    %2680 = vmatpush1.bf16.msra.mxu0 %v2401
    %2681 = vmatprep.subr.bf16.mxu0 %v2404
    %2682 = vmatpush1.bf16.msra.mxu0 %v2403
    %2683 = vmatprep.subr.bf16.mxu0 %v2406
    %2684 = vmatpush1.bf16.msra.mxu0 %v2405
    %2685 = vmatprep.subr.bf16.mxu0 %v2408
    %2686 = vmatpush1.bf16.msra.mxu0 %v2407
    %2687 = vmatprep.subr.bf16.mxu0 %v2410
    %2688 = vmatpush1.bf16.msra.mxu0 %v2409
    %2689 = vmatprep.subr.bf16.mxu0 %v2412
    %2690 = vmatpush1.bf16.msra.mxu0 %v2411
    %2691 = vmatprep.subr.bf16.mxu0 %v2414
    %2692 = vmatpush1.bf16.msra.mxu0 %v2413
    %2693 = vmatprep.subr.bf16.mxu0 %v2416
    %2694 = vmatpush1.bf16.msra.mxu0 %v2415
    %2695 = vmatprep.subr.bf16.mxu0 %v2418
    %2696 = vmatpush1.bf16.msra.mxu0 %v2417
    %2697 = vmatprep.subr.bf16.mxu0 %v2420
    %2698 = vmatpush1.bf16.msra.mxu0 %v2419
    %2699 = vmatprep.subr.bf16.mxu0 %v2422
    %2700 = vmatpush1.bf16.msra.mxu0 %v2421
    %2701 = vmatprep.subr.bf16.mxu0 %v2424
    %2702 = vmatpush1.bf16.msra.mxu0 %v2423
    %2703 = vmatprep.subr.bf16.mxu0 %v2426
    %2704 = vmatpush1.bf16.msra.mxu0 %v2425
    %2705 = vmatprep.subr.bf16.mxu0 %v2428
    %2706 = vmatpush1.bf16.msra.mxu0 %v2427
    %2707 = vmatprep.subr.bf16.mxu0 %v2430
    %2708 = vmatpush1.bf16.msra.mxu0 %v2429
    %2709 = vmatprep.subr.bf16.mxu0 %v2432
    %2710 = vmatpush1.bf16.msra.mxu0 %v2431
    %2711 = vmatprep.mubr.bf16.mxu0 %v1822
    %2712 = vmatmul.mubr.bf16.gmra.mrb[0].mxu0 %v1821
    %v2713 = vpop.f32.mrb[0].mxu0
    %v2714 = vadd.f32 %v2671, %v2713
    %v2715 = vpop.f32.mrb[0].mxu0
    %v2716 = vadd.f32 %v2673, %v2715
    %v2717 = vpop.f32.mrb[0].mxu0
    %v2718 = vadd.f32 %v2675, %v2717
    %v2719 = vpop.f32.mrb[0].mxu0
    %v2720 = vadd.f32 %v2677, %v2719
    %2721 = vdwg.mxu0
    %2722 = vmatprep.subr.bf16.mxu0 %v2434
    %2723 = vmatpush1.bf16.msra.mxu0 %v2433
    %2724 = vmatprep.subr.bf16.mxu0 %v2436
    %2725 = vmatpush1.bf16.msra.mxu0 %v2435
    %2726 = vmatprep.subr.bf16.mxu0 %v2438
    %2727 = vmatpush1.bf16.msra.mxu0 %v2437
    %2728 = vmatprep.subr.bf16.mxu0 %v2440
    %2729 = vmatpush1.bf16.msra.mxu0 %v2439
    %2730 = vmatprep.subr.bf16.mxu0 %v2442
    %2731 = vmatpush1.bf16.msra.mxu0 %v2441
    %2732 = vmatprep.subr.bf16.mxu0 %v2444
    %2733 = vmatpush1.bf16.msra.mxu0 %v2443
    %2734 = vmatprep.subr.bf16.mxu0 %v2446
    %2735 = vmatpush1.bf16.msra.mxu0 %v2445
    %2736 = vmatprep.subr.bf16.mxu0 %v2448
    %2737 = vmatpush1.bf16.msra.mxu0 %v2447
    %2738 = vmatprep.subr.bf16.mxu0 %v2450
    %2739 = vmatpush1.bf16.msra.mxu0 %v2449
    %2740 = vmatprep.subr.bf16.mxu0 %v2452
    %2741 = vmatpush1.bf16.msra.mxu0 %v2451
    %2742 = vmatprep.subr.bf16.mxu0 %v2454
    %2743 = vmatpush1.bf16.msra.mxu0 %v2453
    %2744 = vmatprep.subr.bf16.mxu0 %v2456
    %2745 = vmatpush1.bf16.msra.mxu0 %v2455
    %2746 = vmatprep.subr.bf16.mxu0 %v2458
    %2747 = vmatpush1.bf16.msra.mxu0 %v2457
    %2748 = vmatprep.subr.bf16.mxu0 %v2460
    %2749 = vmatpush1.bf16.msra.mxu0 %v2459
    %2750 = vmatprep.subr.bf16.mxu0 %v2462
    %2751 = vmatpush1.bf16.msra.mxu0 %v2461
    %2752 = vmatprep.subr.bf16.mxu0 %v2464
    %2753 = vmatpush1.bf16.msra.mxu0 %v2463
    %2754 = vmatprep.mubr.bf16.mxu0 %v1824
    %2755 = vmatmul.mubr.bf16.gmra.mrb[0].mxu0 %v1823
    %v2756 = vpop.f32.mrb[0].mxu0
    %v2757 = vadd.f32 %v2714, %v2756
    %v2758 = vpop.f32.mrb[0].mxu0
    %v2759 = vadd.f32 %v2716, %v2758
    %v2760 = vpop.f32.mrb[0].mxu0
    %v2761 = vadd.f32 %v2718, %v2760
    %v2762 = vpop.f32.mrb[0].mxu0
    %v2763 = vadd.f32 %v2720, %v2762
    %2764 = vdwg.mxu0
    %v2765 = vadd.f32 %v1813, %v2757
    %v2766 = vadd.f32 %v1814, %v2759
    %v2767 = vadd.f32 %v1815, %v2761
    %v2768 = vadd.f32 %v1816, %v2763
    %2769 = vst [vmem:[#allocation4] sm:$0xff] %v2765
    %2770 = vst [vmem:[#allocation4 + $0x8] sm:$0xff] %v2766
    %2771 = vst [vmem:[#allocation4 + $0x10] sm:$0xff] %v2767
    %2772 = vst [vmem:[#allocation4 + $0x18] sm:$0xff] %v2768
    // Predicated region
    $region50: #{gpt_forward.9} parent=1 // pred_check
      %p2773 = pneg %p49
    $region51: #{gpt_forward.9} parent=1 // pred_check_branch
      %2775 = sbr.rel (%p2773) target = $region53
    $region52: #{gpt_forward.9} parent=1 // pred_region
      %v2776 = vld [vmem:[#allocation2] sm:$0xff]
      %v2777 = vld [vmem:[#allocation2 + $0x8] sm:$0xff]
      %v2778 = vld [vmem:[#allocation2 + $0x10] sm:$0xff]
      %v2779 = vld [vmem:[#allocation2 + $0x18] sm:$0xff]
      %v2780 = vld [vmem:[#allocation4] sm:$0xff]
      %v2781 = vld [vmem:[#allocation4 + $0x8] sm:$0xff]
      %v2782 = vld [vmem:[#allocation4 + $0x10] sm:$0xff]
      %v2783 = vld [vmem:[#allocation4 + $0x18] sm:$0xff]
      %v2784 = vadd.f32 %v2776, %v2780
      %v2785 = vadd.f32 %v2777, %v2781
      %v2786 = vadd.f32 %v2778, %v2782
      %v2787 = vadd.f32 %v2779, %v2783
      %v2788 = vld [vmem:[%s9] sm:$0x3]
      %v2790 = vlaneseq
      %v2791 = vshrl.u32 %v2790, 7
      %v2792 = vsub.s32 0, %v2791
      %v2793 = vrot.slane %v2788, %v2792
      %v2794 = vlaneseq
      %v2795 = vshrl.u32 %v2794, 7
      %v2796 = vsub.s32 1, %v2795
      %v2797 = vrot.slane %v2788, %v2796
      %v2800 = vadd.f32 %v2784, %v2793
      %v2801 = vadd.f32 %v2785, %v2797
      %v2802 = vadd.f32 %v2786, %v2793
      %v2803 = vadd.f32 %v2787, %v2797
      %2804 = vst [vmem:[%s10] sm:$0xff] %v2800
      %2805 = vst [vmem:[%s10 + $0x8] sm:$0xff] %v2801
      %2806 = vst [vmem:[%s10 + $0x10] sm:$0xff] %v2802
      %2807 = vst [vmem:[%s10 + $0x18] sm:$0xff] %v2803
    $region53: #{gpt_forward.9} parent=1 // pred_fallthru
      _
    // Predicated region
    $region54: #{gpt_forward.9} parent=1 // pred_check
      _
    $region55: #{gpt_forward.9} parent=1 // pred_check_branch
      %2809 = sbr.rel (0) target = $region57
    $region56: #{gpt_forward.9} parent=1 // pred_region
      _
    $region57: #{gpt_forward.9} parent=1 // pred_fallthru
      _
    // Predicated region
    $region58: #{gpt_forward.9} parent=1 // pred_check
      _
    $region59: #{gpt_forward.9} parent=1 // pred_check_branch
      %2811 = sbr.rel (0) target = $region61
    $region60: #{gpt_forward.9} parent=1 // pred_region
      _
    $region61: #{gpt_forward.9} parent=1 // pred_fallthru
      _
    %2812 = vsyncpa [#allocation6], 1

// kernel: gpt_forward.12
$region0: #{gpt_forward.12}
  #allocation0 [shape = 'u32[]', space=smem, size = 0x4, offset = 0x4, fixed_abs, tag = 'smem constant byte address 0x4 - core index']
  #allocation1 [shape = 'u32[144,128]{1,0:T(1,128)}', space=vmem, size = 0x12000, scoped, tag = 'internal scratch']
  #allocation2 [shape = 'f32[16,256]{1,0:T(8,128)}', space=vmem, size = 0x4000, scoped, tag = 'scratch operand']
  #allocation3 [shape = 'bf16[16,256]{1,0:T(16,128)(2,1)}', space=vmem, size = 0x2000, scoped, tag = 'scratch operand']
  #allocation4 [shape = 'f32[16,256]{1,0:T(8,128)}', space=vmem, size = 0x4000, scoped, tag = 'scratch operand']
  %s0 = inlined_call_operand.vmem [shape: bf16[16,256], index: 0, kind: input, shape index: {}]
  %s1 = inlined_call_operand.vmem [shape: f32[16,256], index: 1, kind: input, shape index: {}]
  %s2 = inlined_call_operand.vmem [shape: bf16[256,256], index: 2, kind: input, shape index: {}]
  %s3 = inlined_call_operand.vmem [shape: f32[1,256], index: 3, kind: input, shape index: {}]
  %s4 = inlined_call_operand.vmem [shape: f32[1,256], index: 4, kind: input, shape index: {}]
  %s5 = inlined_call_operand.vmem [shape: f32[1,256], index: 5, kind: input, shape index: {}]
  %s6 = inlined_call_operand.vmem [shape: bf16[256,1024], index: 6, kind: input, shape index: {}]
  %s7 = inlined_call_operand.vmem [shape: f32[1,1024], index: 7, kind: input, shape index: {}]
  %s8 = inlined_call_operand.vmem [shape: bf16[1024,256], index: 8, kind: input, shape index: {}]
  %s9 = inlined_call_operand.vmem [shape: f32[1,256], index: 9, kind: input, shape index: {}]
  %s10 = inlined_call_operand.vmem [shape: f32[16,256], index: 10, kind: output, shape index: {}]
  %s11 = sld [smem:[#allocation0]]
  $region58: #{gpt_forward.12} parent=0
    _
  %s13 = ssub.s32 1, %s11
  %s14 = scalar_select 0, %s13, %s11
  // Predicated region
  $region2: #{gpt_forward.12} parent=0 // pred_check
    _
  $region3: #{gpt_forward.12} parent=0 // pred_check_branch
    %16 = sbr.rel (0) target = $region5
  $region4: #{gpt_forward.12} parent=0 // pred_region
    _
  $region5: #{gpt_forward.12} parent=0 // pred_fallthru
    _
  // Predicated region
  $region6: #{gpt_forward.12} parent=0 // pred_check
    _
  $region7: #{gpt_forward.12} parent=0 // pred_check_branch
    %18 = sbr.rel (0) target = $region9
  $region8: #{gpt_forward.12} parent=0 // pred_region
    _
  $region9: #{gpt_forward.12} parent=0 // pred_fallthru
    _
  // Predicated region
  $region10: #{gpt_forward.12} parent=0 // pred_check
    _
  $region11: #{gpt_forward.12} parent=0 // pred_check_branch
    %20 = sbr.rel (0) target = $region13
  $region12: #{gpt_forward.12} parent=0 // pred_region
    _
  $region13: #{gpt_forward.12} parent=0 // pred_fallthru
    _
  // Predicated region
  $region14: #{gpt_forward.12} parent=0 // pred_check
    _
  $region15: #{gpt_forward.12} parent=0 // pred_check_branch
    %22 = sbr.rel (0) target = $region17
  $region16: #{gpt_forward.12} parent=0 // pred_region
    _
  $region17: #{gpt_forward.12} parent=0 // pred_fallthru
    _
  // Predicated region
  $region18: #{gpt_forward.12} parent=0 // pred_check
    _
  $region19: #{gpt_forward.12} parent=0 // pred_check_branch
    %24 = sbr.rel (0) target = $region21
  $region20: #{gpt_forward.12} parent=0 // pred_region
    _
  $region21: #{gpt_forward.12} parent=0 // pred_fallthru
    _
  // Predicated region
  $region22: #{gpt_forward.12} parent=0 // pred_check
    _
  $region23: #{gpt_forward.12} parent=0 // pred_check_branch
    %26 = sbr.rel (0) target = $region25
  $region24: #{gpt_forward.12} parent=0 // pred_region
    _
  $region25: #{gpt_forward.12} parent=0 // pred_fallthru
    _
  // Predicated region
  $region26: #{gpt_forward.12} parent=0 // pred_check
    _
  $region27: #{gpt_forward.12} parent=0 // pred_check_branch
    %28 = sbr.rel (0) target = $region29
  $region28: #{gpt_forward.12} parent=0 // pred_region
    _
  $region29: #{gpt_forward.12} parent=0 // pred_fallthru
    _
  // Predicated region
  $region30: #{gpt_forward.12} parent=0 // pred_check
    _
  $region31: #{gpt_forward.12} parent=0 // pred_check_branch
    %30 = sbr.rel (0) target = $region33
  $region32: #{gpt_forward.12} parent=0 // pred_region
    _
  $region33: #{gpt_forward.12} parent=0 // pred_fallthru
    _
  // Predicated region
  $region34: #{gpt_forward.12} parent=0 // pred_check
    _
  $region35: #{gpt_forward.12} parent=0 // pred_check_branch
    %32 = sbr.rel (0) target = $region37
  $region36: #{gpt_forward.12} parent=0 // pred_region
    _
  $region37: #{gpt_forward.12} parent=0 // pred_fallthru
    _
  // Predicated region
  $region38: #{gpt_forward.12} parent=0 // pred_check
    _
  $region39: #{gpt_forward.12} parent=0 // pred_check_branch
    %34 = sbr.rel (0) target = $region41
  $region40: #{gpt_forward.12} parent=0 // pred_region
    _
  $region41: #{gpt_forward.12} parent=0 // pred_fallthru
    _
  %p35 = scmp.eq.s32.totalorder 0, 0
  // Predicated region
  $region42: #{gpt_forward.12} parent=0 // pred_check
    %p36 = pneg %p35
  $region43: #{gpt_forward.12} parent=0 // pred_check_branch
    %38 = sbr.rel (%p36) target = $region45
  $region44: #{gpt_forward.12} parent=0 // pred_region
    %v39 = vld [vmem:[%s0] sm:$0xff]
    %v40 = vld [vmem:[%s0 + $0x8] sm:$0xff]
    %v41 = vld [vmem:[%s2] sm:$0xff]
    %v42 = vld [vmem:[%s2 + $0x8] sm:$0xff]
    %v43 = vld [vmem:[%s2 + $0x10] sm:$0xff]
    %v44 = vld [vmem:[%s2 + $0x18] sm:$0xff]
    %v45 = vld [vmem:[%s2 + $0x20] sm:$0xff]
    %v46 = vld [vmem:[%s2 + $0x28] sm:$0xff]
    %v47 = vld [vmem:[%s2 + $0x30] sm:$0xff]
    %v48 = vld [vmem:[%s2 + $0x38] sm:$0xff]
    %v49 = vld [vmem:[%s2 + $0x40] sm:$0xff]
    %v50 = vld [vmem:[%s2 + $0x48] sm:$0xff]
    %v51 = vld [vmem:[%s2 + $0x50] sm:$0xff]
    %v52 = vld [vmem:[%s2 + $0x58] sm:$0xff]
    %v53 = vld [vmem:[%s2 + $0x60] sm:$0xff]
    %v54 = vld [vmem:[%s2 + $0x68] sm:$0xff]
    %v55 = vld [vmem:[%s2 + $0x70] sm:$0xff]
    %v56 = vld [vmem:[%s2 + $0x78] sm:$0xff]
    %v57 = vld [vmem:[%s2 + $0x80] sm:$0xff]
    %v58 = vld [vmem:[%s2 + $0x88] sm:$0xff]
    %v59 = vld [vmem:[%s2 + $0x90] sm:$0xff]
    %v60 = vld [vmem:[%s2 + $0x98] sm:$0xff]
    %v61 = vld [vmem:[%s2 + $0xa0] sm:$0xff]
    %v62 = vld [vmem:[%s2 + $0xa8] sm:$0xff]
    %v63 = vld [vmem:[%s2 + $0xb0] sm:$0xff]
    %v64 = vld [vmem:[%s2 + $0xb8] sm:$0xff]
    %v65 = vld [vmem:[%s2 + $0xc0] sm:$0xff]
    %v66 = vld [vmem:[%s2 + $0xc8] sm:$0xff]
    %v67 = vld [vmem:[%s2 + $0xd0] sm:$0xff]
    %v68 = vld [vmem:[%s2 + $0xd8] sm:$0xff]
    %v69 = vld [vmem:[%s2 + $0xe0] sm:$0xff]
    %v70 = vld [vmem:[%s2 + $0xe8] sm:$0xff]
    %v71 = vld [vmem:[%s2 + $0xf0] sm:$0xff]
    %v72 = vld [vmem:[%s2 + $0xf8] sm:$0xff]
    %v73 = vld [vmem:[%s3] sm:$0x3]
    %v75 = vlaneseq
    %v76 = vshrl.u32 %v75, 7
    %v77 = vsub.s32 0, %v76
    %v78 = vrot.slane %v73, %v77
    %v79 = vlaneseq
    %v80 = vshrl.u32 %v79, 7
    %v81 = vsub.s32 1, %v80
    %v82 = vrot.slane %v73, %v81
    %v87 = vunpack.c.l.b16 %v39
    %v88 = vunpack.c.h.b16 %v39
    %v89 = vunpack.c.l.b16 %v40
    %v90 = vunpack.c.h.b16 %v40
    %v91 = vpack.c.b16 %v89, %v87
    %v92 = vpack.c.b16 %v90, %v88
    %v127 = vunpack.c.l.b16 %v41
    %v128 = vunpack.c.h.b16 %v41
    %v129 = vunpack.c.l.b16 %v42
    %v130 = vunpack.c.h.b16 %v42
    %v131 = vunpack.c.l.b16 %v43
    %v132 = vunpack.c.h.b16 %v43
    %v133 = vunpack.c.l.b16 %v44
    %v134 = vunpack.c.h.b16 %v44
    %v135 = vunpack.c.l.b16 %v45
    %v136 = vunpack.c.h.b16 %v45
    %v137 = vunpack.c.l.b16 %v46
    %v138 = vunpack.c.h.b16 %v46
    %v139 = vunpack.c.l.b16 %v47
    %v140 = vunpack.c.h.b16 %v47
    %v141 = vunpack.c.l.b16 %v48
    %v142 = vunpack.c.h.b16 %v48
    %v143 = vunpack.c.l.b16 %v49
    %v144 = vunpack.c.h.b16 %v49
    %v145 = vunpack.c.l.b16 %v50
    %v146 = vunpack.c.h.b16 %v50
    %v147 = vunpack.c.l.b16 %v51
    %v148 = vunpack.c.h.b16 %v51
    %v149 = vunpack.c.l.b16 %v52
    %v150 = vunpack.c.h.b16 %v52
    %v151 = vunpack.c.l.b16 %v53
    %v152 = vunpack.c.h.b16 %v53
    %v153 = vunpack.c.l.b16 %v54
    %v154 = vunpack.c.h.b16 %v54
    %v155 = vunpack.c.l.b16 %v55
    %v156 = vunpack.c.h.b16 %v55
    %v157 = vunpack.c.l.b16 %v56
    %v158 = vunpack.c.h.b16 %v56
    %v159 = vunpack.c.l.b16 %v57
    %v160 = vunpack.c.h.b16 %v57
    %v161 = vunpack.c.l.b16 %v58
    %v162 = vunpack.c.h.b16 %v58
    %v163 = vunpack.c.l.b16 %v59
    %v164 = vunpack.c.h.b16 %v59
    %v165 = vunpack.c.l.b16 %v60
    %v166 = vunpack.c.h.b16 %v60
    %v167 = vunpack.c.l.b16 %v61
    %v168 = vunpack.c.h.b16 %v61
    %v169 = vunpack.c.l.b16 %v62
    %v170 = vunpack.c.h.b16 %v62
    %v171 = vunpack.c.l.b16 %v63
    %v172 = vunpack.c.h.b16 %v63
    %v173 = vunpack.c.l.b16 %v64
    %v174 = vunpack.c.h.b16 %v64
    %v175 = vunpack.c.l.b16 %v65
    %v176 = vunpack.c.h.b16 %v65
    %v177 = vunpack.c.l.b16 %v66
    %v178 = vunpack.c.h.b16 %v66
    %v179 = vunpack.c.l.b16 %v67
    %v180 = vunpack.c.h.b16 %v67
    %v181 = vunpack.c.l.b16 %v68
    %v182 = vunpack.c.h.b16 %v68
    %v183 = vunpack.c.l.b16 %v69
    %v184 = vunpack.c.h.b16 %v69
    %v185 = vunpack.c.l.b16 %v70
    %v186 = vunpack.c.h.b16 %v70
    %v187 = vunpack.c.l.b16 %v71
    %v188 = vunpack.c.h.b16 %v71
    %v189 = vunpack.c.l.b16 %v72
    %v190 = vunpack.c.h.b16 %v72
    %v191 = vpack.c.b16 %v129, %v127
    %v192 = vpack.c.b16 %v130, %v128
    %v193 = vpack.c.b16 %v133, %v131
    %v194 = vpack.c.b16 %v134, %v132
    %v195 = vpack.c.b16 %v137, %v135
    %v196 = vpack.c.b16 %v138, %v136
    %v197 = vpack.c.b16 %v141, %v139
    %v198 = vpack.c.b16 %v142, %v140
    %v199 = vpack.c.b16 %v145, %v143
    %v200 = vpack.c.b16 %v146, %v144
    %v201 = vpack.c.b16 %v149, %v147
    %v202 = vpack.c.b16 %v150, %v148
    %v203 = vpack.c.b16 %v153, %v151
    %v204 = vpack.c.b16 %v154, %v152
    %v205 = vpack.c.b16 %v157, %v155
    %v206 = vpack.c.b16 %v158, %v156
    %v207 = vpack.c.b16 %v161, %v159
    %v208 = vpack.c.b16 %v162, %v160
    %v209 = vpack.c.b16 %v165, %v163
    %v210 = vpack.c.b16 %v166, %v164
    %v211 = vpack.c.b16 %v169, %v167
    %v212 = vpack.c.b16 %v170, %v168
    %v213 = vpack.c.b16 %v173, %v171
    %v214 = vpack.c.b16 %v174, %v172
    %v215 = vpack.c.b16 %v177, %v175
    %v216 = vpack.c.b16 %v178, %v176
    %v217 = vpack.c.b16 %v181, %v179
    %v218 = vpack.c.b16 %v182, %v180
    %v219 = vpack.c.b16 %v185, %v183
    %v220 = vpack.c.b16 %v186, %v184
    %v221 = vpack.c.b16 %v189, %v187
    %v222 = vpack.c.b16 %v190, %v188
    %255 = vmatprep.subr.bf16.mxu0 %v192
    %256 = vmatpush1.bf16.msra.mxu0 %v191
    %257 = vmatprep.subr.bf16.mxu0 %v194
    %258 = vmatpush1.bf16.msra.mxu0 %v193
    %259 = vmatprep.subr.bf16.mxu0 %v196
    %260 = vmatpush1.bf16.msra.mxu0 %v195
    %261 = vmatprep.subr.bf16.mxu0 %v198
    %262 = vmatpush1.bf16.msra.mxu0 %v197
    %263 = vmatprep.subr.bf16.mxu0 %v200
    %264 = vmatpush1.bf16.msra.mxu0 %v199
    %265 = vmatprep.subr.bf16.mxu0 %v202
    %266 = vmatpush1.bf16.msra.mxu0 %v201
    %267 = vmatprep.subr.bf16.mxu0 %v204
    %268 = vmatpush1.bf16.msra.mxu0 %v203
    %269 = vmatprep.subr.bf16.mxu0 %v206
    %270 = vmatpush1.bf16.msra.mxu0 %v205
    %271 = vmatprep.subr.bf16.mxu0 %v208
    %272 = vmatpush1.bf16.msra.mxu0 %v207
    %273 = vmatprep.subr.bf16.mxu0 %v210
    %274 = vmatpush1.bf16.msra.mxu0 %v209
    %275 = vmatprep.subr.bf16.mxu0 %v212
    %276 = vmatpush1.bf16.msra.mxu0 %v211
    %277 = vmatprep.subr.bf16.mxu0 %v214
    %278 = vmatpush1.bf16.msra.mxu0 %v213
    %279 = vmatprep.subr.bf16.mxu0 %v216
    %280 = vmatpush1.bf16.msra.mxu0 %v215
    %281 = vmatprep.subr.bf16.mxu0 %v218
    %282 = vmatpush1.bf16.msra.mxu0 %v217
    %283 = vmatprep.subr.bf16.mxu0 %v220
    %284 = vmatpush1.bf16.msra.mxu0 %v219
    %285 = vmatprep.subr.bf16.mxu0 %v222
    %286 = vmatpush1.bf16.msra.mxu0 %v221
    %287 = vmatprep.mubr.bf16.mxu0 %v92
    %288 = vmatmul.mubr.bf16.gmra.mrb[0].mxu0 %v91
    %v289 = vpop.f32.mrb[0].mxu0
    %v290 = vadd.f32 %v78, %v289
    %v291 = vpop.f32.mrb[0].mxu0
    %v292 = vadd.f32 %v82, %v291
    %v293 = vpop.f32.mrb[0].mxu0
    %v294 = vadd.f32 %v78, %v293
    %v295 = vpop.f32.mrb[0].mxu0
    %v296 = vadd.f32 %v82, %v295
    %297 = vdwg.mxu0
    %v298 = vld [vmem:[%s1] sm:$0xff]
    %v299 = vld [vmem:[%s1 + $0x8] sm:$0xff]
    %v300 = vld [vmem:[%s1 + $0x10] sm:$0xff]
    %v301 = vld [vmem:[%s1 + $0x18] sm:$0xff]
    %v302 = vadd.f32 %v298, %v290
    %v303 = vadd.f32 %v299, %v292
    %v304 = vadd.f32 %v300, %v294
    %v305 = vadd.f32 %v301, %v296
    %306 = vst [vmem:[#allocation2] sm:$0xff] %v302
    %307 = vst [vmem:[#allocation2 + $0x8] sm:$0xff] %v303
    %308 = vst [vmem:[#allocation2 + $0x10] sm:$0xff] %v304
    %309 = vst [vmem:[#allocation2 + $0x18] sm:$0xff] %v305
    %v310 = vld [vmem:[%s4] sm:$0x3]
    %v311 = vld [vmem:[%s5] sm:$0x3]
    %v312 = vadd.f32 %v302, %v303
    %313 = vadd.xlane.f32.xlu0 %v312
    %v314 = vpop.xlane.xlu0 %313
    %v315 = vadd.f32 %v304, %v305
    %316 = vadd.xlane.f32.xlu0 %v315
    %v317 = vpop.xlane.xlu0 %316
    %v318 = vrcp.pop 256.0
    %v319 = vmul.f32 %v314, %v318
    %v320 = vmul.f32 %v317, %v318
    %v321 = vsub.f32 %v302, %v319
    %v322 = vsub.f32 %v303, %v319
    %v323 = vsub.f32 %v304, %v320
    %v324 = vsub.f32 %v305, %v320
    %v325 = vmul.f32 %v321, %v321
    %v326 = vmul.f32 %v322, %v322
    %v327 = vmul.f32 %v323, %v323
    %v328 = vmul.f32 %v324, %v324
    %v329 = vadd.f32 %v325, %v326
    %330 = vadd.xlane.f32.xlu0 %v329
    %v331 = vpop.xlane.xlu0 %330
    %v332 = vadd.f32 %v327, %v328
    %333 = vadd.xlane.f32.xlu0 %v332
    %v334 = vpop.xlane.xlu0 %333
    %v335 = vmul.f32 %v331, %v318
    %v336 = vmul.f32 %v334, %v318
    %v337 = vadd.f32 %v335, 1e-05
    %v338 = vadd.f32 %v336, 1e-05
    %v339 = vrsqrt.pop %v337
    %v340 = vrsqrt.pop %v338
    %v341 = vmul.f32 %v321, %v339
    %v342 = vmul.f32 %v322, %v339
    %v343 = vmul.f32 %v323, %v340
    %v344 = vmul.f32 %v324, %v340
    %v346 = vlaneseq
    %v347 = vshrl.u32 %v346, 7
    %v348 = vsub.s32 0, %v347
    %v349 = vrot.slane %v310, %v348
    %v350 = vlaneseq
    %v351 = vshrl.u32 %v350, 7
    %v352 = vsub.s32 1, %v351
    %v353 = vrot.slane %v310, %v352
    %v356 = vmul.f32 %v341, %v349
    %v357 = vmul.f32 %v342, %v353
    %v358 = vmul.f32 %v343, %v349
    %v359 = vmul.f32 %v344, %v353
    %v361 = vlaneseq
    %v362 = vshrl.u32 %v361, 7
    %v363 = vsub.s32 0, %v362
    %v364 = vrot.slane %v311, %v363
    %v365 = vlaneseq
    %v366 = vshrl.u32 %v365, 7
    %v367 = vsub.s32 1, %v366
    %v368 = vrot.slane %v311, %v367
    %v371 = vadd.f32 %v356, %v364
    %v372 = vadd.f32 %v357, %v368
    %v373 = vadd.f32 %v358, %v364
    %v374 = vadd.f32 %v359, %v368
    %v375 = vpack.c.bf16 %v373, %v371
    %v376 = vpack.c.bf16 %v374, %v372
    %377 = vst [vmem:[#allocation3] sm:$0xff] %v375
    %378 = vst [vmem:[#allocation3 + $0x8] sm:$0xff] %v376
    %379 = vst [vmem:[#allocation4] sm:$0xff] 0.0
    %380 = vst [vmem:[#allocation4 + $0x8] sm:$0xff] 0.0
    %381 = vst [vmem:[#allocation4 + $0x10] sm:$0xff] 0.0
    %382 = vst [vmem:[#allocation4 + $0x18] sm:$0xff] 0.0
  $region45: #{gpt_forward.12} parent=0 // pred_fallthru
    _
  %v383 = vld [vmem:[#allocation3] sm:$0xff]
  %v384 = vld [vmem:[#allocation3 + $0x8] sm:$0xff]
  %v385 = vld [vmem:[%s6] sm:$0xff]
  %v386 = vld [vmem:[%s6 + $0x8] sm:$0xff]
  %v387 = vld [vmem:[%s6 + $0x10] sm:$0xff]
  %v388 = vld [vmem:[%s6 + $0x18] sm:$0xff]
  %v389 = vld [vmem:[%s6 + $0x20] sm:$0xff]
  %v390 = vld [vmem:[%s6 + $0x28] sm:$0xff]
  %v391 = vld [vmem:[%s6 + $0x30] sm:$0xff]
  %v392 = vld [vmem:[%s6 + $0x38] sm:$0xff]
  %v393 = vld [vmem:[%s6 + $0x40] sm:$0xff]
  %v394 = vld [vmem:[%s6 + $0x48] sm:$0xff]
  %v395 = vld [vmem:[%s6 + $0x50] sm:$0xff]
  %v396 = vld [vmem:[%s6 + $0x58] sm:$0xff]
  %v397 = vld [vmem:[%s6 + $0x60] sm:$0xff]
  %v398 = vld [vmem:[%s6 + $0x68] sm:$0xff]
  %v399 = vld [vmem:[%s6 + $0x70] sm:$0xff]
  %v400 = vld [vmem:[%s6 + $0x78] sm:$0xff]
  %v401 = vld [vmem:[%s6 + $0x80] sm:$0xff]
  %v402 = vld [vmem:[%s6 + $0x88] sm:$0xff]
  %v403 = vld [vmem:[%s6 + $0x90] sm:$0xff]
  %v404 = vld [vmem:[%s6 + $0x98] sm:$0xff]
  %v405 = vld [vmem:[%s6 + $0xa0] sm:$0xff]
  %v406 = vld [vmem:[%s6 + $0xa8] sm:$0xff]
  %v407 = vld [vmem:[%s6 + $0xb0] sm:$0xff]
  %v408 = vld [vmem:[%s6 + $0xb8] sm:$0xff]
  %v409 = vld [vmem:[%s6 + $0xc0] sm:$0xff]
  %v410 = vld [vmem:[%s6 + $0xc8] sm:$0xff]
  %v411 = vld [vmem:[%s6 + $0xd0] sm:$0xff]
  %v412 = vld [vmem:[%s6 + $0xd8] sm:$0xff]
  %v413 = vld [vmem:[%s6 + $0xe0] sm:$0xff]
  %v414 = vld [vmem:[%s6 + $0xe8] sm:$0xff]
  %v415 = vld [vmem:[%s6 + $0xf0] sm:$0xff]
  %v416 = vld [vmem:[%s6 + $0xf8] sm:$0xff]
  %v417 = vld [vmem:[%s6 + $0x100] sm:$0xff]
  %v418 = vld [vmem:[%s6 + $0x108] sm:$0xff]
  %v419 = vld [vmem:[%s6 + $0x110] sm:$0xff]
  %v420 = vld [vmem:[%s6 + $0x118] sm:$0xff]
  %v421 = vld [vmem:[%s6 + $0x120] sm:$0xff]
  %v422 = vld [vmem:[%s6 + $0x128] sm:$0xff]
  %v423 = vld [vmem:[%s6 + $0x130] sm:$0xff]
  %v424 = vld [vmem:[%s6 + $0x138] sm:$0xff]
  %v425 = vld [vmem:[%s6 + $0x140] sm:$0xff]
  %v426 = vld [vmem:[%s6 + $0x148] sm:$0xff]
  %v427 = vld [vmem:[%s6 + $0x150] sm:$0xff]
  %v428 = vld [vmem:[%s6 + $0x158] sm:$0xff]
  %v429 = vld [vmem:[%s6 + $0x160] sm:$0xff]
  %v430 = vld [vmem:[%s6 + $0x168] sm:$0xff]
  %v431 = vld [vmem:[%s6 + $0x170] sm:$0xff]
  %v432 = vld [vmem:[%s6 + $0x178] sm:$0xff]
  %v433 = vld [vmem:[%s6 + $0x180] sm:$0xff]
  %v434 = vld [vmem:[%s6 + $0x188] sm:$0xff]
  %v435 = vld [vmem:[%s6 + $0x190] sm:$0xff]
  %v436 = vld [vmem:[%s6 + $0x198] sm:$0xff]
  %v437 = vld [vmem:[%s6 + $0x1a0] sm:$0xff]
  %v438 = vld [vmem:[%s6 + $0x1a8] sm:$0xff]
  %v439 = vld [vmem:[%s6 + $0x1b0] sm:$0xff]
  %v440 = vld [vmem:[%s6 + $0x1b8] sm:$0xff]
  %v441 = vld [vmem:[%s6 + $0x1c0] sm:$0xff]
  %v442 = vld [vmem:[%s6 + $0x1c8] sm:$0xff]
  %v443 = vld [vmem:[%s6 + $0x1d0] sm:$0xff]
  %v444 = vld [vmem:[%s6 + $0x1d8] sm:$0xff]
  %v445 = vld [vmem:[%s6 + $0x1e0] sm:$0xff]
  %v446 = vld [vmem:[%s6 + $0x1e8] sm:$0xff]
  %v447 = vld [vmem:[%s6 + $0x1f0] sm:$0xff]
  %v448 = vld [vmem:[%s6 + $0x1f8] sm:$0xff]
  %v449 = vld [vmem:[%s6 + $0x200] sm:$0xff]
  %v450 = vld [vmem:[%s6 + $0x208] sm:$0xff]
  %v451 = vld [vmem:[%s6 + $0x210] sm:$0xff]
  %v452 = vld [vmem:[%s6 + $0x218] sm:$0xff]
  %v453 = vld [vmem:[%s6 + $0x220] sm:$0xff]
  %v454 = vld [vmem:[%s6 + $0x228] sm:$0xff]
  %v455 = vld [vmem:[%s6 + $0x230] sm:$0xff]
  %v456 = vld [vmem:[%s6 + $0x238] sm:$0xff]
  %v457 = vld [vmem:[%s6 + $0x240] sm:$0xff]
  %v458 = vld [vmem:[%s6 + $0x248] sm:$0xff]
  %v459 = vld [vmem:[%s6 + $0x250] sm:$0xff]
  %v460 = vld [vmem:[%s6 + $0x258] sm:$0xff]
  %v461 = vld [vmem:[%s6 + $0x260] sm:$0xff]
  %v462 = vld [vmem:[%s6 + $0x268] sm:$0xff]
  %v463 = vld [vmem:[%s6 + $0x270] sm:$0xff]
  %v464 = vld [vmem:[%s6 + $0x278] sm:$0xff]
  %v465 = vld [vmem:[%s6 + $0x280] sm:$0xff]
  %v466 = vld [vmem:[%s6 + $0x288] sm:$0xff]
  %v467 = vld [vmem:[%s6 + $0x290] sm:$0xff]
  %v468 = vld [vmem:[%s6 + $0x298] sm:$0xff]
  %v469 = vld [vmem:[%s6 + $0x2a0] sm:$0xff]
  %v470 = vld [vmem:[%s6 + $0x2a8] sm:$0xff]
  %v471 = vld [vmem:[%s6 + $0x2b0] sm:$0xff]
  %v472 = vld [vmem:[%s6 + $0x2b8] sm:$0xff]
  %v473 = vld [vmem:[%s6 + $0x2c0] sm:$0xff]
  %v474 = vld [vmem:[%s6 + $0x2c8] sm:$0xff]
  %v475 = vld [vmem:[%s6 + $0x2d0] sm:$0xff]
  %v476 = vld [vmem:[%s6 + $0x2d8] sm:$0xff]
  %v477 = vld [vmem:[%s6 + $0x2e0] sm:$0xff]
  %v478 = vld [vmem:[%s6 + $0x2e8] sm:$0xff]
  %v479 = vld [vmem:[%s6 + $0x2f0] sm:$0xff]
  %v480 = vld [vmem:[%s6 + $0x2f8] sm:$0xff]
  %v481 = vld [vmem:[%s6 + $0x300] sm:$0xff]
  %v482 = vld [vmem:[%s6 + $0x308] sm:$0xff]
  %v483 = vld [vmem:[%s6 + $0x310] sm:$0xff]
  %v484 = vld [vmem:[%s6 + $0x318] sm:$0xff]
  %v485 = vld [vmem:[%s6 + $0x320] sm:$0xff]
  %v486 = vld [vmem:[%s6 + $0x328] sm:$0xff]
  %v487 = vld [vmem:[%s6 + $0x330] sm:$0xff]
  %v488 = vld [vmem:[%s6 + $0x338] sm:$0xff]
  %v489 = vld [vmem:[%s6 + $0x340] sm:$0xff]
  %v490 = vld [vmem:[%s6 + $0x348] sm:$0xff]
  %v491 = vld [vmem:[%s6 + $0x350] sm:$0xff]
  %v492 = vld [vmem:[%s6 + $0x358] sm:$0xff]
  %v493 = vld [vmem:[%s6 + $0x360] sm:$0xff]
  %v494 = vld [vmem:[%s6 + $0x368] sm:$0xff]
  %v495 = vld [vmem:[%s6 + $0x370] sm:$0xff]
  %v496 = vld [vmem:[%s6 + $0x378] sm:$0xff]
  %v497 = vld [vmem:[%s6 + $0x380] sm:$0xff]
  %v498 = vld [vmem:[%s6 + $0x388] sm:$0xff]
  %v499 = vld [vmem:[%s6 + $0x390] sm:$0xff]
  %v500 = vld [vmem:[%s6 + $0x398] sm:$0xff]
  %v501 = vld [vmem:[%s6 + $0x3a0] sm:$0xff]
  %v502 = vld [vmem:[%s6 + $0x3a8] sm:$0xff]
  %v503 = vld [vmem:[%s6 + $0x3b0] sm:$0xff]
  %v504 = vld [vmem:[%s6 + $0x3b8] sm:$0xff]
  %v505 = vld [vmem:[%s6 + $0x3c0] sm:$0xff]
  %v506 = vld [vmem:[%s6 + $0x3c8] sm:$0xff]
  %v507 = vld [vmem:[%s6 + $0x3d0] sm:$0xff]
  %v508 = vld [vmem:[%s6 + $0x3d8] sm:$0xff]
  %v509 = vld [vmem:[%s6 + $0x3e0] sm:$0xff]
  %v510 = vld [vmem:[%s6 + $0x3e8] sm:$0xff]
  %v511 = vld [vmem:[%s6 + $0x3f0] sm:$0xff]
  %v512 = vld [vmem:[%s6 + $0x3f8] sm:$0xff]
  %v513 = vld [vmem:[%s7] sm:$0xff]
  %v515 = vlaneseq
  %v516 = vshrl.u32 %v515, 7
  %v517 = vsub.s32 0, %v516
  %v518 = vrot.slane %v513, %v517
  %v519 = vlaneseq
  %v520 = vshrl.u32 %v519, 7
  %v521 = vsub.s32 1, %v520
  %v522 = vrot.slane %v513, %v521
  %v523 = vlaneseq
  %v524 = vshrl.u32 %v523, 7
  %v525 = vsub.s32 2, %v524
  %v526 = vrot.slane %v513, %v525
  %v527 = vlaneseq
  %v528 = vshrl.u32 %v527, 7
  %v529 = vsub.s32 3, %v528
  %v530 = vrot.slane %v513, %v529
  %v531 = vlaneseq
  %v532 = vshrl.u32 %v531, 7
  %v533 = vsub.s32 4, %v532
  %v534 = vrot.slane %v513, %v533
  %v535 = vlaneseq
  %v536 = vshrl.u32 %v535, 7
  %v537 = vsub.s32 5, %v536
  %v538 = vrot.slane %v513, %v537
  %v539 = vlaneseq
  %v540 = vshrl.u32 %v539, 7
  %v541 = vsub.s32 6, %v540
  %v542 = vrot.slane %v513, %v541
  %v543 = vlaneseq
  %v544 = vshrl.u32 %v543, 7
  %v545 = vsub.s32 7, %v544
  %v546 = vrot.slane %v513, %v545
  %v683 = vunpack.c.l.b16 %v385
  %v684 = vunpack.c.h.b16 %v385
  %v685 = vunpack.c.l.b16 %v386
  %v686 = vunpack.c.h.b16 %v386
  %v687 = vunpack.c.l.b16 %v387
  %v688 = vunpack.c.h.b16 %v387
  %v689 = vunpack.c.l.b16 %v388
  %v690 = vunpack.c.h.b16 %v388
  %v691 = vunpack.c.l.b16 %v389
  %v692 = vunpack.c.h.b16 %v389
  %v693 = vunpack.c.l.b16 %v390
  %v694 = vunpack.c.h.b16 %v390
  %v695 = vunpack.c.l.b16 %v391
  %v696 = vunpack.c.h.b16 %v391
  %v697 = vunpack.c.l.b16 %v392
  %v698 = vunpack.c.h.b16 %v392
  %v699 = vunpack.c.l.b16 %v393
  %v700 = vunpack.c.h.b16 %v393
  %v701 = vunpack.c.l.b16 %v394
  %v702 = vunpack.c.h.b16 %v394
  %v703 = vunpack.c.l.b16 %v395
  %v704 = vunpack.c.h.b16 %v395
  %v705 = vunpack.c.l.b16 %v396
  %v706 = vunpack.c.h.b16 %v396
  %v707 = vunpack.c.l.b16 %v397
  %v708 = vunpack.c.h.b16 %v397
  %v709 = vunpack.c.l.b16 %v398
  %v710 = vunpack.c.h.b16 %v398
  %v711 = vunpack.c.l.b16 %v399
  %v712 = vunpack.c.h.b16 %v399
  %v713 = vunpack.c.l.b16 %v400
  %v714 = vunpack.c.h.b16 %v400
  %v715 = vunpack.c.l.b16 %v401
  %v716 = vunpack.c.h.b16 %v401
  %v717 = vunpack.c.l.b16 %v402
  %v718 = vunpack.c.h.b16 %v402
  %v719 = vunpack.c.l.b16 %v403
  %v720 = vunpack.c.h.b16 %v403
  %v721 = vunpack.c.l.b16 %v404
  %v722 = vunpack.c.h.b16 %v404
  %v723 = vunpack.c.l.b16 %v405
  %v724 = vunpack.c.h.b16 %v405
  %v725 = vunpack.c.l.b16 %v406
  %v726 = vunpack.c.h.b16 %v406
  %v727 = vunpack.c.l.b16 %v407
  %v728 = vunpack.c.h.b16 %v407
  %v729 = vunpack.c.l.b16 %v408
  %v730 = vunpack.c.h.b16 %v408
  %v731 = vunpack.c.l.b16 %v409
  %v732 = vunpack.c.h.b16 %v409
  %v733 = vunpack.c.l.b16 %v410
  %v734 = vunpack.c.h.b16 %v410
  %v735 = vunpack.c.l.b16 %v411
  %v736 = vunpack.c.h.b16 %v411
  %v737 = vunpack.c.l.b16 %v412
  %v738 = vunpack.c.h.b16 %v412
  %v739 = vunpack.c.l.b16 %v413
  %v740 = vunpack.c.h.b16 %v413
  %v741 = vunpack.c.l.b16 %v414
  %v742 = vunpack.c.h.b16 %v414
  %v743 = vunpack.c.l.b16 %v415
  %v744 = vunpack.c.h.b16 %v415
  %v745 = vunpack.c.l.b16 %v416
  %v746 = vunpack.c.h.b16 %v416
  %v747 = vunpack.c.l.b16 %v417
  %v748 = vunpack.c.h.b16 %v417
  %v749 = vunpack.c.l.b16 %v418
  %v750 = vunpack.c.h.b16 %v418
  %v751 = vunpack.c.l.b16 %v419
  %v752 = vunpack.c.h.b16 %v419
  %v753 = vunpack.c.l.b16 %v420
  %v754 = vunpack.c.h.b16 %v420
  %v755 = vunpack.c.l.b16 %v421
  %v756 = vunpack.c.h.b16 %v421
  %v757 = vunpack.c.l.b16 %v422
  %v758 = vunpack.c.h.b16 %v422
  %v759 = vunpack.c.l.b16 %v423
  %v760 = vunpack.c.h.b16 %v423
  %v761 = vunpack.c.l.b16 %v424
  %v762 = vunpack.c.h.b16 %v424
  %v763 = vunpack.c.l.b16 %v425
  %v764 = vunpack.c.h.b16 %v425
  %v765 = vunpack.c.l.b16 %v426
  %v766 = vunpack.c.h.b16 %v426
  %v767 = vunpack.c.l.b16 %v427
  %v768 = vunpack.c.h.b16 %v427
  %v769 = vunpack.c.l.b16 %v428
  %v770 = vunpack.c.h.b16 %v428
  %v771 = vunpack.c.l.b16 %v429
  %v772 = vunpack.c.h.b16 %v429
  %v773 = vunpack.c.l.b16 %v430
  %v774 = vunpack.c.h.b16 %v430
  %v775 = vunpack.c.l.b16 %v431
  %v776 = vunpack.c.h.b16 %v431
  %v777 = vunpack.c.l.b16 %v432
  %v778 = vunpack.c.h.b16 %v432
  %v779 = vunpack.c.l.b16 %v433
  %v780 = vunpack.c.h.b16 %v433
  %v781 = vunpack.c.l.b16 %v434
  %v782 = vunpack.c.h.b16 %v434
  %v783 = vunpack.c.l.b16 %v435
  %v784 = vunpack.c.h.b16 %v435
  %v785 = vunpack.c.l.b16 %v436
  %v786 = vunpack.c.h.b16 %v436
  %v787 = vunpack.c.l.b16 %v437
  %v788 = vunpack.c.h.b16 %v437
  %v789 = vunpack.c.l.b16 %v438
  %v790 = vunpack.c.h.b16 %v438
  %v791 = vunpack.c.l.b16 %v439
  %v792 = vunpack.c.h.b16 %v439
  %v793 = vunpack.c.l.b16 %v440
  %v794 = vunpack.c.h.b16 %v440
  %v795 = vunpack.c.l.b16 %v441
  %v796 = vunpack.c.h.b16 %v441
  %v797 = vunpack.c.l.b16 %v442
  %v798 = vunpack.c.h.b16 %v442
  %v799 = vunpack.c.l.b16 %v443
  %v800 = vunpack.c.h.b16 %v443
  %v801 = vunpack.c.l.b16 %v444
  %v802 = vunpack.c.h.b16 %v444
  %v803 = vunpack.c.l.b16 %v445
  %v804 = vunpack.c.h.b16 %v445
  %v805 = vunpack.c.l.b16 %v446
  %v806 = vunpack.c.h.b16 %v446
  %v807 = vunpack.c.l.b16 %v447
  %v808 = vunpack.c.h.b16 %v447
  %v809 = vunpack.c.l.b16 %v448
  %v810 = vunpack.c.h.b16 %v448
  %v811 = vunpack.c.l.b16 %v449
  %v812 = vunpack.c.h.b16 %v449
  %v813 = vunpack.c.l.b16 %v450
  %v814 = vunpack.c.h.b16 %v450
  %v815 = vunpack.c.l.b16 %v451
  %v816 = vunpack.c.h.b16 %v451
  %v817 = vunpack.c.l.b16 %v452
  %v818 = vunpack.c.h.b16 %v452
  %v819 = vunpack.c.l.b16 %v453
  %v820 = vunpack.c.h.b16 %v453
  %v821 = vunpack.c.l.b16 %v454
  %v822 = vunpack.c.h.b16 %v454
  %v823 = vunpack.c.l.b16 %v455
  %v824 = vunpack.c.h.b16 %v455
  %v825 = vunpack.c.l.b16 %v456
  %v826 = vunpack.c.h.b16 %v456
  %v827 = vunpack.c.l.b16 %v457
  %v828 = vunpack.c.h.b16 %v457
  %v829 = vunpack.c.l.b16 %v458
  %v830 = vunpack.c.h.b16 %v458
  %v831 = vunpack.c.l.b16 %v459
  %v832 = vunpack.c.h.b16 %v459
  %v833 = vunpack.c.l.b16 %v460
  %v834 = vunpack.c.h.b16 %v460
  %v835 = vunpack.c.l.b16 %v461
  %v836 = vunpack.c.h.b16 %v461
  %v837 = vunpack.c.l.b16 %v462
  %v838 = vunpack.c.h.b16 %v462
  %v839 = vunpack.c.l.b16 %v463
  %v840 = vunpack.c.h.b16 %v463
  %v841 = vunpack.c.l.b16 %v464
  %v842 = vunpack.c.h.b16 %v464
  %v843 = vunpack.c.l.b16 %v465
  %v844 = vunpack.c.h.b16 %v465
  %v845 = vunpack.c.l.b16 %v466
  %v846 = vunpack.c.h.b16 %v466
  %v847 = vunpack.c.l.b16 %v467
  %v848 = vunpack.c.h.b16 %v467
  %v849 = vunpack.c.l.b16 %v468
  %v850 = vunpack.c.h.b16 %v468
  %v851 = vunpack.c.l.b16 %v469
  %v852 = vunpack.c.h.b16 %v469
  %v853 = vunpack.c.l.b16 %v470
  %v854 = vunpack.c.h.b16 %v470
  %v855 = vunpack.c.l.b16 %v471
  %v856 = vunpack.c.h.b16 %v471
  %v857 = vunpack.c.l.b16 %v472
  %v858 = vunpack.c.h.b16 %v472
  %v859 = vunpack.c.l.b16 %v473
  %v860 = vunpack.c.h.b16 %v473
  %v861 = vunpack.c.l.b16 %v474
  %v862 = vunpack.c.h.b16 %v474
  %v863 = vunpack.c.l.b16 %v475
  %v864 = vunpack.c.h.b16 %v475
  %v865 = vunpack.c.l.b16 %v476
  %v866 = vunpack.c.h.b16 %v476
  %v867 = vunpack.c.l.b16 %v477
  %v868 = vunpack.c.h.b16 %v477
  %v869 = vunpack.c.l.b16 %v478
  %v870 = vunpack.c.h.b16 %v478
  %v871 = vunpack.c.l.b16 %v479
  %v872 = vunpack.c.h.b16 %v479
  %v873 = vunpack.c.l.b16 %v480
  %v874 = vunpack.c.h.b16 %v480
  %v875 = vunpack.c.l.b16 %v481
  %v876 = vunpack.c.h.b16 %v481
  %v877 = vunpack.c.l.b16 %v482
  %v878 = vunpack.c.h.b16 %v482
  %v879 = vunpack.c.l.b16 %v483
  %v880 = vunpack.c.h.b16 %v483
  %v881 = vunpack.c.l.b16 %v484
  %v882 = vunpack.c.h.b16 %v484
  %v883 = vunpack.c.l.b16 %v485
  %v884 = vunpack.c.h.b16 %v485
  %v885 = vunpack.c.l.b16 %v486
  %v886 = vunpack.c.h.b16 %v486
  %v887 = vunpack.c.l.b16 %v487
  %v888 = vunpack.c.h.b16 %v487
  %v889 = vunpack.c.l.b16 %v488
  %v890 = vunpack.c.h.b16 %v488
  %v891 = vunpack.c.l.b16 %v489
  %v892 = vunpack.c.h.b16 %v489
  %v893 = vunpack.c.l.b16 %v490
  %v894 = vunpack.c.h.b16 %v490
  %v895 = vunpack.c.l.b16 %v491
  %v896 = vunpack.c.h.b16 %v491
  %v897 = vunpack.c.l.b16 %v492
  %v898 = vunpack.c.h.b16 %v492
  %v899 = vunpack.c.l.b16 %v493
  %v900 = vunpack.c.h.b16 %v493
  %v901 = vunpack.c.l.b16 %v494
  %v902 = vunpack.c.h.b16 %v494
  %v903 = vunpack.c.l.b16 %v495
  %v904 = vunpack.c.h.b16 %v495
  %v905 = vunpack.c.l.b16 %v496
  %v906 = vunpack.c.h.b16 %v496
  %v907 = vunpack.c.l.b16 %v497
  %v908 = vunpack.c.h.b16 %v497
  %v909 = vunpack.c.l.b16 %v498
  %v910 = vunpack.c.h.b16 %v498
  %v911 = vunpack.c.l.b16 %v499
  %v912 = vunpack.c.h.b16 %v499
  %v913 = vunpack.c.l.b16 %v500
  %v914 = vunpack.c.h.b16 %v500
  %v915 = vunpack.c.l.b16 %v501
  %v916 = vunpack.c.h.b16 %v501
  %v917 = vunpack.c.l.b16 %v502
  %v918 = vunpack.c.h.b16 %v502
  %v919 = vunpack.c.l.b16 %v503
  %v920 = vunpack.c.h.b16 %v503
  %v921 = vunpack.c.l.b16 %v504
  %v922 = vunpack.c.h.b16 %v504
  %v923 = vunpack.c.l.b16 %v505
  %v924 = vunpack.c.h.b16 %v505
  %v925 = vunpack.c.l.b16 %v506
  %v926 = vunpack.c.h.b16 %v506
  %v927 = vunpack.c.l.b16 %v507
  %v928 = vunpack.c.h.b16 %v507
  %v929 = vunpack.c.l.b16 %v508
  %v930 = vunpack.c.h.b16 %v508
  %v931 = vunpack.c.l.b16 %v509
  %v932 = vunpack.c.h.b16 %v509
  %v933 = vunpack.c.l.b16 %v510
  %v934 = vunpack.c.h.b16 %v510
  %v935 = vunpack.c.l.b16 %v511
  %v936 = vunpack.c.h.b16 %v511
  %v937 = vunpack.c.l.b16 %v512
  %v938 = vunpack.c.h.b16 %v512
  %v939 = vpack.c.b16 %v691, %v683
  %v940 = vpack.c.b16 %v692, %v684
  %v941 = vpack.c.b16 %v693, %v685
  %v942 = vpack.c.b16 %v694, %v686
  %v943 = vpack.c.b16 %v695, %v687
  %v944 = vpack.c.b16 %v696, %v688
  %v945 = vpack.c.b16 %v697, %v689
  %v946 = vpack.c.b16 %v698, %v690
  %v947 = vpack.c.b16 %v707, %v699
  %v948 = vpack.c.b16 %v708, %v700
  %v949 = vpack.c.b16 %v709, %v701
  %v950 = vpack.c.b16 %v710, %v702
  %v951 = vpack.c.b16 %v711, %v703
  %v952 = vpack.c.b16 %v712, %v704
  %v953 = vpack.c.b16 %v713, %v705
  %v954 = vpack.c.b16 %v714, %v706
  %v955 = vpack.c.b16 %v723, %v715
  %v956 = vpack.c.b16 %v724, %v716
  %v957 = vpack.c.b16 %v725, %v717
  %v958 = vpack.c.b16 %v726, %v718
  %v959 = vpack.c.b16 %v727, %v719
  %v960 = vpack.c.b16 %v728, %v720
  %v961 = vpack.c.b16 %v729, %v721
  %v962 = vpack.c.b16 %v730, %v722
  %v963 = vpack.c.b16 %v739, %v731
  %v964 = vpack.c.b16 %v740, %v732
  %v965 = vpack.c.b16 %v741, %v733
  %v966 = vpack.c.b16 %v742, %v734
  %v967 = vpack.c.b16 %v743, %v735
  %v968 = vpack.c.b16 %v744, %v736
  %v969 = vpack.c.b16 %v745, %v737
  %v970 = vpack.c.b16 %v746, %v738
  %v971 = vpack.c.b16 %v755, %v747
  %v972 = vpack.c.b16 %v756, %v748
  %v973 = vpack.c.b16 %v757, %v749
  %v974 = vpack.c.b16 %v758, %v750
  %v975 = vpack.c.b16 %v759, %v751
  %v976 = vpack.c.b16 %v760, %v752
  %v977 = vpack.c.b16 %v761, %v753
  %v978 = vpack.c.b16 %v762, %v754
  %v979 = vpack.c.b16 %v771, %v763
  %v980 = vpack.c.b16 %v772, %v764
  %v981 = vpack.c.b16 %v773, %v765
  %v982 = vpack.c.b16 %v774, %v766
  %v983 = vpack.c.b16 %v775, %v767
  %v984 = vpack.c.b16 %v776, %v768
  %v985 = vpack.c.b16 %v777, %v769
  %v986 = vpack.c.b16 %v778, %v770
  %v987 = vpack.c.b16 %v787, %v779
  %v988 = vpack.c.b16 %v788, %v780
  %v989 = vpack.c.b16 %v789, %v781
  %v990 = vpack.c.b16 %v790, %v782
  %v991 = vpack.c.b16 %v791, %v783
  %v992 = vpack.c.b16 %v792, %v784
  %v993 = vpack.c.b16 %v793, %v785
  %v994 = vpack.c.b16 %v794, %v786
  %v995 = vpack.c.b16 %v803, %v795
  %v996 = vpack.c.b16 %v804, %v796
  %v997 = vpack.c.b16 %v805, %v797
  %v998 = vpack.c.b16 %v806, %v798
  %v999 = vpack.c.b16 %v807, %v799
  %v1000 = vpack.c.b16 %v808, %v800
  %v1001 = vpack.c.b16 %v809, %v801
  %v1002 = vpack.c.b16 %v810, %v802
  %v1003 = vpack.c.b16 %v819, %v811
  %v1004 = vpack.c.b16 %v820, %v812
  %v1005 = vpack.c.b16 %v821, %v813
  %v1006 = vpack.c.b16 %v822, %v814
  %v1007 = vpack.c.b16 %v823, %v815
  %v1008 = vpack.c.b16 %v824, %v816
  %v1009 = vpack.c.b16 %v825, %v817
  %v1010 = vpack.c.b16 %v826, %v818
  %v1011 = vpack.c.b16 %v835, %v827
  %v1012 = vpack.c.b16 %v836, %v828
  %v1013 = vpack.c.b16 %v837, %v829
  %v1014 = vpack.c.b16 %v838, %v830
  %v1015 = vpack.c.b16 %v839, %v831
  %v1016 = vpack.c.b16 %v840, %v832
  %v1017 = vpack.c.b16 %v841, %v833
  %v1018 = vpack.c.b16 %v842, %v834
  %v1019 = vpack.c.b16 %v851, %v843
  %v1020 = vpack.c.b16 %v852, %v844
  %v1021 = vpack.c.b16 %v853, %v845
  %v1022 = vpack.c.b16 %v854, %v846
  %v1023 = vpack.c.b16 %v855, %v847
  %v1024 = vpack.c.b16 %v856, %v848
  %v1025 = vpack.c.b16 %v857, %v849
  %v1026 = vpack.c.b16 %v858, %v850
  %v1027 = vpack.c.b16 %v867, %v859
  %v1028 = vpack.c.b16 %v868, %v860
  %v1029 = vpack.c.b16 %v869, %v861
  %v1030 = vpack.c.b16 %v870, %v862
  %v1031 = vpack.c.b16 %v871, %v863
  %v1032 = vpack.c.b16 %v872, %v864
  %v1033 = vpack.c.b16 %v873, %v865
  %v1034 = vpack.c.b16 %v874, %v866
  %v1035 = vpack.c.b16 %v883, %v875
  %v1036 = vpack.c.b16 %v884, %v876
  %v1037 = vpack.c.b16 %v885, %v877
  %v1038 = vpack.c.b16 %v886, %v878
  %v1039 = vpack.c.b16 %v887, %v879
  %v1040 = vpack.c.b16 %v888, %v880
  %v1041 = vpack.c.b16 %v889, %v881
  %v1042 = vpack.c.b16 %v890, %v882
  %v1043 = vpack.c.b16 %v899, %v891
  %v1044 = vpack.c.b16 %v900, %v892
  %v1045 = vpack.c.b16 %v901, %v893
  %v1046 = vpack.c.b16 %v902, %v894
  %v1047 = vpack.c.b16 %v903, %v895
  %v1048 = vpack.c.b16 %v904, %v896
  %v1049 = vpack.c.b16 %v905, %v897
  %v1050 = vpack.c.b16 %v906, %v898
  %v1051 = vpack.c.b16 %v915, %v907
  %v1052 = vpack.c.b16 %v916, %v908
  %v1053 = vpack.c.b16 %v917, %v909
  %v1054 = vpack.c.b16 %v918, %v910
  %v1055 = vpack.c.b16 %v919, %v911
  %v1056 = vpack.c.b16 %v920, %v912
  %v1057 = vpack.c.b16 %v921, %v913
  %v1058 = vpack.c.b16 %v922, %v914
  %v1059 = vpack.c.b16 %v931, %v923
  %v1060 = vpack.c.b16 %v932, %v924
  %v1061 = vpack.c.b16 %v933, %v925
  %v1062 = vpack.c.b16 %v934, %v926
  %v1063 = vpack.c.b16 %v935, %v927
  %v1064 = vpack.c.b16 %v936, %v928
  %v1065 = vpack.c.b16 %v937, %v929
  %v1066 = vpack.c.b16 %v938, %v930
  %1195 = vmatprep.subr.bf16.mxu0 %v940
  %1196 = vmatpush1.bf16.msra.mxu0 %v939
  %1197 = vmatprep.subr.bf16.mxu0 %v948
  %1198 = vmatpush1.bf16.msra.mxu0 %v947
  %1199 = vmatprep.subr.bf16.mxu0 %v956
  %1200 = vmatpush1.bf16.msra.mxu0 %v955
  %1201 = vmatprep.subr.bf16.mxu0 %v964
  %1202 = vmatpush1.bf16.msra.mxu0 %v963
  %1203 = vmatprep.subr.bf16.mxu0 %v972
  %1204 = vmatpush1.bf16.msra.mxu0 %v971
  %1205 = vmatprep.subr.bf16.mxu0 %v980
  %1206 = vmatpush1.bf16.msra.mxu0 %v979
  %1207 = vmatprep.subr.bf16.mxu0 %v988
  %1208 = vmatpush1.bf16.msra.mxu0 %v987
  %1209 = vmatprep.subr.bf16.mxu0 %v996
  %1210 = vmatpush1.bf16.msra.mxu0 %v995
  %1211 = vmatprep.subr.bf16.mxu0 %v1004
  %1212 = vmatpush1.bf16.msra.mxu0 %v1003
  %1213 = vmatprep.subr.bf16.mxu0 %v1012
  %1214 = vmatpush1.bf16.msra.mxu0 %v1011
  %1215 = vmatprep.subr.bf16.mxu0 %v1020
  %1216 = vmatpush1.bf16.msra.mxu0 %v1019
  %1217 = vmatprep.subr.bf16.mxu0 %v1028
  %1218 = vmatpush1.bf16.msra.mxu0 %v1027
  %1219 = vmatprep.subr.bf16.mxu0 %v1036
  %1220 = vmatpush1.bf16.msra.mxu0 %v1035
  %1221 = vmatprep.subr.bf16.mxu0 %v1044
  %1222 = vmatpush1.bf16.msra.mxu0 %v1043
  %1223 = vmatprep.subr.bf16.mxu0 %v1052
  %1224 = vmatpush1.bf16.msra.mxu0 %v1051
  %1225 = vmatprep.subr.bf16.mxu0 %v1060
  %1226 = vmatpush1.bf16.msra.mxu0 %v1059
  %1227 = vmatprep.mubr.bf16.mxu0 %v384
  %1228 = vmatmul.mubr.bf16.gmra.mrb[0].mxu0 %v383
  %v1229 = vpop.f32.mrb[0].mxu0
  %v1230 = vadd.f32 %v518, %v1229
  %v1231 = vpop.f32.mrb[0].mxu0
  %v1232 = vadd.f32 %v522, %v1231
  %v1233 = vpop.f32.mrb[0].mxu0
  %v1234 = vadd.f32 %v518, %v1233
  %v1235 = vpop.f32.mrb[0].mxu0
  %v1236 = vadd.f32 %v522, %v1235
  %1237 = vdwg.mxu0
  %1238 = vmatprep.subr.bf16.mxu0 %v942
  %1239 = vmatpush1.bf16.msra.mxu0 %v941
  %1240 = vmatprep.subr.bf16.mxu0 %v950
  %1241 = vmatpush1.bf16.msra.mxu0 %v949
  %1242 = vmatprep.subr.bf16.mxu0 %v958
  %1243 = vmatpush1.bf16.msra.mxu0 %v957
  %1244 = vmatprep.subr.bf16.mxu0 %v966
  %1245 = vmatpush1.bf16.msra.mxu0 %v965
  %1246 = vmatprep.subr.bf16.mxu0 %v974
  %1247 = vmatpush1.bf16.msra.mxu0 %v973
  %1248 = vmatprep.subr.bf16.mxu0 %v982
  %1249 = vmatpush1.bf16.msra.mxu0 %v981
  %1250 = vmatprep.subr.bf16.mxu0 %v990
  %1251 = vmatpush1.bf16.msra.mxu0 %v989
  %1252 = vmatprep.subr.bf16.mxu0 %v998
  %1253 = vmatpush1.bf16.msra.mxu0 %v997
  %1254 = vmatprep.subr.bf16.mxu0 %v1006
  %1255 = vmatpush1.bf16.msra.mxu0 %v1005
  %1256 = vmatprep.subr.bf16.mxu0 %v1014
  %1257 = vmatpush1.bf16.msra.mxu0 %v1013
  %1258 = vmatprep.subr.bf16.mxu0 %v1022
  %1259 = vmatpush1.bf16.msra.mxu0 %v1021
  %1260 = vmatprep.subr.bf16.mxu0 %v1030
  %1261 = vmatpush1.bf16.msra.mxu0 %v1029
  %1262 = vmatprep.subr.bf16.mxu0 %v1038
  %1263 = vmatpush1.bf16.msra.mxu0 %v1037
  %1264 = vmatprep.subr.bf16.mxu0 %v1046
  %1265 = vmatpush1.bf16.msra.mxu0 %v1045
  %1266 = vmatprep.subr.bf16.mxu0 %v1054
  %1267 = vmatpush1.bf16.msra.mxu0 %v1053
  %1268 = vmatprep.subr.bf16.mxu0 %v1062
  %1269 = vmatpush1.bf16.msra.mxu0 %v1061
  %1270 = vmatprep.mubr.bf16.mxu0 %v384
  %1271 = vmatmul.mubr.bf16.gmra.mrb[0].mxu0 %v383
  %v1272 = vpop.f32.mrb[0].mxu0
  %v1273 = vadd.f32 %v526, %v1272
  %v1274 = vpop.f32.mrb[0].mxu0
  %v1275 = vadd.f32 %v530, %v1274
  %v1276 = vpop.f32.mrb[0].mxu0
  %v1277 = vadd.f32 %v526, %v1276
  %v1278 = vpop.f32.mrb[0].mxu0
  %v1279 = vadd.f32 %v530, %v1278
  %1280 = vdwg.mxu0
  %1281 = vmatprep.subr.bf16.mxu0 %v944
  %1282 = vmatpush1.bf16.msra.mxu0 %v943
  %1283 = vmatprep.subr.bf16.mxu0 %v952
  %1284 = vmatpush1.bf16.msra.mxu0 %v951
  %1285 = vmatprep.subr.bf16.mxu0 %v960
  %1286 = vmatpush1.bf16.msra.mxu0 %v959
  %1287 = vmatprep.subr.bf16.mxu0 %v968
  %1288 = vmatpush1.bf16.msra.mxu0 %v967
  %1289 = vmatprep.subr.bf16.mxu0 %v976
  %1290 = vmatpush1.bf16.msra.mxu0 %v975
  %1291 = vmatprep.subr.bf16.mxu0 %v984
  %1292 = vmatpush1.bf16.msra.mxu0 %v983
  %1293 = vmatprep.subr.bf16.mxu0 %v992
  %1294 = vmatpush1.bf16.msra.mxu0 %v991
  %1295 = vmatprep.subr.bf16.mxu0 %v1000
  %1296 = vmatpush1.bf16.msra.mxu0 %v999
  %1297 = vmatprep.subr.bf16.mxu0 %v1008
  %1298 = vmatpush1.bf16.msra.mxu0 %v1007
  %1299 = vmatprep.subr.bf16.mxu0 %v1016
  %1300 = vmatpush1.bf16.msra.mxu0 %v1015
  %1301 = vmatprep.subr.bf16.mxu0 %v1024
  %1302 = vmatpush1.bf16.msra.mxu0 %v1023
  %1303 = vmatprep.subr.bf16.mxu0 %v1032
  %1304 = vmatpush1.bf16.msra.mxu0 %v1031
  %1305 = vmatprep.subr.bf16.mxu0 %v1040
  %1306 = vmatpush1.bf16.msra.mxu0 %v1039
  %1307 = vmatprep.subr.bf16.mxu0 %v1048
  %1308 = vmatpush1.bf16.msra.mxu0 %v1047
  %1309 = vmatprep.subr.bf16.mxu0 %v1056
  %1310 = vmatpush1.bf16.msra.mxu0 %v1055
  %1311 = vmatprep.subr.bf16.mxu0 %v1064
  %1312 = vmatpush1.bf16.msra.mxu0 %v1063
  %1313 = vmatprep.mubr.bf16.mxu0 %v384
  %1314 = vmatmul.mubr.bf16.gmra.mrb[0].mxu0 %v383
  %v1315 = vpop.f32.mrb[0].mxu0
  %v1316 = vadd.f32 %v534, %v1315
  %v1317 = vpop.f32.mrb[0].mxu0
  %v1318 = vadd.f32 %v538, %v1317
  %v1319 = vpop.f32.mrb[0].mxu0
  %v1320 = vadd.f32 %v534, %v1319
  %v1321 = vpop.f32.mrb[0].mxu0
  %v1322 = vadd.f32 %v538, %v1321
  %1323 = vdwg.mxu0
  %1324 = vmatprep.subr.bf16.mxu0 %v946
  %1325 = vmatpush1.bf16.msra.mxu0 %v945
  %1326 = vmatprep.subr.bf16.mxu0 %v954
  %1327 = vmatpush1.bf16.msra.mxu0 %v953
  %1328 = vmatprep.subr.bf16.mxu0 %v962
  %1329 = vmatpush1.bf16.msra.mxu0 %v961
  %1330 = vmatprep.subr.bf16.mxu0 %v970
  %1331 = vmatpush1.bf16.msra.mxu0 %v969
  %1332 = vmatprep.subr.bf16.mxu0 %v978
  %1333 = vmatpush1.bf16.msra.mxu0 %v977
  %1334 = vmatprep.subr.bf16.mxu0 %v986
  %1335 = vmatpush1.bf16.msra.mxu0 %v985
  %1336 = vmatprep.subr.bf16.mxu0 %v994
  %1337 = vmatpush1.bf16.msra.mxu0 %v993
  %1338 = vmatprep.subr.bf16.mxu0 %v1002
  %1339 = vmatpush1.bf16.msra.mxu0 %v1001
  %1340 = vmatprep.subr.bf16.mxu0 %v1010
  %1341 = vmatpush1.bf16.msra.mxu0 %v1009
  %1342 = vmatprep.subr.bf16.mxu0 %v1018
  %1343 = vmatpush1.bf16.msra.mxu0 %v1017
  %1344 = vmatprep.subr.bf16.mxu0 %v1026
  %1345 = vmatpush1.bf16.msra.mxu0 %v1025
  %1346 = vmatprep.subr.bf16.mxu0 %v1034
  %1347 = vmatpush1.bf16.msra.mxu0 %v1033
  %1348 = vmatprep.subr.bf16.mxu0 %v1042
  %1349 = vmatpush1.bf16.msra.mxu0 %v1041
  %1350 = vmatprep.subr.bf16.mxu0 %v1050
  %1351 = vmatpush1.bf16.msra.mxu0 %v1049
  %1352 = vmatprep.subr.bf16.mxu0 %v1058
  %1353 = vmatpush1.bf16.msra.mxu0 %v1057
  %1354 = vmatprep.subr.bf16.mxu0 %v1066
  %1355 = vmatpush1.bf16.msra.mxu0 %v1065
  %1356 = vmatprep.mubr.bf16.mxu0 %v384
  %1357 = vmatmul.mubr.bf16.gmra.mrb[0].mxu0 %v383
  %v1358 = vpop.f32.mrb[0].mxu0
  %v1359 = vadd.f32 %v542, %v1358
  %v1360 = vpop.f32.mrb[0].mxu0
  %v1361 = vadd.f32 %v546, %v1360
  %v1362 = vpop.f32.mrb[0].mxu0
  %v1363 = vadd.f32 %v542, %v1362
  %v1364 = vpop.f32.mrb[0].mxu0
  %v1365 = vadd.f32 %v546, %v1364
  %1366 = vdwg.mxu0
  %v1367 = vmul.f32 %v1230, 0.5
  %v1368 = vmul.f32 %v1232, 0.5
  %v1369 = vmul.f32 %v1273, 0.5
  %v1370 = vmul.f32 %v1275, 0.5
  %v1371 = vmul.f32 %v1316, 0.5
  %v1372 = vmul.f32 %v1318, 0.5
  %v1373 = vmul.f32 %v1359, 0.5
  %v1374 = vmul.f32 %v1361, 0.5
  %v1375 = vmul.f32 %v1234, 0.5
  %v1376 = vmul.f32 %v1236, 0.5
  %v1377 = vmul.f32 %v1277, 0.5
  %v1378 = vmul.f32 %v1279, 0.5
  %v1379 = vmul.f32 %v1320, 0.5
  %v1380 = vmul.f32 %v1322, 0.5
  %v1381 = vmul.f32 %v1363, 0.5
  %v1382 = vmul.f32 %v1365, 0.5
  %v1383 = vmul.f32 %v1230, 0.70710677
  %v1384 = vmul.f32 %v1232, 0.70710677
  %v1385 = vmul.f32 %v1273, 0.70710677
  %v1386 = vmul.f32 %v1275, 0.70710677
  %v1387 = vmul.f32 %v1316, 0.70710677
  %v1388 = vmul.f32 %v1318, 0.70710677
  %v1389 = vmul.f32 %v1359, 0.70710677
  %v1390 = vmul.f32 %v1361, 0.70710677
  %v1391 = vmul.f32 %v1234, 0.70710677
  %v1392 = vmul.f32 %v1236, 0.70710677
  %v1393 = vmul.f32 %v1277, 0.70710677
  %v1394 = vmul.f32 %v1279, 0.70710677
  %v1395 = vmul.f32 %v1320, 0.70710677
  %v1396 = vmul.f32 %v1322, 0.70710677
  %v1397 = vmul.f32 %v1363, 0.70710677
  %v1398 = vmul.f32 %v1365, 0.70710677
  %vm1399 = vcmp.ge.f32.partialorder %v1383, 0.0
  %vm1400 = vcmp.ge.f32.partialorder %v1384, 0.0
  %vm1401 = vcmp.ge.f32.partialorder %v1385, 0.0
  %vm1402 = vcmp.ge.f32.partialorder %v1386, 0.0
  %vm1403 = vcmp.ge.f32.partialorder %v1387, 0.0
  %vm1404 = vcmp.ge.f32.partialorder %v1388, 0.0
  %vm1405 = vcmp.ge.f32.partialorder %v1389, 0.0
  %vm1406 = vcmp.ge.f32.partialorder %v1390, 0.0
  %vm1407 = vcmp.ge.f32.partialorder %v1391, 0.0
  %vm1408 = vcmp.ge.f32.partialorder %v1392, 0.0
  %vm1409 = vcmp.ge.f32.partialorder %v1393, 0.0
  %vm1410 = vcmp.ge.f32.partialorder %v1394, 0.0
  %vm1411 = vcmp.ge.f32.partialorder %v1395, 0.0
  %vm1412 = vcmp.ge.f32.partialorder %v1396, 0.0
  %vm1413 = vcmp.ge.f32.partialorder %v1397, 0.0
  %vm1414 = vcmp.ge.f32.partialorder %v1398, 0.0
  %v1415 = vsel %vm1399, 1.0, -1.0
  %v1416 = vsel %vm1400, 1.0, -1.0
  %v1417 = vsel %vm1401, 1.0, -1.0
  %v1418 = vsel %vm1402, 1.0, -1.0
  %v1419 = vsel %vm1403, 1.0, -1.0
  %v1420 = vsel %vm1404, 1.0, -1.0
  %v1421 = vsel %vm1405, 1.0, -1.0
  %v1422 = vsel %vm1406, 1.0, -1.0
  %v1423 = vsel %vm1407, 1.0, -1.0
  %v1424 = vsel %vm1408, 1.0, -1.0
  %v1425 = vsel %vm1409, 1.0, -1.0
  %v1426 = vsel %vm1410, 1.0, -1.0
  %v1427 = vsel %vm1411, 1.0, -1.0
  %v1428 = vsel %vm1412, 1.0, -1.0
  %v1429 = vsel %vm1413, 1.0, -1.0
  %v1430 = vsel %vm1414, 1.0, -1.0
  %v1431 = vand.u32 2147483647, %v1383
  %v1432 = vand.u32 2147483647, %v1384
  %v1433 = vand.u32 2147483647, %v1385
  %v1434 = vand.u32 2147483647, %v1386
  %v1435 = vand.u32 2147483647, %v1387
  %v1436 = vand.u32 2147483647, %v1388
  %v1437 = vand.u32 2147483647, %v1389
  %v1438 = vand.u32 2147483647, %v1390
  %v1439 = vand.u32 2147483647, %v1391
  %v1440 = vand.u32 2147483647, %v1392
  %v1441 = vand.u32 2147483647, %v1393
  %v1442 = vand.u32 2147483647, %v1394
  %v1443 = vand.u32 2147483647, %v1395
  %v1444 = vand.u32 2147483647, %v1396
  %v1445 = vand.u32 2147483647, %v1397
  %v1446 = vand.u32 2147483647, %v1398
  %v1447 = vmul.f32 %v1431, 0.3275911
  %v1448 = vmul.f32 %v1432, 0.3275911
  %v1449 = vmul.f32 %v1433, 0.3275911
  %v1450 = vmul.f32 %v1434, 0.3275911
  %v1451 = vmul.f32 %v1435, 0.3275911
  %v1452 = vmul.f32 %v1436, 0.3275911
  %v1453 = vmul.f32 %v1437, 0.3275911
  %v1454 = vmul.f32 %v1438, 0.3275911
  %v1455 = vmul.f32 %v1439, 0.3275911
  %v1456 = vmul.f32 %v1440, 0.3275911
  %v1457 = vmul.f32 %v1441, 0.3275911
  %v1458 = vmul.f32 %v1442, 0.3275911
  %v1459 = vmul.f32 %v1443, 0.3275911
  %v1460 = vmul.f32 %v1444, 0.3275911
  %v1461 = vmul.f32 %v1445, 0.3275911
  %v1462 = vmul.f32 %v1446, 0.3275911
  %v1463 = vadd.f32 %v1447, 1.0
  %v1464 = vadd.f32 %v1448, 1.0
  %v1465 = vadd.f32 %v1449, 1.0
  %v1466 = vadd.f32 %v1450, 1.0
  %v1467 = vadd.f32 %v1451, 1.0
  %v1468 = vadd.f32 %v1452, 1.0
  %v1469 = vadd.f32 %v1453, 1.0
  %v1470 = vadd.f32 %v1454, 1.0
  %v1471 = vadd.f32 %v1455, 1.0
  %v1472 = vadd.f32 %v1456, 1.0
  %v1473 = vadd.f32 %v1457, 1.0
  %v1474 = vadd.f32 %v1458, 1.0
  %v1475 = vadd.f32 %v1459, 1.0
  %v1476 = vadd.f32 %v1460, 1.0
  %v1477 = vadd.f32 %v1461, 1.0
  %v1478 = vadd.f32 %v1462, 1.0
  %v1479 = vrcp.pop %v1463
  %v1480 = vmul.f32 1.0, %v1479
  %v1481 = vrcp.pop %v1464
  %v1482 = vmul.f32 1.0, %v1481
  %v1483 = vrcp.pop %v1465
  %v1484 = vmul.f32 1.0, %v1483
  %v1485 = vrcp.pop %v1466
  %v1486 = vmul.f32 1.0, %v1485
  %v1487 = vrcp.pop %v1467
  %v1488 = vmul.f32 1.0, %v1487
  %v1489 = vrcp.pop %v1468
  %v1490 = vmul.f32 1.0, %v1489
  %v1491 = vrcp.pop %v1469
  %v1492 = vmul.f32 1.0, %v1491
  %v1493 = vrcp.pop %v1470
  %v1494 = vmul.f32 1.0, %v1493
  %v1495 = vrcp.pop %v1471
  %v1496 = vmul.f32 1.0, %v1495
  %v1497 = vrcp.pop %v1472
  %v1498 = vmul.f32 1.0, %v1497
  %v1499 = vrcp.pop %v1473
  %v1500 = vmul.f32 1.0, %v1499
  %v1501 = vrcp.pop %v1474
  %v1502 = vmul.f32 1.0, %v1501
  %v1503 = vrcp.pop %v1475
  %v1504 = vmul.f32 1.0, %v1503
  %v1505 = vrcp.pop %v1476
  %v1506 = vmul.f32 1.0, %v1505
  %v1507 = vrcp.pop %v1477
  %v1508 = vmul.f32 1.0, %v1507
  %v1509 = vrcp.pop %v1478
  %v1510 = vmul.f32 1.0, %v1509
  %v1511 = vmul.f32 %v1480, 1.0614054
  %v1512 = vmul.f32 %v1482, 1.0614054
  %v1513 = vmul.f32 %v1484, 1.0614054
  %v1514 = vmul.f32 %v1486, 1.0614054
  %v1515 = vmul.f32 %v1488, 1.0614054
  %v1516 = vmul.f32 %v1490, 1.0614054
  %v1517 = vmul.f32 %v1492, 1.0614054
  %v1518 = vmul.f32 %v1494, 1.0614054
  %v1519 = vmul.f32 %v1496, 1.0614054
  %v1520 = vmul.f32 %v1498, 1.0614054
  %v1521 = vmul.f32 %v1500, 1.0614054
  %v1522 = vmul.f32 %v1502, 1.0614054
  %v1523 = vmul.f32 %v1504, 1.0614054
  %v1524 = vmul.f32 %v1506, 1.0614054
  %v1525 = vmul.f32 %v1508, 1.0614054
  %v1526 = vmul.f32 %v1510, 1.0614054
  %v1527 = vadd.f32 %v1511, -1.4531521
  %v1528 = vadd.f32 %v1512, -1.4531521
  %v1529 = vadd.f32 %v1513, -1.4531521
  %v1530 = vadd.f32 %v1514, -1.4531521
  %v1531 = vadd.f32 %v1515, -1.4531521
  %v1532 = vadd.f32 %v1516, -1.4531521
  %v1533 = vadd.f32 %v1517, -1.4531521
  %v1534 = vadd.f32 %v1518, -1.4531521
  %v1535 = vadd.f32 %v1519, -1.4531521
  %v1536 = vadd.f32 %v1520, -1.4531521
  %v1537 = vadd.f32 %v1521, -1.4531521
  %v1538 = vadd.f32 %v1522, -1.4531521
  %v1539 = vadd.f32 %v1523, -1.4531521
  %v1540 = vadd.f32 %v1524, -1.4531521
  %v1541 = vadd.f32 %v1525, -1.4531521
  %v1542 = vadd.f32 %v1526, -1.4531521
  %v1543 = vmul.f32 %v1527, %v1480
  %v1544 = vmul.f32 %v1528, %v1482
  %v1545 = vmul.f32 %v1529, %v1484
  %v1546 = vmul.f32 %v1530, %v1486
  %v1547 = vmul.f32 %v1531, %v1488
  %v1548 = vmul.f32 %v1532, %v1490
  %v1549 = vmul.f32 %v1533, %v1492
  %v1550 = vmul.f32 %v1534, %v1494
  %v1551 = vmul.f32 %v1535, %v1496
  %v1552 = vmul.f32 %v1536, %v1498
  %v1553 = vmul.f32 %v1537, %v1500
  %v1554 = vmul.f32 %v1538, %v1502
  %v1555 = vmul.f32 %v1539, %v1504
  %v1556 = vmul.f32 %v1540, %v1506
  %v1557 = vmul.f32 %v1541, %v1508
  %v1558 = vmul.f32 %v1542, %v1510
  %v1559 = vadd.f32 %v1543, 1.4214138
  %v1560 = vadd.f32 %v1544, 1.4214138
  %v1561 = vadd.f32 %v1545, 1.4214138
  %v1562 = vadd.f32 %v1546, 1.4214138
  %v1563 = vadd.f32 %v1547, 1.4214138
  %v1564 = vadd.f32 %v1548, 1.4214138
  %v1565 = vadd.f32 %v1549, 1.4214138
  %v1566 = vadd.f32 %v1550, 1.4214138
  %v1567 = vadd.f32 %v1551, 1.4214138
  %v1568 = vadd.f32 %v1552, 1.4214138
  %v1569 = vadd.f32 %v1553, 1.4214138
  %v1570 = vadd.f32 %v1554, 1.4214138
  %v1571 = vadd.f32 %v1555, 1.4214138
  %v1572 = vadd.f32 %v1556, 1.4214138
  %v1573 = vadd.f32 %v1557, 1.4214138
  %v1574 = vadd.f32 %v1558, 1.4214138
  %v1575 = vmul.f32 %v1559, %v1480
  %v1576 = vmul.f32 %v1560, %v1482
  %v1577 = vmul.f32 %v1561, %v1484
  %v1578 = vmul.f32 %v1562, %v1486
  %v1579 = vmul.f32 %v1563, %v1488
  %v1580 = vmul.f32 %v1564, %v1490
  %v1581 = vmul.f32 %v1565, %v1492
  %v1582 = vmul.f32 %v1566, %v1494
  %v1583 = vmul.f32 %v1567, %v1496
  %v1584 = vmul.f32 %v1568, %v1498
  %v1585 = vmul.f32 %v1569, %v1500
  %v1586 = vmul.f32 %v1570, %v1502
  %v1587 = vmul.f32 %v1571, %v1504
  %v1588 = vmul.f32 %v1572, %v1506
  %v1589 = vmul.f32 %v1573, %v1508
  %v1590 = vmul.f32 %v1574, %v1510
  %v1591 = vadd.f32 %v1575, -0.28449672
  %v1592 = vadd.f32 %v1576, -0.28449672
  %v1593 = vadd.f32 %v1577, -0.28449672
  %v1594 = vadd.f32 %v1578, -0.28449672
  %v1595 = vadd.f32 %v1579, -0.28449672
  %v1596 = vadd.f32 %v1580, -0.28449672
  %v1597 = vadd.f32 %v1581, -0.28449672
  %v1598 = vadd.f32 %v1582, -0.28449672
  %v1599 = vadd.f32 %v1583, -0.28449672
  %v1600 = vadd.f32 %v1584, -0.28449672
  %v1601 = vadd.f32 %v1585, -0.28449672
  %v1602 = vadd.f32 %v1586, -0.28449672
  %v1603 = vadd.f32 %v1587, -0.28449672
  %v1604 = vadd.f32 %v1588, -0.28449672
  %v1605 = vadd.f32 %v1589, -0.28449672
  %v1606 = vadd.f32 %v1590, -0.28449672
  %v1607 = vmul.f32 %v1591, %v1480
  %v1608 = vmul.f32 %v1592, %v1482
  %v1609 = vmul.f32 %v1593, %v1484
  %v1610 = vmul.f32 %v1594, %v1486
  %v1611 = vmul.f32 %v1595, %v1488
  %v1612 = vmul.f32 %v1596, %v1490
  %v1613 = vmul.f32 %v1597, %v1492
  %v1614 = vmul.f32 %v1598, %v1494
  %v1615 = vmul.f32 %v1599, %v1496
  %v1616 = vmul.f32 %v1600, %v1498
  %v1617 = vmul.f32 %v1601, %v1500
  %v1618 = vmul.f32 %v1602, %v1502
  %v1619 = vmul.f32 %v1603, %v1504
  %v1620 = vmul.f32 %v1604, %v1506
  %v1621 = vmul.f32 %v1605, %v1508
  %v1622 = vmul.f32 %v1606, %v1510
  %v1623 = vadd.f32 %v1607, 0.2548296
  %v1624 = vadd.f32 %v1608, 0.2548296
  %v1625 = vadd.f32 %v1609, 0.2548296
  %v1626 = vadd.f32 %v1610, 0.2548296
  %v1627 = vadd.f32 %v1611, 0.2548296
  %v1628 = vadd.f32 %v1612, 0.2548296
  %v1629 = vadd.f32 %v1613, 0.2548296
  %v1630 = vadd.f32 %v1614, 0.2548296
  %v1631 = vadd.f32 %v1615, 0.2548296
  %v1632 = vadd.f32 %v1616, 0.2548296
  %v1633 = vadd.f32 %v1617, 0.2548296
  %v1634 = vadd.f32 %v1618, 0.2548296
  %v1635 = vadd.f32 %v1619, 0.2548296
  %v1636 = vadd.f32 %v1620, 0.2548296
  %v1637 = vadd.f32 %v1621, 0.2548296
  %v1638 = vadd.f32 %v1622, 0.2548296
  %v1639 = vmul.f32 %v1623, %v1480
  %v1640 = vmul.f32 %v1624, %v1482
  %v1641 = vmul.f32 %v1625, %v1484
  %v1642 = vmul.f32 %v1626, %v1486
  %v1643 = vmul.f32 %v1627, %v1488
  %v1644 = vmul.f32 %v1628, %v1490
  %v1645 = vmul.f32 %v1629, %v1492
  %v1646 = vmul.f32 %v1630, %v1494
  %v1647 = vmul.f32 %v1631, %v1496
  %v1648 = vmul.f32 %v1632, %v1498
  %v1649 = vmul.f32 %v1633, %v1500
  %v1650 = vmul.f32 %v1634, %v1502
  %v1651 = vmul.f32 %v1635, %v1504
  %v1652 = vmul.f32 %v1636, %v1506
  %v1653 = vmul.f32 %v1637, %v1508
  %v1654 = vmul.f32 %v1638, %v1510
  %v1655 = vsub.f32 0.0, %v1431
  %v1656 = vsub.f32 0.0, %v1432
  %v1657 = vsub.f32 0.0, %v1433
  %v1658 = vsub.f32 0.0, %v1434
  %v1659 = vsub.f32 0.0, %v1435
  %v1660 = vsub.f32 0.0, %v1436
  %v1661 = vsub.f32 0.0, %v1437
  %v1662 = vsub.f32 0.0, %v1438
  %v1663 = vsub.f32 0.0, %v1439
  %v1664 = vsub.f32 0.0, %v1440
  %v1665 = vsub.f32 0.0, %v1441
  %v1666 = vsub.f32 0.0, %v1442
  %v1667 = vsub.f32 0.0, %v1443
  %v1668 = vsub.f32 0.0, %v1444
  %v1669 = vsub.f32 0.0, %v1445
  %v1670 = vsub.f32 0.0, %v1446
  %v1671 = vmul.f32 %v1655, %v1431
  %v1672 = vmul.f32 %v1656, %v1432
  %v1673 = vmul.f32 %v1657, %v1433
  %v1674 = vmul.f32 %v1658, %v1434
  %v1675 = vmul.f32 %v1659, %v1435
  %v1676 = vmul.f32 %v1660, %v1436
  %v1677 = vmul.f32 %v1661, %v1437
  %v1678 = vmul.f32 %v1662, %v1438
  %v1679 = vmul.f32 %v1663, %v1439
  %v1680 = vmul.f32 %v1664, %v1440
  %v1681 = vmul.f32 %v1665, %v1441
  %v1682 = vmul.f32 %v1666, %v1442
  %v1683 = vmul.f32 %v1667, %v1443
  %v1684 = vmul.f32 %v1668, %v1444
  %v1685 = vmul.f32 %v1669, %v1445
  %v1686 = vmul.f32 %v1670, %v1446
  %v1687 = vmul.f32 %v1671, 1.442695
  %v1688 = vpow.pop %v1687
  %v1689 = vmul.f32 %v1672, 1.442695
  %v1690 = vpow.pop %v1689
  %v1691 = vmul.f32 %v1673, 1.442695
  %v1692 = vpow.pop %v1691
  %v1693 = vmul.f32 %v1674, 1.442695
  %v1694 = vpow.pop %v1693
  %v1695 = vmul.f32 %v1675, 1.442695
  %v1696 = vpow.pop %v1695
  %v1697 = vmul.f32 %v1676, 1.442695
  %v1698 = vpow.pop %v1697
  %v1699 = vmul.f32 %v1677, 1.442695
  %v1700 = vpow.pop %v1699
  %v1701 = vmul.f32 %v1678, 1.442695
  %v1702 = vpow.pop %v1701
  %v1703 = vmul.f32 %v1679, 1.442695
  %v1704 = vpow.pop %v1703
  %v1705 = vmul.f32 %v1680, 1.442695
  %v1706 = vpow.pop %v1705
  %v1707 = vmul.f32 %v1681, 1.442695
  %v1708 = vpow.pop %v1707
  %v1709 = vmul.f32 %v1682, 1.442695
  %v1710 = vpow.pop %v1709
  %v1711 = vmul.f32 %v1683, 1.442695
  %v1712 = vpow.pop %v1711
  %v1713 = vmul.f32 %v1684, 1.442695
  %v1714 = vpow.pop %v1713
  %v1715 = vmul.f32 %v1685, 1.442695
  %v1716 = vpow.pop %v1715
  %v1717 = vmul.f32 %v1686, 1.442695
  %v1718 = vpow.pop %v1717
  %v1719 = vmul.f32 %v1639, %v1688
  %v1720 = vmul.f32 %v1640, %v1690
  %v1721 = vmul.f32 %v1641, %v1692
  %v1722 = vmul.f32 %v1642, %v1694
  %v1723 = vmul.f32 %v1643, %v1696
  %v1724 = vmul.f32 %v1644, %v1698
  %v1725 = vmul.f32 %v1645, %v1700
  %v1726 = vmul.f32 %v1646, %v1702
  %v1727 = vmul.f32 %v1647, %v1704
  %v1728 = vmul.f32 %v1648, %v1706
  %v1729 = vmul.f32 %v1649, %v1708
  %v1730 = vmul.f32 %v1650, %v1710
  %v1731 = vmul.f32 %v1651, %v1712
  %v1732 = vmul.f32 %v1652, %v1714
  %v1733 = vmul.f32 %v1653, %v1716
  %v1734 = vmul.f32 %v1654, %v1718
  %v1735 = vsub.f32 1.0, %v1719
  %v1736 = vsub.f32 1.0, %v1720
  %v1737 = vsub.f32 1.0, %v1721
  %v1738 = vsub.f32 1.0, %v1722
  %v1739 = vsub.f32 1.0, %v1723
  %v1740 = vsub.f32 1.0, %v1724
  %v1741 = vsub.f32 1.0, %v1725
  %v1742 = vsub.f32 1.0, %v1726
  %v1743 = vsub.f32 1.0, %v1727
  %v1744 = vsub.f32 1.0, %v1728
  %v1745 = vsub.f32 1.0, %v1729
  %v1746 = vsub.f32 1.0, %v1730
  %v1747 = vsub.f32 1.0, %v1731
  %v1748 = vsub.f32 1.0, %v1732
  %v1749 = vsub.f32 1.0, %v1733
  %v1750 = vsub.f32 1.0, %v1734
  %v1751 = vmul.f32 %v1415, %v1735
  %v1752 = vmul.f32 %v1416, %v1736
  %v1753 = vmul.f32 %v1417, %v1737
  %v1754 = vmul.f32 %v1418, %v1738
  %v1755 = vmul.f32 %v1419, %v1739
  %v1756 = vmul.f32 %v1420, %v1740
  %v1757 = vmul.f32 %v1421, %v1741
  %v1758 = vmul.f32 %v1422, %v1742
  %v1759 = vmul.f32 %v1423, %v1743
  %v1760 = vmul.f32 %v1424, %v1744
  %v1761 = vmul.f32 %v1425, %v1745
  %v1762 = vmul.f32 %v1426, %v1746
  %v1763 = vmul.f32 %v1427, %v1747
  %v1764 = vmul.f32 %v1428, %v1748
  %v1765 = vmul.f32 %v1429, %v1749
  %v1766 = vmul.f32 %v1430, %v1750
  %v1767 = vadd.f32 %v1751, 1.0
  %v1768 = vadd.f32 %v1752, 1.0
  %v1769 = vadd.f32 %v1753, 1.0
  %v1770 = vadd.f32 %v1754, 1.0
  %v1771 = vadd.f32 %v1755, 1.0
  %v1772 = vadd.f32 %v1756, 1.0
  %v1773 = vadd.f32 %v1757, 1.0
  %v1774 = vadd.f32 %v1758, 1.0
  %v1775 = vadd.f32 %v1759, 1.0
  %v1776 = vadd.f32 %v1760, 1.0
  %v1777 = vadd.f32 %v1761, 1.0
  %v1778 = vadd.f32 %v1762, 1.0
  %v1779 = vadd.f32 %v1763, 1.0
  %v1780 = vadd.f32 %v1764, 1.0
  %v1781 = vadd.f32 %v1765, 1.0
  %v1782 = vadd.f32 %v1766, 1.0
  %v1783 = vmul.f32 %v1367, %v1767
  %v1784 = vmul.f32 %v1368, %v1768
  %v1785 = vmul.f32 %v1369, %v1769
  %v1786 = vmul.f32 %v1370, %v1770
  %v1787 = vmul.f32 %v1371, %v1771
  %v1788 = vmul.f32 %v1372, %v1772
  %v1789 = vmul.f32 %v1373, %v1773
  %v1790 = vmul.f32 %v1374, %v1774
  %v1791 = vmul.f32 %v1375, %v1775
  %v1792 = vmul.f32 %v1376, %v1776
  %v1793 = vmul.f32 %v1377, %v1777
  %v1794 = vmul.f32 %v1378, %v1778
  %v1795 = vmul.f32 %v1379, %v1779
  %v1796 = vmul.f32 %v1380, %v1780
  %v1797 = vmul.f32 %v1381, %v1781
  %v1798 = vmul.f32 %v1382, %v1782
  %v1799 = vld [vmem:[#allocation4] sm:$0xff]
  %v1800 = vld [vmem:[#allocation4 + $0x8] sm:$0xff]
  %v1801 = vld [vmem:[#allocation4 + $0x10] sm:$0xff]
  %v1802 = vld [vmem:[#allocation4 + $0x18] sm:$0xff]
  %v1803 = vpack.c.bf16 %v1791, %v1783
  %v1804 = vpack.c.bf16 %v1792, %v1784
  %v1805 = vpack.c.bf16 %v1793, %v1785
  %v1806 = vpack.c.bf16 %v1794, %v1786
  %v1807 = vpack.c.bf16 %v1795, %v1787
  %v1808 = vpack.c.bf16 %v1796, %v1788
  %v1809 = vpack.c.bf16 %v1797, %v1789
  %v1810 = vpack.c.bf16 %v1798, %v1790
  %v1811 = vld [vmem:[%s8] sm:$0xff]
  %v1812 = vld [vmem:[%s8 + $0x8] sm:$0xff]
  %v1813 = vld [vmem:[%s8 + $0x10] sm:$0xff]
  %v1814 = vld [vmem:[%s8 + $0x18] sm:$0xff]
  %v1815 = vld [vmem:[%s8 + $0x20] sm:$0xff]
  %v1816 = vld [vmem:[%s8 + $0x28] sm:$0xff]
  %v1817 = vld [vmem:[%s8 + $0x30] sm:$0xff]
  %v1818 = vld [vmem:[%s8 + $0x38] sm:$0xff]
  %v1819 = vld [vmem:[%s8 + $0x40] sm:$0xff]
  %v1820 = vld [vmem:[%s8 + $0x48] sm:$0xff]
  %v1821 = vld [vmem:[%s8 + $0x50] sm:$0xff]
  %v1822 = vld [vmem:[%s8 + $0x58] sm:$0xff]
  %v1823 = vld [vmem:[%s8 + $0x60] sm:$0xff]
  %v1824 = vld [vmem:[%s8 + $0x68] sm:$0xff]
  %v1825 = vld [vmem:[%s8 + $0x70] sm:$0xff]
  %v1826 = vld [vmem:[%s8 + $0x78] sm:$0xff]
  %v1827 = vld [vmem:[%s8 + $0x80] sm:$0xff]
  %v1828 = vld [vmem:[%s8 + $0x88] sm:$0xff]
  %v1829 = vld [vmem:[%s8 + $0x90] sm:$0xff]
  %v1830 = vld [vmem:[%s8 + $0x98] sm:$0xff]
  %v1831 = vld [vmem:[%s8 + $0xa0] sm:$0xff]
  %v1832 = vld [vmem:[%s8 + $0xa8] sm:$0xff]
  %v1833 = vld [vmem:[%s8 + $0xb0] sm:$0xff]
  %v1834 = vld [vmem:[%s8 + $0xb8] sm:$0xff]
  %v1835 = vld [vmem:[%s8 + $0xc0] sm:$0xff]
  %v1836 = vld [vmem:[%s8 + $0xc8] sm:$0xff]
  %v1837 = vld [vmem:[%s8 + $0xd0] sm:$0xff]
  %v1838 = vld [vmem:[%s8 + $0xd8] sm:$0xff]
  %v1839 = vld [vmem:[%s8 + $0xe0] sm:$0xff]
  %v1840 = vld [vmem:[%s8 + $0xe8] sm:$0xff]
  %v1841 = vld [vmem:[%s8 + $0xf0] sm:$0xff]
  %v1842 = vld [vmem:[%s8 + $0xf8] sm:$0xff]
  %v1843 = vld [vmem:[%s8 + $0x100] sm:$0xff]
  %v1844 = vld [vmem:[%s8 + $0x108] sm:$0xff]
  %v1845 = vld [vmem:[%s8 + $0x110] sm:$0xff]
  %v1846 = vld [vmem:[%s8 + $0x118] sm:$0xff]
  %v1847 = vld [vmem:[%s8 + $0x120] sm:$0xff]
  %v1848 = vld [vmem:[%s8 + $0x128] sm:$0xff]
  %v1849 = vld [vmem:[%s8 + $0x130] sm:$0xff]
  %v1850 = vld [vmem:[%s8 + $0x138] sm:$0xff]
  %v1851 = vld [vmem:[%s8 + $0x140] sm:$0xff]
  %v1852 = vld [vmem:[%s8 + $0x148] sm:$0xff]
  %v1853 = vld [vmem:[%s8 + $0x150] sm:$0xff]
  %v1854 = vld [vmem:[%s8 + $0x158] sm:$0xff]
  %v1855 = vld [vmem:[%s8 + $0x160] sm:$0xff]
  %v1856 = vld [vmem:[%s8 + $0x168] sm:$0xff]
  %v1857 = vld [vmem:[%s8 + $0x170] sm:$0xff]
  %v1858 = vld [vmem:[%s8 + $0x178] sm:$0xff]
  %v1859 = vld [vmem:[%s8 + $0x180] sm:$0xff]
  %v1860 = vld [vmem:[%s8 + $0x188] sm:$0xff]
  %v1861 = vld [vmem:[%s8 + $0x190] sm:$0xff]
  %v1862 = vld [vmem:[%s8 + $0x198] sm:$0xff]
  %v1863 = vld [vmem:[%s8 + $0x1a0] sm:$0xff]
  %v1864 = vld [vmem:[%s8 + $0x1a8] sm:$0xff]
  %v1865 = vld [vmem:[%s8 + $0x1b0] sm:$0xff]
  %v1866 = vld [vmem:[%s8 + $0x1b8] sm:$0xff]
  %v1867 = vld [vmem:[%s8 + $0x1c0] sm:$0xff]
  %v1868 = vld [vmem:[%s8 + $0x1c8] sm:$0xff]
  %v1869 = vld [vmem:[%s8 + $0x1d0] sm:$0xff]
  %v1870 = vld [vmem:[%s8 + $0x1d8] sm:$0xff]
  %v1871 = vld [vmem:[%s8 + $0x1e0] sm:$0xff]
  %v1872 = vld [vmem:[%s8 + $0x1e8] sm:$0xff]
  %v1873 = vld [vmem:[%s8 + $0x1f0] sm:$0xff]
  %v1874 = vld [vmem:[%s8 + $0x1f8] sm:$0xff]
  %v1875 = vld [vmem:[%s8 + $0x200] sm:$0xff]
  %v1876 = vld [vmem:[%s8 + $0x208] sm:$0xff]
  %v1877 = vld [vmem:[%s8 + $0x210] sm:$0xff]
  %v1878 = vld [vmem:[%s8 + $0x218] sm:$0xff]
  %v1879 = vld [vmem:[%s8 + $0x220] sm:$0xff]
  %v1880 = vld [vmem:[%s8 + $0x228] sm:$0xff]
  %v1881 = vld [vmem:[%s8 + $0x230] sm:$0xff]
  %v1882 = vld [vmem:[%s8 + $0x238] sm:$0xff]
  %v1883 = vld [vmem:[%s8 + $0x240] sm:$0xff]
  %v1884 = vld [vmem:[%s8 + $0x248] sm:$0xff]
  %v1885 = vld [vmem:[%s8 + $0x250] sm:$0xff]
  %v1886 = vld [vmem:[%s8 + $0x258] sm:$0xff]
  %v1887 = vld [vmem:[%s8 + $0x260] sm:$0xff]
  %v1888 = vld [vmem:[%s8 + $0x268] sm:$0xff]
  %v1889 = vld [vmem:[%s8 + $0x270] sm:$0xff]
  %v1890 = vld [vmem:[%s8 + $0x278] sm:$0xff]
  %v1891 = vld [vmem:[%s8 + $0x280] sm:$0xff]
  %v1892 = vld [vmem:[%s8 + $0x288] sm:$0xff]
  %v1893 = vld [vmem:[%s8 + $0x290] sm:$0xff]
  %v1894 = vld [vmem:[%s8 + $0x298] sm:$0xff]
  %v1895 = vld [vmem:[%s8 + $0x2a0] sm:$0xff]
  %v1896 = vld [vmem:[%s8 + $0x2a8] sm:$0xff]
  %v1897 = vld [vmem:[%s8 + $0x2b0] sm:$0xff]
  %v1898 = vld [vmem:[%s8 + $0x2b8] sm:$0xff]
  %v1899 = vld [vmem:[%s8 + $0x2c0] sm:$0xff]
  %v1900 = vld [vmem:[%s8 + $0x2c8] sm:$0xff]
  %v1901 = vld [vmem:[%s8 + $0x2d0] sm:$0xff]
  %v1902 = vld [vmem:[%s8 + $0x2d8] sm:$0xff]
  %v1903 = vld [vmem:[%s8 + $0x2e0] sm:$0xff]
  %v1904 = vld [vmem:[%s8 + $0x2e8] sm:$0xff]
  %v1905 = vld [vmem:[%s8 + $0x2f0] sm:$0xff]
  %v1906 = vld [vmem:[%s8 + $0x2f8] sm:$0xff]
  %v1907 = vld [vmem:[%s8 + $0x300] sm:$0xff]
  %v1908 = vld [vmem:[%s8 + $0x308] sm:$0xff]
  %v1909 = vld [vmem:[%s8 + $0x310] sm:$0xff]
  %v1910 = vld [vmem:[%s8 + $0x318] sm:$0xff]
  %v1911 = vld [vmem:[%s8 + $0x320] sm:$0xff]
  %v1912 = vld [vmem:[%s8 + $0x328] sm:$0xff]
  %v1913 = vld [vmem:[%s8 + $0x330] sm:$0xff]
  %v1914 = vld [vmem:[%s8 + $0x338] sm:$0xff]
  %v1915 = vld [vmem:[%s8 + $0x340] sm:$0xff]
  %v1916 = vld [vmem:[%s8 + $0x348] sm:$0xff]
  %v1917 = vld [vmem:[%s8 + $0x350] sm:$0xff]
  %v1918 = vld [vmem:[%s8 + $0x358] sm:$0xff]
  %v1919 = vld [vmem:[%s8 + $0x360] sm:$0xff]
  %v1920 = vld [vmem:[%s8 + $0x368] sm:$0xff]
  %v1921 = vld [vmem:[%s8 + $0x370] sm:$0xff]
  %v1922 = vld [vmem:[%s8 + $0x378] sm:$0xff]
  %v1923 = vld [vmem:[%s8 + $0x380] sm:$0xff]
  %v1924 = vld [vmem:[%s8 + $0x388] sm:$0xff]
  %v1925 = vld [vmem:[%s8 + $0x390] sm:$0xff]
  %v1926 = vld [vmem:[%s8 + $0x398] sm:$0xff]
  %v1927 = vld [vmem:[%s8 + $0x3a0] sm:$0xff]
  %v1928 = vld [vmem:[%s8 + $0x3a8] sm:$0xff]
  %v1929 = vld [vmem:[%s8 + $0x3b0] sm:$0xff]
  %v1930 = vld [vmem:[%s8 + $0x3b8] sm:$0xff]
  %v1931 = vld [vmem:[%s8 + $0x3c0] sm:$0xff]
  %v1932 = vld [vmem:[%s8 + $0x3c8] sm:$0xff]
  %v1933 = vld [vmem:[%s8 + $0x3d0] sm:$0xff]
  %v1934 = vld [vmem:[%s8 + $0x3d8] sm:$0xff]
  %v1935 = vld [vmem:[%s8 + $0x3e0] sm:$0xff]
  %v1936 = vld [vmem:[%s8 + $0x3e8] sm:$0xff]
  %v1937 = vld [vmem:[%s8 + $0x3f0] sm:$0xff]
  %v1938 = vld [vmem:[%s8 + $0x3f8] sm:$0xff]
  %v2067 = vunpack.c.l.b16 %v1811
  %v2068 = vunpack.c.h.b16 %v1811
  %v2069 = vunpack.c.l.b16 %v1812
  %v2070 = vunpack.c.h.b16 %v1812
  %v2071 = vunpack.c.l.b16 %v1813
  %v2072 = vunpack.c.h.b16 %v1813
  %v2073 = vunpack.c.l.b16 %v1814
  %v2074 = vunpack.c.h.b16 %v1814
  %v2075 = vunpack.c.l.b16 %v1815
  %v2076 = vunpack.c.h.b16 %v1815
  %v2077 = vunpack.c.l.b16 %v1816
  %v2078 = vunpack.c.h.b16 %v1816
  %v2079 = vunpack.c.l.b16 %v1817
  %v2080 = vunpack.c.h.b16 %v1817
  %v2081 = vunpack.c.l.b16 %v1818
  %v2082 = vunpack.c.h.b16 %v1818
  %v2083 = vunpack.c.l.b16 %v1819
  %v2084 = vunpack.c.h.b16 %v1819
  %v2085 = vunpack.c.l.b16 %v1820
  %v2086 = vunpack.c.h.b16 %v1820
  %v2087 = vunpack.c.l.b16 %v1821
  %v2088 = vunpack.c.h.b16 %v1821
  %v2089 = vunpack.c.l.b16 %v1822
  %v2090 = vunpack.c.h.b16 %v1822
  %v2091 = vunpack.c.l.b16 %v1823
  %v2092 = vunpack.c.h.b16 %v1823
  %v2093 = vunpack.c.l.b16 %v1824
  %v2094 = vunpack.c.h.b16 %v1824
  %v2095 = vunpack.c.l.b16 %v1825
  %v2096 = vunpack.c.h.b16 %v1825
  %v2097 = vunpack.c.l.b16 %v1826
  %v2098 = vunpack.c.h.b16 %v1826
  %v2099 = vunpack.c.l.b16 %v1827
  %v2100 = vunpack.c.h.b16 %v1827
  %v2101 = vunpack.c.l.b16 %v1828
  %v2102 = vunpack.c.h.b16 %v1828
  %v2103 = vunpack.c.l.b16 %v1829
  %v2104 = vunpack.c.h.b16 %v1829
  %v2105 = vunpack.c.l.b16 %v1830
  %v2106 = vunpack.c.h.b16 %v1830
  %v2107 = vunpack.c.l.b16 %v1831
  %v2108 = vunpack.c.h.b16 %v1831
  %v2109 = vunpack.c.l.b16 %v1832
  %v2110 = vunpack.c.h.b16 %v1832
  %v2111 = vunpack.c.l.b16 %v1833
  %v2112 = vunpack.c.h.b16 %v1833
  %v2113 = vunpack.c.l.b16 %v1834
  %v2114 = vunpack.c.h.b16 %v1834
  %v2115 = vunpack.c.l.b16 %v1835
  %v2116 = vunpack.c.h.b16 %v1835
  %v2117 = vunpack.c.l.b16 %v1836
  %v2118 = vunpack.c.h.b16 %v1836
  %v2119 = vunpack.c.l.b16 %v1837
  %v2120 = vunpack.c.h.b16 %v1837
  %v2121 = vunpack.c.l.b16 %v1838
  %v2122 = vunpack.c.h.b16 %v1838
  %v2123 = vunpack.c.l.b16 %v1839
  %v2124 = vunpack.c.h.b16 %v1839
  %v2125 = vunpack.c.l.b16 %v1840
  %v2126 = vunpack.c.h.b16 %v1840
  %v2127 = vunpack.c.l.b16 %v1841
  %v2128 = vunpack.c.h.b16 %v1841
  %v2129 = vunpack.c.l.b16 %v1842
  %v2130 = vunpack.c.h.b16 %v1842
  %v2131 = vunpack.c.l.b16 %v1843
  %v2132 = vunpack.c.h.b16 %v1843
  %v2133 = vunpack.c.l.b16 %v1844
  %v2134 = vunpack.c.h.b16 %v1844
  %v2135 = vunpack.c.l.b16 %v1845
  %v2136 = vunpack.c.h.b16 %v1845
  %v2137 = vunpack.c.l.b16 %v1846
  %v2138 = vunpack.c.h.b16 %v1846
  %v2139 = vunpack.c.l.b16 %v1847
  %v2140 = vunpack.c.h.b16 %v1847
  %v2141 = vunpack.c.l.b16 %v1848
  %v2142 = vunpack.c.h.b16 %v1848
  %v2143 = vunpack.c.l.b16 %v1849
  %v2144 = vunpack.c.h.b16 %v1849
  %v2145 = vunpack.c.l.b16 %v1850
  %v2146 = vunpack.c.h.b16 %v1850
  %v2147 = vunpack.c.l.b16 %v1851
  %v2148 = vunpack.c.h.b16 %v1851
  %v2149 = vunpack.c.l.b16 %v1852
  %v2150 = vunpack.c.h.b16 %v1852
  %v2151 = vunpack.c.l.b16 %v1853
  %v2152 = vunpack.c.h.b16 %v1853
  %v2153 = vunpack.c.l.b16 %v1854
  %v2154 = vunpack.c.h.b16 %v1854
  %v2155 = vunpack.c.l.b16 %v1855
  %v2156 = vunpack.c.h.b16 %v1855
  %v2157 = vunpack.c.l.b16 %v1856
  %v2158 = vunpack.c.h.b16 %v1856
  %v2159 = vunpack.c.l.b16 %v1857
  %v2160 = vunpack.c.h.b16 %v1857
  %v2161 = vunpack.c.l.b16 %v1858
  %v2162 = vunpack.c.h.b16 %v1858
  %v2163 = vunpack.c.l.b16 %v1859
  %v2164 = vunpack.c.h.b16 %v1859
  %v2165 = vunpack.c.l.b16 %v1860
  %v2166 = vunpack.c.h.b16 %v1860
  %v2167 = vunpack.c.l.b16 %v1861
  %v2168 = vunpack.c.h.b16 %v1861
  %v2169 = vunpack.c.l.b16 %v1862
  %v2170 = vunpack.c.h.b16 %v1862
  %v2171 = vunpack.c.l.b16 %v1863
  %v2172 = vunpack.c.h.b16 %v1863
  %v2173 = vunpack.c.l.b16 %v1864
  %v2174 = vunpack.c.h.b16 %v1864
  %v2175 = vunpack.c.l.b16 %v1865
  %v2176 = vunpack.c.h.b16 %v1865
  %v2177 = vunpack.c.l.b16 %v1866
  %v2178 = vunpack.c.h.b16 %v1866
  %v2179 = vunpack.c.l.b16 %v1867
  %v2180 = vunpack.c.h.b16 %v1867
  %v2181 = vunpack.c.l.b16 %v1868
  %v2182 = vunpack.c.h.b16 %v1868
  %v2183 = vunpack.c.l.b16 %v1869
  %v2184 = vunpack.c.h.b16 %v1869
  %v2185 = vunpack.c.l.b16 %v1870
  %v2186 = vunpack.c.h.b16 %v1870
  %v2187 = vunpack.c.l.b16 %v1871
  %v2188 = vunpack.c.h.b16 %v1871
  %v2189 = vunpack.c.l.b16 %v1872
  %v2190 = vunpack.c.h.b16 %v1872
  %v2191 = vunpack.c.l.b16 %v1873
  %v2192 = vunpack.c.h.b16 %v1873
  %v2193 = vunpack.c.l.b16 %v1874
  %v2194 = vunpack.c.h.b16 %v1874
  %v2195 = vunpack.c.l.b16 %v1875
  %v2196 = vunpack.c.h.b16 %v1875
  %v2197 = vunpack.c.l.b16 %v1876
  %v2198 = vunpack.c.h.b16 %v1876
  %v2199 = vunpack.c.l.b16 %v1877
  %v2200 = vunpack.c.h.b16 %v1877
  %v2201 = vunpack.c.l.b16 %v1878
  %v2202 = vunpack.c.h.b16 %v1878
  %v2203 = vunpack.c.l.b16 %v1879
  %v2204 = vunpack.c.h.b16 %v1879
  %v2205 = vunpack.c.l.b16 %v1880
  %v2206 = vunpack.c.h.b16 %v1880
  %v2207 = vunpack.c.l.b16 %v1881
  %v2208 = vunpack.c.h.b16 %v1881
  %v2209 = vunpack.c.l.b16 %v1882
  %v2210 = vunpack.c.h.b16 %v1882
  %v2211 = vunpack.c.l.b16 %v1883
  %v2212 = vunpack.c.h.b16 %v1883
  %v2213 = vunpack.c.l.b16 %v1884
  %v2214 = vunpack.c.h.b16 %v1884
  %v2215 = vunpack.c.l.b16 %v1885
  %v2216 = vunpack.c.h.b16 %v1885
  %v2217 = vunpack.c.l.b16 %v1886
  %v2218 = vunpack.c.h.b16 %v1886
  %v2219 = vunpack.c.l.b16 %v1887
  %v2220 = vunpack.c.h.b16 %v1887
  %v2221 = vunpack.c.l.b16 %v1888
  %v2222 = vunpack.c.h.b16 %v1888
  %v2223 = vunpack.c.l.b16 %v1889
  %v2224 = vunpack.c.h.b16 %v1889
  %v2225 = vunpack.c.l.b16 %v1890
  %v2226 = vunpack.c.h.b16 %v1890
  %v2227 = vunpack.c.l.b16 %v1891
  %v2228 = vunpack.c.h.b16 %v1891
  %v2229 = vunpack.c.l.b16 %v1892
  %v2230 = vunpack.c.h.b16 %v1892
  %v2231 = vunpack.c.l.b16 %v1893
  %v2232 = vunpack.c.h.b16 %v1893
  %v2233 = vunpack.c.l.b16 %v1894
  %v2234 = vunpack.c.h.b16 %v1894
  %v2235 = vunpack.c.l.b16 %v1895
  %v2236 = vunpack.c.h.b16 %v1895
  %v2237 = vunpack.c.l.b16 %v1896
  %v2238 = vunpack.c.h.b16 %v1896
  %v2239 = vunpack.c.l.b16 %v1897
  %v2240 = vunpack.c.h.b16 %v1897
  %v2241 = vunpack.c.l.b16 %v1898
  %v2242 = vunpack.c.h.b16 %v1898
  %v2243 = vunpack.c.l.b16 %v1899
  %v2244 = vunpack.c.h.b16 %v1899
  %v2245 = vunpack.c.l.b16 %v1900
  %v2246 = vunpack.c.h.b16 %v1900
  %v2247 = vunpack.c.l.b16 %v1901
  %v2248 = vunpack.c.h.b16 %v1901
  %v2249 = vunpack.c.l.b16 %v1902
  %v2250 = vunpack.c.h.b16 %v1902
  %v2251 = vunpack.c.l.b16 %v1903
  %v2252 = vunpack.c.h.b16 %v1903
  %v2253 = vunpack.c.l.b16 %v1904
  %v2254 = vunpack.c.h.b16 %v1904
  %v2255 = vunpack.c.l.b16 %v1905
  %v2256 = vunpack.c.h.b16 %v1905
  %v2257 = vunpack.c.l.b16 %v1906
  %v2258 = vunpack.c.h.b16 %v1906
  %v2259 = vunpack.c.l.b16 %v1907
  %v2260 = vunpack.c.h.b16 %v1907
  %v2261 = vunpack.c.l.b16 %v1908
  %v2262 = vunpack.c.h.b16 %v1908
  %v2263 = vunpack.c.l.b16 %v1909
  %v2264 = vunpack.c.h.b16 %v1909
  %v2265 = vunpack.c.l.b16 %v1910
  %v2266 = vunpack.c.h.b16 %v1910
  %v2267 = vunpack.c.l.b16 %v1911
  %v2268 = vunpack.c.h.b16 %v1911
  %v2269 = vunpack.c.l.b16 %v1912
  %v2270 = vunpack.c.h.b16 %v1912
  %v2271 = vunpack.c.l.b16 %v1913
  %v2272 = vunpack.c.h.b16 %v1913
  %v2273 = vunpack.c.l.b16 %v1914
  %v2274 = vunpack.c.h.b16 %v1914
  %v2275 = vunpack.c.l.b16 %v1915
  %v2276 = vunpack.c.h.b16 %v1915
  %v2277 = vunpack.c.l.b16 %v1916
  %v2278 = vunpack.c.h.b16 %v1916
  %v2279 = vunpack.c.l.b16 %v1917
  %v2280 = vunpack.c.h.b16 %v1917
  %v2281 = vunpack.c.l.b16 %v1918
  %v2282 = vunpack.c.h.b16 %v1918
  %v2283 = vunpack.c.l.b16 %v1919
  %v2284 = vunpack.c.h.b16 %v1919
  %v2285 = vunpack.c.l.b16 %v1920
  %v2286 = vunpack.c.h.b16 %v1920
  %v2287 = vunpack.c.l.b16 %v1921
  %v2288 = vunpack.c.h.b16 %v1921
  %v2289 = vunpack.c.l.b16 %v1922
  %v2290 = vunpack.c.h.b16 %v1922
  %v2291 = vunpack.c.l.b16 %v1923
  %v2292 = vunpack.c.h.b16 %v1923
  %v2293 = vunpack.c.l.b16 %v1924
  %v2294 = vunpack.c.h.b16 %v1924
  %v2295 = vunpack.c.l.b16 %v1925
  %v2296 = vunpack.c.h.b16 %v1925
  %v2297 = vunpack.c.l.b16 %v1926
  %v2298 = vunpack.c.h.b16 %v1926
  %v2299 = vunpack.c.l.b16 %v1927
  %v2300 = vunpack.c.h.b16 %v1927
  %v2301 = vunpack.c.l.b16 %v1928
  %v2302 = vunpack.c.h.b16 %v1928
  %v2303 = vunpack.c.l.b16 %v1929
  %v2304 = vunpack.c.h.b16 %v1929
  %v2305 = vunpack.c.l.b16 %v1930
  %v2306 = vunpack.c.h.b16 %v1930
  %v2307 = vunpack.c.l.b16 %v1931
  %v2308 = vunpack.c.h.b16 %v1931
  %v2309 = vunpack.c.l.b16 %v1932
  %v2310 = vunpack.c.h.b16 %v1932
  %v2311 = vunpack.c.l.b16 %v1933
  %v2312 = vunpack.c.h.b16 %v1933
  %v2313 = vunpack.c.l.b16 %v1934
  %v2314 = vunpack.c.h.b16 %v1934
  %v2315 = vunpack.c.l.b16 %v1935
  %v2316 = vunpack.c.h.b16 %v1935
  %v2317 = vunpack.c.l.b16 %v1936
  %v2318 = vunpack.c.h.b16 %v1936
  %v2319 = vunpack.c.l.b16 %v1937
  %v2320 = vunpack.c.h.b16 %v1937
  %v2321 = vunpack.c.l.b16 %v1938
  %v2322 = vunpack.c.h.b16 %v1938
  %v2323 = vpack.c.b16 %v2069, %v2067
  %v2324 = vpack.c.b16 %v2070, %v2068
  %v2325 = vpack.c.b16 %v2073, %v2071
  %v2326 = vpack.c.b16 %v2074, %v2072
  %v2327 = vpack.c.b16 %v2077, %v2075
  %v2328 = vpack.c.b16 %v2078, %v2076
  %v2329 = vpack.c.b16 %v2081, %v2079
  %v2330 = vpack.c.b16 %v2082, %v2080
  %v2331 = vpack.c.b16 %v2085, %v2083
  %v2332 = vpack.c.b16 %v2086, %v2084
  %v2333 = vpack.c.b16 %v2089, %v2087
  %v2334 = vpack.c.b16 %v2090, %v2088
  %v2335 = vpack.c.b16 %v2093, %v2091
  %v2336 = vpack.c.b16 %v2094, %v2092
  %v2337 = vpack.c.b16 %v2097, %v2095
  %v2338 = vpack.c.b16 %v2098, %v2096
  %v2339 = vpack.c.b16 %v2101, %v2099
  %v2340 = vpack.c.b16 %v2102, %v2100
  %v2341 = vpack.c.b16 %v2105, %v2103
  %v2342 = vpack.c.b16 %v2106, %v2104
  %v2343 = vpack.c.b16 %v2109, %v2107
  %v2344 = vpack.c.b16 %v2110, %v2108
  %v2345 = vpack.c.b16 %v2113, %v2111
  %v2346 = vpack.c.b16 %v2114, %v2112
  %v2347 = vpack.c.b16 %v2117, %v2115
  %v2348 = vpack.c.b16 %v2118, %v2116
  %v2349 = vpack.c.b16 %v2121, %v2119
  %v2350 = vpack.c.b16 %v2122, %v2120
  %v2351 = vpack.c.b16 %v2125, %v2123
  %v2352 = vpack.c.b16 %v2126, %v2124
  %v2353 = vpack.c.b16 %v2129, %v2127
  %v2354 = vpack.c.b16 %v2130, %v2128
  %v2355 = vpack.c.b16 %v2133, %v2131
  %v2356 = vpack.c.b16 %v2134, %v2132
  %v2357 = vpack.c.b16 %v2137, %v2135
  %v2358 = vpack.c.b16 %v2138, %v2136
  %v2359 = vpack.c.b16 %v2141, %v2139
  %v2360 = vpack.c.b16 %v2142, %v2140
  %v2361 = vpack.c.b16 %v2145, %v2143
  %v2362 = vpack.c.b16 %v2146, %v2144
  %v2363 = vpack.c.b16 %v2149, %v2147
  %v2364 = vpack.c.b16 %v2150, %v2148
  %v2365 = vpack.c.b16 %v2153, %v2151
  %v2366 = vpack.c.b16 %v2154, %v2152
  %v2367 = vpack.c.b16 %v2157, %v2155
  %v2368 = vpack.c.b16 %v2158, %v2156
  %v2369 = vpack.c.b16 %v2161, %v2159
  %v2370 = vpack.c.b16 %v2162, %v2160
  %v2371 = vpack.c.b16 %v2165, %v2163
  %v2372 = vpack.c.b16 %v2166, %v2164
  %v2373 = vpack.c.b16 %v2169, %v2167
  %v2374 = vpack.c.b16 %v2170, %v2168
  %v2375 = vpack.c.b16 %v2173, %v2171
  %v2376 = vpack.c.b16 %v2174, %v2172
  %v2377 = vpack.c.b16 %v2177, %v2175
  %v2378 = vpack.c.b16 %v2178, %v2176
  %v2379 = vpack.c.b16 %v2181, %v2179
  %v2380 = vpack.c.b16 %v2182, %v2180
  %v2381 = vpack.c.b16 %v2185, %v2183
  %v2382 = vpack.c.b16 %v2186, %v2184
  %v2383 = vpack.c.b16 %v2189, %v2187
  %v2384 = vpack.c.b16 %v2190, %v2188
  %v2385 = vpack.c.b16 %v2193, %v2191
  %v2386 = vpack.c.b16 %v2194, %v2192
  %v2387 = vpack.c.b16 %v2197, %v2195
  %v2388 = vpack.c.b16 %v2198, %v2196
  %v2389 = vpack.c.b16 %v2201, %v2199
  %v2390 = vpack.c.b16 %v2202, %v2200
  %v2391 = vpack.c.b16 %v2205, %v2203
  %v2392 = vpack.c.b16 %v2206, %v2204
  %v2393 = vpack.c.b16 %v2209, %v2207
  %v2394 = vpack.c.b16 %v2210, %v2208
  %v2395 = vpack.c.b16 %v2213, %v2211
  %v2396 = vpack.c.b16 %v2214, %v2212
  %v2397 = vpack.c.b16 %v2217, %v2215
  %v2398 = vpack.c.b16 %v2218, %v2216
  %v2399 = vpack.c.b16 %v2221, %v2219
  %v2400 = vpack.c.b16 %v2222, %v2220
  %v2401 = vpack.c.b16 %v2225, %v2223
  %v2402 = vpack.c.b16 %v2226, %v2224
  %v2403 = vpack.c.b16 %v2229, %v2227
  %v2404 = vpack.c.b16 %v2230, %v2228
  %v2405 = vpack.c.b16 %v2233, %v2231
  %v2406 = vpack.c.b16 %v2234, %v2232
  %v2407 = vpack.c.b16 %v2237, %v2235
  %v2408 = vpack.c.b16 %v2238, %v2236
  %v2409 = vpack.c.b16 %v2241, %v2239
  %v2410 = vpack.c.b16 %v2242, %v2240
  %v2411 = vpack.c.b16 %v2245, %v2243
  %v2412 = vpack.c.b16 %v2246, %v2244
  %v2413 = vpack.c.b16 %v2249, %v2247
  %v2414 = vpack.c.b16 %v2250, %v2248
  %v2415 = vpack.c.b16 %v2253, %v2251
  %v2416 = vpack.c.b16 %v2254, %v2252
  %v2417 = vpack.c.b16 %v2257, %v2255
  %v2418 = vpack.c.b16 %v2258, %v2256
  %v2419 = vpack.c.b16 %v2261, %v2259
  %v2420 = vpack.c.b16 %v2262, %v2260
  %v2421 = vpack.c.b16 %v2265, %v2263
  %v2422 = vpack.c.b16 %v2266, %v2264
  %v2423 = vpack.c.b16 %v2269, %v2267
  %v2424 = vpack.c.b16 %v2270, %v2268
  %v2425 = vpack.c.b16 %v2273, %v2271
  %v2426 = vpack.c.b16 %v2274, %v2272
  %v2427 = vpack.c.b16 %v2277, %v2275
  %v2428 = vpack.c.b16 %v2278, %v2276
  %v2429 = vpack.c.b16 %v2281, %v2279
  %v2430 = vpack.c.b16 %v2282, %v2280
  %v2431 = vpack.c.b16 %v2285, %v2283
  %v2432 = vpack.c.b16 %v2286, %v2284
  %v2433 = vpack.c.b16 %v2289, %v2287
  %v2434 = vpack.c.b16 %v2290, %v2288
  %v2435 = vpack.c.b16 %v2293, %v2291
  %v2436 = vpack.c.b16 %v2294, %v2292
  %v2437 = vpack.c.b16 %v2297, %v2295
  %v2438 = vpack.c.b16 %v2298, %v2296
  %v2439 = vpack.c.b16 %v2301, %v2299
  %v2440 = vpack.c.b16 %v2302, %v2300
  %v2441 = vpack.c.b16 %v2305, %v2303
  %v2442 = vpack.c.b16 %v2306, %v2304
  %v2443 = vpack.c.b16 %v2309, %v2307
  %v2444 = vpack.c.b16 %v2310, %v2308
  %v2445 = vpack.c.b16 %v2313, %v2311
  %v2446 = vpack.c.b16 %v2314, %v2312
  %v2447 = vpack.c.b16 %v2317, %v2315
  %v2448 = vpack.c.b16 %v2318, %v2316
  %v2449 = vpack.c.b16 %v2321, %v2319
  %v2450 = vpack.c.b16 %v2322, %v2320
  %2579 = vmatprep.subr.bf16.mxu0 %v2324
  %2580 = vmatpush1.bf16.msra.mxu0 %v2323
  %2581 = vmatprep.subr.bf16.mxu0 %v2326
  %2582 = vmatpush1.bf16.msra.mxu0 %v2325
  %2583 = vmatprep.subr.bf16.mxu0 %v2328
  %2584 = vmatpush1.bf16.msra.mxu0 %v2327
  %2585 = vmatprep.subr.bf16.mxu0 %v2330
  %2586 = vmatpush1.bf16.msra.mxu0 %v2329
  %2587 = vmatprep.subr.bf16.mxu0 %v2332
  %2588 = vmatpush1.bf16.msra.mxu0 %v2331
  %2589 = vmatprep.subr.bf16.mxu0 %v2334
  %2590 = vmatpush1.bf16.msra.mxu0 %v2333
  %2591 = vmatprep.subr.bf16.mxu0 %v2336
  %2592 = vmatpush1.bf16.msra.mxu0 %v2335
  %2593 = vmatprep.subr.bf16.mxu0 %v2338
  %2594 = vmatpush1.bf16.msra.mxu0 %v2337
  %2595 = vmatprep.subr.bf16.mxu0 %v2340
  %2596 = vmatpush1.bf16.msra.mxu0 %v2339
  %2597 = vmatprep.subr.bf16.mxu0 %v2342
  %2598 = vmatpush1.bf16.msra.mxu0 %v2341
  %2599 = vmatprep.subr.bf16.mxu0 %v2344
  %2600 = vmatpush1.bf16.msra.mxu0 %v2343
  %2601 = vmatprep.subr.bf16.mxu0 %v2346
  %2602 = vmatpush1.bf16.msra.mxu0 %v2345
  %2603 = vmatprep.subr.bf16.mxu0 %v2348
  %2604 = vmatpush1.bf16.msra.mxu0 %v2347
  %2605 = vmatprep.subr.bf16.mxu0 %v2350
  %2606 = vmatpush1.bf16.msra.mxu0 %v2349
  %2607 = vmatprep.subr.bf16.mxu0 %v2352
  %2608 = vmatpush1.bf16.msra.mxu0 %v2351
  %2609 = vmatprep.subr.bf16.mxu0 %v2354
  %2610 = vmatpush1.bf16.msra.mxu0 %v2353
  %2611 = vmatprep.mubr.bf16.mxu0 %v1804
  %2612 = vmatmul.mubr.bf16.gmra.mrb[0].mxu0 %v1803
  %v2613 = vpop.f32.mrb[0].mxu0
  %v2614 = vadd.f32 0.0, %v2613
  %v2615 = vpop.f32.mrb[0].mxu0
  %v2616 = vadd.f32 0.0, %v2615
  %v2617 = vpop.f32.mrb[0].mxu0
  %v2618 = vadd.f32 0.0, %v2617
  %v2619 = vpop.f32.mrb[0].mxu0
  %v2620 = vadd.f32 0.0, %v2619
  %2621 = vdwg.mxu0
  %2622 = vmatprep.subr.bf16.mxu0 %v2356
  %2623 = vmatpush1.bf16.msra.mxu0 %v2355
  %2624 = vmatprep.subr.bf16.mxu0 %v2358
  %2625 = vmatpush1.bf16.msra.mxu0 %v2357
  %2626 = vmatprep.subr.bf16.mxu0 %v2360
  %2627 = vmatpush1.bf16.msra.mxu0 %v2359
  %2628 = vmatprep.subr.bf16.mxu0 %v2362
  %2629 = vmatpush1.bf16.msra.mxu0 %v2361
  %2630 = vmatprep.subr.bf16.mxu0 %v2364
  %2631 = vmatpush1.bf16.msra.mxu0 %v2363
  %2632 = vmatprep.subr.bf16.mxu0 %v2366
  %2633 = vmatpush1.bf16.msra.mxu0 %v2365
  %2634 = vmatprep.subr.bf16.mxu0 %v2368
  %2635 = vmatpush1.bf16.msra.mxu0 %v2367
  %2636 = vmatprep.subr.bf16.mxu0 %v2370
  %2637 = vmatpush1.bf16.msra.mxu0 %v2369
  %2638 = vmatprep.subr.bf16.mxu0 %v2372
  %2639 = vmatpush1.bf16.msra.mxu0 %v2371
  %2640 = vmatprep.subr.bf16.mxu0 %v2374
  %2641 = vmatpush1.bf16.msra.mxu0 %v2373
  %2642 = vmatprep.subr.bf16.mxu0 %v2376
  %2643 = vmatpush1.bf16.msra.mxu0 %v2375
  %2644 = vmatprep.subr.bf16.mxu0 %v2378
  %2645 = vmatpush1.bf16.msra.mxu0 %v2377
  %2646 = vmatprep.subr.bf16.mxu0 %v2380
  %2647 = vmatpush1.bf16.msra.mxu0 %v2379
  %2648 = vmatprep.subr.bf16.mxu0 %v2382
  %2649 = vmatpush1.bf16.msra.mxu0 %v2381
  %2650 = vmatprep.subr.bf16.mxu0 %v2384
  %2651 = vmatpush1.bf16.msra.mxu0 %v2383
  %2652 = vmatprep.subr.bf16.mxu0 %v2386
  %2653 = vmatpush1.bf16.msra.mxu0 %v2385
  %2654 = vmatprep.mubr.bf16.mxu0 %v1806
  %2655 = vmatmul.mubr.bf16.gmra.mrb[0].mxu0 %v1805
  %v2656 = vpop.f32.mrb[0].mxu0
  %v2657 = vadd.f32 %v2614, %v2656
  %v2658 = vpop.f32.mrb[0].mxu0
  %v2659 = vadd.f32 %v2616, %v2658
  %v2660 = vpop.f32.mrb[0].mxu0
  %v2661 = vadd.f32 %v2618, %v2660
  %v2662 = vpop.f32.mrb[0].mxu0
  %v2663 = vadd.f32 %v2620, %v2662
  %2664 = vdwg.mxu0
  %2665 = vmatprep.subr.bf16.mxu0 %v2388
  %2666 = vmatpush1.bf16.msra.mxu0 %v2387
  %2667 = vmatprep.subr.bf16.mxu0 %v2390
  %2668 = vmatpush1.bf16.msra.mxu0 %v2389
  %2669 = vmatprep.subr.bf16.mxu0 %v2392
  %2670 = vmatpush1.bf16.msra.mxu0 %v2391
  %2671 = vmatprep.subr.bf16.mxu0 %v2394
  %2672 = vmatpush1.bf16.msra.mxu0 %v2393
  %2673 = vmatprep.subr.bf16.mxu0 %v2396
  %2674 = vmatpush1.bf16.msra.mxu0 %v2395
  %2675 = vmatprep.subr.bf16.mxu0 %v2398
  %2676 = vmatpush1.bf16.msra.mxu0 %v2397
  %2677 = vmatprep.subr.bf16.mxu0 %v2400
  %2678 = vmatpush1.bf16.msra.mxu0 %v2399
  %2679 = vmatprep.subr.bf16.mxu0 %v2402
  %2680 = vmatpush1.bf16.msra.mxu0 %v2401
  %2681 = vmatprep.subr.bf16.mxu0 %v2404
  %2682 = vmatpush1.bf16.msra.mxu0 %v2403
  %2683 = vmatprep.subr.bf16.mxu0 %v2406
  %2684 = vmatpush1.bf16.msra.mxu0 %v2405
  %2685 = vmatprep.subr.bf16.mxu0 %v2408
  %2686 = vmatpush1.bf16.msra.mxu0 %v2407
  %2687 = vmatprep.subr.bf16.mxu0 %v2410
  %2688 = vmatpush1.bf16.msra.mxu0 %v2409
  %2689 = vmatprep.subr.bf16.mxu0 %v2412
  %2690 = vmatpush1.bf16.msra.mxu0 %v2411
  %2691 = vmatprep.subr.bf16.mxu0 %v2414
  %2692 = vmatpush1.bf16.msra.mxu0 %v2413
  %2693 = vmatprep.subr.bf16.mxu0 %v2416
  %2694 = vmatpush1.bf16.msra.mxu0 %v2415
  %2695 = vmatprep.subr.bf16.mxu0 %v2418
  %2696 = vmatpush1.bf16.msra.mxu0 %v2417
  %2697 = vmatprep.mubr.bf16.mxu0 %v1808
  %2698 = vmatmul.mubr.bf16.gmra.mrb[0].mxu0 %v1807
  %v2699 = vpop.f32.mrb[0].mxu0
  %v2700 = vadd.f32 %v2657, %v2699
  %v2701 = vpop.f32.mrb[0].mxu0
  %v2702 = vadd.f32 %v2659, %v2701
  %v2703 = vpop.f32.mrb[0].mxu0
  %v2704 = vadd.f32 %v2661, %v2703
  %v2705 = vpop.f32.mrb[0].mxu0
  %v2706 = vadd.f32 %v2663, %v2705
  %2707 = vdwg.mxu0
  %2708 = vmatprep.subr.bf16.mxu0 %v2420
  %2709 = vmatpush1.bf16.msra.mxu0 %v2419
  %2710 = vmatprep.subr.bf16.mxu0 %v2422
  %2711 = vmatpush1.bf16.msra.mxu0 %v2421
  %2712 = vmatprep.subr.bf16.mxu0 %v2424
  %2713 = vmatpush1.bf16.msra.mxu0 %v2423
  %2714 = vmatprep.subr.bf16.mxu0 %v2426
  %2715 = vmatpush1.bf16.msra.mxu0 %v2425
  %2716 = vmatprep.subr.bf16.mxu0 %v2428
  %2717 = vmatpush1.bf16.msra.mxu0 %v2427
  %2718 = vmatprep.subr.bf16.mxu0 %v2430
  %2719 = vmatpush1.bf16.msra.mxu0 %v2429
  %2720 = vmatprep.subr.bf16.mxu0 %v2432
  %2721 = vmatpush1.bf16.msra.mxu0 %v2431
  %2722 = vmatprep.subr.bf16.mxu0 %v2434
  %2723 = vmatpush1.bf16.msra.mxu0 %v2433
  %2724 = vmatprep.subr.bf16.mxu0 %v2436
  %2725 = vmatpush1.bf16.msra.mxu0 %v2435
  %2726 = vmatprep.subr.bf16.mxu0 %v2438
  %2727 = vmatpush1.bf16.msra.mxu0 %v2437
  %2728 = vmatprep.subr.bf16.mxu0 %v2440
  %2729 = vmatpush1.bf16.msra.mxu0 %v2439
  %2730 = vmatprep.subr.bf16.mxu0 %v2442
  %2731 = vmatpush1.bf16.msra.mxu0 %v2441
  %2732 = vmatprep.subr.bf16.mxu0 %v2444
  %2733 = vmatpush1.bf16.msra.mxu0 %v2443
  %2734 = vmatprep.subr.bf16.mxu0 %v2446
  %2735 = vmatpush1.bf16.msra.mxu0 %v2445
  %2736 = vmatprep.subr.bf16.mxu0 %v2448
  %2737 = vmatpush1.bf16.msra.mxu0 %v2447
  %2738 = vmatprep.subr.bf16.mxu0 %v2450
  %2739 = vmatpush1.bf16.msra.mxu0 %v2449
  %2740 = vmatprep.mubr.bf16.mxu0 %v1810
  %2741 = vmatmul.mubr.bf16.gmra.mrb[0].mxu0 %v1809
  %v2742 = vpop.f32.mrb[0].mxu0
  %v2743 = vadd.f32 %v2700, %v2742
  %v2744 = vpop.f32.mrb[0].mxu0
  %v2745 = vadd.f32 %v2702, %v2744
  %v2746 = vpop.f32.mrb[0].mxu0
  %v2747 = vadd.f32 %v2704, %v2746
  %v2748 = vpop.f32.mrb[0].mxu0
  %v2749 = vadd.f32 %v2706, %v2748
  %2750 = vdwg.mxu0
  %v2751 = vadd.f32 %v1799, %v2743
  %v2752 = vadd.f32 %v1800, %v2745
  %v2753 = vadd.f32 %v1801, %v2747
  %v2754 = vadd.f32 %v1802, %v2749
  %2755 = vst [vmem:[#allocation4] sm:$0xff] %v2751
  %2756 = vst [vmem:[#allocation4 + $0x8] sm:$0xff] %v2752
  %2757 = vst [vmem:[#allocation4 + $0x10] sm:$0xff] %v2753
  %2758 = vst [vmem:[#allocation4 + $0x18] sm:$0xff] %v2754
  // Predicated region
  $region46: #{gpt_forward.12} parent=0 // pred_check
    %p2759 = pneg %p35
  $region47: #{gpt_forward.12} parent=0 // pred_check_branch
    %2761 = sbr.rel (%p2759) target = $region49
  $region48: #{gpt_forward.12} parent=0 // pred_region
    %v2762 = vld [vmem:[#allocation2] sm:$0xff]
    %v2763 = vld [vmem:[#allocation2 + $0x8] sm:$0xff]
    %v2764 = vld [vmem:[#allocation2 + $0x10] sm:$0xff]
    %v2765 = vld [vmem:[#allocation2 + $0x18] sm:$0xff]
    %v2766 = vld [vmem:[#allocation4] sm:$0xff]
    %v2767 = vld [vmem:[#allocation4 + $0x8] sm:$0xff]
    %v2768 = vld [vmem:[#allocation4 + $0x10] sm:$0xff]
    %v2769 = vld [vmem:[#allocation4 + $0x18] sm:$0xff]
    %v2770 = vadd.f32 %v2762, %v2766
    %v2771 = vadd.f32 %v2763, %v2767
    %v2772 = vadd.f32 %v2764, %v2768
    %v2773 = vadd.f32 %v2765, %v2769
    %v2774 = vld [vmem:[%s9] sm:$0x3]
    %v2776 = vlaneseq
    %v2777 = vshrl.u32 %v2776, 7
    %v2778 = vsub.s32 0, %v2777
    %v2779 = vrot.slane %v2774, %v2778
    %v2780 = vlaneseq
    %v2781 = vshrl.u32 %v2780, 7
    %v2782 = vsub.s32 1, %v2781
    %v2783 = vrot.slane %v2774, %v2782
    %v2786 = vadd.f32 %v2770, %v2779
    %v2787 = vadd.f32 %v2771, %v2783
    %v2788 = vadd.f32 %v2772, %v2779
    %v2789 = vadd.f32 %v2773, %v2783
    %2790 = vst [vmem:[%s10] sm:$0xff] %v2786
    %2791 = vst [vmem:[%s10 + $0x8] sm:$0xff] %v2787
    %2792 = vst [vmem:[%s10 + $0x10] sm:$0xff] %v2788
    %2793 = vst [vmem:[%s10 + $0x18] sm:$0xff] %v2789
  $region49: #{gpt_forward.12} parent=0 // pred_fallthru
    _
  // Predicated region
  $region50: #{gpt_forward.12} parent=0 // pred_check
    _
  $region51: #{gpt_forward.12} parent=0 // pred_check_branch
    %2795 = sbr.rel (0) target = $region53
  $region52: #{gpt_forward.12} parent=0 // pred_region
    _
  $region53: #{gpt_forward.12} parent=0 // pred_fallthru
    _
  // Predicated region
  $region54: #{gpt_forward.12} parent=0 // pred_check
    _
  $region55: #{gpt_forward.12} parent=0 // pred_check_branch
    %2797 = sbr.rel (0) target = $region57
  $region56: #{gpt_forward.12} parent=0 // pred_region
    _
  $region57: #{gpt_forward.12} parent=0 // pred_fallthru
    _

</llo_original>
